<compile_context>
chip_gen: v5e
topology: v5e:2x2
jax: 0.10.0
libtpu: 0.0.40
codegen_flags: <defaults>
</compile_context>

<pallas_src>
import numpy as np

import jax
import jax.numpy as jnp
from jax.experimental import pallas as pl
from jax.experimental.pallas import tpu as pltpu  # noqa: F401  (TPU backend assumed)


# ----------------------------------------------------------------------------
# Fused kernel body (built as a closure over static per-conv offsets/sizes)
# ----------------------------------------------------------------------------
def _build_kernel(block_cfgs, n_batch):
    def mish(y):
        # mish(y) = y * tanh(softplus(y)) = y * n/(n+2),  n = e^y * (e^y + 2).
        e = jnp.exp(jnp.minimum(y, 20.0))
        n = e * (e + 2.0)
        return jnp.where(y > 20.0, y, y * (n / (n + 2.0)))

    def kernel(x_ref, w_ref, b_ref, out_ref, skip_ref):
        def conv(t, c):
            wm = w_ref[c["off"]:c["off"] + c["k"], 0:c["n"]]
            bias = b_ref[c["brow"]:c["brow"] + 1, 0:c["n"]]
            y = jnp.dot(t, wm, preferred_element_type=jnp.float32,
                        precision=jax.lax.Precision.HIGHEST)
            return mish(y + bias)

        def row_in_image(rows, hout):
            return jax.lax.broadcasted_iota(jnp.int32, (rows, 1), 0) % hout

        def taps_stride1(x, hout):
            # x: (n_batch*hout, W*C). Taps ky=0/1/2 -> rows r-1 / r / r+1,
            # zero-padded at each image's top/bottom row.
            up = jnp.concatenate([x[:1], x[:-1]], axis=0)     # row r -> x[r-1]
            dn = jnp.concatenate([x[1:], x[-1:]], axis=0)     # row r -> x[r+1]
            rid = row_in_image(x.shape[0], hout)
            up = jnp.where(rid == 0, 0.0, up)
            dn = jnp.where(rid == hout - 1, 0.0, dn)
            return jnp.concatenate([up, x, dn], axis=1)

        def taps_stride2(ref, hout):
            # ref: (n_batch*hin, W*C), hin = 2*hout.  Output row r needs input
            # rows 2r-1 / 2r / 2r+1 -> two strided sublane loads + one shift.
            r_out = n_batch * hout
            mid = ref[pl.ds(0, r_out, 2), :].astype(jnp.float32)   # 2r
            dn = ref[pl.ds(1, r_out, 2), :].astype(jnp.float32)    # 2r + 1
            up = jnp.concatenate([dn[:1], dn[:-1]], axis=0)        # 2r - 1
            up = jnp.where(row_in_image(r_out, hout) == 0, 0.0, up)
            return jnp.concatenate([up, mid, dn], axis=1)

        cur = None
        skip = None
        for bi, bc in enumerate(block_cfgs):
            ho = bc["ho"]
            if bi == 0:
                if bc["stride"] == 2:
                    t1 = taps_stride2(x_ref, ho)
                else:
                    t1 = taps_stride1(x_ref[...].astype(jnp.float32), ho)
            else:
                # TODO(synk): a stride-2 block in the middle of a fused chain
                # would need a VMEM staging ref for the strided row selection;
                # all non-leading blocks here are stride 1.
                t1 = taps_stride1(cur, ho)
            d1 = conv(t1, bc["conv1"])
            t = conv(d1, bc["conv2"])
            d2 = conv(taps_stride1(t, ho), bc["conv3"])
            t = conv(d2, bc["conv4"])
            d3 = conv(taps_stride1(t, ho), bc["conv5"])
            branches = [d1, d2, d3] if bc["is_first"] else [d1, d2, d3, skip]
            cur = conv(jnp.concatenate(branches, axis=1), bc["conv6"])
            if bc["is_first"]:
                skip = cur

        out_ref[...] = cur.astype(out_ref.dtype)
        skip_ref[...] = skip.astype(skip_ref.dtype)

    return kernel


# ----------------------------------------------------------------------------
# Setup-time construction (numpy, runs once): fold BN, build matmul operands
# ----------------------------------------------------------------------------
def _fold(w, scale):
    return np.asarray(w, np.float32) * np.asarray(scale, np.float32).reshape(-1)


def _bias_row(bias, wout):
    return np.tile(np.asarray(bias, np.float32).reshape(-1), wout)


def _conv3x3_stacked(cp, hin, win, stride):
    """Stacked-tap matrix: (3*Win*Cin, Wo*Cout), taps ordered ky=0,1,2."""
    wt = _fold(cp["w"], cp["scale"])                # (3, 3, cin, cout)
    cin, cout = wt.shape[2], wt.shape[3]
    wout = (win + 2 - 3) // stride + 1
    B = np.zeros((3, win * cin, wout * cout), np.float32)
    for ky in range(3):
        for ox in range(wout):
            for kx in range(3):
                ww = stride * ox + kx - 1
                if 0 <= ww < win:
                    B[ky, ww * cin:(ww + 1) * cin, ox * cout:(ox + 1) * cout] = wt[ky, kx]
    return B.reshape(3 * win * cin, wout * cout), _bias_row(cp["bias"], wout)


def _conv1x1_mat(cp, wout):
    wt = _fold(cp["w"], cp["scale"])[0, 0]          # (cin, cout)
    return np.kron(np.eye(wout, dtype=np.float32), wt), _bias_row(cp["bias"], wout)


def prepare_selecsls_block(params, h, w, stride, is_first):
    p = params
    ho = (h + 2 - 3) // stride + 1
    wo = (w + 2 - 3) // stride + 1

    m1, b1 = _conv3x3_stacked(p["conv1"], h, w, stride)
    m2, b2 = _conv1x1_mat(p["conv2"], wo)
    m3, b3 = _conv3x3_stacked(p["conv3"], ho, wo, 1)
    m4, b4 = _conv1x1_mat(p["conv4"], wo)
    m5, b5 = _conv3x3_stacked(p["conv5"], ho, wo, 1)

    k = int(np.asarray(p["conv1"]["w"]).shape[-1])
    w6 = _fold(p["conv6"]["w"], p["conv6"]["scale"])[0, 0]   # (2k [+skip], oup)
    oup = int(w6.shape[-1])
    bounds = [0, k, k + k // 2, 2 * k]
    if not is_first:
        bounds.append(w6.shape[0])
    segs = [np.kron(np.eye(wo, dtype=np.float32), w6[a:b])
            for a, b in zip(bounds[:-1], bounds[1:])]
    m6 = np.vstack(segs)                             # matches concat([d1,d2,d3,(skip)])
    b6 = _bias_row(p["conv6"]["bias"], wo)

    return dict(is_first=is_first, stride=stride, h=h, w=w, ho=ho, wo=wo, oup=oup,
                mats=[m1, m2, m3, m4, m5, m6],
                biases=[b1, b2, b3, b4, b5, b6])


def pack_selecsls_chain(preps):
    """Pack all per-conv matrices into one weight slab + one bias slab."""
    ncol = max(m.shape[1] for prep in preps for m in prep["mats"])
    ncol = int(-(-ncol // 128) * 128)
    w_segs, b_rows, cfgs = [], [], []
    off = 0
    for prep in preps:
        bc = dict(is_first=prep["is_first"], stride=prep["stride"], ho=prep["ho"])
        for ci, (m, b) in enumerate(zip(prep["mats"], prep["biases"]), start=1):
            kk, nn = m.shape
            kk_pad = int(-(-kk // 8) * 8)
            mp = np.zeros((kk_pad, ncol), np.float32)
            mp[:kk, :nn] = m
            bp = np.zeros((ncol,), np.float32)
            bp[:nn] = b
            w_segs.append(mp)
            b_rows.append(bp)
            bc["conv%d" % ci] = dict(off=off, k=kk, n=nn, brow=len(b_rows) - 1)
            off += kk_pad
        cfgs.append(bc)
    return dict(wslab=jnp.asarray(np.concatenate(w_segs, axis=0)),
                bslab=jnp.asarray(np.stack(b_rows, axis=0)),
                cfgs=cfgs, preps=preps)


# ----------------------------------------------------------------------------
# Fused forward: one pallas_call for the whole chain of blocks
# ----------------------------------------------------------------------------
def fused_selecsls_forward(packed, x_nhwc):
    preps = packed["preps"]
    assert preps[0]["is_first"], "fused chain must start with an isFirst block"
    for prep in preps[1:]:
        assert prep["stride"] == 1, "non-leading fused blocks must be stride 1"

    n, h, w, c = x_nhwc.shape
    x2d = x_nhwc.reshape(n * h, w * c)               # lane-dense (N*H, W*C) layout
    first, last = preps[0], preps[-1]

    out, skip = pl.pallas_call(
        _build_kernel(packed["cfgs"], n),
        out_shape=(
            jax.ShapeDtypeStruct((n * last["ho"], last["wo"] * last["oup"]), x_nhwc.dtype),
            jax.ShapeDtypeStruct((n * first["ho"], first["wo"] * first["oup"]), x_nhwc.dtype),
        ),
    )(x2d, packed["wslab"], packed["bslab"])

    return (out.reshape(n, last["ho"], last["wo"], last["oup"]),
            skip.reshape(n, first["ho"], first["wo"], first["oup"]))


# ----------------------------------------------------------------------------
# Deterministic parameter init (Conv weight + folded eval-mode BatchNorm)
# ----------------------------------------------------------------------------
def init_conv_bn(key, kh, kw, cin, cout):
    kw_, kg, kb, km, kv = jax.random.split(key, 5)
    fan_in = kh * kw * cin
    w = jax.random.normal(kw_, (kh, kw, cin, cout), jnp.float32) * np.sqrt(2.0 / fan_in)
    gamma = 1.0 + 0.1 * jax.random.normal(kg, (cout,), jnp.float32)
    beta = 0.1 * jax.random.normal(kb, (cout,), jnp.float32)
    mean = 0.1 * jax.random.normal(km, (cout,), jnp.float32)
    var = 0.5 + jax.random.uniform(kv, (cout,), jnp.float32)
    scale = gamma / jnp.sqrt(var + 1e-5)
    bias = beta - mean * scale
    return dict(w=w, scale=scale.reshape(1, cout), bias=bias.reshape(1, cout))


def init_selecsls_block(key, inp, skip, k, oup, is_first):
    keys = jax.random.split(key, 6)
    return dict(
        conv1=init_conv_bn(keys[0], 3, 3, inp, k),
        conv2=init_conv_bn(keys[1], 1, 1, k, k),
        conv3=init_conv_bn(keys[2], 3, 3, k, k // 2),
        conv4=init_conv_bn(keys[3], 1, 1, k // 2, k),
        conv5=init_conv_bn(keys[4], 3, 3, k, k // 2),
        conv6=init_conv_bn(keys[5], 1, 1, 2 * k + (0 if is_first else skip), oup),
    )


# ----------------------------------------------------------------------------
# Pure-JAX reference (lax.conv at HIGHEST precision, stable tanh/softplus Mish)
# ----------------------------------------------------------------------------
def _mish_ref(y):
    sp = jnp.maximum(y, 0.0) + jnp.log1p(jnp.exp(-jnp.abs(y)))
    return y * jnp.tanh(sp)


def _ref_conv_bn_mish(x, w_hwio, scale, bias, stride, pad):
    y = jax.lax.conv_general_dilated(
        x, w_hwio, (stride, stride), ((pad, pad), (pad, pad)),
        dimension_numbers=("NHWC", "HWIO", "NHWC"),
        precision=jax.lax.Precision.HIGHEST)
    y = y * scale.reshape(1, 1, 1, -1) + bias.reshape(1, 1, 1, -1)
    return _mish_ref(y)


def ref_selecsls_block_forward(params, x_list, stride, is_first):
    p = params
    x0 = x_list[0]
    d1 = _ref_conv_bn_mish(x0, p["conv1"]["w"], p["conv1"]["scale"], p["conv1"]["bias"], stride, 1)
    t = _ref_conv_bn_mish(d1, p["conv2"]["w"], p["conv2"]["scale"], p["conv2"]["bias"], 1, 0)
    d2 = _ref_conv_bn_mish(t, p["conv3"]["w"], p["conv3"]["scale"], p["conv3"]["bias"], 1, 1)
    t = _ref_conv_bn_mish(d2, p["conv4"]["w"], p["conv4"]["scale"], p["conv4"]["bias"], 1, 0)
    d3 = _ref_conv_bn_mish(t, p["conv5"]["w"], p["conv5"]["scale"], p["conv5"]["bias"], 1, 1)
    if is_first:
        cat = jnp.concatenate([d1, d2, d3], axis=-1)
        out = _ref_conv_bn_mish(cat, p["conv6"]["w"], p["conv6"]["scale"], p["conv6"]["bias"], 1, 0)
        return [out, out]
    cat = jnp.concatenate([d1, d2, d3, x_list[1]], axis=-1)
    out = _ref_conv_bn_mish(cat, p["conv6"]["w"], p["conv6"]["scale"], p["conv6"]["bias"], 1, 0)
    return [out, x_list[1]]


if __name__ == "__main__":
    key = jax.random.PRNGKey(0)
    k_x, k_b1, k_b2 = jax.random.split(key, 3)

    # PyTorch-convention input: NCHW (2, 4, 16, 16)
    x_nchw = jax.random.normal(k_x, (2, 4, 16, 16), jnp.float32)
    x_nhwc = jnp.transpose(x_nchw, (0, 2, 3, 1))              # (2, 16, 16, 4)
    N, H, W, C = x_nhwc.shape

    # Block 1: isFirst=True, stride=2  (inp=4, k=8, oup=16)
    p1 = init_selecsls_block(k_b1, inp=4, skip=0, k=8, oup=16, is_first=True)
    prep1 = prepare_selecsls_block(p1, H, W, stride=2, is_first=True)
    # Block 2: isFirst=False, stride=1 (inp=16, skip=16, k=8, oup=16)
    p2 = init_selecsls_block(k_b2, inp=16, skip=16, k=8, oup=16, is_first=False)
    prep2 = prepare_selecsls_block(p2, prep1["ho"], prep1["wo"], stride=1, is_first=False)

    packed = pack_selecsls_chain([prep1, prep2])
    out2, out1 = fused_selecsls_forward(packed, x_nhwc)       # [final out, skip passthrough]
    jax.block_until_ready((out2, out1))

    # Correctness check against a pure-JAX lax.conv reference (HIGHEST precision).
    ref1 = ref_selecsls_block_forward(p1, [x_nhwc], stride=2, is_first=True)
    ref2 = ref_selecsls_block_forward(p2, ref1, stride=1, is_first=False)

    np.testing.assert_allclose(np.asarray(out2), np.asarray(ref2[0]), atol=1e-2, rtol=1e-2)
    np.testing.assert_allclose(np.asarray(out1), np.asarray(ref2[1]), atol=1e-2, rtol=1e-2)

    print("KERNEL_OK")
</pallas_src>

<mosaic_0001>
module attributes {stable_mosaic.version = 11 : i64} {
  func.func @kernel(%arg0: memref<32x64xf32, #tpu.memory_space<vmem>>, %arg1: memref<1920x128xf32, #tpu.memory_space<vmem>>, %arg2: memref<12x128xf32, #tpu.memory_space<vmem>>, %arg3: memref<16x128xf32, #tpu.memory_space<vmem>>, %arg4: memref<16x128xf32, #tpu.memory_space<vmem>>) attributes {dimension_semantics = [], scalar_prefetch = 0 : i64, scratch_operands = 0 : i64, tpu.core_type = #tpu.core_type<tc>} {
    %c0 = arith.constant 0 : index
    %c0_0 = arith.constant 0 : index
    %0 = tpu.strided_load %arg0[%c0, %c0_0] {strides = array<i32: 2, 1>} : memref<32x64xf32, #tpu.memory_space<vmem>>, vector<16x64xf32>
    %c1 = arith.constant 1 : index
    %c0_1 = arith.constant 0 : index
    %1 = tpu.strided_load %arg0[%c1, %c0_1] {strides = array<i32: 2, 1>} : memref<32x64xf32, #tpu.memory_space<vmem>>, vector<16x64xf32>
    %2 = vector.extract_strided_slice %1 {offsets = [0, 0], sizes = [1, 64], strides = [1, 1]} : vector<16x64xf32> to vector<1x64xf32>
    %3 = vector.extract_strided_slice %1 {offsets = [0, 0], sizes = [15, 64], strides = [1, 1]} : vector<16x64xf32> to vector<15x64xf32>
    %4 = tpu.concatenate %2, %3 in 0 : vector<1x64xf32>, vector<15x64xf32> -> vector<16x64xf32>
    %5 = tpu.iota {dimensions = array<i32: 0>} : vector<16x1xi32>
    %c8_i32 = arith.constant 8 : i32
    %c0_i32 = arith.constant 0 : i32
    %6 = arith.cmpi eq, %c8_i32, %c0_i32 : i32
    %c1_i32 = arith.constant 1 : i32
    %7 = arith.select %6, %c1_i32, %c8_i32 : i32
    %8 = vector.broadcast %7 : i32 to vector<16x1xi32>
    %9 = arith.remsi %5, %8 : vector<16x1xi32>
    %c0_i32_2 = arith.constant 0 : i32
    %10 = vector.broadcast %c0_i32_2 : i32 to vector<16x1xi32>
    %11 = arith.cmpi ne, %9, %10 : vector<16x1xi32>
    %c0_i32_3 = arith.constant 0 : i32
    %12 = vector.broadcast %c0_i32_3 : i32 to vector<16x1xi32>
    %13 = arith.cmpi slt, %9, %12 : vector<16x1xi32>
    %c0_i32_4 = arith.constant 0 : i32
    %14 = arith.cmpi slt, %7, %c0_i32_4 : i32
    %15 = vector.broadcast %14 : i1 to vector<16x1xi1>
    %16 = vector.broadcast %15 : vector<16x1xi1> to vector<16x1xi1>
    %17 = arith.xori %13, %16 : vector<16x1xi1>
    %18 = arith.andi %17, %11 : vector<16x1xi1>
    %19 = vector.broadcast %7 : i32 to vector<16x1xi32>
    %20 = arith.addi %9, %19 : vector<16x1xi32>
    %21 = arith.select %18, %20, %9 : vector<16x1xi1>, vector<16x1xi32>
    %c0_i32_5 = arith.constant 0 : i32
    %22 = vector.broadcast %c0_i32_5 : i32 to vector<16x1xi32>
    %23 = arith.cmpi eq, %21, %22 : vector<16x1xi32>
    %cst = arith.constant 0.000000e+00 : f32
    %24 = vector.shape_cast %23 : vector<16x1xi1> to vector<16x1xi1>
    %25 = vector.broadcast %24 : vector<16x1xi1> to vector<16x64xi1>
    %26 = vector.broadcast %cst : f32 to vector<16x64xf32>
    %27 = arith.select %25, %26, %4 : vector<16x64xi1>, vector<16x64xf32>
    %28 = tpu.concatenate %27, %0, %1 in 1 : vector<16x64xf32>, vector<16x64xf32>, vector<16x64xf32> -> vector<16x192xf32>
    %c0_6 = arith.constant 0 : index
    %c0_7 = arith.constant 0 : index
    %29 = vector.load %arg1[%c0_6, %c0_7] : memref<1920x128xf32, #tpu.memory_space<vmem>>, vector<192x64xf32>
    %c0_8 = arith.constant 0 : index
    %c0_9 = arith.constant 0 : index
    %30 = vector.load %arg2[%c0_8, %c0_9] : memref<12x128xf32, #tpu.memory_space<vmem>>, vector<1x64xf32>
    %cst_10 = arith.constant dense<0.000000e+00> : vector<16x64xf32>
    %31 = tpu.matmul %28, %29, %cst_10 {dimension_numbers = #tpu.dot_dimension_numbers<[1], [0], [0], [1], [0, 0, 1, 1], [], []>, precision = #tpu.contract_precision<fp32>} : vector<16x192xf32>, vector<192x64xf32>, vector<16x64xf32> -> vector<16x64xf32>
    %32 = vector.broadcast %30 : vector<1x64xf32> to vector<16x64xf32>
    %33 = arith.addf %31, %32 : vector<16x64xf32>
    %cst_11 = arith.constant 2.000000e+01 : f32
    %34 = vector.broadcast %cst_11 : f32 to vector<16x64xf32>
    %35 = arith.minimumf %33, %34 : vector<16x64xf32>
    %36 = math.exp %35 : vector<16x64xf32>
    %cst_12 = arith.constant 2.000000e+00 : f32
    %37 = vector.broadcast %cst_12 : f32 to vector<16x64xf32>
    %38 = arith.addf %36, %37 : vector<16x64xf32>
    %39 = arith.mulf %36, %38 : vector<16x64xf32>
    %cst_13 = arith.constant 2.000000e+01 : f32
    %40 = vector.broadcast %cst_13 : f32 to vector<16x64xf32>
    %41 = arith.cmpf ogt, %33, %40 : vector<16x64xf32>
    %cst_14 = arith.constant 2.000000e+00 : f32
    %42 = vector.broadcast %cst_14 : f32 to vector<16x64xf32>
    %43 = arith.addf %39, %42 : vector<16x64xf32>
    %44 = arith.divf %39, %43 : vector<16x64xf32>
    %45 = arith.mulf %33, %44 : vector<16x64xf32>
    %46 = arith.select %41, %33, %45 : vector<16x64xi1>, vector<16x64xf32>
    %c192 = arith.constant 192 : index
    %c0_15 = arith.constant 0 : index
    %47 = vector.load %arg1[%c192, %c0_15] : memref<1920x128xf32, #tpu.memory_space<vmem>>, vector<64x64xf32>
    %c1_16 = arith.constant 1 : index
    %c0_17 = arith.constant 0 : index
    %48 = vector.load %arg2[%c1_16, %c0_17] : memref<12x128xf32, #tpu.memory_space<vmem>>, vector<1x64xf32>
    %cst_18 = arith.constant dense<0.000000e+00> : vector<16x64xf32>
    %49 = tpu.matmul %46, %47, %cst_18 {dimension_numbers = #tpu.dot_dimension_numbers<[1], [0], [0], [1], [0, 0, 1, 1], [], []>, precision = #tpu.contract_precision<fp32>} : vector<16x64xf32>, vector<64x64xf32>, vector<16x64xf32> -> vector<16x64xf32>
    %50 = vector.broadcast %48 : vector<1x64xf32> to vector<16x64xf32>
    %51 = arith.addf %49, %50 : vector<16x64xf32>
    %cst_19 = arith.constant 2.000000e+01 : f32
    %52 = vector.broadcast %cst_19 : f32 to vector<16x64xf32>
    %53 = arith.minimumf %51, %52 : vector<16x64xf32>
    %54 = math.exp %53 : vector<16x64xf32>
    %cst_20 = arith.constant 2.000000e+00 : f32
    %55 = vector.broadcast %cst_20 : f32 to vector<16x64xf32>
    %56 = arith.addf %54, %55 : vector<16x64xf32>
    %57 = arith.mulf %54, %56 : vector<16x64xf32>
    %cst_21 = arith.constant 2.000000e+01 : f32
    %58 = vector.broadcast %cst_21 : f32 to vector<16x64xf32>
    %59 = arith.cmpf ogt, %51, %58 : vector<16x64xf32>
    %cst_22 = arith.constant 2.000000e+00 : f32
    %60 = vector.broadcast %cst_22 : f32 to vector<16x64xf32>
    %61 = arith.addf %57, %60 : vector<16x64xf32>
    %62 = arith.divf %57, %61 : vector<16x64xf32>
    %63 = arith.mulf %51, %62 : vector<16x64xf32>
    %64 = arith.select %59, %51, %63 : vector<16x64xi1>, vector<16x64xf32>
    %65 = vector.extract_strided_slice %64 {offsets = [0, 0], sizes = [1, 64], strides = [1, 1]} : vector<16x64xf32> to vector<1x64xf32>
    %66 = vector.extract_strided_slice %64 {offsets = [0, 0], sizes = [15, 64], strides = [1, 1]} : vector<16x64xf32> to vector<15x64xf32>
    %67 = tpu.concatenate %65, %66 in 0 : vector<1x64xf32>, vector<15x64xf32> -> vector<16x64xf32>
    %68 = vector.extract_strided_slice %64 {offsets = [1, 0], sizes = [15, 64], strides = [1, 1]} : vector<16x64xf32> to vector<15x64xf32>
    %69 = vector.extract_strided_slice %64 {offsets = [15, 0], sizes = [1, 64], strides = [1, 1]} : vector<16x64xf32> to vector<1x64xf32>
    %70 = tpu.concatenate %68, %69 in 0 : vector<15x64xf32>, vector<1x64xf32> -> vector<16x64xf32>
    %71 = tpu.iota {dimensions = array<i32: 0>} : vector<16x1xi32>
    %c8_i32_23 = arith.constant 8 : i32
    %c0_i32_24 = arith.constant 0 : i32
    %72 = arith.cmpi eq, %c8_i32_23, %c0_i32_24 : i32
    %c1_i32_25 = arith.constant 1 : i32
    %73 = arith.select %72, %c1_i32_25, %c8_i32_23 : i32
    %74 = vector.broadcast %73 : i32 to vector<16x1xi32>
    %75 = arith.remsi %71, %74 : vector<16x1xi32>
    %c0_i32_26 = arith.constant 0 : i32
    %76 = vector.broadcast %c0_i32_26 : i32 to vector<16x1xi32>
    %77 = arith.cmpi ne, %75, %76 : vector<16x1xi32>
    %c0_i32_27 = arith.constant 0 : i32
    %78 = vector.broadcast %c0_i32_27 : i32 to vector<16x1xi32>
    %79 = arith.cmpi slt, %75, %78 : vector<16x1xi32>
    %c0_i32_28 = arith.constant 0 : i32
    %80 = arith.cmpi slt, %73, %c0_i32_28 : i32
    %81 = vector.broadcast %80 : i1 to vector<16x1xi1>
    %82 = vector.broadcast %81 : vector<16x1xi1> to vector<16x1xi1>
    %83 = arith.xori %79, %82 : vector<16x1xi1>
    %84 = arith.andi %83, %77 : vector<16x1xi1>
    %85 = vector.broadcast %73 : i32 to vector<16x1xi32>
    %86 = arith.addi %75, %85 : vector<16x1xi32>
    %87 = arith.select %84, %86, %75 : vector<16x1xi1>, vector<16x1xi32>
    %c0_i32_29 = arith.constant 0 : i32
    %88 = vector.broadcast %c0_i32_29 : i32 to vector<16x1xi32>
    %89 = arith.cmpi eq, %87, %88 : vector<16x1xi32>
    %cst_30 = arith.constant 0.000000e+00 : f32
    %90 = vector.shape_cast %89 : vector<16x1xi1> to vector<16x1xi1>
    %91 = vector.broadcast %90 : vector<16x1xi1> to vector<16x64xi1>
    %92 = vector.broadcast %cst_30 : f32 to vector<16x64xf32>
    %93 = arith.select %91, %92, %67 : vector<16x64xi1>, vector<16x64xf32>
    %c7_i32 = arith.constant 7 : i32
    %94 = vector.broadcast %c7_i32 : i32 to vector<16x1xi32>
    %95 = arith.cmpi eq, %87, %94 : vector<16x1xi32>
    %cst_31 = arith.constant 0.000000e+00 : f32
    %96 = vector.shape_cast %95 : vector<16x1xi1> to vector<16x1xi1>
    %97 = vector.broadcast %96 : vector<16x1xi1> to vector<16x64xi1>
    %98 = vector.broadcast %cst_31 : f32 to vector<16x64xf32>
    %99 = arith.select %97, %98, %70 : vector<16x64xi1>, vector<16x64xf32>
    %100 = tpu.concatenate %93, %64, %99 in 1 : vector<16x64xf32>, vector<16x64xf32>, vector<16x64xf32> -> vector<16x192xf32>
    %c256 = arith.constant 256 : index
    %c0_32 = arith.constant 0 : index
    %101 = vector.load %arg1[%c256, %c0_32] : memref<1920x128xf32, #tpu.memory_space<vmem>>, vector<192x32xf32>
    %c2 = arith.constant 2 : index
    %c0_33 = arith.constant 0 : index
    %102 = vector.load %arg2[%c2, %c0_33] : memref<12x128xf32, #tpu.memory_space<vmem>>, vector<1x32xf32>
    %cst_34 = arith.constant dense<0.000000e+00> : vector<16x32xf32>
    %103 = tpu.matmul %100, %101, %cst_34 {dimension_numbers = #tpu.dot_dimension_numbers<[1], [0], [0], [1], [0, 0, 1, 1], [], []>, precision = #tpu.contract_precision<fp32>} : vector<16x192xf32>, vector<192x32xf32>, vector<16x32xf32> -> vector<16x32xf32>
    %104 = vector.broadcast %102 : vector<1x32xf32> to vector<16x32xf32>
    %105 = arith.addf %103, %104 : vector<16x32xf32>
    %cst_35 = arith.constant 2.000000e+01 : f32
    %106 = vector.broadcast %cst_35 : f32 to vector<16x32xf32>
    %107 = arith.minimumf %105, %106 : vector<16x32xf32>
    %108 = math.exp %107 : vector<16x32xf32>
    %cst_36 = arith.constant 2.000000e+00 : f32
    %109 = vector.broadcast %cst_36 : f32 to vector<16x32xf32>
    %110 = arith.addf %108, %109 : vector<16x32xf32>
    %111 = arith.mulf %108, %110 : vector<16x32xf32>
    %cst_37 = arith.constant 2.000000e+01 : f32
    %112 = vector.broadcast %cst_37 : f32 to vector<16x32xf32>
    %113 = arith.cmpf ogt, %105, %112 : vector<16x32xf32>
    %cst_38 = arith.constant 2.000000e+00 : f32
    %114 = vector.broadcast %cst_38 : f32 to vector<16x32xf32>
    %115 = arith.addf %111, %114 : vector<16x32xf32>
    %116 = arith.divf %111, %115 : vector<16x32xf32>
    %117 = arith.mulf %105, %116 : vector<16x32xf32>
    %118 = arith.select %113, %105, %117 : vector<16x32xi1>, vector<16x32xf32>
    %c448 = arith.constant 448 : index
    %c0_39 = arith.constant 0 : index
    %119 = vector.load %arg1[%c448, %c0_39] : memref<1920x128xf32, #tpu.memory_space<vmem>>, vector<32x64xf32>
    %c3 = arith.constant 3 : index
    %c0_40 = arith.constant 0 : index
    %120 = vector.load %arg2[%c3, %c0_40] : memref<12x128xf32, #tpu.memory_space<vmem>>, vector<1x64xf32>
    %cst_41 = arith.constant dense<0.000000e+00> : vector<16x64xf32>
    %121 = tpu.matmul %118, %119, %cst_41 {dimension_numbers = #tpu.dot_dimension_numbers<[1], [0], [0], [1], [0, 0, 1, 1], [], []>, precision = #tpu.contract_precision<fp32>} : vector<16x32xf32>, vector<32x64xf32>, vector<16x64xf32> -> vector<16x64xf32>
    %122 = vector.broadcast %120 : vector<1x64xf32> to vector<16x64xf32>
    %123 = arith.addf %121, %122 : vector<16x64xf32>
    %cst_42 = arith.constant 2.000000e+01 : f32
    %124 = vector.broadcast %cst_42 : f32 to vector<16x64xf32>
    %125 = arith.minimumf %123, %124 : vector<16x64xf32>
    %126 = math.exp %125 : vector<16x64xf32>
    %cst_43 = arith.constant 2.000000e+00 : f32
    %127 = vector.broadcast %cst_43 : f32 to vector<16x64xf32>
    %128 = arith.addf %126, %127 : vector<16x64xf32>
    %129 = arith.mulf %126, %128 : vector<16x64xf32>
    %cst_44 = arith.constant 2.000000e+01 : f32
    %130 = vector.broadcast %cst_44 : f32 to vector<16x64xf32>
    %131 = arith.cmpf ogt, %123, %130 : vector<16x64xf32>
    %cst_45 = arith.constant 2.000000e+00 : f32
    %132 = vector.broadcast %cst_45 : f32 to vector<16x64xf32>
    %133 = arith.addf %129, %132 : vector<16x64xf32>
    %134 = arith.divf %129, %133 : vector<16x64xf32>
    %135 = arith.mulf %123, %134 : vector<16x64xf32>
    %136 = arith.select %131, %123, %135 : vector<16x64xi1>, vector<16x64xf32>
    %137 = vector.extract_strided_slice %136 {offsets = [0, 0], sizes = [1, 64], strides = [1, 1]} : vector<16x64xf32> to vector<1x64xf32>
    %138 = vector.extract_strided_slice %136 {offsets = [0, 0], sizes = [15, 64], strides = [1, 1]} : vector<16x64xf32> to vector<15x64xf32>
    %139 = tpu.concatenate %137, %138 in 0 : vector<1x64xf32>, vector<15x64xf32> -> vector<16x64xf32>
    %140 = vector.extract_strided_slice %136 {offsets = [1, 0], sizes = [15, 64], strides = [1, 1]} : vector<16x64xf32> to vector<15x64xf32>
    %141 = vector.extract_strided_slice %136 {offsets = [15, 0], sizes = [1, 64], strides = [1, 1]} : vector<16x64xf32> to vector<1x64xf32>
    %142 = tpu.concatenate %140, %141 in 0 : vector<15x64xf32>, vector<1x64xf32> -> vector<16x64xf32>
    %143 = tpu.iota {dimensions = array<i32: 0>} : vector<16x1xi32>
    %c8_i32_46 = arith.constant 8 : i32
    %c0_i32_47 = arith.constant 0 : i32
    %144 = arith.cmpi eq, %c8_i32_46, %c0_i32_47 : i32
    %c1_i32_48 = arith.constant 1 : i32
    %145 = arith.select %144, %c1_i32_48, %c8_i32_46 : i32
    %146 = vector.broadcast %145 : i32 to vector<16x1xi32>
    %147 = arith.remsi %143, %146 : vector<16x1xi32>
    %c0_i32_49 = arith.constant 0 : i32
    %148 = vector.broadcast %c0_i32_49 : i32 to vector<16x1xi32>
    %149 = arith.cmpi ne, %147, %148 : vector<16x1xi32>
    %c0_i32_50 = arith.constant 0 : i32
    %150 = vector.broadcast %c0_i32_50 : i32 to vector<16x1xi32>
    %151 = arith.cmpi slt, %147, %150 : vector<16x1xi32>
    %c0_i32_51 = arith.constant 0 : i32
    %152 = arith.cmpi slt, %145, %c0_i32_51 : i32
    %153 = vector.broadcast %152 : i1 to vector<16x1xi1>
    %154 = vector.broadcast %153 : vector<16x1xi1> to vector<16x1xi1>
    %155 = arith.xori %151, %154 : vector<16x1xi1>
    %156 = arith.andi %155, %149 : vector<16x1xi1>
    %157 = vector.broadcast %145 : i32 to vector<16x1xi32>
    %158 = arith.addi %147, %157 : vector<16x1xi32>
    %159 = arith.select %156, %158, %147 : vector<16x1xi1>, vector<16x1xi32>
    %c0_i32_52 = arith.constant 0 : i32
    %160 = vector.broadcast %c0_i32_52 : i32 to vector<16x1xi32>
    %161 = arith.cmpi eq, %159, %160 : vector<16x1xi32>
    %cst_53 = arith.constant 0.000000e+00 : f32
    %162 = vector.shape_cast %161 : vector<16x1xi1> to vector<16x1xi1>
    %163 = vector.broadcast %162 : vector<16x1xi1> to vector<16x64xi1>
    %164 = vector.broadcast %cst_53 : f32 to vector<16x64xf32>
    %165 = arith.select %163, %164, %139 : vector<16x64xi1>, vector<16x64xf32>
    %c7_i32_54 = arith.constant 7 : i32
    %166 = vector.broadcast %c7_i32_54 : i32 to vector<16x1xi32>
    %167 = arith.cmpi eq, %159, %166 : vector<16x1xi32>
    %cst_55 = arith.constant 0.000000e+00 : f32
    %168 = vector.shape_cast %167 : vector<16x1xi1> to vector<16x1xi1>
    %169 = vector.broadcast %168 : vector<16x1xi1> to vector<16x64xi1>
    %170 = vector.broadcast %cst_55 : f32 to vector<16x64xf32>
    %171 = arith.select %169, %170, %142 : vector<16x64xi1>, vector<16x64xf32>
    %172 = tpu.concatenate %165, %136, %171 in 1 : vector<16x64xf32>, vector<16x64xf32>, vector<16x64xf32> -> vector<16x192xf32>
    %c480 = arith.constant 480 : index
    %c0_56 = arith.constant 0 : index
    %173 = vector.load %arg1[%c480, %c0_56] : memref<1920x128xf32, #tpu.memory_space<vmem>>, vector<192x32xf32>
    %c4 = arith.constant 4 : index
    %c0_57 = arith.constant 0 : index
    %174 = vector.load %arg2[%c4, %c0_57] : memref<12x128xf32, #tpu.memory_space<vmem>>, vector<1x32xf32>
    %cst_58 = arith.constant dense<0.000000e+00> : vector<16x32xf32>
    %175 = tpu.matmul %172, %173, %cst_58 {dimension_numbers = #tpu.dot_dimension_numbers<[1], [0], [0], [1], [0, 0, 1, 1], [], []>, precision = #tpu.contract_precision<fp32>} : vector<16x192xf32>, vector<192x32xf32>, vector<16x32xf32> -> vector<16x32xf32>
    %176 = vector.broadcast %174 : vector<1x32xf32> to vector<16x32xf32>
    %177 = arith.addf %175, %176 : vector<16x32xf32>
    %cst_59 = arith.constant 2.000000e+01 : f32
    %178 = vector.broadcast %cst_59 : f32 to vector<16x32xf32>
    %179 = arith.minimumf %177, %178 : vector<16x32xf32>
    %180 = math.exp %179 : vector<16x32xf32>
    %cst_60 = arith.constant 2.000000e+00 : f32
    %181 = vector.broadcast %cst_60 : f32 to vector<16x32xf32>
    %182 = arith.addf %180, %181 : vector<16x32xf32>
    %183 = arith.mulf %180, %182 : vector<16x32xf32>
    %cst_61 = arith.constant 2.000000e+01 : f32
    %184 = vector.broadcast %cst_61 : f32 to vector<16x32xf32>
    %185 = arith.cmpf ogt, %177, %184 : vector<16x32xf32>
    %cst_62 = arith.constant 2.000000e+00 : f32
    %186 = vector.broadcast %cst_62 : f32 to vector<16x32xf32>
    %187 = arith.addf %183, %186 : vector<16x32xf32>
    %188 = arith.divf %183, %187 : vector<16x32xf32>
    %189 = arith.mulf %177, %188 : vector<16x32xf32>
    %190 = arith.select %185, %177, %189 : vector<16x32xi1>, vector<16x32xf32>
    %191 = tpu.concatenate %46, %118, %190 in 1 : vector<16x64xf32>, vector<16x32xf32>, vector<16x32xf32> -> vector<16x128xf32>
    %c672 = arith.constant 672 : index
    %c0_63 = arith.constant 0 : index
    %192 = vector.load %arg1[%c672, %c0_63] : memref<1920x128xf32, #tpu.memory_space<vmem>>, vector<128x128xf32>
    %c5 = arith.constant 5 : index
    %c0_64 = arith.constant 0 : index
    %193 = vector.load %arg2[%c5, %c0_64] : memref<12x128xf32, #tpu.memory_space<vmem>>, vector<1x128xf32>
    %cst_65 = arith.constant dense<0.000000e+00> : vector<16x128xf32>
    %194 = tpu.matmul %191, %192, %cst_65 {dimension_numbers = #tpu.dot_dimension_numbers<[1], [0], [0], [1], [0, 0, 1, 1], [], []>, precision = #tpu.contract_precision<fp32>} : vector<16x128xf32>, vector<128x128xf32>, vector<16x128xf32> -> vector<16x128xf32>
    %195 = vector.broadcast %193 : vector<1x128xf32> to vector<16x128xf32>
    %196 = arith.addf %194, %195 : vector<16x128xf32>
    %cst_66 = arith.constant 2.000000e+01 : f32
    %197 = vector.broadcast %cst_66 : f32 to vector<16x128xf32>
    %198 = arith.minimumf %196, %197 : vector<16x128xf32>
    %199 = math.exp %198 : vector<16x128xf32>
    %cst_67 = arith.constant 2.000000e+00 : f32
    %200 = vector.broadcast %cst_67 : f32 to vector<16x128xf32>
    %201 = arith.addf %199, %200 : vector<16x128xf32>
    %202 = arith.mulf %199, %201 : vector<16x128xf32>
    %cst_68 = arith.constant 2.000000e+01 : f32
    %203 = vector.broadcast %cst_68 : f32 to vector<16x128xf32>
    %204 = arith.cmpf ogt, %196, %203 : vector<16x128xf32>
    %cst_69 = arith.constant 2.000000e+00 : f32
    %205 = vector.broadcast %cst_69 : f32 to vector<16x128xf32>
    %206 = arith.addf %202, %205 : vector<16x128xf32>
    %207 = arith.divf %202, %206 : vector<16x128xf32>
    %208 = arith.mulf %196, %207 : vector<16x128xf32>
    %209 = arith.select %204, %196, %208 : vector<16x128xi1>, vector<16x128xf32>
    %210 = vector.extract_strided_slice %209 {offsets = [0, 0], sizes = [1, 128], strides = [1, 1]} : vector<16x128xf32> to vector<1x128xf32>
    %211 = vector.extract_strided_slice %209 {offsets = [0, 0], sizes = [15, 128], strides = [1, 1]} : vector<16x128xf32> to vector<15x128xf32>
    %212 = tpu.concatenate %210, %211 in 0 : vector<1x128xf32>, vector<15x128xf32> -> vector<16x128xf32>
    %213 = vector.extract_strided_slice %209 {offsets = [1, 0], sizes = [15, 128], strides = [1, 1]} : vector<16x128xf32> to vector<15x128xf32>
    %214 = vector.extract_strided_slice %209 {offsets = [15, 0], sizes = [1, 128], strides = [1, 1]} : vector<16x128xf32> to vector<1x128xf32>
    %215 = tpu.concatenate %213, %214 in 0 : vector<15x128xf32>, vector<1x128xf32> -> vector<16x128xf32>
    %216 = tpu.iota {dimensions = array<i32: 0>} : vector<16x1xi32>
    %c8_i32_70 = arith.constant 8 : i32
    %c0_i32_71 = arith.constant 0 : i32
    %217 = arith.cmpi eq, %c8_i32_70, %c0_i32_71 : i32
    %c1_i32_72 = arith.constant 1 : i32
    %218 = arith.select %217, %c1_i32_72, %c8_i32_70 : i32
    %219 = vector.broadcast %218 : i32 to vector<16x1xi32>
    %220 = arith.remsi %216, %219 : vector<16x1xi32>
    %c0_i32_73 = arith.constant 0 : i32
    %221 = vector.broadcast %c0_i32_73 : i32 to vector<16x1xi32>
    %222 = arith.cmpi ne, %220, %221 : vector<16x1xi32>
    %c0_i32_74 = arith.constant 0 : i32
    %223 = vector.broadcast %c0_i32_74 : i32 to vector<16x1xi32>
    %224 = arith.cmpi slt, %220, %223 : vector<16x1xi32>
    %c0_i32_75 = arith.constant 0 : i32
    %225 = arith.cmpi slt, %218, %c0_i32_75 : i32
    %226 = vector.broadcast %225 : i1 to vector<16x1xi1>
    %227 = vector.broadcast %226 : vector<16x1xi1> to vector<16x1xi1>
    %228 = arith.xori %224, %227 : vector<16x1xi1>
    %229 = arith.andi %228, %222 : vector<16x1xi1>
    %230 = vector.broadcast %218 : i32 to vector<16x1xi32>
    %231 = arith.addi %220, %230 : vector<16x1xi32>
    %232 = arith.select %229, %231, %220 : vector<16x1xi1>, vector<16x1xi32>
    %c0_i32_76 = arith.constant 0 : i32
    %233 = vector.broadcast %c0_i32_76 : i32 to vector<16x1xi32>
    %234 = arith.cmpi eq, %232, %233 : vector<16x1xi32>
    %cst_77 = arith.constant 0.000000e+00 : f32
    %235 = vector.shape_cast %234 : vector<16x1xi1> to vector<16x1xi1>
    %236 = vector.broadcast %235 : vector<16x1xi1> to vector<16x128xi1>
    %237 = vector.broadcast %cst_77 : f32 to vector<16x128xf32>
    %238 = arith.select %236, %237, %212 : vector<16x128xi1>, vector<16x128xf32>
    %c7_i32_78 = arith.constant 7 : i32
    %239 = vector.broadcast %c7_i32_78 : i32 to vector<16x1xi32>
    %240 = arith.cmpi eq, %232, %239 : vector<16x1xi32>
    %cst_79 = arith.constant 0.000000e+00 : f32
    %241 = vector.shape_cast %240 : vector<16x1xi1> to vector<16x1xi1>
    %242 = vector.broadcast %241 : vector<16x1xi1> to vector<16x128xi1>
    %243 = vector.broadcast %cst_79 : f32 to vector<16x128xf32>
    %244 = arith.select %242, %243, %215 : vector<16x128xi1>, vector<16x128xf32>
    %245 = tpu.concatenate %238, %209, %244 in 1 : vector<16x128xf32>, vector<16x128xf32>, vector<16x128xf32> -> vector<16x384xf32>
    %c800 = arith.constant 800 : index
    %c0_80 = arith.constant 0 : index
    %246 = vector.load %arg1[%c800, %c0_80] : memref<1920x128xf32, #tpu.memory_space<vmem>>, vector<384x64xf32>
    %c6 = arith.constant 6 : index
    %c0_81 = arith.constant 0 : index
    %247 = vector.load %arg2[%c6, %c0_81] : memref<12x128xf32, #tpu.memory_space<vmem>>, vector<1x64xf32>
    %cst_82 = arith.constant dense<0.000000e+00> : vector<16x64xf32>
    %248 = tpu.matmul %245, %246, %cst_82 {dimension_numbers = #tpu.dot_dimension_numbers<[1], [0], [0], [1], [0, 0, 1, 1], [], []>, precision = #tpu.contract_precision<fp32>} : vector<16x384xf32>, vector<384x64xf32>, vector<16x64xf32> -> vector<16x64xf32>
    %249 = vector.broadcast %247 : vector<1x64xf32> to vector<16x64xf32>
    %250 = arith.addf %248, %249 : vector<16x64xf32>
    %cst_83 = arith.constant 2.000000e+01 : f32
    %251 = vector.broadcast %cst_83 : f32 to vector<16x64xf32>
    %252 = arith.minimumf %250, %251 : vector<16x64xf32>
    %253 = math.exp %252 : vector<16x64xf32>
    %cst_84 = arith.constant 2.000000e+00 : f32
    %254 = vector.broadcast %cst_84 : f32 to vector<16x64xf32>
    %255 = arith.addf %253, %254 : vector<16x64xf32>
    %256 = arith.mulf %253, %255 : vector<16x64xf32>
    %cst_85 = arith.constant 2.000000e+01 : f32
    %257 = vector.broadcast %cst_85 : f32 to vector<16x64xf32>
    %258 = arith.cmpf ogt, %250, %257 : vector<16x64xf32>
    %cst_86 = arith.constant 2.000000e+00 : f32
    %259 = vector.broadcast %cst_86 : f32 to vector<16x64xf32>
    %260 = arith.addf %256, %259 : vector<16x64xf32>
    %261 = arith.divf %256, %260 : vector<16x64xf32>
    %262 = arith.mulf %250, %261 : vector<16x64xf32>
    %263 = arith.select %258, %250, %262 : vector<16x64xi1>, vector<16x64xf32>
    %c1184 = arith.constant 1184 : index
    %c0_87 = arith.constant 0 : index
    %264 = vector.load %arg1[%c1184, %c0_87] : memref<1920x128xf32, #tpu.memory_space<vmem>>, vector<64x64xf32>
    %c7 = arith.constant 7 : index
    %c0_88 = arith.constant 0 : index
    %265 = vector.load %arg2[%c7, %c0_88] : memref<12x128xf32, #tpu.memory_space<vmem>>, vector<1x64xf32>
    %cst_89 = arith.constant dense<0.000000e+00> : vector<16x64xf32>
    %266 = tpu.matmul %263, %264, %cst_89 {dimension_numbers = #tpu.dot_dimension_numbers<[1], [0], [0], [1], [0, 0, 1, 1], [], []>, precision = #tpu.contract_precision<fp32>} : vector<16x64xf32>, vector<64x64xf32>, vector<16x64xf32> -> vector<16x64xf32>
    %267 = vector.broadcast %265 : vector<1x64xf32> to vector<16x64xf32>
    %268 = arith.addf %266, %267 : vector<16x64xf32>
    %cst_90 = arith.constant 2.000000e+01 : f32
    %269 = vector.broadcast %cst_90 : f32 to vector<16x64xf32>
    %270 = arith.minimumf %268, %269 : vector<16x64xf32>
    %271 = math.exp %270 : vector<16x64xf32>
    %cst_91 = arith.constant 2.000000e+00 : f32
    %272 = vector.broadcast %cst_91 : f32 to vector<16x64xf32>
    %273 = arith.addf %271, %272 : vector<16x64xf32>
    %274 = arith.mulf %271, %273 : vector<16x64xf32>
    %cst_92 = arith.constant 2.000000e+01 : f32
    %275 = vector.broadcast %cst_92 : f32 to vector<16x64xf32>
    %276 = arith.cmpf ogt, %268, %275 : vector<16x64xf32>
    %cst_93 = arith.constant 2.000000e+00 : f32
    %277 = vector.broadcast %cst_93 : f32 to vector<16x64xf32>
    %278 = arith.addf %274, %277 : vector<16x64xf32>
    %279 = arith.divf %274, %278 : vector<16x64xf32>
    %280 = arith.mulf %268, %279 : vector<16x64xf32>
    %281 = arith.select %276, %268, %280 : vector<16x64xi1>, vector<16x64xf32>
    %282 = vector.extract_strided_slice %281 {offsets = [0, 0], sizes = [1, 64], strides = [1, 1]} : vector<16x64xf32> to vector<1x64xf32>
    %283 = vector.extract_strided_slice %281 {offsets = [0, 0], sizes = [15, 64], strides = [1, 1]} : vector<16x64xf32> to vector<15x64xf32>
    %284 = tpu.concatenate %282, %283 in 0 : vector<1x64xf32>, vector<15x64xf32> -> vector<16x64xf32>
    %285 = vector.extract_strided_slice %281 {offsets = [1, 0], sizes = [15, 64], strides = [1, 1]} : vector<16x64xf32> to vector<15x64xf32>
    %286 = vector.extract_strided_slice %281 {offsets = [15, 0], sizes = [1, 64], strides = [1, 1]} : vector<16x64xf32> to vector<1x64xf32>
    %287 = tpu.concatenate %285, %286 in 0 : vector<15x64xf32>, vector<1x64xf32> -> vector<16x64xf32>
    %288 = tpu.iota {dimensions = array<i32: 0>} : vector<16x1xi32>
    %c8_i32_94 = arith.constant 8 : i32
    %c0_i32_95 = arith.constant 0 : i32
    %289 = arith.cmpi eq, %c8_i32_94, %c0_i32_95 : i32
    %c1_i32_96 = arith.constant 1 : i32
    %290 = arith.select %289, %c1_i32_96, %c8_i32_94 : i32
    %291 = vector.broadcast %290 : i32 to vector<16x1xi32>
    %292 = arith.remsi %288, %291 : vector<16x1xi32>
    %c0_i32_97 = arith.constant 0 : i32
    %293 = vector.broadcast %c0_i32_97 : i32 to vector<16x1xi32>
    %294 = arith.cmpi ne, %292, %293 : vector<16x1xi32>
    %c0_i32_98 = arith.constant 0 : i32
    %295 = vector.broadcast %c0_i32_98 : i32 to vector<16x1xi32>
    %296 = arith.cmpi slt, %292, %295 : vector<16x1xi32>
    %c0_i32_99 = arith.constant 0 : i32
    %297 = arith.cmpi slt, %290, %c0_i32_99 : i32
    %298 = vector.broadcast %297 : i1 to vector<16x1xi1>
    %299 = vector.broadcast %298 : vector<16x1xi1> to vector<16x1xi1>
    %300 = arith.xori %296, %299 : vector<16x1xi1>
    %301 = arith.andi %300, %294 : vector<16x1xi1>
    %302 = vector.broadcast %290 : i32 to vector<16x1xi32>
    %303 = arith.addi %292, %302 : vector<16x1xi32>
    %304 = arith.select %301, %303, %292 : vector<16x1xi1>, vector<16x1xi32>
    %c0_i32_100 = arith.constant 0 : i32
    %305 = vector.broadcast %c0_i32_100 : i32 to vector<16x1xi32>
    %306 = arith.cmpi eq, %304, %305 : vector<16x1xi32>
    %cst_101 = arith.constant 0.000000e+00 : f32
    %307 = vector.shape_cast %306 : vector<16x1xi1> to vector<16x1xi1>
    %308 = vector.broadcast %307 : vector<16x1xi1> to vector<16x64xi1>
    %309 = vector.broadcast %cst_101 : f32 to vector<16x64xf32>
    %310 = arith.select %308, %309, %284 : vector<16x64xi1>, vector<16x64xf32>
    %c7_i32_102 = arith.constant 7 : i32
    %311 = vector.broadcast %c7_i32_102 : i32 to vector<16x1xi32>
    %312 = arith.cmpi eq, %304, %311 : vector<16x1xi32>
    %cst_103 = arith.constant 0.000000e+00 : f32
    %313 = vector.shape_cast %312 : vector<16x1xi1> to vector<16x1xi1>
    %314 = vector.broadcast %313 : vector<16x1xi1> to vector<16x64xi1>
    %315 = vector.broadcast %cst_103 : f32 to vector<16x64xf32>
    %316 = arith.select %314, %315, %287 : vector<16x64xi1>, vector<16x64xf32>
    %317 = tpu.concatenate %310, %281, %316 in 1 : vector<16x64xf32>, vector<16x64xf32>, vector<16x64xf32> -> vector<16x192xf32>
    %c1248 = arith.constant 1248 : index
    %c0_104 = arith.constant 0 : index
    %318 = vector.load %arg1[%c1248, %c0_104] : memref<1920x128xf32, #tpu.memory_space<vmem>>, vector<192x32xf32>
    %c8 = arith.constant 8 : index
    %c0_105 = arith.constant 0 : index
    %319 = vector.load %arg2[%c8, %c0_105] : memref<12x128xf32, #tpu.memory_space<vmem>>, vector<1x32xf32>
    %cst_106 = arith.constant dense<0.000000e+00> : vector<16x32xf32>
    %320 = tpu.matmul %317, %318, %cst_106 {dimension_numbers = #tpu.dot_dimension_numbers<[1], [0], [0], [1], [0, 0, 1, 1], [], []>, precision = #tpu.contract_precision<fp32>} : vector<16x192xf32>, vector<192x32xf32>, vector<16x32xf32> -> vector<16x32xf32>
    %321 = vector.broadcast %319 : vector<1x32xf32> to vector<16x32xf32>
    %322 = arith.addf %320, %321 : vector<16x32xf32>
    %cst_107 = arith.constant 2.000000e+01 : f32
    %323 = vector.broadcast %cst_107 : f32 to vector<16x32xf32>
    %324 = arith.minimumf %322, %323 : vector<16x32xf32>
    %325 = math.exp %324 : vector<16x32xf32>
    %cst_108 = arith.constant 2.000000e+00 : f32
    %326 = vector.broadcast %cst_108 : f32 to vector<16x32xf32>
    %327 = arith.addf %325, %326 : vector<16x32xf32>
    %328 = arith.mulf %325, %327 : vector<16x32xf32>
    %cst_109 = arith.constant 2.000000e+01 : f32
    %329 = vector.broadcast %cst_109 : f32 to vector<16x32xf32>
    %330 = arith.cmpf ogt, %322, %329 : vector<16x32xf32>
    %cst_110 = arith.constant 2.000000e+00 : f32
    %331 = vector.broadcast %cst_110 : f32 to vector<16x32xf32>
    %332 = arith.addf %328, %331 : vector<16x32xf32>
    %333 = arith.divf %328, %332 : vector<16x32xf32>
    %334 = arith.mulf %322, %333 : vector<16x32xf32>
    %335 = arith.select %330, %322, %334 : vector<16x32xi1>, vector<16x32xf32>
    %c1440 = arith.constant 1440 : index
    %c0_111 = arith.constant 0 : index
    %336 = vector.load %arg1[%c1440, %c0_111] : memref<1920x128xf32, #tpu.memory_space<vmem>>, vector<32x64xf32>
    %c9 = arith.constant 9 : index
    %c0_112 = arith.constant 0 : index
    %337 = vector.load %arg2[%c9, %c0_112] : memref<12x128xf32, #tpu.memory_space<vmem>>, vector<1x64xf32>
    %cst_113 = arith.constant dense<0.000000e+00> : vector<16x64xf32>
    %338 = tpu.matmul %335, %336, %cst_113 {dimension_numbers = #tpu.dot_dimension_numbers<[1], [0], [0], [1], [0, 0, 1, 1], [], []>, precision = #tpu.contract_precision<fp32>} : vector<16x32xf32>, vector<32x64xf32>, vector<16x64xf32> -> vector<16x64xf32>
    %339 = vector.broadcast %337 : vector<1x64xf32> to vector<16x64xf32>
    %340 = arith.addf %338, %339 : vector<16x64xf32>
    %cst_114 = arith.constant 2.000000e+01 : f32
    %341 = vector.broadcast %cst_114 : f32 to vector<16x64xf32>
    %342 = arith.minimumf %340, %341 : vector<16x64xf32>
    %343 = math.exp %342 : vector<16x64xf32>
    %cst_115 = arith.constant 2.000000e+00 : f32
    %344 = vector.broadcast %cst_115 : f32 to vector<16x64xf32>
    %345 = arith.addf %343, %344 : vector<16x64xf32>
    %346 = arith.mulf %343, %345 : vector<16x64xf32>
    %cst_116 = arith.constant 2.000000e+01 : f32
    %347 = vector.broadcast %cst_116 : f32 to vector<16x64xf32>
    %348 = arith.cmpf ogt, %340, %347 : vector<16x64xf32>
    %cst_117 = arith.constant 2.000000e+00 : f32
    %349 = vector.broadcast %cst_117 : f32 to vector<16x64xf32>
    %350 = arith.addf %346, %349 : vector<16x64xf32>
    %351 = arith.divf %346, %350 : vector<16x64xf32>
    %352 = arith.mulf %340, %351 : vector<16x64xf32>
    %353 = arith.select %348, %340, %352 : vector<16x64xi1>, vector<16x64xf32>
    %354 = vector.extract_strided_slice %353 {offsets = [0, 0], sizes = [1, 64], strides = [1, 1]} : vector<16x64xf32> to vector<1x64xf32>
    %355 = vector.extract_strided_slice %353 {offsets = [0, 0], sizes = [15, 64], strides = [1, 1]} : vector<16x64xf32> to vector<15x64xf32>
    %356 = tpu.concatenate %354, %355 in 0 : vector<1x64xf32>, vector<15x64xf32> -> vector<16x64xf32>
    %357 = vector.extract_strided_slice %353 {offsets = [1, 0], sizes = [15, 64], strides = [1, 1]} : vector<16x64xf32> to vector<15x64xf32>
    %358 = vector.extract_strided_slice %353 {offsets = [15, 0], sizes = [1, 64], strides = [1, 1]} : vector<16x64xf32> to vector<1x64xf32>
    %359 = tpu.concatenate %357, %358 in 0 : vector<15x64xf32>, vector<1x64xf32> -> vector<16x64xf32>
    %360 = tpu.iota {dimensions = array<i32: 0>} : vector<16x1xi32>
    %c8_i32_118 = arith.constant 8 : i32
    %c0_i32_119 = arith.constant 0 : i32
    %361 = arith.cmpi eq, %c8_i32_118, %c0_i32_119 : i32
    %c1_i32_120 = arith.constant 1 : i32
    %362 = arith.select %361, %c1_i32_120, %c8_i32_118 : i32
    %363 = vector.broadcast %362 : i32 to vector<16x1xi32>
    %364 = arith.remsi %360, %363 : vector<16x1xi32>
    %c0_i32_121 = arith.constant 0 : i32
    %365 = vector.broadcast %c0_i32_121 : i32 to vector<16x1xi32>
    %366 = arith.cmpi ne, %364, %365 : vector<16x1xi32>
    %c0_i32_122 = arith.constant 0 : i32
    %367 = vector.broadcast %c0_i32_122 : i32 to vector<16x1xi32>
    %368 = arith.cmpi slt, %364, %367 : vector<16x1xi32>
    %c0_i32_123 = arith.constant 0 : i32
    %369 = arith.cmpi slt, %362, %c0_i32_123 : i32
    %370 = vector.broadcast %369 : i1 to vector<16x1xi1>
    %371 = vector.broadcast %370 : vector<16x1xi1> to vector<16x1xi1>
    %372 = arith.xori %368, %371 : vector<16x1xi1>
    %373 = arith.andi %372, %366 : vector<16x1xi1>
    %374 = vector.broadcast %362 : i32 to vector<16x1xi32>
    %375 = arith.addi %364, %374 : vector<16x1xi32>
    %376 = arith.select %373, %375, %364 : vector<16x1xi1>, vector<16x1xi32>
    %c0_i32_124 = arith.constant 0 : i32
    %377 = vector.broadcast %c0_i32_124 : i32 to vector<16x1xi32>
    %378 = arith.cmpi eq, %376, %377 : vector<16x1xi32>
    %cst_125 = arith.constant 0.000000e+00 : f32
    %379 = vector.shape_cast %378 : vector<16x1xi1> to vector<16x1xi1>
    %380 = vector.broadcast %379 : vector<16x1xi1> to vector<16x64xi1>
    %381 = vector.broadcast %cst_125 : f32 to vector<16x64xf32>
    %382 = arith.select %380, %381, %356 : vector<16x64xi1>, vector<16x64xf32>
    %c7_i32_126 = arith.constant 7 : i32
    %383 = vector.broadcast %c7_i32_126 : i32 to vector<16x1xi32>
    %384 = arith.cmpi eq, %376, %383 : vector<16x1xi32>
    %cst_127 = arith.constant 0.000000e+00 : f32
    %385 = vector.shape_cast %384 : vector<16x1xi1> to vector<16x1xi1>
    %386 = vector.broadcast %385 : vector<16x1xi1> to vector<16x64xi1>
    %387 = vector.broadcast %cst_127 : f32 to vector<16x64xf32>
    %388 = arith.select %386, %387, %359 : vector<16x64xi1>, vector<16x64xf32>
    %389 = tpu.concatenate %382, %353, %388 in 1 : vector<16x64xf32>, vector<16x64xf32>, vector<16x64xf32> -> vector<16x192xf32>
    %c1472 = arith.constant 1472 : index
    %c0_128 = arith.constant 0 : index
    %390 = vector.load %arg1[%c1472, %c0_128] : memref<1920x128xf32, #tpu.memory_space<vmem>>, vector<192x32xf32>
    %c10 = arith.constant 10 : index
    %c0_129 = arith.constant 0 : index
    %391 = vector.load %arg2[%c10, %c0_129] : memref<12x128xf32, #tpu.memory_space<vmem>>, vector<1x32xf32>
    %cst_130 = arith.constant dense<0.000000e+00> : vector<16x32xf32>
    %392 = tpu.matmul %389, %390, %cst_130 {dimension_numbers = #tpu.dot_dimension_numbers<[1], [0], [0], [1], [0, 0, 1, 1], [], []>, precision = #tpu.contract_precision<fp32>} : vector<16x192xf32>, vector<192x32xf32>, vector<16x32xf32> -> vector<16x32xf32>
    %393 = vector.broadcast %391 : vector<1x32xf32> to vector<16x32xf32>
    %394 = arith.addf %392, %393 : vector<16x32xf32>
    %cst_131 = arith.constant 2.000000e+01 : f32
    %395 = vector.broadcast %cst_131 : f32 to vector<16x32xf32>
    %396 = arith.minimumf %394, %395 : vector<16x32xf32>
    %397 = math.exp %396 : vector<16x32xf32>
    %cst_132 = arith.constant 2.000000e+00 : f32
    %398 = vector.broadcast %cst_132 : f32 to vector<16x32xf32>
    %399 = arith.addf %397, %398 : vector<16x32xf32>
    %400 = arith.mulf %397, %399 : vector<16x32xf32>
    %cst_133 = arith.constant 2.000000e+01 : f32
    %401 = vector.broadcast %cst_133 : f32 to vector<16x32xf32>
    %402 = arith.cmpf ogt, %394, %401 : vector<16x32xf32>
    %cst_134 = arith.constant 2.000000e+00 : f32
    %403 = vector.broadcast %cst_134 : f32 to vector<16x32xf32>
    %404 = arith.addf %400, %403 : vector<16x32xf32>
    %405 = arith.divf %400, %404 : vector<16x32xf32>
    %406 = arith.mulf %394, %405 : vector<16x32xf32>
    %407 = arith.select %402, %394, %406 : vector<16x32xi1>, vector<16x32xf32>
    %408 = tpu.concatenate %263, %335, %407, %209 in 1 : vector<16x64xf32>, vector<16x32xf32>, vector<16x32xf32>, vector<16x128xf32> -> vector<16x256xf32>
    %c1664 = arith.constant 1664 : index
    %c0_135 = arith.constant 0 : index
    %409 = vector.load %arg1[%c1664, %c0_135] : memref<1920x128xf32, #tpu.memory_space<vmem>>, vector<256x128xf32>
    %c11 = arith.constant 11 : index
    %c0_136 = arith.constant 0 : index
    %410 = vector.load %arg2[%c11, %c0_136] : memref<12x128xf32, #tpu.memory_space<vmem>>, vector<1x128xf32>
    %cst_137 = arith.constant dense<0.000000e+00> : vector<16x128xf32>
    %411 = tpu.matmul %408, %409, %cst_137 {dimension_numbers = #tpu.dot_dimension_numbers<[1], [0], [0], [1], [0, 0, 1, 1], [], []>, precision = #tpu.contract_precision<fp32>} : vector<16x256xf32>, vector<256x128xf32>, vector<16x128xf32> -> vector<16x128xf32>
    %412 = vector.broadcast %410 : vector<1x128xf32> to vector<16x128xf32>
    %413 = arith.addf %411, %412 : vector<16x128xf32>
    %cst_138 = arith.constant 2.000000e+01 : f32
    %414 = vector.broadcast %cst_138 : f32 to vector<16x128xf32>
    %415 = arith.minimumf %413, %414 : vector<16x128xf32>
    %416 = math.exp %415 : vector<16x128xf32>
    %cst_139 = arith.constant 2.000000e+00 : f32
    %417 = vector.broadcast %cst_139 : f32 to vector<16x128xf32>
    %418 = arith.addf %416, %417 : vector<16x128xf32>
    %419 = arith.mulf %416, %418 : vector<16x128xf32>
    %cst_140 = arith.constant 2.000000e+01 : f32
    %420 = vector.broadcast %cst_140 : f32 to vector<16x128xf32>
    %421 = arith.cmpf ogt, %413, %420 : vector<16x128xf32>
    %cst_141 = arith.constant 2.000000e+00 : f32
    %422 = vector.broadcast %cst_141 : f32 to vector<16x128xf32>
    %423 = arith.addf %419, %422 : vector<16x128xf32>
    %424 = arith.divf %419, %423 : vector<16x128xf32>
    %425 = arith.mulf %413, %424 : vector<16x128xf32>
    %426 = arith.select %421, %413, %425 : vector<16x128xi1>, vector<16x128xf32>
    %c0_142 = arith.constant 0 : index
    %c0_143 = arith.constant 0 : index
    %427 = vector.load %arg3[%c0_142, %c0_143] : memref<16x128xf32, #tpu.memory_space<vmem>>, vector<16x128xf32>
    tpu.vector_store %arg3[%c0_142, %c0_143], %426 {strides = array<i32>} : memref<16x128xf32, #tpu.memory_space<vmem>>, vector<16x128xf32>,
    %c0_144 = arith.constant 0 : index
    %c0_145 = arith.constant 0 : index
    %428 = vector.load %arg4[%c0_144, %c0_145] : memref<16x128xf32, #tpu.memory_space<vmem>>, vector<16x128xf32>
    tpu.vector_store %arg4[%c0_144, %c0_145], %209 {strides = array<i32>} : memref<16x128xf32, #tpu.memory_space<vmem>>, vector<16x128xf32>,
    return
  }
}

</mosaic_0001>

<llo_original>
// kernel: tpu_custom_call.1
$region0: #{tpu_custom_call.1}
  #allocation0 [shape = 'u32[]', space=smem, size = 0x4, offset = 0x4, fixed_abs, tag = 'smem constant byte address 0x4 - core index']
  #allocation1 [shape = 'u32[72,128]{1,0:T(1,128)}', space=vmem, size = 0x9000, scoped, tag = 'internal scratch']
  %s0 = inlined_call_operand.hbm [shape: f32[32,64], index: 0, kind: input, shape index: {}]
  %s1 = inlined_call_operand.hbm [shape: f32[1920,128], index: 1, kind: input, shape index: {}]
  %s2 = inlined_call_operand.hbm [shape: f32[12,128], index: 2, kind: input, shape index: {}]
  %s3 = inlined_call_operand.hbm [shape: f32[16,128], index: 3, kind: output, shape index: {0}]
  %s4 = inlined_call_operand.hbm [shape: f32[16,128], index: 4, kind: output, shape index: {1}]
  %5 = xla_tuple %s3, %s4
  %s6 = sld [smem:[#allocation0]]
  $region42: #{tpu_custom_call.1} parent=0
    _
  %s8 = ssub.s32 1, %s6
  %s9 = scalar_select 0, %s8, %s6
  $region1: #{tpu_custom_call.1} parent=0
    #allocation2 [shape = 'u8[16384]{0}', space=vmem, size = 0x4000, scoped, tag = 'input window, operand 0, single buffered']
    #allocation3 [shape = 's32[1]{0}', space=sflag, size = 0x4, scoped, tag = 'scoped memory for tpu_custom_call.1']
    #allocation4 [shape = 's32[1]{0}', space=sflag, size = 0x4, scoped, tag = 'scoped memory for tpu_custom_call.1']
    #allocation5 [shape = 'u8[983040]{0}', space=vmem, size = 0xf0000, scoped, tag = 'input window, operand 1, single buffered']
    #allocation6 [shape = 's32[1]{0}', space=sflag, size = 0x4, scoped, tag = 'scoped memory for tpu_custom_call.1']
    #allocation7 [shape = 'u8[8192]{0}', space=vmem, size = 0x2000, scoped, tag = 'input window, operand 2, single buffered']
    #allocation8 [shape = 'u8[8192]{0}', space=vmem, size = 0x2000, scoped, tag = 'output window, operand 0, single buffered']
    #allocation9 [shape = 'u8[8192]{0}', space=vmem, size = 0x2000, scoped, tag = 'output window, operand 1, single buffered']
    #allocation10 [shape = 's32[1]{0}', space=sflag, size = 0x4, scoped, tag = 'scoped memory for tpu_custom_call.1']
    %10 = vsyncpa [#allocation3], 0
    %11 = vsyncpa [#allocation6], 0
    %12 = vsyncpa [#allocation4], 0
    %13 = vsyncpa [#allocation10], 0
    // Predicated region
    $region2: #{tpu_custom_call.1} parent=1 // pred_check
      _
    $region3: #{tpu_custom_call.1} parent=1 // pred_check_branch
      %15 = sbr.rel (0) target = $region5
    $region4: #{tpu_custom_call.1} parent=1 // pred_region
      %17 = vsyncadd [#allocation3], 0
      %s18 = sshll.u32 %s0, 4
      %s19 = int_to_ptr.hbm [resolvable:$true] %s18
      %s20 = sshll.u32 [#allocation2], 4
      %s21 = int_to_ptr.vmem [resolvable:$true] %s20
      %26 = dma.hbm_to_vmem [thread:$0]  %s19, 512, %s21, [#allocation3], 128, 128, 8
    $region5: #{tpu_custom_call.1} parent=1 // pred_fallthru
      _
    // Predicated region
    $region6: #{tpu_custom_call.1} parent=1 // pred_check
      _
    $region7: #{tpu_custom_call.1} parent=1 // pred_check_branch
      %28 = sbr.rel (0) target = $region9
    $region8: #{tpu_custom_call.1} parent=1 // pred_region
      %30 = vsyncadd [#allocation6], 0
      %s31 = sshll.u32 %s1, 4
      %s32 = int_to_ptr.hbm [resolvable:$true] %s31
      %s33 = sshll.u32 [#allocation5], 4
      %s34 = int_to_ptr.vmem [resolvable:$true] %s33
      %39 = dma.hbm_to_vmem [thread:$0]  %s32, 30720, %s34, [#allocation6], 128, 128, 8
    $region9: #{tpu_custom_call.1} parent=1 // pred_fallthru
      _
    // Predicated region
    $region10: #{tpu_custom_call.1} parent=1 // pred_check
      _
    $region11: #{tpu_custom_call.1} parent=1 // pred_check_branch
      %41 = sbr.rel (0) target = $region13
    $region12: #{tpu_custom_call.1} parent=1 // pred_region
      %43 = vsyncadd [#allocation6], 0
      %s44 = sshll.u32 %s2, 4
      %s45 = int_to_ptr.hbm [resolvable:$true] %s44
      %s46 = sshll.u32 [#allocation7], 4
      %s47 = int_to_ptr.vmem [resolvable:$true] %s46
      %52 = dma.hbm_to_vmem [thread:$0]  %s45, 256, %s47, [#allocation6], 128, 128, 8
    $region13: #{tpu_custom_call.1} parent=1 // pred_fallthru
      _
    // Predicated region
    $region14: #{tpu_custom_call.1} parent=1 // pred_check
      _
    $region15: #{tpu_custom_call.1} parent=1 // pred_check_branch
      %54 = sbr.rel (0) target = $region17
    $region16: #{tpu_custom_call.1} parent=1 // pred_region
      %56 = dma.done [#allocation3], 512
    $region17: #{tpu_custom_call.1} parent=1 // pred_fallthru
      _
    // Predicated region
    $region18: #{tpu_custom_call.1} parent=1 // pred_check
      _
    $region19: #{tpu_custom_call.1} parent=1 // pred_check_branch
      %58 = sbr.rel (0) target = $region21
    $region20: #{tpu_custom_call.1} parent=1 // pred_region
      %60 = dma.done [#allocation6], 30720
    $region21: #{tpu_custom_call.1} parent=1 // pred_fallthru
      _
    // Predicated region
    $region22: #{tpu_custom_call.1} parent=1 // pred_check
      _
    $region23: #{tpu_custom_call.1} parent=1 // pred_check_branch
      %62 = sbr.rel (0) target = $region25
    $region24: #{tpu_custom_call.1} parent=1 // pred_region
      %64 = dma.done [#allocation6], 256
    $region25: #{tpu_custom_call.1} parent=1 // pred_fallthru
      _
    %v65 = vld [vmem:[#allocation2] ss:$2 sm:$0xff]
    %s66 = scalar_lea.vmem [#allocation2], 16
    %v67 = vld [vmem:[%s66] ss:$2 sm:$0xff]
    %s68 = scalar_lea.vmem [#allocation2], 1
    %v69 = vld [vmem:[%s68] ss:$2 sm:$0xff]
    %s70 = scalar_lea.vmem [#allocation2], 17
    %v71 = vld [vmem:[%s70] ss:$2 sm:$0xff]
    %vm74 = vcmask 1040384
    %v75 = vrot.slane %v69, 7
    %v76 = vrot.slane %v71, 7
    %v77 = vsel %vm74, %v75, %v76
    %v80 = vsel %vm74, %v69, %v75
    %v81 = vlaneseq
    %v82 = vshrl.u32 %v81, 7
    %v83 = vadd.s32 %v82, 8
    %vm84 = vcmp.lt.s32.totalorder %v82, 0
    %v85 = vsub.s32 0, %v82
    %v86 = vsel %vm84, %v85, %v82
    %v87 = vshrl.u32 %v86, 3
    %v88 = vand.u32 %v86, 7
    %v89 = vsub.s32 0, %v88
    %v90 = vsel %vm84, %v89, %v88
    %vm91 = vcmp.lt.s32.totalorder %v83, 0
    %v92 = vsub.s32 0, %v83
    %v93 = vsel %vm91, %v92, %v83
    %v94 = vshrl.u32 %v93, 3
    %v95 = vand.u32 %v93, 7
    %v96 = vsub.s32 0, %v95
    %v97 = vsel %vm91, %v96, %v95
    %vm98 = vcmp.ne.s32.totalorder %v90, 0
    %vm99 = vcmp.ne.s32.totalorder %v97, 0
    %vm100 = vcmp.lt.s32.totalorder %v90, 0
    %vm101 = vcmp.lt.s32.totalorder %v97, 0
    %vm102 = vmand %vm100, %vm98
    %vm103 = vmand %vm101, %vm99
    %v104 = vadd.s32 %v90, 8
    %v105 = vadd.s32 %v97, 8
    %v106 = vsel %vm102, %v104, %v90
    %v107 = vsel %vm103, %v105, %v97
    %vm108 = vcmp.eq.s32.totalorder %v106, 0
    %vm109 = vcmp.eq.s32.totalorder %v107, 0
    %v110 = vsel %vm108, 1, 0
    %v111 = vsel %vm109, 1, 0
    %vm112 = vcmp.eq.s32.totalorder %v110, 1
    %vm113 = vcmp.eq.s32.totalorder %v111, 1
    %v114 = vsel %vm112, 0.0, %v80
    %v115 = vsel %vm113, 0.0, %v77
    %118 = vrot.lane.b32.xlu0 %v65, 64
    %v119 = vpop.permute.xlu0 %118
    %120 = vrot.lane.b32.xlu0 %v67, 64
    %v121 = vpop.permute.xlu0 %120
    %vm124 = vcmask 523264
    %v125 = vsel %vm124, %v114, %v119
    %v126 = vsel %vm124, %v115, %v121
    %v127 = vld [vmem:[#allocation5] sm:$0xff]
    %v128 = vld [vmem:[#allocation5 + $0x8] sm:$0xff]
    %v129 = vld [vmem:[#allocation5 + $0x10] sm:$0xff]
    %v130 = vld [vmem:[#allocation5 + $0x18] sm:$0xff]
    %v131 = vld [vmem:[#allocation5 + $0x20] sm:$0xff]
    %v132 = vld [vmem:[#allocation5 + $0x28] sm:$0xff]
    %v133 = vld [vmem:[#allocation5 + $0x30] sm:$0xff]
    %v134 = vld [vmem:[#allocation5 + $0x38] sm:$0xff]
    %v135 = vld [vmem:[#allocation5 + $0x40] sm:$0xff]
    %v136 = vld [vmem:[#allocation5 + $0x48] sm:$0xff]
    %v137 = vld [vmem:[#allocation5 + $0x50] sm:$0xff]
    %v138 = vld [vmem:[#allocation5 + $0x58] sm:$0xff]
    %v139 = vld [vmem:[#allocation5 + $0x60] sm:$0xff]
    %v140 = vld [vmem:[#allocation5 + $0x68] sm:$0xff]
    %v141 = vld [vmem:[#allocation5 + $0x70] sm:$0xff]
    %v142 = vld [vmem:[#allocation5 + $0x78] sm:$0xff]
    %v143 = vld [vmem:[#allocation5 + $0x80] sm:$0xff]
    %v144 = vld [vmem:[#allocation5 + $0x88] sm:$0xff]
    %v145 = vld [vmem:[#allocation5 + $0x90] sm:$0xff]
    %v146 = vld [vmem:[#allocation5 + $0x98] sm:$0xff]
    %v147 = vld [vmem:[#allocation5 + $0xa0] sm:$0xff]
    %v148 = vld [vmem:[#allocation5 + $0xa8] sm:$0xff]
    %v149 = vld [vmem:[#allocation5 + $0xb0] sm:$0xff]
    %v150 = vld [vmem:[#allocation5 + $0xb8] sm:$0xff]
    %v151 = vld [vmem:[#allocation7] sm:$0x1]
    %v152 = vperm.slane %v151, 0
    %v153 = vsel %vm124, %v69, 0
    %v155 = vsel %vm124, %v71, 0
    %v157 = vand.u32 %v142, 4294901760
    %158 = vmatpush.msra.mxu0 %v157
    %v159 = vand.u32 %v141, 4294901760
    %160 = vmatpush.msra.mxu0 %v159
    %v161 = vand.u32 %v140, 4294901760
    %162 = vmatpush.msra.mxu0 %v161
    %v163 = vand.u32 %v139, 4294901760
    %164 = vmatpush.msra.mxu0 %v163
    %v165 = vand.u32 %v138, 4294901760
    %166 = vmatpush.msra.mxu0 %v165
    %v167 = vand.u32 %v137, 4294901760
    %168 = vmatpush.msra.mxu0 %v167
    %v169 = vand.u32 %v136, 4294901760
    %170 = vmatpush.msra.mxu0 %v169
    %v171 = vand.u32 %v135, 4294901760
    %172 = vmatpush.msra.mxu0 %v171
    %v173 = vand.u32 %v134, 4294901760
    %174 = vmatpush.msra.mxu0 %v173
    %v175 = vand.u32 %v133, 4294901760
    %176 = vmatpush.msra.mxu0 %v175
    %v177 = vand.u32 %v132, 4294901760
    %178 = vmatpush.msra.mxu0 %v177
    %v179 = vand.u32 %v131, 4294901760
    %180 = vmatpush.msra.mxu0 %v179
    %v181 = vand.u32 %v130, 4294901760
    %182 = vmatpush.msra.mxu0 %v181
    %v183 = vand.u32 %v129, 4294901760
    %184 = vmatpush.msra.mxu0 %v183
    %v185 = vand.u32 %v128, 4294901760
    %186 = vmatpush.msra.mxu0 %v185
    %v187 = vand.u32 %v127, 4294901760
    %188 = vmatpush.msra.mxu0 %v187
    %v189 = vand.u32 %v125, 4294901760
    %v190 = vsub.f32 %v125, %v189
    %v191 = vand.u32 %v190, 4294901760
    %v192 = vsub.f32 %v190, %v191
    %v193 = vand.u32 %v192, 4294901760
    %194 = vmatmul.f32.gmra.mxu0 %v193
    %v195 = vpop.f32.mrf.mxu0
    %v196 = vadd.f32 %v152, %v195
    %v197 = vand.u32 %v126, 4294901760
    %v198 = vsub.f32 %v126, %v197
    %v199 = vand.u32 %v198, 4294901760
    %v200 = vsub.f32 %v198, %v199
    %v201 = vand.u32 %v200, 4294901760
    %202 = vmatmul.f32.gmra.mxu0 %v201
    %v203 = vpop.f32.mrf.mxu0
    %v204 = vadd.f32 %v152, %v203
    %205 = vdwg.mxu0
    %v206 = vand.u32 %v142, 4294901760
    %v207 = vsub.f32 %v142, %v206
    %v208 = vand.u32 %v207, 4294901760
    %v209 = vsub.f32 %v207, %v208
    %v210 = vand.u32 %v209, 4294901760
    %211 = vmatpush.msra.mxu0 %v210
    %v212 = vand.u32 %v141, 4294901760
    %v213 = vsub.f32 %v141, %v212
    %v214 = vand.u32 %v213, 4294901760
    %v215 = vsub.f32 %v213, %v214
    %v216 = vand.u32 %v215, 4294901760
    %217 = vmatpush.msra.mxu0 %v216
    %v218 = vand.u32 %v140, 4294901760
    %v219 = vsub.f32 %v140, %v218
    %v220 = vand.u32 %v219, 4294901760
    %v221 = vsub.f32 %v219, %v220
    %v222 = vand.u32 %v221, 4294901760
    %223 = vmatpush.msra.mxu0 %v222
    %v224 = vand.u32 %v139, 4294901760
    %v225 = vsub.f32 %v139, %v224
    %v226 = vand.u32 %v225, 4294901760
    %v227 = vsub.f32 %v225, %v226
    %v228 = vand.u32 %v227, 4294901760
    %229 = vmatpush.msra.mxu0 %v228
    %v230 = vand.u32 %v138, 4294901760
    %v231 = vsub.f32 %v138, %v230
    %v232 = vand.u32 %v231, 4294901760
    %v233 = vsub.f32 %v231, %v232
    %v234 = vand.u32 %v233, 4294901760
    %235 = vmatpush.msra.mxu0 %v234
    %v236 = vand.u32 %v137, 4294901760
    %v237 = vsub.f32 %v137, %v236
    %v238 = vand.u32 %v237, 4294901760
    %v239 = vsub.f32 %v237, %v238
    %v240 = vand.u32 %v239, 4294901760
    %241 = vmatpush.msra.mxu0 %v240
    %v242 = vand.u32 %v136, 4294901760
    %v243 = vsub.f32 %v136, %v242
    %v244 = vand.u32 %v243, 4294901760
    %v245 = vsub.f32 %v243, %v244
    %v246 = vand.u32 %v245, 4294901760
    %247 = vmatpush.msra.mxu0 %v246
    %v248 = vand.u32 %v135, 4294901760
    %v249 = vsub.f32 %v135, %v248
    %v250 = vand.u32 %v249, 4294901760
    %v251 = vsub.f32 %v249, %v250
    %v252 = vand.u32 %v251, 4294901760
    %253 = vmatpush.msra.mxu0 %v252
    %v254 = vand.u32 %v134, 4294901760
    %v255 = vsub.f32 %v134, %v254
    %v256 = vand.u32 %v255, 4294901760
    %v257 = vsub.f32 %v255, %v256
    %v258 = vand.u32 %v257, 4294901760
    %259 = vmatpush.msra.mxu0 %v258
    %v260 = vand.u32 %v133, 4294901760
    %v261 = vsub.f32 %v133, %v260
    %v262 = vand.u32 %v261, 4294901760
    %v263 = vsub.f32 %v261, %v262
    %v264 = vand.u32 %v263, 4294901760
    %265 = vmatpush.msra.mxu0 %v264
    %v266 = vand.u32 %v132, 4294901760
    %v267 = vsub.f32 %v132, %v266
    %v268 = vand.u32 %v267, 4294901760
    %v269 = vsub.f32 %v267, %v268
    %v270 = vand.u32 %v269, 4294901760
    %271 = vmatpush.msra.mxu0 %v270
    %v272 = vand.u32 %v131, 4294901760
    %v273 = vsub.f32 %v131, %v272
    %v274 = vand.u32 %v273, 4294901760
    %v275 = vsub.f32 %v273, %v274
    %v276 = vand.u32 %v275, 4294901760
    %277 = vmatpush.msra.mxu0 %v276
    %v278 = vand.u32 %v130, 4294901760
    %v279 = vsub.f32 %v130, %v278
    %v280 = vand.u32 %v279, 4294901760
    %v281 = vsub.f32 %v279, %v280
    %v282 = vand.u32 %v281, 4294901760
    %283 = vmatpush.msra.mxu0 %v282
    %v284 = vand.u32 %v129, 4294901760
    %v285 = vsub.f32 %v129, %v284
    %v286 = vand.u32 %v285, 4294901760
    %v287 = vsub.f32 %v285, %v286
    %v288 = vand.u32 %v287, 4294901760
    %289 = vmatpush.msra.mxu0 %v288
    %v290 = vand.u32 %v128, 4294901760
    %v291 = vsub.f32 %v128, %v290
    %v292 = vand.u32 %v291, 4294901760
    %v293 = vsub.f32 %v291, %v292
    %v294 = vand.u32 %v293, 4294901760
    %295 = vmatpush.msra.mxu0 %v294
    %v296 = vand.u32 %v127, 4294901760
    %v297 = vsub.f32 %v127, %v296
    %v298 = vand.u32 %v297, 4294901760
    %v299 = vsub.f32 %v297, %v298
    %v300 = vand.u32 %v299, 4294901760
    %301 = vmatpush.msra.mxu0 %v300
    %v302 = vand.u32 %v125, 4294901760
    %303 = vmatmul.f32.gmra.mxu0 %v302
    %v304 = vpop.f32.mrf.mxu0
    %v305 = vadd.f32 %v196, %v304
    %v306 = vand.u32 %v126, 4294901760
    %307 = vmatmul.f32.gmra.mxu0 %v306
    %v308 = vpop.f32.mrf.mxu0
    %v309 = vadd.f32 %v204, %v308
    %310 = vdwg.mxu0
    %v311 = vand.u32 %v142, 4294901760
    %v312 = vsub.f32 %v142, %v311
    %313 = vmatpush.msra.mxu0 %v312
    %v314 = vand.u32 %v141, 4294901760
    %v315 = vsub.f32 %v141, %v314
    %316 = vmatpush.msra.mxu0 %v315
    %v317 = vand.u32 %v140, 4294901760
    %v318 = vsub.f32 %v140, %v317
    %319 = vmatpush.msra.mxu0 %v318
    %v320 = vand.u32 %v139, 4294901760
    %v321 = vsub.f32 %v139, %v320
    %322 = vmatpush.msra.mxu0 %v321
    %v323 = vand.u32 %v138, 4294901760
    %v324 = vsub.f32 %v138, %v323
    %325 = vmatpush.msra.mxu0 %v324
    %v326 = vand.u32 %v137, 4294901760
    %v327 = vsub.f32 %v137, %v326
    %328 = vmatpush.msra.mxu0 %v327
    %v329 = vand.u32 %v136, 4294901760
    %v330 = vsub.f32 %v136, %v329
    %331 = vmatpush.msra.mxu0 %v330
    %v332 = vand.u32 %v135, 4294901760
    %v333 = vsub.f32 %v135, %v332
    %334 = vmatpush.msra.mxu0 %v333
    %v335 = vand.u32 %v134, 4294901760
    %v336 = vsub.f32 %v134, %v335
    %337 = vmatpush.msra.mxu0 %v336
    %v338 = vand.u32 %v133, 4294901760
    %v339 = vsub.f32 %v133, %v338
    %340 = vmatpush.msra.mxu0 %v339
    %v341 = vand.u32 %v132, 4294901760
    %v342 = vsub.f32 %v132, %v341
    %343 = vmatpush.msra.mxu0 %v342
    %v344 = vand.u32 %v131, 4294901760
    %v345 = vsub.f32 %v131, %v344
    %346 = vmatpush.msra.mxu0 %v345
    %v347 = vand.u32 %v130, 4294901760
    %v348 = vsub.f32 %v130, %v347
    %349 = vmatpush.msra.mxu0 %v348
    %v350 = vand.u32 %v129, 4294901760
    %v351 = vsub.f32 %v129, %v350
    %352 = vmatpush.msra.mxu0 %v351
    %v353 = vand.u32 %v128, 4294901760
    %v354 = vsub.f32 %v128, %v353
    %355 = vmatpush.msra.mxu0 %v354
    %v356 = vand.u32 %v127, 4294901760
    %v357 = vsub.f32 %v127, %v356
    %358 = vmatpush.msra.mxu0 %v357
    %v359 = vand.u32 %v125, 4294901760
    %v360 = vsub.f32 %v125, %v359
    %361 = vmatmul.f32.gmra.mxu0 %v360
    %v362 = vpop.f32.mrf.mxu0
    %v363 = vadd.f32 %v305, %v362
    %v364 = vand.u32 %v126, 4294901760
    %v365 = vsub.f32 %v126, %v364
    %366 = vmatmul.f32.gmra.mxu0 %v365
    %v367 = vpop.f32.mrf.mxu0
    %v368 = vadd.f32 %v309, %v367
    %369 = vdwg.mxu0
    %v370 = vand.u32 %v142, 4294901760
    %371 = vmatpush.msra.mxu0 %v370
    %v372 = vand.u32 %v141, 4294901760
    %373 = vmatpush.msra.mxu0 %v372
    %v374 = vand.u32 %v140, 4294901760
    %375 = vmatpush.msra.mxu0 %v374
    %v376 = vand.u32 %v139, 4294901760
    %377 = vmatpush.msra.mxu0 %v376
    %v378 = vand.u32 %v138, 4294901760
    %379 = vmatpush.msra.mxu0 %v378
    %v380 = vand.u32 %v137, 4294901760
    %381 = vmatpush.msra.mxu0 %v380
    %v382 = vand.u32 %v136, 4294901760
    %383 = vmatpush.msra.mxu0 %v382
    %v384 = vand.u32 %v135, 4294901760
    %385 = vmatpush.msra.mxu0 %v384
    %v386 = vand.u32 %v134, 4294901760
    %387 = vmatpush.msra.mxu0 %v386
    %v388 = vand.u32 %v133, 4294901760
    %389 = vmatpush.msra.mxu0 %v388
    %v390 = vand.u32 %v132, 4294901760
    %391 = vmatpush.msra.mxu0 %v390
    %v392 = vand.u32 %v131, 4294901760
    %393 = vmatpush.msra.mxu0 %v392
    %v394 = vand.u32 %v130, 4294901760
    %395 = vmatpush.msra.mxu0 %v394
    %v396 = vand.u32 %v129, 4294901760
    %397 = vmatpush.msra.mxu0 %v396
    %v398 = vand.u32 %v128, 4294901760
    %399 = vmatpush.msra.mxu0 %v398
    %v400 = vand.u32 %v127, 4294901760
    %401 = vmatpush.msra.mxu0 %v400
    %v402 = vand.u32 %v125, 4294901760
    %v403 = vsub.f32 %v125, %v402
    %v404 = vand.u32 %v403, 4294901760
    %405 = vmatmul.f32.gmra.mxu0 %v404
    %v406 = vpop.f32.mrf.mxu0
    %v407 = vadd.f32 %v363, %v406
    %v408 = vand.u32 %v126, 4294901760
    %v409 = vsub.f32 %v126, %v408
    %v410 = vand.u32 %v409, 4294901760
    %411 = vmatmul.f32.gmra.mxu0 %v410
    %v412 = vpop.f32.mrf.mxu0
    %v413 = vadd.f32 %v368, %v412
    %414 = vdwg.mxu0
    %v415 = vand.u32 %v142, 4294901760
    %v416 = vsub.f32 %v142, %v415
    %v417 = vand.u32 %v416, 4294901760
    %418 = vmatpush.msra.mxu0 %v417
    %v419 = vand.u32 %v141, 4294901760
    %v420 = vsub.f32 %v141, %v419
    %v421 = vand.u32 %v420, 4294901760
    %422 = vmatpush.msra.mxu0 %v421
    %v423 = vand.u32 %v140, 4294901760
    %v424 = vsub.f32 %v140, %v423
    %v425 = vand.u32 %v424, 4294901760
    %426 = vmatpush.msra.mxu0 %v425
    %v427 = vand.u32 %v139, 4294901760
    %v428 = vsub.f32 %v139, %v427
    %v429 = vand.u32 %v428, 4294901760
    %430 = vmatpush.msra.mxu0 %v429
    %v431 = vand.u32 %v138, 4294901760
    %v432 = vsub.f32 %v138, %v431
    %v433 = vand.u32 %v432, 4294901760
    %434 = vmatpush.msra.mxu0 %v433
    %v435 = vand.u32 %v137, 4294901760
    %v436 = vsub.f32 %v137, %v435
    %v437 = vand.u32 %v436, 4294901760
    %438 = vmatpush.msra.mxu0 %v437
    %v439 = vand.u32 %v136, 4294901760
    %v440 = vsub.f32 %v136, %v439
    %v441 = vand.u32 %v440, 4294901760
    %442 = vmatpush.msra.mxu0 %v441
    %v443 = vand.u32 %v135, 4294901760
    %v444 = vsub.f32 %v135, %v443
    %v445 = vand.u32 %v444, 4294901760
    %446 = vmatpush.msra.mxu0 %v445
    %v447 = vand.u32 %v134, 4294901760
    %v448 = vsub.f32 %v134, %v447
    %v449 = vand.u32 %v448, 4294901760
    %450 = vmatpush.msra.mxu0 %v449
    %v451 = vand.u32 %v133, 4294901760
    %v452 = vsub.f32 %v133, %v451
    %v453 = vand.u32 %v452, 4294901760
    %454 = vmatpush.msra.mxu0 %v453
    %v455 = vand.u32 %v132, 4294901760
    %v456 = vsub.f32 %v132, %v455
    %v457 = vand.u32 %v456, 4294901760
    %458 = vmatpush.msra.mxu0 %v457
    %v459 = vand.u32 %v131, 4294901760
    %v460 = vsub.f32 %v131, %v459
    %v461 = vand.u32 %v460, 4294901760
    %462 = vmatpush.msra.mxu0 %v461
    %v463 = vand.u32 %v130, 4294901760
    %v464 = vsub.f32 %v130, %v463
    %v465 = vand.u32 %v464, 4294901760
    %466 = vmatpush.msra.mxu0 %v465
    %v467 = vand.u32 %v129, 4294901760
    %v468 = vsub.f32 %v129, %v467
    %v469 = vand.u32 %v468, 4294901760
    %470 = vmatpush.msra.mxu0 %v469
    %v471 = vand.u32 %v128, 4294901760
    %v472 = vsub.f32 %v128, %v471
    %v473 = vand.u32 %v472, 4294901760
    %474 = vmatpush.msra.mxu0 %v473
    %v475 = vand.u32 %v127, 4294901760
    %v476 = vsub.f32 %v127, %v475
    %v477 = vand.u32 %v476, 4294901760
    %478 = vmatpush.msra.mxu0 %v477
    %v479 = vand.u32 %v125, 4294901760
    %480 = vmatmul.f32.gmra.mxu0 %v479
    %v481 = vpop.f32.mrf.mxu0
    %v482 = vadd.f32 %v407, %v481
    %v483 = vand.u32 %v126, 4294901760
    %484 = vmatmul.f32.gmra.mxu0 %v483
    %v485 = vpop.f32.mrf.mxu0
    %v486 = vadd.f32 %v413, %v485
    %487 = vdwg.mxu0
    %v488 = vand.u32 %v142, 4294901760
    %489 = vmatpush.msra.mxu0 %v488
    %v490 = vand.u32 %v141, 4294901760
    %491 = vmatpush.msra.mxu0 %v490
    %v492 = vand.u32 %v140, 4294901760
    %493 = vmatpush.msra.mxu0 %v492
    %v494 = vand.u32 %v139, 4294901760
    %495 = vmatpush.msra.mxu0 %v494
    %v496 = vand.u32 %v138, 4294901760
    %497 = vmatpush.msra.mxu0 %v496
    %v498 = vand.u32 %v137, 4294901760
    %499 = vmatpush.msra.mxu0 %v498
    %v500 = vand.u32 %v136, 4294901760
    %501 = vmatpush.msra.mxu0 %v500
    %v502 = vand.u32 %v135, 4294901760
    %503 = vmatpush.msra.mxu0 %v502
    %v504 = vand.u32 %v134, 4294901760
    %505 = vmatpush.msra.mxu0 %v504
    %v506 = vand.u32 %v133, 4294901760
    %507 = vmatpush.msra.mxu0 %v506
    %v508 = vand.u32 %v132, 4294901760
    %509 = vmatpush.msra.mxu0 %v508
    %v510 = vand.u32 %v131, 4294901760
    %511 = vmatpush.msra.mxu0 %v510
    %v512 = vand.u32 %v130, 4294901760
    %513 = vmatpush.msra.mxu0 %v512
    %v514 = vand.u32 %v129, 4294901760
    %515 = vmatpush.msra.mxu0 %v514
    %v516 = vand.u32 %v128, 4294901760
    %517 = vmatpush.msra.mxu0 %v516
    %v518 = vand.u32 %v127, 4294901760
    %519 = vmatpush.msra.mxu0 %v518
    %v520 = vand.u32 %v125, 4294901760
    %521 = vmatmul.f32.gmra.mxu0 %v520
    %v522 = vpop.f32.mrf.mxu0
    %v523 = vadd.f32 %v482, %v522
    %v524 = vand.u32 %v126, 4294901760
    %525 = vmatmul.f32.gmra.mxu0 %v524
    %v526 = vpop.f32.mrf.mxu0
    %v527 = vadd.f32 %v486, %v526
    %528 = vdwg.mxu0
    %529 = vmatpush.msra.mxu0 0.0
    %530 = vmatpush.msra.mxu0 0.0
    %531 = vmatpush.msra.mxu0 0.0
    %532 = vmatpush.msra.mxu0 0.0
    %533 = vmatpush.msra.mxu0 0.0
    %534 = vmatpush.msra.mxu0 0.0
    %535 = vmatpush.msra.mxu0 0.0
    %536 = vmatpush.msra.mxu0 0.0
    %v537 = vand.u32 %v150, 4294901760
    %538 = vmatpush.msra.mxu0 %v537
    %v539 = vand.u32 %v149, 4294901760
    %540 = vmatpush.msra.mxu0 %v539
    %v541 = vand.u32 %v148, 4294901760
    %542 = vmatpush.msra.mxu0 %v541
    %v543 = vand.u32 %v147, 4294901760
    %544 = vmatpush.msra.mxu0 %v543
    %v545 = vand.u32 %v146, 4294901760
    %546 = vmatpush.msra.mxu0 %v545
    %v547 = vand.u32 %v145, 4294901760
    %548 = vmatpush.msra.mxu0 %v547
    %v549 = vand.u32 %v144, 4294901760
    %550 = vmatpush.msra.mxu0 %v549
    %v551 = vand.u32 %v143, 4294901760
    %552 = vmatpush.msra.mxu0 %v551
    %v553 = vand.u32 %v153, 4294901760
    %v554 = vsub.f32 %v153, %v553
    %v555 = vand.u32 %v554, 4294901760
    %v556 = vsub.f32 %v554, %v555
    %v557 = vand.u32 %v556, 4294901760
    %558 = vmatmul.f32.gmra.mxu0 %v557
    %v559 = vpop.f32.mrf.mxu0
    %v560 = vadd.f32 %v523, %v559
    %v561 = vand.u32 %v155, 4294901760
    %v562 = vsub.f32 %v155, %v561
    %v563 = vand.u32 %v562, 4294901760
    %v564 = vsub.f32 %v562, %v563
    %v565 = vand.u32 %v564, 4294901760
    %566 = vmatmul.f32.gmra.mxu0 %v565
    %v567 = vpop.f32.mrf.mxu0
    %v568 = vadd.f32 %v527, %v567
    %569 = vdwg.mxu0
    %570 = vmatpush.msra.mxu0 0.0
    %571 = vmatpush.msra.mxu0 0.0
    %572 = vmatpush.msra.mxu0 0.0
    %573 = vmatpush.msra.mxu0 0.0
    %574 = vmatpush.msra.mxu0 0.0
    %575 = vmatpush.msra.mxu0 0.0
    %576 = vmatpush.msra.mxu0 0.0
    %577 = vmatpush.msra.mxu0 0.0
    %v578 = vand.u32 %v150, 4294901760
    %v579 = vsub.f32 %v150, %v578
    %v580 = vand.u32 %v579, 4294901760
    %v581 = vsub.f32 %v579, %v580
    %v582 = vand.u32 %v581, 4294901760
    %583 = vmatpush.msra.mxu0 %v582
    %v584 = vand.u32 %v149, 4294901760
    %v585 = vsub.f32 %v149, %v584
    %v586 = vand.u32 %v585, 4294901760
    %v587 = vsub.f32 %v585, %v586
    %v588 = vand.u32 %v587, 4294901760
    %589 = vmatpush.msra.mxu0 %v588
    %v590 = vand.u32 %v148, 4294901760
    %v591 = vsub.f32 %v148, %v590
    %v592 = vand.u32 %v591, 4294901760
    %v593 = vsub.f32 %v591, %v592
    %v594 = vand.u32 %v593, 4294901760
    %595 = vmatpush.msra.mxu0 %v594
    %v596 = vand.u32 %v147, 4294901760
    %v597 = vsub.f32 %v147, %v596
    %v598 = vand.u32 %v597, 4294901760
    %v599 = vsub.f32 %v597, %v598
    %v600 = vand.u32 %v599, 4294901760
    %601 = vmatpush.msra.mxu0 %v600
    %v602 = vand.u32 %v146, 4294901760
    %v603 = vsub.f32 %v146, %v602
    %v604 = vand.u32 %v603, 4294901760
    %v605 = vsub.f32 %v603, %v604
    %v606 = vand.u32 %v605, 4294901760
    %607 = vmatpush.msra.mxu0 %v606
    %v608 = vand.u32 %v145, 4294901760
    %v609 = vsub.f32 %v145, %v608
    %v610 = vand.u32 %v609, 4294901760
    %v611 = vsub.f32 %v609, %v610
    %v612 = vand.u32 %v611, 4294901760
    %613 = vmatpush.msra.mxu0 %v612
    %v614 = vand.u32 %v144, 4294901760
    %v615 = vsub.f32 %v144, %v614
    %v616 = vand.u32 %v615, 4294901760
    %v617 = vsub.f32 %v615, %v616
    %v618 = vand.u32 %v617, 4294901760
    %619 = vmatpush.msra.mxu0 %v618
    %v620 = vand.u32 %v143, 4294901760
    %v621 = vsub.f32 %v143, %v620
    %v622 = vand.u32 %v621, 4294901760
    %v623 = vsub.f32 %v621, %v622
    %v624 = vand.u32 %v623, 4294901760
    %625 = vmatpush.msra.mxu0 %v624
    %v626 = vand.u32 %v153, 4294901760
    %627 = vmatmul.f32.gmra.mxu0 %v626
    %v628 = vpop.f32.mrf.mxu0
    %v629 = vadd.f32 %v560, %v628
    %v630 = vand.u32 %v155, 4294901760
    %631 = vmatmul.f32.gmra.mxu0 %v630
    %v632 = vpop.f32.mrf.mxu0
    %v633 = vadd.f32 %v568, %v632
    %634 = vdwg.mxu0
    %635 = vmatpush.msra.mxu0 0.0
    %636 = vmatpush.msra.mxu0 0.0
    %637 = vmatpush.msra.mxu0 0.0
    %638 = vmatpush.msra.mxu0 0.0
    %639 = vmatpush.msra.mxu0 0.0
    %640 = vmatpush.msra.mxu0 0.0
    %641 = vmatpush.msra.mxu0 0.0
    %642 = vmatpush.msra.mxu0 0.0
    %v643 = vand.u32 %v150, 4294901760
    %v644 = vsub.f32 %v150, %v643
    %645 = vmatpush.msra.mxu0 %v644
    %v646 = vand.u32 %v149, 4294901760
    %v647 = vsub.f32 %v149, %v646
    %648 = vmatpush.msra.mxu0 %v647
    %v649 = vand.u32 %v148, 4294901760
    %v650 = vsub.f32 %v148, %v649
    %651 = vmatpush.msra.mxu0 %v650
    %v652 = vand.u32 %v147, 4294901760
    %v653 = vsub.f32 %v147, %v652
    %654 = vmatpush.msra.mxu0 %v653
    %v655 = vand.u32 %v146, 4294901760
    %v656 = vsub.f32 %v146, %v655
    %657 = vmatpush.msra.mxu0 %v656
    %v658 = vand.u32 %v145, 4294901760
    %v659 = vsub.f32 %v145, %v658
    %660 = vmatpush.msra.mxu0 %v659
    %v661 = vand.u32 %v144, 4294901760
    %v662 = vsub.f32 %v144, %v661
    %663 = vmatpush.msra.mxu0 %v662
    %v664 = vand.u32 %v143, 4294901760
    %v665 = vsub.f32 %v143, %v664
    %666 = vmatpush.msra.mxu0 %v665
    %v667 = vand.u32 %v153, 4294901760
    %v668 = vsub.f32 %v153, %v667
    %669 = vmatmul.f32.gmra.mxu0 %v668
    %v670 = vpop.f32.mrf.mxu0
    %v671 = vadd.f32 %v629, %v670
    %v672 = vand.u32 %v155, 4294901760
    %v673 = vsub.f32 %v155, %v672
    %674 = vmatmul.f32.gmra.mxu0 %v673
    %v675 = vpop.f32.mrf.mxu0
    %v676 = vadd.f32 %v633, %v675
    %677 = vdwg.mxu0
    %678 = vmatpush.msra.mxu0 0.0
    %679 = vmatpush.msra.mxu0 0.0
    %680 = vmatpush.msra.mxu0 0.0
    %681 = vmatpush.msra.mxu0 0.0
    %682 = vmatpush.msra.mxu0 0.0
    %683 = vmatpush.msra.mxu0 0.0
    %684 = vmatpush.msra.mxu0 0.0
    %685 = vmatpush.msra.mxu0 0.0
    %v686 = vand.u32 %v150, 4294901760
    %687 = vmatpush.msra.mxu0 %v686
    %v688 = vand.u32 %v149, 4294901760
    %689 = vmatpush.msra.mxu0 %v688
    %v690 = vand.u32 %v148, 4294901760
    %691 = vmatpush.msra.mxu0 %v690
    %v692 = vand.u32 %v147, 4294901760
    %693 = vmatpush.msra.mxu0 %v692
    %v694 = vand.u32 %v146, 4294901760
    %695 = vmatpush.msra.mxu0 %v694
    %v696 = vand.u32 %v145, 4294901760
    %697 = vmatpush.msra.mxu0 %v696
    %v698 = vand.u32 %v144, 4294901760
    %699 = vmatpush.msra.mxu0 %v698
    %v700 = vand.u32 %v143, 4294901760
    %701 = vmatpush.msra.mxu0 %v700
    %v702 = vand.u32 %v153, 4294901760
    %v703 = vsub.f32 %v153, %v702
    %v704 = vand.u32 %v703, 4294901760
    %705 = vmatmul.f32.gmra.mxu0 %v704
    %v706 = vpop.f32.mrf.mxu0
    %v707 = vadd.f32 %v671, %v706
    %v708 = vand.u32 %v155, 4294901760
    %v709 = vsub.f32 %v155, %v708
    %v710 = vand.u32 %v709, 4294901760
    %711 = vmatmul.f32.gmra.mxu0 %v710
    %v712 = vpop.f32.mrf.mxu0
    %v713 = vadd.f32 %v676, %v712
    %714 = vdwg.mxu0
    %715 = vmatpush.msra.mxu0 0.0
    %716 = vmatpush.msra.mxu0 0.0
    %717 = vmatpush.msra.mxu0 0.0
    %718 = vmatpush.msra.mxu0 0.0
    %719 = vmatpush.msra.mxu0 0.0
    %720 = vmatpush.msra.mxu0 0.0
    %721 = vmatpush.msra.mxu0 0.0
    %722 = vmatpush.msra.mxu0 0.0
    %v723 = vand.u32 %v150, 4294901760
    %v724 = vsub.f32 %v150, %v723
    %v725 = vand.u32 %v724, 4294901760
    %726 = vmatpush.msra.mxu0 %v725
    %v727 = vand.u32 %v149, 4294901760
    %v728 = vsub.f32 %v149, %v727
    %v729 = vand.u32 %v728, 4294901760
    %730 = vmatpush.msra.mxu0 %v729
    %v731 = vand.u32 %v148, 4294901760
    %v732 = vsub.f32 %v148, %v731
    %v733 = vand.u32 %v732, 4294901760
    %734 = vmatpush.msra.mxu0 %v733
    %v735 = vand.u32 %v147, 4294901760
    %v736 = vsub.f32 %v147, %v735
    %v737 = vand.u32 %v736, 4294901760
    %738 = vmatpush.msra.mxu0 %v737
    %v739 = vand.u32 %v146, 4294901760
    %v740 = vsub.f32 %v146, %v739
    %v741 = vand.u32 %v740, 4294901760
    %742 = vmatpush.msra.mxu0 %v741
    %v743 = vand.u32 %v145, 4294901760
    %v744 = vsub.f32 %v145, %v743
    %v745 = vand.u32 %v744, 4294901760
    %746 = vmatpush.msra.mxu0 %v745
    %v747 = vand.u32 %v144, 4294901760
    %v748 = vsub.f32 %v144, %v747
    %v749 = vand.u32 %v748, 4294901760
    %750 = vmatpush.msra.mxu0 %v749
    %v751 = vand.u32 %v143, 4294901760
    %v752 = vsub.f32 %v143, %v751
    %v753 = vand.u32 %v752, 4294901760
    %754 = vmatpush.msra.mxu0 %v753
    %v755 = vand.u32 %v153, 4294901760
    %756 = vmatmul.f32.gmra.mxu0 %v755
    %v757 = vpop.f32.mrf.mxu0
    %v758 = vadd.f32 %v707, %v757
    %v759 = vand.u32 %v155, 4294901760
    %760 = vmatmul.f32.gmra.mxu0 %v759
    %v761 = vpop.f32.mrf.mxu0
    %v762 = vadd.f32 %v713, %v761
    %763 = vdwg.mxu0
    %764 = vmatpush.msra.mxu0 0.0
    %765 = vmatpush.msra.mxu0 0.0
    %766 = vmatpush.msra.mxu0 0.0
    %767 = vmatpush.msra.mxu0 0.0
    %768 = vmatpush.msra.mxu0 0.0
    %769 = vmatpush.msra.mxu0 0.0
    %770 = vmatpush.msra.mxu0 0.0
    %771 = vmatpush.msra.mxu0 0.0
    %v772 = vand.u32 %v150, 4294901760
    %773 = vmatpush.msra.mxu0 %v772
    %v774 = vand.u32 %v149, 4294901760
    %775 = vmatpush.msra.mxu0 %v774
    %v776 = vand.u32 %v148, 4294901760
    %777 = vmatpush.msra.mxu0 %v776
    %v778 = vand.u32 %v147, 4294901760
    %779 = vmatpush.msra.mxu0 %v778
    %v780 = vand.u32 %v146, 4294901760
    %781 = vmatpush.msra.mxu0 %v780
    %v782 = vand.u32 %v145, 4294901760
    %783 = vmatpush.msra.mxu0 %v782
    %v784 = vand.u32 %v144, 4294901760
    %785 = vmatpush.msra.mxu0 %v784
    %v786 = vand.u32 %v143, 4294901760
    %787 = vmatpush.msra.mxu0 %v786
    %v788 = vand.u32 %v153, 4294901760
    %789 = vmatmul.f32.gmra.mxu0 %v788
    %v790 = vpop.f32.mrf.mxu0
    %v791 = vadd.f32 %v758, %v790
    %v792 = vand.u32 %v155, 4294901760
    %793 = vmatmul.f32.gmra.mxu0 %v792
    %v794 = vpop.f32.mrf.mxu0
    %v795 = vadd.f32 %v762, %v794
    %796 = vdwg.mxu0
    %v797 = vmin.f32 %v791, 20.0
    %v798 = vmin.f32 %v795, 20.0
    %v799 = vmul.f32 %v797, 1.442695
    %v800 = vpow.pop %v799
    %v801 = vmul.f32 %v798, 1.442695
    %v802 = vpow.pop %v801
    %v803 = vadd.f32 %v800, 2.0
    %v804 = vadd.f32 %v802, 2.0
    %v805 = vmul.f32 %v800, %v803
    %v806 = vmul.f32 %v802, %v804
    %vm807 = vcmp.gt.f32.partialorder %v791, 20.0
    %vm808 = vcmp.gt.f32.partialorder %v795, 20.0
    %v809 = vadd.f32 %v805, 2.0
    %v810 = vadd.f32 %v806, 2.0
    %v811 = vrcp.pop %v809
    %v812 = vmul.f32 %v809, %v811
    %v813 = vsub.f32 1.0, %v812
    %v814 = vmul.f32 %v811, %v813
    %v815 = vadd.f32 %v811, %v814
    %vm816 = vweird.f32 %v809
    %vm817 = vweird.f32 %v811
    %vm818 = vmor %vm816, %vm817
    %v819 = vsel %vm818, %v811, %v815
    %v820 = vand.u32 2147483647, %v809
    %vm821 = vcmp.eq.f32.partialorder %v820, 8.507059e+37
    %v822 = vand.u32 %v809, 2147483648
    %v823 = vor.u32 1.1754944e-38, %v822
    %v824 = vsel %vm821, %v823, %v819
    %v825 = vmul.f32 %v805, %v824
    %v826 = vrcp.pop %v810
    %v827 = vmul.f32 %v810, %v826
    %v828 = vsub.f32 1.0, %v827
    %v829 = vmul.f32 %v826, %v828
    %v830 = vadd.f32 %v826, %v829
    %vm831 = vweird.f32 %v810
    %vm832 = vweird.f32 %v826
    %vm833 = vmor %vm831, %vm832
    %v834 = vsel %vm833, %v826, %v830
    %v835 = vand.u32 2147483647, %v810
    %vm836 = vcmp.eq.f32.partialorder %v835, 8.507059e+37
    %v837 = vand.u32 %v810, 2147483648
    %v838 = vor.u32 1.1754944e-38, %v837
    %v839 = vsel %vm836, %v838, %v834
    %v840 = vmul.f32 %v806, %v839
    %v841 = vmul.f32 %v791, %v825
    %v842 = vmul.f32 %v795, %v840
    %v843 = vsel %vm807, %v791, %v841
    %v844 = vsel %vm808, %v795, %v842
    %v845 = vld [vmem:[#allocation5 + $0xc0] sm:$0xff]
    %v846 = vld [vmem:[#allocation5 + $0xc8] sm:$0xff]
    %v847 = vld [vmem:[#allocation5 + $0xd0] sm:$0xff]
    %v848 = vld [vmem:[#allocation5 + $0xd8] sm:$0xff]
    %v849 = vld [vmem:[#allocation5 + $0xe0] sm:$0xff]
    %v850 = vld [vmem:[#allocation5 + $0xe8] sm:$0xff]
    %v851 = vld [vmem:[#allocation5 + $0xf0] sm:$0xff]
    %v852 = vld [vmem:[#allocation5 + $0xf8] sm:$0xff]
    %v853 = vld [vmem:[#allocation7 + $0x1] sm:$0x1]
    %v854 = vperm.slane %v853, 0
    %v856 = vsel %vm124, %v843, 0
    %v859 = vsel %vm124, %v844, 0
    %861 = vmatpush.msra.mxu0 0.0
    %862 = vmatpush.msra.mxu0 0.0
    %863 = vmatpush.msra.mxu0 0.0
    %864 = vmatpush.msra.mxu0 0.0
    %865 = vmatpush.msra.mxu0 0.0
    %866 = vmatpush.msra.mxu0 0.0
    %867 = vmatpush.msra.mxu0 0.0
    %868 = vmatpush.msra.mxu0 0.0
    %v869 = vand.u32 %v852, 4294901760
    %870 = vmatpush.msra.mxu0 %v869
    %v871 = vand.u32 %v851, 4294901760
    %872 = vmatpush.msra.mxu0 %v871
    %v873 = vand.u32 %v850, 4294901760
    %874 = vmatpush.msra.mxu0 %v873
    %v875 = vand.u32 %v849, 4294901760
    %876 = vmatpush.msra.mxu0 %v875
    %v877 = vand.u32 %v848, 4294901760
    %878 = vmatpush.msra.mxu0 %v877
    %v879 = vand.u32 %v847, 4294901760
    %880 = vmatpush.msra.mxu0 %v879
    %v881 = vand.u32 %v846, 4294901760
    %882 = vmatpush.msra.mxu0 %v881
    %v883 = vand.u32 %v845, 4294901760
    %884 = vmatpush.msra.mxu0 %v883
    %v885 = vand.u32 %v856, 4294901760
    %v886 = vsub.f32 %v856, %v885
    %v887 = vand.u32 %v886, 4294901760
    %v888 = vsub.f32 %v886, %v887
    %v889 = vand.u32 %v888, 4294901760
    %890 = vmatmul.f32.gmra.mxu0 %v889
    %v891 = vpop.f32.mrf.mxu0
    %v892 = vadd.f32 %v854, %v891
    %v893 = vand.u32 %v859, 4294901760
    %v894 = vsub.f32 %v859, %v893
    %v895 = vand.u32 %v894, 4294901760
    %v896 = vsub.f32 %v894, %v895
    %v897 = vand.u32 %v896, 4294901760
    %898 = vmatmul.f32.gmra.mxu0 %v897
    %v899 = vpop.f32.mrf.mxu0
    %v900 = vadd.f32 %v854, %v899
    %901 = vdwg.mxu0
    %902 = vmatpush.msra.mxu0 0.0
    %903 = vmatpush.msra.mxu0 0.0
    %904 = vmatpush.msra.mxu0 0.0
    %905 = vmatpush.msra.mxu0 0.0
    %906 = vmatpush.msra.mxu0 0.0
    %907 = vmatpush.msra.mxu0 0.0
    %908 = vmatpush.msra.mxu0 0.0
    %909 = vmatpush.msra.mxu0 0.0
    %v910 = vand.u32 %v852, 4294901760
    %v911 = vsub.f32 %v852, %v910
    %v912 = vand.u32 %v911, 4294901760
    %v913 = vsub.f32 %v911, %v912
    %v914 = vand.u32 %v913, 4294901760
    %915 = vmatpush.msra.mxu0 %v914
    %v916 = vand.u32 %v851, 4294901760
    %v917 = vsub.f32 %v851, %v916
    %v918 = vand.u32 %v917, 4294901760
    %v919 = vsub.f32 %v917, %v918
    %v920 = vand.u32 %v919, 4294901760
    %921 = vmatpush.msra.mxu0 %v920
    %v922 = vand.u32 %v850, 4294901760
    %v923 = vsub.f32 %v850, %v922
    %v924 = vand.u32 %v923, 4294901760
    %v925 = vsub.f32 %v923, %v924
    %v926 = vand.u32 %v925, 4294901760
    %927 = vmatpush.msra.mxu0 %v926
    %v928 = vand.u32 %v849, 4294901760
    %v929 = vsub.f32 %v849, %v928
    %v930 = vand.u32 %v929, 4294901760
    %v931 = vsub.f32 %v929, %v930
    %v932 = vand.u32 %v931, 4294901760
    %933 = vmatpush.msra.mxu0 %v932
    %v934 = vand.u32 %v848, 4294901760
    %v935 = vsub.f32 %v848, %v934
    %v936 = vand.u32 %v935, 4294901760
    %v937 = vsub.f32 %v935, %v936
    %v938 = vand.u32 %v937, 4294901760
    %939 = vmatpush.msra.mxu0 %v938
    %v940 = vand.u32 %v847, 4294901760
    %v941 = vsub.f32 %v847, %v940
    %v942 = vand.u32 %v941, 4294901760
    %v943 = vsub.f32 %v941, %v942
    %v944 = vand.u32 %v943, 4294901760
    %945 = vmatpush.msra.mxu0 %v944
    %v946 = vand.u32 %v846, 4294901760
    %v947 = vsub.f32 %v846, %v946
    %v948 = vand.u32 %v947, 4294901760
    %v949 = vsub.f32 %v947, %v948
    %v950 = vand.u32 %v949, 4294901760
    %951 = vmatpush.msra.mxu0 %v950
    %v952 = vand.u32 %v845, 4294901760
    %v953 = vsub.f32 %v845, %v952
    %v954 = vand.u32 %v953, 4294901760
    %v955 = vsub.f32 %v953, %v954
    %v956 = vand.u32 %v955, 4294901760
    %957 = vmatpush.msra.mxu0 %v956
    %v958 = vand.u32 %v856, 4294901760
    %959 = vmatmul.f32.gmra.mxu0 %v958
    %v960 = vpop.f32.mrf.mxu0
    %v961 = vadd.f32 %v892, %v960
    %v962 = vand.u32 %v859, 4294901760
    %963 = vmatmul.f32.gmra.mxu0 %v962
    %v964 = vpop.f32.mrf.mxu0
    %v965 = vadd.f32 %v900, %v964
    %966 = vdwg.mxu0
    %967 = vmatpush.msra.mxu0 0.0
    %968 = vmatpush.msra.mxu0 0.0
    %969 = vmatpush.msra.mxu0 0.0
    %970 = vmatpush.msra.mxu0 0.0
    %971 = vmatpush.msra.mxu0 0.0
    %972 = vmatpush.msra.mxu0 0.0
    %973 = vmatpush.msra.mxu0 0.0
    %974 = vmatpush.msra.mxu0 0.0
    %v975 = vand.u32 %v852, 4294901760
    %v976 = vsub.f32 %v852, %v975
    %977 = vmatpush.msra.mxu0 %v976
    %v978 = vand.u32 %v851, 4294901760
    %v979 = vsub.f32 %v851, %v978
    %980 = vmatpush.msra.mxu0 %v979
    %v981 = vand.u32 %v850, 4294901760
    %v982 = vsub.f32 %v850, %v981
    %983 = vmatpush.msra.mxu0 %v982
    %v984 = vand.u32 %v849, 4294901760
    %v985 = vsub.f32 %v849, %v984
    %986 = vmatpush.msra.mxu0 %v985
    %v987 = vand.u32 %v848, 4294901760
    %v988 = vsub.f32 %v848, %v987
    %989 = vmatpush.msra.mxu0 %v988
    %v990 = vand.u32 %v847, 4294901760
    %v991 = vsub.f32 %v847, %v990
    %992 = vmatpush.msra.mxu0 %v991
    %v993 = vand.u32 %v846, 4294901760
    %v994 = vsub.f32 %v846, %v993
    %995 = vmatpush.msra.mxu0 %v994
    %v996 = vand.u32 %v845, 4294901760
    %v997 = vsub.f32 %v845, %v996
    %998 = vmatpush.msra.mxu0 %v997
    %v999 = vand.u32 %v856, 4294901760
    %v1000 = vsub.f32 %v856, %v999
    %1001 = vmatmul.f32.gmra.mxu0 %v1000
    %v1002 = vpop.f32.mrf.mxu0
    %v1003 = vadd.f32 %v961, %v1002
    %v1004 = vand.u32 %v859, 4294901760
    %v1005 = vsub.f32 %v859, %v1004
    %1006 = vmatmul.f32.gmra.mxu0 %v1005
    %v1007 = vpop.f32.mrf.mxu0
    %v1008 = vadd.f32 %v965, %v1007
    %1009 = vdwg.mxu0
    %1010 = vmatpush.msra.mxu0 0.0
    %1011 = vmatpush.msra.mxu0 0.0
    %1012 = vmatpush.msra.mxu0 0.0
    %1013 = vmatpush.msra.mxu0 0.0
    %1014 = vmatpush.msra.mxu0 0.0
    %1015 = vmatpush.msra.mxu0 0.0
    %1016 = vmatpush.msra.mxu0 0.0
    %1017 = vmatpush.msra.mxu0 0.0
    %v1018 = vand.u32 %v852, 4294901760
    %1019 = vmatpush.msra.mxu0 %v1018
    %v1020 = vand.u32 %v851, 4294901760
    %1021 = vmatpush.msra.mxu0 %v1020
    %v1022 = vand.u32 %v850, 4294901760
    %1023 = vmatpush.msra.mxu0 %v1022
    %v1024 = vand.u32 %v849, 4294901760
    %1025 = vmatpush.msra.mxu0 %v1024
    %v1026 = vand.u32 %v848, 4294901760
    %1027 = vmatpush.msra.mxu0 %v1026
    %v1028 = vand.u32 %v847, 4294901760
    %1029 = vmatpush.msra.mxu0 %v1028
    %v1030 = vand.u32 %v846, 4294901760
    %1031 = vmatpush.msra.mxu0 %v1030
    %v1032 = vand.u32 %v845, 4294901760
    %1033 = vmatpush.msra.mxu0 %v1032
    %v1034 = vand.u32 %v856, 4294901760
    %v1035 = vsub.f32 %v856, %v1034
    %v1036 = vand.u32 %v1035, 4294901760
    %1037 = vmatmul.f32.gmra.mxu0 %v1036
    %v1038 = vpop.f32.mrf.mxu0
    %v1039 = vadd.f32 %v1003, %v1038
    %v1040 = vand.u32 %v859, 4294901760
    %v1041 = vsub.f32 %v859, %v1040
    %v1042 = vand.u32 %v1041, 4294901760
    %1043 = vmatmul.f32.gmra.mxu0 %v1042
    %v1044 = vpop.f32.mrf.mxu0
    %v1045 = vadd.f32 %v1008, %v1044
    %1046 = vdwg.mxu0
    %1047 = vmatpush.msra.mxu0 0.0
    %1048 = vmatpush.msra.mxu0 0.0
    %1049 = vmatpush.msra.mxu0 0.0
    %1050 = vmatpush.msra.mxu0 0.0
    %1051 = vmatpush.msra.mxu0 0.0
    %1052 = vmatpush.msra.mxu0 0.0
    %1053 = vmatpush.msra.mxu0 0.0
    %1054 = vmatpush.msra.mxu0 0.0
    %v1055 = vand.u32 %v852, 4294901760
    %v1056 = vsub.f32 %v852, %v1055
    %v1057 = vand.u32 %v1056, 4294901760
    %1058 = vmatpush.msra.mxu0 %v1057
    %v1059 = vand.u32 %v851, 4294901760
    %v1060 = vsub.f32 %v851, %v1059
    %v1061 = vand.u32 %v1060, 4294901760
    %1062 = vmatpush.msra.mxu0 %v1061
    %v1063 = vand.u32 %v850, 4294901760
    %v1064 = vsub.f32 %v850, %v1063
    %v1065 = vand.u32 %v1064, 4294901760
    %1066 = vmatpush.msra.mxu0 %v1065
    %v1067 = vand.u32 %v849, 4294901760
    %v1068 = vsub.f32 %v849, %v1067
    %v1069 = vand.u32 %v1068, 4294901760
    %1070 = vmatpush.msra.mxu0 %v1069
    %v1071 = vand.u32 %v848, 4294901760
    %v1072 = vsub.f32 %v848, %v1071
    %v1073 = vand.u32 %v1072, 4294901760
    %1074 = vmatpush.msra.mxu0 %v1073
    %v1075 = vand.u32 %v847, 4294901760
    %v1076 = vsub.f32 %v847, %v1075
    %v1077 = vand.u32 %v1076, 4294901760
    %1078 = vmatpush.msra.mxu0 %v1077
    %v1079 = vand.u32 %v846, 4294901760
    %v1080 = vsub.f32 %v846, %v1079
    %v1081 = vand.u32 %v1080, 4294901760
    %1082 = vmatpush.msra.mxu0 %v1081
    %v1083 = vand.u32 %v845, 4294901760
    %v1084 = vsub.f32 %v845, %v1083
    %v1085 = vand.u32 %v1084, 4294901760
    %1086 = vmatpush.msra.mxu0 %v1085
    %v1087 = vand.u32 %v856, 4294901760
    %1088 = vmatmul.f32.gmra.mxu0 %v1087
    %v1089 = vpop.f32.mrf.mxu0
    %v1090 = vadd.f32 %v1039, %v1089
    %v1091 = vand.u32 %v859, 4294901760
    %1092 = vmatmul.f32.gmra.mxu0 %v1091
    %v1093 = vpop.f32.mrf.mxu0
    %v1094 = vadd.f32 %v1045, %v1093
    %1095 = vdwg.mxu0
    %1096 = vmatpush.msra.mxu0 0.0
    %1097 = vmatpush.msra.mxu0 0.0
    %1098 = vmatpush.msra.mxu0 0.0
    %1099 = vmatpush.msra.mxu0 0.0
    %1100 = vmatpush.msra.mxu0 0.0
    %1101 = vmatpush.msra.mxu0 0.0
    %1102 = vmatpush.msra.mxu0 0.0
    %1103 = vmatpush.msra.mxu0 0.0
    %v1104 = vand.u32 %v852, 4294901760
    %1105 = vmatpush.msra.mxu0 %v1104
    %v1106 = vand.u32 %v851, 4294901760
    %1107 = vmatpush.msra.mxu0 %v1106
    %v1108 = vand.u32 %v850, 4294901760
    %1109 = vmatpush.msra.mxu0 %v1108
    %v1110 = vand.u32 %v849, 4294901760
    %1111 = vmatpush.msra.mxu0 %v1110
    %v1112 = vand.u32 %v848, 4294901760
    %1113 = vmatpush.msra.mxu0 %v1112
    %v1114 = vand.u32 %v847, 4294901760
    %1115 = vmatpush.msra.mxu0 %v1114
    %v1116 = vand.u32 %v846, 4294901760
    %1117 = vmatpush.msra.mxu0 %v1116
    %v1118 = vand.u32 %v845, 4294901760
    %1119 = vmatpush.msra.mxu0 %v1118
    %v1120 = vand.u32 %v856, 4294901760
    %1121 = vmatmul.f32.gmra.mxu0 %v1120
    %v1122 = vpop.f32.mrf.mxu0
    %v1123 = vadd.f32 %v1090, %v1122
    %v1124 = vand.u32 %v859, 4294901760
    %1125 = vmatmul.f32.gmra.mxu0 %v1124
    %v1126 = vpop.f32.mrf.mxu0
    %v1127 = vadd.f32 %v1094, %v1126
    %1128 = vdwg.mxu0
    %v1129 = vmin.f32 %v1123, 20.0
    %v1130 = vmin.f32 %v1127, 20.0
    %v1131 = vmul.f32 %v1129, 1.442695
    %v1132 = vpow.pop %v1131
    %v1133 = vmul.f32 %v1130, 1.442695
    %v1134 = vpow.pop %v1133
    %v1135 = vadd.f32 %v1132, 2.0
    %v1136 = vadd.f32 %v1134, 2.0
    %v1137 = vmul.f32 %v1132, %v1135
    %v1138 = vmul.f32 %v1134, %v1136
    %vm1139 = vcmp.gt.f32.partialorder %v1123, 20.0
    %vm1140 = vcmp.gt.f32.partialorder %v1127, 20.0
    %v1141 = vadd.f32 %v1137, 2.0
    %v1142 = vadd.f32 %v1138, 2.0
    %v1143 = vrcp.pop %v1141
    %v1144 = vmul.f32 %v1141, %v1143
    %v1145 = vsub.f32 1.0, %v1144
    %v1146 = vmul.f32 %v1143, %v1145
    %v1147 = vadd.f32 %v1143, %v1146
    %vm1148 = vweird.f32 %v1141
    %vm1149 = vweird.f32 %v1143
    %vm1150 = vmor %vm1148, %vm1149
    %v1151 = vsel %vm1150, %v1143, %v1147
    %v1152 = vand.u32 2147483647, %v1141
    %vm1153 = vcmp.eq.f32.partialorder %v1152, 8.507059e+37
    %v1154 = vand.u32 %v1141, 2147483648
    %v1155 = vor.u32 1.1754944e-38, %v1154
    %v1156 = vsel %vm1153, %v1155, %v1151
    %v1157 = vmul.f32 %v1137, %v1156
    %v1158 = vrcp.pop %v1142
    %v1159 = vmul.f32 %v1142, %v1158
    %v1160 = vsub.f32 1.0, %v1159
    %v1161 = vmul.f32 %v1158, %v1160
    %v1162 = vadd.f32 %v1158, %v1161
    %vm1163 = vweird.f32 %v1142
    %vm1164 = vweird.f32 %v1158
    %vm1165 = vmor %vm1163, %vm1164
    %v1166 = vsel %vm1165, %v1158, %v1162
    %v1167 = vand.u32 2147483647, %v1142
    %vm1168 = vcmp.eq.f32.partialorder %v1167, 8.507059e+37
    %v1169 = vand.u32 %v1142, 2147483648
    %v1170 = vor.u32 1.1754944e-38, %v1169
    %v1171 = vsel %vm1168, %v1170, %v1166
    %v1172 = vmul.f32 %v1138, %v1171
    %v1173 = vmul.f32 %v1123, %v1157
    %v1174 = vmul.f32 %v1127, %v1172
    %v1175 = vsel %vm1139, %v1123, %v1173
    %v1176 = vsel %vm1140, %v1127, %v1174
    %v1179 = vrot.slane %v1175, 7
    %v1180 = vrot.slane %v1176, 7
    %v1181 = vsel %vm74, %v1179, %v1180
    %v1184 = vsel %vm74, %v1175, %v1179
    %vm1185 = vcmask 1046528
    %v1186 = vrot.slane %v1175, 1
    %v1187 = vrot.slane %v1176, 1
    %v1188 = vsel %vm1185, %v1186, %v1187
    %v1191 = vsel %vm1185, %v1187, %v1176
    %v1192 = vsel %vm112, 0.0, %v1184
    %v1193 = vsel %vm113, 0.0, %v1181
    %vm1194 = vcmp.eq.s32.totalorder %v106, 7
    %vm1195 = vcmp.eq.s32.totalorder %v107, 7
    %v1196 = vsel %vm1194, 1, 0
    %v1197 = vsel %vm1195, 1, 0
    %vm1198 = vcmp.eq.s32.totalorder %v1196, 1
    %vm1199 = vcmp.eq.s32.totalorder %v1197, 1
    %v1200 = vsel %vm1198, 0.0, %v1188
    %v1201 = vsel %vm1199, 0.0, %v1191
    %1202 = vrot.lane.b32.xlu0 %v1175, 64
    %v1203 = vpop.permute.xlu0 %1202
    %1204 = vrot.lane.b32.xlu0 %v1176, 64
    %v1205 = vpop.permute.xlu0 %1204
    %v1208 = vsel %vm124, %v1192, %v1203
    %v1209 = vsel %vm124, %v1193, %v1205
    %v1210 = vld [vmem:[#allocation5 + $0x100] sm:$0xff]
    %v1211 = vld [vmem:[#allocation5 + $0x108] sm:$0xff]
    %v1212 = vld [vmem:[#allocation5 + $0x110] sm:$0xff]
    %v1213 = vld [vmem:[#allocation5 + $0x118] sm:$0xff]
    %v1214 = vld [vmem:[#allocation5 + $0x120] sm:$0xff]
    %v1215 = vld [vmem:[#allocation5 + $0x128] sm:$0xff]
    %v1216 = vld [vmem:[#allocation5 + $0x130] sm:$0xff]
    %v1217 = vld [vmem:[#allocation5 + $0x138] sm:$0xff]
    %v1218 = vld [vmem:[#allocation5 + $0x140] sm:$0xff]
    %v1219 = vld [vmem:[#allocation5 + $0x148] sm:$0xff]
    %v1220 = vld [vmem:[#allocation5 + $0x150] sm:$0xff]
    %v1221 = vld [vmem:[#allocation5 + $0x158] sm:$0xff]
    %v1222 = vld [vmem:[#allocation5 + $0x160] sm:$0xff]
    %v1223 = vld [vmem:[#allocation5 + $0x168] sm:$0xff]
    %v1224 = vld [vmem:[#allocation5 + $0x170] sm:$0xff]
    %v1225 = vld [vmem:[#allocation5 + $0x178] sm:$0xff]
    %v1226 = vld [vmem:[#allocation5 + $0x180] sm:$0xff]
    %v1227 = vld [vmem:[#allocation5 + $0x188] sm:$0xff]
    %v1228 = vld [vmem:[#allocation5 + $0x190] sm:$0xff]
    %v1229 = vld [vmem:[#allocation5 + $0x198] sm:$0xff]
    %v1230 = vld [vmem:[#allocation5 + $0x1a0] sm:$0xff]
    %v1231 = vld [vmem:[#allocation5 + $0x1a8] sm:$0xff]
    %v1232 = vld [vmem:[#allocation5 + $0x1b0] sm:$0xff]
    %v1233 = vld [vmem:[#allocation5 + $0x1b8] sm:$0xff]
    %v1234 = vld [vmem:[#allocation7 + $0x2] sm:$0x1]
    %v1235 = vperm.slane %v1234, 0
    %v1237 = vsel %vm124, %v1200, 0
    %v1240 = vsel %vm124, %v1201, 0
    %v1242 = vand.u32 %v1225, 4294901760
    %1243 = vmatpush.msra.mxu0 %v1242
    %v1244 = vand.u32 %v1224, 4294901760
    %1245 = vmatpush.msra.mxu0 %v1244
    %v1246 = vand.u32 %v1223, 4294901760
    %1247 = vmatpush.msra.mxu0 %v1246
    %v1248 = vand.u32 %v1222, 4294901760
    %1249 = vmatpush.msra.mxu0 %v1248
    %v1250 = vand.u32 %v1221, 4294901760
    %1251 = vmatpush.msra.mxu0 %v1250
    %v1252 = vand.u32 %v1220, 4294901760
    %1253 = vmatpush.msra.mxu0 %v1252
    %v1254 = vand.u32 %v1219, 4294901760
    %1255 = vmatpush.msra.mxu0 %v1254
    %v1256 = vand.u32 %v1218, 4294901760
    %1257 = vmatpush.msra.mxu0 %v1256
    %v1258 = vand.u32 %v1217, 4294901760
    %1259 = vmatpush.msra.mxu0 %v1258
    %v1260 = vand.u32 %v1216, 4294901760
    %1261 = vmatpush.msra.mxu0 %v1260
    %v1262 = vand.u32 %v1215, 4294901760
    %1263 = vmatpush.msra.mxu0 %v1262
    %v1264 = vand.u32 %v1214, 4294901760
    %1265 = vmatpush.msra.mxu0 %v1264
    %v1266 = vand.u32 %v1213, 4294901760
    %1267 = vmatpush.msra.mxu0 %v1266
    %v1268 = vand.u32 %v1212, 4294901760
    %1269 = vmatpush.msra.mxu0 %v1268
    %v1270 = vand.u32 %v1211, 4294901760
    %1271 = vmatpush.msra.mxu0 %v1270
    %v1272 = vand.u32 %v1210, 4294901760
    %1273 = vmatpush.msra.mxu0 %v1272
    %v1274 = vand.u32 %v1208, 4294901760
    %v1275 = vsub.f32 %v1208, %v1274
    %v1276 = vand.u32 %v1275, 4294901760
    %v1277 = vsub.f32 %v1275, %v1276
    %v1278 = vand.u32 %v1277, 4294901760
    %1279 = vmatmul.f32.gmra.mxu0 %v1278
    %v1280 = vpop.f32.mrf.mxu0
    %v1281 = vadd.f32 %v1235, %v1280
    %v1282 = vand.u32 %v1209, 4294901760
    %v1283 = vsub.f32 %v1209, %v1282
    %v1284 = vand.u32 %v1283, 4294901760
    %v1285 = vsub.f32 %v1283, %v1284
    %v1286 = vand.u32 %v1285, 4294901760
    %1287 = vmatmul.f32.gmra.mxu0 %v1286
    %v1288 = vpop.f32.mrf.mxu0
    %v1289 = vadd.f32 %v1235, %v1288
    %1290 = vdwg.mxu0
    %v1291 = vand.u32 %v1225, 4294901760
    %v1292 = vsub.f32 %v1225, %v1291
    %v1293 = vand.u32 %v1292, 4294901760
    %v1294 = vsub.f32 %v1292, %v1293
    %v1295 = vand.u32 %v1294, 4294901760
    %1296 = vmatpush.msra.mxu0 %v1295
    %v1297 = vand.u32 %v1224, 4294901760
    %v1298 = vsub.f32 %v1224, %v1297
    %v1299 = vand.u32 %v1298, 4294901760
    %v1300 = vsub.f32 %v1298, %v1299
    %v1301 = vand.u32 %v1300, 4294901760
    %1302 = vmatpush.msra.mxu0 %v1301
    %v1303 = vand.u32 %v1223, 4294901760
    %v1304 = vsub.f32 %v1223, %v1303
    %v1305 = vand.u32 %v1304, 4294901760
    %v1306 = vsub.f32 %v1304, %v1305
    %v1307 = vand.u32 %v1306, 4294901760
    %1308 = vmatpush.msra.mxu0 %v1307
    %v1309 = vand.u32 %v1222, 4294901760
    %v1310 = vsub.f32 %v1222, %v1309
    %v1311 = vand.u32 %v1310, 4294901760
    %v1312 = vsub.f32 %v1310, %v1311
    %v1313 = vand.u32 %v1312, 4294901760
    %1314 = vmatpush.msra.mxu0 %v1313
    %v1315 = vand.u32 %v1221, 4294901760
    %v1316 = vsub.f32 %v1221, %v1315
    %v1317 = vand.u32 %v1316, 4294901760
    %v1318 = vsub.f32 %v1316, %v1317
    %v1319 = vand.u32 %v1318, 4294901760
    %1320 = vmatpush.msra.mxu0 %v1319
    %v1321 = vand.u32 %v1220, 4294901760
    %v1322 = vsub.f32 %v1220, %v1321
    %v1323 = vand.u32 %v1322, 4294901760
    %v1324 = vsub.f32 %v1322, %v1323
    %v1325 = vand.u32 %v1324, 4294901760
    %1326 = vmatpush.msra.mxu0 %v1325
    %v1327 = vand.u32 %v1219, 4294901760
    %v1328 = vsub.f32 %v1219, %v1327
    %v1329 = vand.u32 %v1328, 4294901760
    %v1330 = vsub.f32 %v1328, %v1329
    %v1331 = vand.u32 %v1330, 4294901760
    %1332 = vmatpush.msra.mxu0 %v1331
    %v1333 = vand.u32 %v1218, 4294901760
    %v1334 = vsub.f32 %v1218, %v1333
    %v1335 = vand.u32 %v1334, 4294901760
    %v1336 = vsub.f32 %v1334, %v1335
    %v1337 = vand.u32 %v1336, 4294901760
    %1338 = vmatpush.msra.mxu0 %v1337
    %v1339 = vand.u32 %v1217, 4294901760
    %v1340 = vsub.f32 %v1217, %v1339
    %v1341 = vand.u32 %v1340, 4294901760
    %v1342 = vsub.f32 %v1340, %v1341
    %v1343 = vand.u32 %v1342, 4294901760
    %1344 = vmatpush.msra.mxu0 %v1343
    %v1345 = vand.u32 %v1216, 4294901760
    %v1346 = vsub.f32 %v1216, %v1345
    %v1347 = vand.u32 %v1346, 4294901760
    %v1348 = vsub.f32 %v1346, %v1347
    %v1349 = vand.u32 %v1348, 4294901760
    %1350 = vmatpush.msra.mxu0 %v1349
    %v1351 = vand.u32 %v1215, 4294901760
    %v1352 = vsub.f32 %v1215, %v1351
    %v1353 = vand.u32 %v1352, 4294901760
    %v1354 = vsub.f32 %v1352, %v1353
    %v1355 = vand.u32 %v1354, 4294901760
    %1356 = vmatpush.msra.mxu0 %v1355
    %v1357 = vand.u32 %v1214, 4294901760
    %v1358 = vsub.f32 %v1214, %v1357
    %v1359 = vand.u32 %v1358, 4294901760
    %v1360 = vsub.f32 %v1358, %v1359
    %v1361 = vand.u32 %v1360, 4294901760
    %1362 = vmatpush.msra.mxu0 %v1361
    %v1363 = vand.u32 %v1213, 4294901760
    %v1364 = vsub.f32 %v1213, %v1363
    %v1365 = vand.u32 %v1364, 4294901760
    %v1366 = vsub.f32 %v1364, %v1365
    %v1367 = vand.u32 %v1366, 4294901760
    %1368 = vmatpush.msra.mxu0 %v1367
    %v1369 = vand.u32 %v1212, 4294901760
    %v1370 = vsub.f32 %v1212, %v1369
    %v1371 = vand.u32 %v1370, 4294901760
    %v1372 = vsub.f32 %v1370, %v1371
    %v1373 = vand.u32 %v1372, 4294901760
    %1374 = vmatpush.msra.mxu0 %v1373
    %v1375 = vand.u32 %v1211, 4294901760
    %v1376 = vsub.f32 %v1211, %v1375
    %v1377 = vand.u32 %v1376, 4294901760
    %v1378 = vsub.f32 %v1376, %v1377
    %v1379 = vand.u32 %v1378, 4294901760
    %1380 = vmatpush.msra.mxu0 %v1379
    %v1381 = vand.u32 %v1210, 4294901760
    %v1382 = vsub.f32 %v1210, %v1381
    %v1383 = vand.u32 %v1382, 4294901760
    %v1384 = vsub.f32 %v1382, %v1383
    %v1385 = vand.u32 %v1384, 4294901760
    %1386 = vmatpush.msra.mxu0 %v1385
    %v1387 = vand.u32 %v1208, 4294901760
    %1388 = vmatmul.f32.gmra.mxu0 %v1387
    %v1389 = vpop.f32.mrf.mxu0
    %v1390 = vadd.f32 %v1281, %v1389
    %v1391 = vand.u32 %v1209, 4294901760
    %1392 = vmatmul.f32.gmra.mxu0 %v1391
    %v1393 = vpop.f32.mrf.mxu0
    %v1394 = vadd.f32 %v1289, %v1393
    %1395 = vdwg.mxu0
    %v1396 = vand.u32 %v1225, 4294901760
    %v1397 = vsub.f32 %v1225, %v1396
    %1398 = vmatpush.msra.mxu0 %v1397
    %v1399 = vand.u32 %v1224, 4294901760
    %v1400 = vsub.f32 %v1224, %v1399
    %1401 = vmatpush.msra.mxu0 %v1400
    %v1402 = vand.u32 %v1223, 4294901760
    %v1403 = vsub.f32 %v1223, %v1402
    %1404 = vmatpush.msra.mxu0 %v1403
    %v1405 = vand.u32 %v1222, 4294901760
    %v1406 = vsub.f32 %v1222, %v1405
    %1407 = vmatpush.msra.mxu0 %v1406
    %v1408 = vand.u32 %v1221, 4294901760
    %v1409 = vsub.f32 %v1221, %v1408
    %1410 = vmatpush.msra.mxu0 %v1409
    %v1411 = vand.u32 %v1220, 4294901760
    %v1412 = vsub.f32 %v1220, %v1411
    %1413 = vmatpush.msra.mxu0 %v1412
    %v1414 = vand.u32 %v1219, 4294901760
    %v1415 = vsub.f32 %v1219, %v1414
    %1416 = vmatpush.msra.mxu0 %v1415
    %v1417 = vand.u32 %v1218, 4294901760
    %v1418 = vsub.f32 %v1218, %v1417
    %1419 = vmatpush.msra.mxu0 %v1418
    %v1420 = vand.u32 %v1217, 4294901760
    %v1421 = vsub.f32 %v1217, %v1420
    %1422 = vmatpush.msra.mxu0 %v1421
    %v1423 = vand.u32 %v1216, 4294901760
    %v1424 = vsub.f32 %v1216, %v1423
    %1425 = vmatpush.msra.mxu0 %v1424
    %v1426 = vand.u32 %v1215, 4294901760
    %v1427 = vsub.f32 %v1215, %v1426
    %1428 = vmatpush.msra.mxu0 %v1427
    %v1429 = vand.u32 %v1214, 4294901760
    %v1430 = vsub.f32 %v1214, %v1429
    %1431 = vmatpush.msra.mxu0 %v1430
    %v1432 = vand.u32 %v1213, 4294901760
    %v1433 = vsub.f32 %v1213, %v1432
    %1434 = vmatpush.msra.mxu0 %v1433
    %v1435 = vand.u32 %v1212, 4294901760
    %v1436 = vsub.f32 %v1212, %v1435
    %1437 = vmatpush.msra.mxu0 %v1436
    %v1438 = vand.u32 %v1211, 4294901760
    %v1439 = vsub.f32 %v1211, %v1438
    %1440 = vmatpush.msra.mxu0 %v1439
    %v1441 = vand.u32 %v1210, 4294901760
    %v1442 = vsub.f32 %v1210, %v1441
    %1443 = vmatpush.msra.mxu0 %v1442
    %v1444 = vand.u32 %v1208, 4294901760
    %v1445 = vsub.f32 %v1208, %v1444
    %1446 = vmatmul.f32.gmra.mxu0 %v1445
    %v1447 = vpop.f32.mrf.mxu0
    %v1448 = vadd.f32 %v1390, %v1447
    %v1449 = vand.u32 %v1209, 4294901760
    %v1450 = vsub.f32 %v1209, %v1449
    %1451 = vmatmul.f32.gmra.mxu0 %v1450
    %v1452 = vpop.f32.mrf.mxu0
    %v1453 = vadd.f32 %v1394, %v1452
    %1454 = vdwg.mxu0
    %v1455 = vand.u32 %v1225, 4294901760
    %1456 = vmatpush.msra.mxu0 %v1455
    %v1457 = vand.u32 %v1224, 4294901760
    %1458 = vmatpush.msra.mxu0 %v1457
    %v1459 = vand.u32 %v1223, 4294901760
    %1460 = vmatpush.msra.mxu0 %v1459
    %v1461 = vand.u32 %v1222, 4294901760
    %1462 = vmatpush.msra.mxu0 %v1461
    %v1463 = vand.u32 %v1221, 4294901760
    %1464 = vmatpush.msra.mxu0 %v1463
    %v1465 = vand.u32 %v1220, 4294901760
    %1466 = vmatpush.msra.mxu0 %v1465
    %v1467 = vand.u32 %v1219, 4294901760
    %1468 = vmatpush.msra.mxu0 %v1467
    %v1469 = vand.u32 %v1218, 4294901760
    %1470 = vmatpush.msra.mxu0 %v1469
    %v1471 = vand.u32 %v1217, 4294901760
    %1472 = vmatpush.msra.mxu0 %v1471
    %v1473 = vand.u32 %v1216, 4294901760
    %1474 = vmatpush.msra.mxu0 %v1473
    %v1475 = vand.u32 %v1215, 4294901760
    %1476 = vmatpush.msra.mxu0 %v1475
    %v1477 = vand.u32 %v1214, 4294901760
    %1478 = vmatpush.msra.mxu0 %v1477
    %v1479 = vand.u32 %v1213, 4294901760
    %1480 = vmatpush.msra.mxu0 %v1479
    %v1481 = vand.u32 %v1212, 4294901760
    %1482 = vmatpush.msra.mxu0 %v1481
    %v1483 = vand.u32 %v1211, 4294901760
    %1484 = vmatpush.msra.mxu0 %v1483
    %v1485 = vand.u32 %v1210, 4294901760
    %1486 = vmatpush.msra.mxu0 %v1485
    %v1487 = vand.u32 %v1208, 4294901760
    %v1488 = vsub.f32 %v1208, %v1487
    %v1489 = vand.u32 %v1488, 4294901760
    %1490 = vmatmul.f32.gmra.mxu0 %v1489
    %v1491 = vpop.f32.mrf.mxu0
    %v1492 = vadd.f32 %v1448, %v1491
    %v1493 = vand.u32 %v1209, 4294901760
    %v1494 = vsub.f32 %v1209, %v1493
    %v1495 = vand.u32 %v1494, 4294901760
    %1496 = vmatmul.f32.gmra.mxu0 %v1495
    %v1497 = vpop.f32.mrf.mxu0
    %v1498 = vadd.f32 %v1453, %v1497
    %1499 = vdwg.mxu0
    %v1500 = vand.u32 %v1225, 4294901760
    %v1501 = vsub.f32 %v1225, %v1500
    %v1502 = vand.u32 %v1501, 4294901760
    %1503 = vmatpush.msra.mxu0 %v1502
    %v1504 = vand.u32 %v1224, 4294901760
    %v1505 = vsub.f32 %v1224, %v1504
    %v1506 = vand.u32 %v1505, 4294901760
    %1507 = vmatpush.msra.mxu0 %v1506
    %v1508 = vand.u32 %v1223, 4294901760
    %v1509 = vsub.f32 %v1223, %v1508
    %v1510 = vand.u32 %v1509, 4294901760
    %1511 = vmatpush.msra.mxu0 %v1510
    %v1512 = vand.u32 %v1222, 4294901760
    %v1513 = vsub.f32 %v1222, %v1512
    %v1514 = vand.u32 %v1513, 4294901760
    %1515 = vmatpush.msra.mxu0 %v1514
    %v1516 = vand.u32 %v1221, 4294901760
    %v1517 = vsub.f32 %v1221, %v1516
    %v1518 = vand.u32 %v1517, 4294901760
    %1519 = vmatpush.msra.mxu0 %v1518
    %v1520 = vand.u32 %v1220, 4294901760
    %v1521 = vsub.f32 %v1220, %v1520
    %v1522 = vand.u32 %v1521, 4294901760
    %1523 = vmatpush.msra.mxu0 %v1522
    %v1524 = vand.u32 %v1219, 4294901760
    %v1525 = vsub.f32 %v1219, %v1524
    %v1526 = vand.u32 %v1525, 4294901760
    %1527 = vmatpush.msra.mxu0 %v1526
    %v1528 = vand.u32 %v1218, 4294901760
    %v1529 = vsub.f32 %v1218, %v1528
    %v1530 = vand.u32 %v1529, 4294901760
    %1531 = vmatpush.msra.mxu0 %v1530
    %v1532 = vand.u32 %v1217, 4294901760
    %v1533 = vsub.f32 %v1217, %v1532
    %v1534 = vand.u32 %v1533, 4294901760
    %1535 = vmatpush.msra.mxu0 %v1534
    %v1536 = vand.u32 %v1216, 4294901760
    %v1537 = vsub.f32 %v1216, %v1536
    %v1538 = vand.u32 %v1537, 4294901760
    %1539 = vmatpush.msra.mxu0 %v1538
    %v1540 = vand.u32 %v1215, 4294901760
    %v1541 = vsub.f32 %v1215, %v1540
    %v1542 = vand.u32 %v1541, 4294901760
    %1543 = vmatpush.msra.mxu0 %v1542
    %v1544 = vand.u32 %v1214, 4294901760
    %v1545 = vsub.f32 %v1214, %v1544
    %v1546 = vand.u32 %v1545, 4294901760
    %1547 = vmatpush.msra.mxu0 %v1546
    %v1548 = vand.u32 %v1213, 4294901760
    %v1549 = vsub.f32 %v1213, %v1548
    %v1550 = vand.u32 %v1549, 4294901760
    %1551 = vmatpush.msra.mxu0 %v1550
    %v1552 = vand.u32 %v1212, 4294901760
    %v1553 = vsub.f32 %v1212, %v1552
    %v1554 = vand.u32 %v1553, 4294901760
    %1555 = vmatpush.msra.mxu0 %v1554
    %v1556 = vand.u32 %v1211, 4294901760
    %v1557 = vsub.f32 %v1211, %v1556
    %v1558 = vand.u32 %v1557, 4294901760
    %1559 = vmatpush.msra.mxu0 %v1558
    %v1560 = vand.u32 %v1210, 4294901760
    %v1561 = vsub.f32 %v1210, %v1560
    %v1562 = vand.u32 %v1561, 4294901760
    %1563 = vmatpush.msra.mxu0 %v1562
    %v1564 = vand.u32 %v1208, 4294901760
    %1565 = vmatmul.f32.gmra.mxu0 %v1564
    %v1566 = vpop.f32.mrf.mxu0
    %v1567 = vadd.f32 %v1492, %v1566
    %v1568 = vand.u32 %v1209, 4294901760
    %1569 = vmatmul.f32.gmra.mxu0 %v1568
    %v1570 = vpop.f32.mrf.mxu0
    %v1571 = vadd.f32 %v1498, %v1570
    %1572 = vdwg.mxu0
    %v1573 = vand.u32 %v1225, 4294901760
    %1574 = vmatpush.msra.mxu0 %v1573
    %v1575 = vand.u32 %v1224, 4294901760
    %1576 = vmatpush.msra.mxu0 %v1575
    %v1577 = vand.u32 %v1223, 4294901760
    %1578 = vmatpush.msra.mxu0 %v1577
    %v1579 = vand.u32 %v1222, 4294901760
    %1580 = vmatpush.msra.mxu0 %v1579
    %v1581 = vand.u32 %v1221, 4294901760
    %1582 = vmatpush.msra.mxu0 %v1581
    %v1583 = vand.u32 %v1220, 4294901760
    %1584 = vmatpush.msra.mxu0 %v1583
    %v1585 = vand.u32 %v1219, 4294901760
    %1586 = vmatpush.msra.mxu0 %v1585
    %v1587 = vand.u32 %v1218, 4294901760
    %1588 = vmatpush.msra.mxu0 %v1587
    %v1589 = vand.u32 %v1217, 4294901760
    %1590 = vmatpush.msra.mxu0 %v1589
    %v1591 = vand.u32 %v1216, 4294901760
    %1592 = vmatpush.msra.mxu0 %v1591
    %v1593 = vand.u32 %v1215, 4294901760
    %1594 = vmatpush.msra.mxu0 %v1593
    %v1595 = vand.u32 %v1214, 4294901760
    %1596 = vmatpush.msra.mxu0 %v1595
    %v1597 = vand.u32 %v1213, 4294901760
    %1598 = vmatpush.msra.mxu0 %v1597
    %v1599 = vand.u32 %v1212, 4294901760
    %1600 = vmatpush.msra.mxu0 %v1599
    %v1601 = vand.u32 %v1211, 4294901760
    %1602 = vmatpush.msra.mxu0 %v1601
    %v1603 = vand.u32 %v1210, 4294901760
    %1604 = vmatpush.msra.mxu0 %v1603
    %v1605 = vand.u32 %v1208, 4294901760
    %1606 = vmatmul.f32.gmra.mxu0 %v1605
    %v1607 = vpop.f32.mrf.mxu0
    %v1608 = vadd.f32 %v1567, %v1607
    %v1609 = vand.u32 %v1209, 4294901760
    %1610 = vmatmul.f32.gmra.mxu0 %v1609
    %v1611 = vpop.f32.mrf.mxu0
    %v1612 = vadd.f32 %v1571, %v1611
    %1613 = vdwg.mxu0
    %1614 = vmatpush.msra.mxu0 0.0
    %1615 = vmatpush.msra.mxu0 0.0
    %1616 = vmatpush.msra.mxu0 0.0
    %1617 = vmatpush.msra.mxu0 0.0
    %1618 = vmatpush.msra.mxu0 0.0
    %1619 = vmatpush.msra.mxu0 0.0
    %1620 = vmatpush.msra.mxu0 0.0
    %1621 = vmatpush.msra.mxu0 0.0
    %v1622 = vand.u32 %v1233, 4294901760
    %1623 = vmatpush.msra.mxu0 %v1622
    %v1624 = vand.u32 %v1232, 4294901760
    %1625 = vmatpush.msra.mxu0 %v1624
    %v1626 = vand.u32 %v1231, 4294901760
    %1627 = vmatpush.msra.mxu0 %v1626
    %v1628 = vand.u32 %v1230, 4294901760
    %1629 = vmatpush.msra.mxu0 %v1628
    %v1630 = vand.u32 %v1229, 4294901760
    %1631 = vmatpush.msra.mxu0 %v1630
    %v1632 = vand.u32 %v1228, 4294901760
    %1633 = vmatpush.msra.mxu0 %v1632
    %v1634 = vand.u32 %v1227, 4294901760
    %1635 = vmatpush.msra.mxu0 %v1634
    %v1636 = vand.u32 %v1226, 4294901760
    %1637 = vmatpush.msra.mxu0 %v1636
    %v1638 = vand.u32 %v1237, 4294901760
    %v1639 = vsub.f32 %v1237, %v1638
    %v1640 = vand.u32 %v1639, 4294901760
    %v1641 = vsub.f32 %v1639, %v1640
    %v1642 = vand.u32 %v1641, 4294901760
    %1643 = vmatmul.f32.gmra.mxu0 %v1642
    %v1644 = vpop.f32.mrf.mxu0
    %v1645 = vadd.f32 %v1608, %v1644
    %v1646 = vand.u32 %v1240, 4294901760
    %v1647 = vsub.f32 %v1240, %v1646
    %v1648 = vand.u32 %v1647, 4294901760
    %v1649 = vsub.f32 %v1647, %v1648
    %v1650 = vand.u32 %v1649, 4294901760
    %1651 = vmatmul.f32.gmra.mxu0 %v1650
    %v1652 = vpop.f32.mrf.mxu0
    %v1653 = vadd.f32 %v1612, %v1652
    %1654 = vdwg.mxu0
    %1655 = vmatpush.msra.mxu0 0.0
    %1656 = vmatpush.msra.mxu0 0.0
    %1657 = vmatpush.msra.mxu0 0.0
    %1658 = vmatpush.msra.mxu0 0.0
    %1659 = vmatpush.msra.mxu0 0.0
    %1660 = vmatpush.msra.mxu0 0.0
    %1661 = vmatpush.msra.mxu0 0.0
    %1662 = vmatpush.msra.mxu0 0.0
    %v1663 = vand.u32 %v1233, 4294901760
    %v1664 = vsub.f32 %v1233, %v1663
    %v1665 = vand.u32 %v1664, 4294901760
    %v1666 = vsub.f32 %v1664, %v1665
    %v1667 = vand.u32 %v1666, 4294901760
    %1668 = vmatpush.msra.mxu0 %v1667
    %v1669 = vand.u32 %v1232, 4294901760
    %v1670 = vsub.f32 %v1232, %v1669
    %v1671 = vand.u32 %v1670, 4294901760
    %v1672 = vsub.f32 %v1670, %v1671
    %v1673 = vand.u32 %v1672, 4294901760
    %1674 = vmatpush.msra.mxu0 %v1673
    %v1675 = vand.u32 %v1231, 4294901760
    %v1676 = vsub.f32 %v1231, %v1675
    %v1677 = vand.u32 %v1676, 4294901760
    %v1678 = vsub.f32 %v1676, %v1677
    %v1679 = vand.u32 %v1678, 4294901760
    %1680 = vmatpush.msra.mxu0 %v1679
    %v1681 = vand.u32 %v1230, 4294901760
    %v1682 = vsub.f32 %v1230, %v1681
    %v1683 = vand.u32 %v1682, 4294901760
    %v1684 = vsub.f32 %v1682, %v1683
    %v1685 = vand.u32 %v1684, 4294901760
    %1686 = vmatpush.msra.mxu0 %v1685
    %v1687 = vand.u32 %v1229, 4294901760
    %v1688 = vsub.f32 %v1229, %v1687
    %v1689 = vand.u32 %v1688, 4294901760
    %v1690 = vsub.f32 %v1688, %v1689
    %v1691 = vand.u32 %v1690, 4294901760
    %1692 = vmatpush.msra.mxu0 %v1691
    %v1693 = vand.u32 %v1228, 4294901760
    %v1694 = vsub.f32 %v1228, %v1693
    %v1695 = vand.u32 %v1694, 4294901760
    %v1696 = vsub.f32 %v1694, %v1695
    %v1697 = vand.u32 %v1696, 4294901760
    %1698 = vmatpush.msra.mxu0 %v1697
    %v1699 = vand.u32 %v1227, 4294901760
    %v1700 = vsub.f32 %v1227, %v1699
    %v1701 = vand.u32 %v1700, 4294901760
    %v1702 = vsub.f32 %v1700, %v1701
    %v1703 = vand.u32 %v1702, 4294901760
    %1704 = vmatpush.msra.mxu0 %v1703
    %v1705 = vand.u32 %v1226, 4294901760
    %v1706 = vsub.f32 %v1226, %v1705
    %v1707 = vand.u32 %v1706, 4294901760
    %v1708 = vsub.f32 %v1706, %v1707
    %v1709 = vand.u32 %v1708, 4294901760
    %1710 = vmatpush.msra.mxu0 %v1709
    %v1711 = vand.u32 %v1237, 4294901760
    %1712 = vmatmul.f32.gmra.mxu0 %v1711
    %v1713 = vpop.f32.mrf.mxu0
    %v1714 = vadd.f32 %v1645, %v1713
    %v1715 = vand.u32 %v1240, 4294901760
    %1716 = vmatmul.f32.gmra.mxu0 %v1715
    %v1717 = vpop.f32.mrf.mxu0
    %v1718 = vadd.f32 %v1653, %v1717
    %1719 = vdwg.mxu0
    %1720 = vmatpush.msra.mxu0 0.0
    %1721 = vmatpush.msra.mxu0 0.0
    %1722 = vmatpush.msra.mxu0 0.0
    %1723 = vmatpush.msra.mxu0 0.0
    %1724 = vmatpush.msra.mxu0 0.0
    %1725 = vmatpush.msra.mxu0 0.0
    %1726 = vmatpush.msra.mxu0 0.0
    %1727 = vmatpush.msra.mxu0 0.0
    %v1728 = vand.u32 %v1233, 4294901760
    %v1729 = vsub.f32 %v1233, %v1728
    %1730 = vmatpush.msra.mxu0 %v1729
    %v1731 = vand.u32 %v1232, 4294901760
    %v1732 = vsub.f32 %v1232, %v1731
    %1733 = vmatpush.msra.mxu0 %v1732
    %v1734 = vand.u32 %v1231, 4294901760
    %v1735 = vsub.f32 %v1231, %v1734
    %1736 = vmatpush.msra.mxu0 %v1735
    %v1737 = vand.u32 %v1230, 4294901760
    %v1738 = vsub.f32 %v1230, %v1737
    %1739 = vmatpush.msra.mxu0 %v1738
    %v1740 = vand.u32 %v1229, 4294901760
    %v1741 = vsub.f32 %v1229, %v1740
    %1742 = vmatpush.msra.mxu0 %v1741
    %v1743 = vand.u32 %v1228, 4294901760
    %v1744 = vsub.f32 %v1228, %v1743
    %1745 = vmatpush.msra.mxu0 %v1744
    %v1746 = vand.u32 %v1227, 4294901760
    %v1747 = vsub.f32 %v1227, %v1746
    %1748 = vmatpush.msra.mxu0 %v1747
    %v1749 = vand.u32 %v1226, 4294901760
    %v1750 = vsub.f32 %v1226, %v1749
    %1751 = vmatpush.msra.mxu0 %v1750
    %v1752 = vand.u32 %v1237, 4294901760
    %v1753 = vsub.f32 %v1237, %v1752
    %1754 = vmatmul.f32.gmra.mxu0 %v1753
    %v1755 = vpop.f32.mrf.mxu0
    %v1756 = vadd.f32 %v1714, %v1755
    %v1757 = vand.u32 %v1240, 4294901760
    %v1758 = vsub.f32 %v1240, %v1757
    %1759 = vmatmul.f32.gmra.mxu0 %v1758
    %v1760 = vpop.f32.mrf.mxu0
    %v1761 = vadd.f32 %v1718, %v1760
    %1762 = vdwg.mxu0
    %1763 = vmatpush.msra.mxu0 0.0
    %1764 = vmatpush.msra.mxu0 0.0
    %1765 = vmatpush.msra.mxu0 0.0
    %1766 = vmatpush.msra.mxu0 0.0
    %1767 = vmatpush.msra.mxu0 0.0
    %1768 = vmatpush.msra.mxu0 0.0
    %1769 = vmatpush.msra.mxu0 0.0
    %1770 = vmatpush.msra.mxu0 0.0
    %v1771 = vand.u32 %v1233, 4294901760
    %1772 = vmatpush.msra.mxu0 %v1771
    %v1773 = vand.u32 %v1232, 4294901760
    %1774 = vmatpush.msra.mxu0 %v1773
    %v1775 = vand.u32 %v1231, 4294901760
    %1776 = vmatpush.msra.mxu0 %v1775
    %v1777 = vand.u32 %v1230, 4294901760
    %1778 = vmatpush.msra.mxu0 %v1777
    %v1779 = vand.u32 %v1229, 4294901760
    %1780 = vmatpush.msra.mxu0 %v1779
    %v1781 = vand.u32 %v1228, 4294901760
    %1782 = vmatpush.msra.mxu0 %v1781
    %v1783 = vand.u32 %v1227, 4294901760
    %1784 = vmatpush.msra.mxu0 %v1783
    %v1785 = vand.u32 %v1226, 4294901760
    %1786 = vmatpush.msra.mxu0 %v1785
    %v1787 = vand.u32 %v1237, 4294901760
    %v1788 = vsub.f32 %v1237, %v1787
    %v1789 = vand.u32 %v1788, 4294901760
    %1790 = vmatmul.f32.gmra.mxu0 %v1789
    %v1791 = vpop.f32.mrf.mxu0
    %v1792 = vadd.f32 %v1756, %v1791
    %v1793 = vand.u32 %v1240, 4294901760
    %v1794 = vsub.f32 %v1240, %v1793
    %v1795 = vand.u32 %v1794, 4294901760
    %1796 = vmatmul.f32.gmra.mxu0 %v1795
    %v1797 = vpop.f32.mrf.mxu0
    %v1798 = vadd.f32 %v1761, %v1797
    %1799 = vdwg.mxu0
    %1800 = vmatpush.msra.mxu0 0.0
    %1801 = vmatpush.msra.mxu0 0.0
    %1802 = vmatpush.msra.mxu0 0.0
    %1803 = vmatpush.msra.mxu0 0.0
    %1804 = vmatpush.msra.mxu0 0.0
    %1805 = vmatpush.msra.mxu0 0.0
    %1806 = vmatpush.msra.mxu0 0.0
    %1807 = vmatpush.msra.mxu0 0.0
    %v1808 = vand.u32 %v1233, 4294901760
    %v1809 = vsub.f32 %v1233, %v1808
    %v1810 = vand.u32 %v1809, 4294901760
    %1811 = vmatpush.msra.mxu0 %v1810
    %v1812 = vand.u32 %v1232, 4294901760
    %v1813 = vsub.f32 %v1232, %v1812
    %v1814 = vand.u32 %v1813, 4294901760
    %1815 = vmatpush.msra.mxu0 %v1814
    %v1816 = vand.u32 %v1231, 4294901760
    %v1817 = vsub.f32 %v1231, %v1816
    %v1818 = vand.u32 %v1817, 4294901760
    %1819 = vmatpush.msra.mxu0 %v1818
    %v1820 = vand.u32 %v1230, 4294901760
    %v1821 = vsub.f32 %v1230, %v1820
    %v1822 = vand.u32 %v1821, 4294901760
    %1823 = vmatpush.msra.mxu0 %v1822
    %v1824 = vand.u32 %v1229, 4294901760
    %v1825 = vsub.f32 %v1229, %v1824
    %v1826 = vand.u32 %v1825, 4294901760
    %1827 = vmatpush.msra.mxu0 %v1826
    %v1828 = vand.u32 %v1228, 4294901760
    %v1829 = vsub.f32 %v1228, %v1828
    %v1830 = vand.u32 %v1829, 4294901760
    %1831 = vmatpush.msra.mxu0 %v1830
    %v1832 = vand.u32 %v1227, 4294901760
    %v1833 = vsub.f32 %v1227, %v1832
    %v1834 = vand.u32 %v1833, 4294901760
    %1835 = vmatpush.msra.mxu0 %v1834
    %v1836 = vand.u32 %v1226, 4294901760
    %v1837 = vsub.f32 %v1226, %v1836
    %v1838 = vand.u32 %v1837, 4294901760
    %1839 = vmatpush.msra.mxu0 %v1838
    %v1840 = vand.u32 %v1237, 4294901760
    %1841 = vmatmul.f32.gmra.mxu0 %v1840
    %v1842 = vpop.f32.mrf.mxu0
    %v1843 = vadd.f32 %v1792, %v1842
    %v1844 = vand.u32 %v1240, 4294901760
    %1845 = vmatmul.f32.gmra.mxu0 %v1844
    %v1846 = vpop.f32.mrf.mxu0
    %v1847 = vadd.f32 %v1798, %v1846
    %1848 = vdwg.mxu0
    %1849 = vmatpush.msra.mxu0 0.0
    %1850 = vmatpush.msra.mxu0 0.0
    %1851 = vmatpush.msra.mxu0 0.0
    %1852 = vmatpush.msra.mxu0 0.0
    %1853 = vmatpush.msra.mxu0 0.0
    %1854 = vmatpush.msra.mxu0 0.0
    %1855 = vmatpush.msra.mxu0 0.0
    %1856 = vmatpush.msra.mxu0 0.0
    %v1857 = vand.u32 %v1233, 4294901760
    %1858 = vmatpush.msra.mxu0 %v1857
    %v1859 = vand.u32 %v1232, 4294901760
    %1860 = vmatpush.msra.mxu0 %v1859
    %v1861 = vand.u32 %v1231, 4294901760
    %1862 = vmatpush.msra.mxu0 %v1861
    %v1863 = vand.u32 %v1230, 4294901760
    %1864 = vmatpush.msra.mxu0 %v1863
    %v1865 = vand.u32 %v1229, 4294901760
    %1866 = vmatpush.msra.mxu0 %v1865
    %v1867 = vand.u32 %v1228, 4294901760
    %1868 = vmatpush.msra.mxu0 %v1867
    %v1869 = vand.u32 %v1227, 4294901760
    %1870 = vmatpush.msra.mxu0 %v1869
    %v1871 = vand.u32 %v1226, 4294901760
    %1872 = vmatpush.msra.mxu0 %v1871
    %v1873 = vand.u32 %v1237, 4294901760
    %1874 = vmatmul.f32.gmra.mxu0 %v1873
    %v1875 = vpop.f32.mrf.mxu0
    %v1876 = vadd.f32 %v1843, %v1875
    %v1877 = vand.u32 %v1240, 4294901760
    %1878 = vmatmul.f32.gmra.mxu0 %v1877
    %v1879 = vpop.f32.mrf.mxu0
    %v1880 = vadd.f32 %v1847, %v1879
    %1881 = vdwg.mxu0
    %v1882 = vmin.f32 %v1876, 20.0
    %v1883 = vmin.f32 %v1880, 20.0
    %v1884 = vmul.f32 %v1882, 1.442695
    %v1885 = vpow.pop %v1884
    %v1886 = vmul.f32 %v1883, 1.442695
    %v1887 = vpow.pop %v1886
    %v1888 = vadd.f32 %v1885, 2.0
    %v1889 = vadd.f32 %v1887, 2.0
    %v1890 = vmul.f32 %v1885, %v1888
    %v1891 = vmul.f32 %v1887, %v1889
    %vm1892 = vcmp.gt.f32.partialorder %v1876, 20.0
    %vm1893 = vcmp.gt.f32.partialorder %v1880, 20.0
    %v1894 = vadd.f32 %v1890, 2.0
    %v1895 = vadd.f32 %v1891, 2.0
    %v1896 = vrcp.pop %v1894
    %v1897 = vmul.f32 %v1894, %v1896
    %v1898 = vsub.f32 1.0, %v1897
    %v1899 = vmul.f32 %v1896, %v1898
    %v1900 = vadd.f32 %v1896, %v1899
    %vm1901 = vweird.f32 %v1894
    %vm1902 = vweird.f32 %v1896
    %vm1903 = vmor %vm1901, %vm1902
    %v1904 = vsel %vm1903, %v1896, %v1900
    %v1905 = vand.u32 2147483647, %v1894
    %vm1906 = vcmp.eq.f32.partialorder %v1905, 8.507059e+37
    %v1907 = vand.u32 %v1894, 2147483648
    %v1908 = vor.u32 1.1754944e-38, %v1907
    %v1909 = vsel %vm1906, %v1908, %v1904
    %v1910 = vmul.f32 %v1890, %v1909
    %v1911 = vrcp.pop %v1895
    %v1912 = vmul.f32 %v1895, %v1911
    %v1913 = vsub.f32 1.0, %v1912
    %v1914 = vmul.f32 %v1911, %v1913
    %v1915 = vadd.f32 %v1911, %v1914
    %vm1916 = vweird.f32 %v1895
    %vm1917 = vweird.f32 %v1911
    %vm1918 = vmor %vm1916, %vm1917
    %v1919 = vsel %vm1918, %v1911, %v1915
    %v1920 = vand.u32 2147483647, %v1895
    %vm1921 = vcmp.eq.f32.partialorder %v1920, 8.507059e+37
    %v1922 = vand.u32 %v1895, 2147483648
    %v1923 = vor.u32 1.1754944e-38, %v1922
    %v1924 = vsel %vm1921, %v1923, %v1919
    %v1925 = vmul.f32 %v1891, %v1924
    %v1926 = vmul.f32 %v1876, %v1910
    %v1927 = vmul.f32 %v1880, %v1925
    %v1928 = vsel %vm1892, %v1876, %v1926
    %v1929 = vsel %vm1893, %v1880, %v1927
    %v1930 = vld [vmem:[#allocation5 + $0x1c0] sm:$0xff]
    %v1931 = vld [vmem:[#allocation5 + $0x1c8] sm:$0xff]
    %v1932 = vld [vmem:[#allocation5 + $0x1d0] sm:$0xff]
    %v1933 = vld [vmem:[#allocation5 + $0x1d8] sm:$0xff]
    %v1934 = vld [vmem:[#allocation7 + $0x3] sm:$0x1]
    %v1935 = vperm.slane %v1934, 0
    %vm1936 = vcmask 261120
    %v1938 = vsel %vm1936, %v1928, 0
    %v1941 = vsel %vm1936, %v1929, 0
    %1943 = vmatpush.msra.mxu0 0.0
    %1944 = vmatpush.msra.mxu0 0.0
    %1945 = vmatpush.msra.mxu0 0.0
    %1946 = vmatpush.msra.mxu0 0.0
    %1947 = vmatpush.msra.mxu0 0.0
    %1948 = vmatpush.msra.mxu0 0.0
    %1949 = vmatpush.msra.mxu0 0.0
    %1950 = vmatpush.msra.mxu0 0.0
    %1951 = vmatpush.msra.mxu0 0.0
    %1952 = vmatpush.msra.mxu0 0.0
    %1953 = vmatpush.msra.mxu0 0.0
    %1954 = vmatpush.msra.mxu0 0.0
    %v1955 = vand.u32 %v1933, 4294901760
    %1956 = vmatpush.msra.mxu0 %v1955
    %v1957 = vand.u32 %v1932, 4294901760
    %1958 = vmatpush.msra.mxu0 %v1957
    %v1959 = vand.u32 %v1931, 4294901760
    %1960 = vmatpush.msra.mxu0 %v1959
    %v1961 = vand.u32 %v1930, 4294901760
    %1962 = vmatpush.msra.mxu0 %v1961
    %v1963 = vand.u32 %v1938, 4294901760
    %v1964 = vsub.f32 %v1938, %v1963
    %v1965 = vand.u32 %v1964, 4294901760
    %v1966 = vsub.f32 %v1964, %v1965
    %v1967 = vand.u32 %v1966, 4294901760
    %1968 = vmatmul.f32.gmra.mxu0 %v1967
    %v1969 = vpop.f32.mrf.mxu0
    %v1970 = vadd.f32 %v1935, %v1969
    %v1971 = vand.u32 %v1941, 4294901760
    %v1972 = vsub.f32 %v1941, %v1971
    %v1973 = vand.u32 %v1972, 4294901760
    %v1974 = vsub.f32 %v1972, %v1973
    %v1975 = vand.u32 %v1974, 4294901760
    %1976 = vmatmul.f32.gmra.mxu0 %v1975
    %v1977 = vpop.f32.mrf.mxu0
    %v1978 = vadd.f32 %v1935, %v1977
    %1979 = vdwg.mxu0
    %1980 = vmatpush.msra.mxu0 0.0
    %1981 = vmatpush.msra.mxu0 0.0
    %1982 = vmatpush.msra.mxu0 0.0
    %1983 = vmatpush.msra.mxu0 0.0
    %1984 = vmatpush.msra.mxu0 0.0
    %1985 = vmatpush.msra.mxu0 0.0
    %1986 = vmatpush.msra.mxu0 0.0
    %1987 = vmatpush.msra.mxu0 0.0
    %1988 = vmatpush.msra.mxu0 0.0
    %1989 = vmatpush.msra.mxu0 0.0
    %1990 = vmatpush.msra.mxu0 0.0
    %1991 = vmatpush.msra.mxu0 0.0
    %v1992 = vand.u32 %v1933, 4294901760
    %v1993 = vsub.f32 %v1933, %v1992
    %v1994 = vand.u32 %v1993, 4294901760
    %v1995 = vsub.f32 %v1993, %v1994
    %v1996 = vand.u32 %v1995, 4294901760
    %1997 = vmatpush.msra.mxu0 %v1996
    %v1998 = vand.u32 %v1932, 4294901760
    %v1999 = vsub.f32 %v1932, %v1998
    %v2000 = vand.u32 %v1999, 4294901760
    %v2001 = vsub.f32 %v1999, %v2000
    %v2002 = vand.u32 %v2001, 4294901760
    %2003 = vmatpush.msra.mxu0 %v2002
    %v2004 = vand.u32 %v1931, 4294901760
    %v2005 = vsub.f32 %v1931, %v2004
    %v2006 = vand.u32 %v2005, 4294901760
    %v2007 = vsub.f32 %v2005, %v2006
    %v2008 = vand.u32 %v2007, 4294901760
    %2009 = vmatpush.msra.mxu0 %v2008
    %v2010 = vand.u32 %v1930, 4294901760
    %v2011 = vsub.f32 %v1930, %v2010
    %v2012 = vand.u32 %v2011, 4294901760
    %v2013 = vsub.f32 %v2011, %v2012
    %v2014 = vand.u32 %v2013, 4294901760
    %2015 = vmatpush.msra.mxu0 %v2014
    %v2016 = vand.u32 %v1938, 4294901760
    %2017 = vmatmul.f32.gmra.mxu0 %v2016
    %v2018 = vpop.f32.mrf.mxu0
    %v2019 = vadd.f32 %v1970, %v2018
    %v2020 = vand.u32 %v1941, 4294901760
    %2021 = vmatmul.f32.gmra.mxu0 %v2020
    %v2022 = vpop.f32.mrf.mxu0
    %v2023 = vadd.f32 %v1978, %v2022
    %2024 = vdwg.mxu0
    %2025 = vmatpush.msra.mxu0 0.0
    %2026 = vmatpush.msra.mxu0 0.0
    %2027 = vmatpush.msra.mxu0 0.0
    %2028 = vmatpush.msra.mxu0 0.0
    %2029 = vmatpush.msra.mxu0 0.0
    %2030 = vmatpush.msra.mxu0 0.0
    %2031 = vmatpush.msra.mxu0 0.0
    %2032 = vmatpush.msra.mxu0 0.0
    %2033 = vmatpush.msra.mxu0 0.0
    %2034 = vmatpush.msra.mxu0 0.0
    %2035 = vmatpush.msra.mxu0 0.0
    %2036 = vmatpush.msra.mxu0 0.0
    %v2037 = vand.u32 %v1933, 4294901760
    %v2038 = vsub.f32 %v1933, %v2037
    %2039 = vmatpush.msra.mxu0 %v2038
    %v2040 = vand.u32 %v1932, 4294901760
    %v2041 = vsub.f32 %v1932, %v2040
    %2042 = vmatpush.msra.mxu0 %v2041
    %v2043 = vand.u32 %v1931, 4294901760
    %v2044 = vsub.f32 %v1931, %v2043
    %2045 = vmatpush.msra.mxu0 %v2044
    %v2046 = vand.u32 %v1930, 4294901760
    %v2047 = vsub.f32 %v1930, %v2046
    %2048 = vmatpush.msra.mxu0 %v2047
    %v2049 = vand.u32 %v1938, 4294901760
    %v2050 = vsub.f32 %v1938, %v2049
    %2051 = vmatmul.f32.gmra.mxu0 %v2050
    %v2052 = vpop.f32.mrf.mxu0
    %v2053 = vadd.f32 %v2019, %v2052
    %v2054 = vand.u32 %v1941, 4294901760
    %v2055 = vsub.f32 %v1941, %v2054
    %2056 = vmatmul.f32.gmra.mxu0 %v2055
    %v2057 = vpop.f32.mrf.mxu0
    %v2058 = vadd.f32 %v2023, %v2057
    %2059 = vdwg.mxu0
    %2060 = vmatpush.msra.mxu0 0.0
    %2061 = vmatpush.msra.mxu0 0.0
    %2062 = vmatpush.msra.mxu0 0.0
    %2063 = vmatpush.msra.mxu0 0.0
    %2064 = vmatpush.msra.mxu0 0.0
    %2065 = vmatpush.msra.mxu0 0.0
    %2066 = vmatpush.msra.mxu0 0.0
    %2067 = vmatpush.msra.mxu0 0.0
    %2068 = vmatpush.msra.mxu0 0.0
    %2069 = vmatpush.msra.mxu0 0.0
    %2070 = vmatpush.msra.mxu0 0.0
    %2071 = vmatpush.msra.mxu0 0.0
    %v2072 = vand.u32 %v1933, 4294901760
    %2073 = vmatpush.msra.mxu0 %v2072
    %v2074 = vand.u32 %v1932, 4294901760
    %2075 = vmatpush.msra.mxu0 %v2074
    %v2076 = vand.u32 %v1931, 4294901760
    %2077 = vmatpush.msra.mxu0 %v2076
    %v2078 = vand.u32 %v1930, 4294901760
    %2079 = vmatpush.msra.mxu0 %v2078
    %v2080 = vand.u32 %v1938, 4294901760
    %v2081 = vsub.f32 %v1938, %v2080
    %v2082 = vand.u32 %v2081, 4294901760
    %2083 = vmatmul.f32.gmra.mxu0 %v2082
    %v2084 = vpop.f32.mrf.mxu0
    %v2085 = vadd.f32 %v2053, %v2084
    %v2086 = vand.u32 %v1941, 4294901760
    %v2087 = vsub.f32 %v1941, %v2086
    %v2088 = vand.u32 %v2087, 4294901760
    %2089 = vmatmul.f32.gmra.mxu0 %v2088
    %v2090 = vpop.f32.mrf.mxu0
    %v2091 = vadd.f32 %v2058, %v2090
    %2092 = vdwg.mxu0
    %2093 = vmatpush.msra.mxu0 0.0
    %2094 = vmatpush.msra.mxu0 0.0
    %2095 = vmatpush.msra.mxu0 0.0
    %2096 = vmatpush.msra.mxu0 0.0
    %2097 = vmatpush.msra.mxu0 0.0
    %2098 = vmatpush.msra.mxu0 0.0
    %2099 = vmatpush.msra.mxu0 0.0
    %2100 = vmatpush.msra.mxu0 0.0
    %2101 = vmatpush.msra.mxu0 0.0
    %2102 = vmatpush.msra.mxu0 0.0
    %2103 = vmatpush.msra.mxu0 0.0
    %2104 = vmatpush.msra.mxu0 0.0
    %v2105 = vand.u32 %v1933, 4294901760
    %v2106 = vsub.f32 %v1933, %v2105
    %v2107 = vand.u32 %v2106, 4294901760
    %2108 = vmatpush.msra.mxu0 %v2107
    %v2109 = vand.u32 %v1932, 4294901760
    %v2110 = vsub.f32 %v1932, %v2109
    %v2111 = vand.u32 %v2110, 4294901760
    %2112 = vmatpush.msra.mxu0 %v2111
    %v2113 = vand.u32 %v1931, 4294901760
    %v2114 = vsub.f32 %v1931, %v2113
    %v2115 = vand.u32 %v2114, 4294901760
    %2116 = vmatpush.msra.mxu0 %v2115
    %v2117 = vand.u32 %v1930, 4294901760
    %v2118 = vsub.f32 %v1930, %v2117
    %v2119 = vand.u32 %v2118, 4294901760
    %2120 = vmatpush.msra.mxu0 %v2119
    %v2121 = vand.u32 %v1938, 4294901760
    %2122 = vmatmul.f32.gmra.mxu0 %v2121
    %v2123 = vpop.f32.mrf.mxu0
    %v2124 = vadd.f32 %v2085, %v2123
    %v2125 = vand.u32 %v1941, 4294901760
    %2126 = vmatmul.f32.gmra.mxu0 %v2125
    %v2127 = vpop.f32.mrf.mxu0
    %v2128 = vadd.f32 %v2091, %v2127
    %2129 = vdwg.mxu0
    %2130 = vmatpush.msra.mxu0 0.0
    %2131 = vmatpush.msra.mxu0 0.0
    %2132 = vmatpush.msra.mxu0 0.0
    %2133 = vmatpush.msra.mxu0 0.0
    %2134 = vmatpush.msra.mxu0 0.0
    %2135 = vmatpush.msra.mxu0 0.0
    %2136 = vmatpush.msra.mxu0 0.0
    %2137 = vmatpush.msra.mxu0 0.0
    %2138 = vmatpush.msra.mxu0 0.0
    %2139 = vmatpush.msra.mxu0 0.0
    %2140 = vmatpush.msra.mxu0 0.0
    %2141 = vmatpush.msra.mxu0 0.0
    %v2142 = vand.u32 %v1933, 4294901760
    %2143 = vmatpush.msra.mxu0 %v2142
    %v2144 = vand.u32 %v1932, 4294901760
    %2145 = vmatpush.msra.mxu0 %v2144
    %v2146 = vand.u32 %v1931, 4294901760
    %2147 = vmatpush.msra.mxu0 %v2146
    %v2148 = vand.u32 %v1930, 4294901760
    %2149 = vmatpush.msra.mxu0 %v2148
    %v2150 = vand.u32 %v1938, 4294901760
    %2151 = vmatmul.f32.gmra.mxu0 %v2150
    %v2152 = vpop.f32.mrf.mxu0
    %v2153 = vadd.f32 %v2124, %v2152
    %v2154 = vand.u32 %v1941, 4294901760
    %2155 = vmatmul.f32.gmra.mxu0 %v2154
    %v2156 = vpop.f32.mrf.mxu0
    %v2157 = vadd.f32 %v2128, %v2156
    %2158 = vdwg.mxu0
    %v2159 = vmin.f32 %v2153, 20.0
    %v2160 = vmin.f32 %v2157, 20.0
    %v2161 = vmul.f32 %v2159, 1.442695
    %v2162 = vpow.pop %v2161
    %v2163 = vmul.f32 %v2160, 1.442695
    %v2164 = vpow.pop %v2163
    %v2165 = vadd.f32 %v2162, 2.0
    %v2166 = vadd.f32 %v2164, 2.0
    %v2167 = vmul.f32 %v2162, %v2165
    %v2168 = vmul.f32 %v2164, %v2166
    %vm2169 = vcmp.gt.f32.partialorder %v2153, 20.0
    %vm2170 = vcmp.gt.f32.partialorder %v2157, 20.0
    %v2171 = vadd.f32 %v2167, 2.0
    %v2172 = vadd.f32 %v2168, 2.0
    %v2173 = vrcp.pop %v2171
    %v2174 = vmul.f32 %v2171, %v2173
    %v2175 = vsub.f32 1.0, %v2174
    %v2176 = vmul.f32 %v2173, %v2175
    %v2177 = vadd.f32 %v2173, %v2176
    %vm2178 = vweird.f32 %v2171
    %vm2179 = vweird.f32 %v2173
    %vm2180 = vmor %vm2178, %vm2179
    %v2181 = vsel %vm2180, %v2173, %v2177
    %v2182 = vand.u32 2147483647, %v2171
    %vm2183 = vcmp.eq.f32.partialorder %v2182, 8.507059e+37
    %v2184 = vand.u32 %v2171, 2147483648
    %v2185 = vor.u32 1.1754944e-38, %v2184
    %v2186 = vsel %vm2183, %v2185, %v2181
    %v2187 = vmul.f32 %v2167, %v2186
    %v2188 = vrcp.pop %v2172
    %v2189 = vmul.f32 %v2172, %v2188
    %v2190 = vsub.f32 1.0, %v2189
    %v2191 = vmul.f32 %v2188, %v2190
    %v2192 = vadd.f32 %v2188, %v2191
    %vm2193 = vweird.f32 %v2172
    %vm2194 = vweird.f32 %v2188
    %vm2195 = vmor %vm2193, %vm2194
    %v2196 = vsel %vm2195, %v2188, %v2192
    %v2197 = vand.u32 2147483647, %v2172
    %vm2198 = vcmp.eq.f32.partialorder %v2197, 8.507059e+37
    %v2199 = vand.u32 %v2172, 2147483648
    %v2200 = vor.u32 1.1754944e-38, %v2199
    %v2201 = vsel %vm2198, %v2200, %v2196
    %v2202 = vmul.f32 %v2168, %v2201
    %v2203 = vmul.f32 %v2153, %v2187
    %v2204 = vmul.f32 %v2157, %v2202
    %v2205 = vsel %vm2169, %v2153, %v2203
    %v2206 = vsel %vm2170, %v2157, %v2204
    %v2209 = vrot.slane %v2205, 7
    %v2210 = vrot.slane %v2206, 7
    %v2211 = vsel %vm74, %v2209, %v2210
    %v2214 = vsel %vm74, %v2205, %v2209
    %v2215 = vrot.slane %v2205, 1
    %v2216 = vrot.slane %v2206, 1
    %v2217 = vsel %vm1185, %v2215, %v2216
    %v2220 = vsel %vm1185, %v2216, %v2206
    %v2221 = vsel %vm112, 0.0, %v2214
    %v2222 = vsel %vm113, 0.0, %v2211
    %v2223 = vsel %vm1198, 0.0, %v2217
    %v2224 = vsel %vm1199, 0.0, %v2220
    %2225 = vrot.lane.b32.xlu0 %v2205, 64
    %v2226 = vpop.permute.xlu0 %2225
    %2227 = vrot.lane.b32.xlu0 %v2206, 64
    %v2228 = vpop.permute.xlu0 %2227
    %v2231 = vsel %vm124, %v2221, %v2226
    %v2232 = vsel %vm124, %v2222, %v2228
    %v2233 = vld [vmem:[#allocation5 + $0x1e0] sm:$0xff]
    %v2234 = vld [vmem:[#allocation5 + $0x1e8] sm:$0xff]
    %v2235 = vld [vmem:[#allocation5 + $0x1f0] sm:$0xff]
    %v2236 = vld [vmem:[#allocation5 + $0x1f8] sm:$0xff]
    %v2237 = vld [vmem:[#allocation5 + $0x200] sm:$0xff]
    %v2238 = vld [vmem:[#allocation5 + $0x208] sm:$0xff]
    %v2239 = vld [vmem:[#allocation5 + $0x210] sm:$0xff]
    %v2240 = vld [vmem:[#allocation5 + $0x218] sm:$0xff]
    %v2241 = vld [vmem:[#allocation5 + $0x220] sm:$0xff]
    %v2242 = vld [vmem:[#allocation5 + $0x228] sm:$0xff]
    %v2243 = vld [vmem:[#allocation5 + $0x230] sm:$0xff]
    %v2244 = vld [vmem:[#allocation5 + $0x238] sm:$0xff]
    %v2245 = vld [vmem:[#allocation5 + $0x240] sm:$0xff]
    %v2246 = vld [vmem:[#allocation5 + $0x248] sm:$0xff]
    %v2247 = vld [vmem:[#allocation5 + $0x250] sm:$0xff]
    %v2248 = vld [vmem:[#allocation5 + $0x258] sm:$0xff]
    %v2249 = vld [vmem:[#allocation5 + $0x260] sm:$0xff]
    %v2250 = vld [vmem:[#allocation5 + $0x268] sm:$0xff]
    %v2251 = vld [vmem:[#allocation5 + $0x270] sm:$0xff]
    %v2252 = vld [vmem:[#allocation5 + $0x278] sm:$0xff]
    %v2253 = vld [vmem:[#allocation5 + $0x280] sm:$0xff]
    %v2254 = vld [vmem:[#allocation5 + $0x288] sm:$0xff]
    %v2255 = vld [vmem:[#allocation5 + $0x290] sm:$0xff]
    %v2256 = vld [vmem:[#allocation5 + $0x298] sm:$0xff]
    %v2257 = vld [vmem:[#allocation7 + $0x4] sm:$0x1]
    %v2258 = vperm.slane %v2257, 0
    %v2260 = vsel %vm124, %v2223, 0
    %v2263 = vsel %vm124, %v2224, 0
    %v2265 = vand.u32 %v2248, 4294901760
    %2266 = vmatpush.msra.mxu0 %v2265
    %v2267 = vand.u32 %v2247, 4294901760
    %2268 = vmatpush.msra.mxu0 %v2267
    %v2269 = vand.u32 %v2246, 4294901760
    %2270 = vmatpush.msra.mxu0 %v2269
    %v2271 = vand.u32 %v2245, 4294901760
    %2272 = vmatpush.msra.mxu0 %v2271
    %v2273 = vand.u32 %v2244, 4294901760
    %2274 = vmatpush.msra.mxu0 %v2273
    %v2275 = vand.u32 %v2243, 4294901760
    %2276 = vmatpush.msra.mxu0 %v2275
    %v2277 = vand.u32 %v2242, 4294901760
    %2278 = vmatpush.msra.mxu0 %v2277
    %v2279 = vand.u32 %v2241, 4294901760
    %2280 = vmatpush.msra.mxu0 %v2279
    %v2281 = vand.u32 %v2240, 4294901760
    %2282 = vmatpush.msra.mxu0 %v2281
    %v2283 = vand.u32 %v2239, 4294901760
    %2284 = vmatpush.msra.mxu0 %v2283
    %v2285 = vand.u32 %v2238, 4294901760
    %2286 = vmatpush.msra.mxu0 %v2285
    %v2287 = vand.u32 %v2237, 4294901760
    %2288 = vmatpush.msra.mxu0 %v2287
    %v2289 = vand.u32 %v2236, 4294901760
    %2290 = vmatpush.msra.mxu0 %v2289
    %v2291 = vand.u32 %v2235, 4294901760
    %2292 = vmatpush.msra.mxu0 %v2291
    %v2293 = vand.u32 %v2234, 4294901760
    %2294 = vmatpush.msra.mxu0 %v2293
    %v2295 = vand.u32 %v2233, 4294901760
    %2296 = vmatpush.msra.mxu0 %v2295
    %v2297 = vand.u32 %v2231, 4294901760
    %v2298 = vsub.f32 %v2231, %v2297
    %v2299 = vand.u32 %v2298, 4294901760
    %v2300 = vsub.f32 %v2298, %v2299
    %v2301 = vand.u32 %v2300, 4294901760
    %2302 = vmatmul.f32.gmra.mxu0 %v2301
    %v2303 = vpop.f32.mrf.mxu0
    %v2304 = vadd.f32 %v2258, %v2303
    %v2305 = vand.u32 %v2232, 4294901760
    %v2306 = vsub.f32 %v2232, %v2305
    %v2307 = vand.u32 %v2306, 4294901760
    %v2308 = vsub.f32 %v2306, %v2307
    %v2309 = vand.u32 %v2308, 4294901760
    %2310 = vmatmul.f32.gmra.mxu0 %v2309
    %v2311 = vpop.f32.mrf.mxu0
    %v2312 = vadd.f32 %v2258, %v2311
    %2313 = vdwg.mxu0
    %v2314 = vand.u32 %v2248, 4294901760
    %v2315 = vsub.f32 %v2248, %v2314
    %v2316 = vand.u32 %v2315, 4294901760
    %v2317 = vsub.f32 %v2315, %v2316
    %v2318 = vand.u32 %v2317, 4294901760
    %2319 = vmatpush.msra.mxu0 %v2318
    %v2320 = vand.u32 %v2247, 4294901760
    %v2321 = vsub.f32 %v2247, %v2320
    %v2322 = vand.u32 %v2321, 4294901760
    %v2323 = vsub.f32 %v2321, %v2322
    %v2324 = vand.u32 %v2323, 4294901760
    %2325 = vmatpush.msra.mxu0 %v2324
    %v2326 = vand.u32 %v2246, 4294901760
    %v2327 = vsub.f32 %v2246, %v2326
    %v2328 = vand.u32 %v2327, 4294901760
    %v2329 = vsub.f32 %v2327, %v2328
    %v2330 = vand.u32 %v2329, 4294901760
    %2331 = vmatpush.msra.mxu0 %v2330
    %v2332 = vand.u32 %v2245, 4294901760
    %v2333 = vsub.f32 %v2245, %v2332
    %v2334 = vand.u32 %v2333, 4294901760
    %v2335 = vsub.f32 %v2333, %v2334
    %v2336 = vand.u32 %v2335, 4294901760
    %2337 = vmatpush.msra.mxu0 %v2336
    %v2338 = vand.u32 %v2244, 4294901760
    %v2339 = vsub.f32 %v2244, %v2338
    %v2340 = vand.u32 %v2339, 4294901760
    %v2341 = vsub.f32 %v2339, %v2340
    %v2342 = vand.u32 %v2341, 4294901760
    %2343 = vmatpush.msra.mxu0 %v2342
    %v2344 = vand.u32 %v2243, 4294901760
    %v2345 = vsub.f32 %v2243, %v2344
    %v2346 = vand.u32 %v2345, 4294901760
    %v2347 = vsub.f32 %v2345, %v2346
    %v2348 = vand.u32 %v2347, 4294901760
    %2349 = vmatpush.msra.mxu0 %v2348
    %v2350 = vand.u32 %v2242, 4294901760
    %v2351 = vsub.f32 %v2242, %v2350
    %v2352 = vand.u32 %v2351, 4294901760
    %v2353 = vsub.f32 %v2351, %v2352
    %v2354 = vand.u32 %v2353, 4294901760
    %2355 = vmatpush.msra.mxu0 %v2354
    %v2356 = vand.u32 %v2241, 4294901760
    %v2357 = vsub.f32 %v2241, %v2356
    %v2358 = vand.u32 %v2357, 4294901760
    %v2359 = vsub.f32 %v2357, %v2358
    %v2360 = vand.u32 %v2359, 4294901760
    %2361 = vmatpush.msra.mxu0 %v2360
    %v2362 = vand.u32 %v2240, 4294901760
    %v2363 = vsub.f32 %v2240, %v2362
    %v2364 = vand.u32 %v2363, 4294901760
    %v2365 = vsub.f32 %v2363, %v2364
    %v2366 = vand.u32 %v2365, 4294901760
    %2367 = vmatpush.msra.mxu0 %v2366
    %v2368 = vand.u32 %v2239, 4294901760
    %v2369 = vsub.f32 %v2239, %v2368
    %v2370 = vand.u32 %v2369, 4294901760
    %v2371 = vsub.f32 %v2369, %v2370
    %v2372 = vand.u32 %v2371, 4294901760
    %2373 = vmatpush.msra.mxu0 %v2372
    %v2374 = vand.u32 %v2238, 4294901760
    %v2375 = vsub.f32 %v2238, %v2374
    %v2376 = vand.u32 %v2375, 4294901760
    %v2377 = vsub.f32 %v2375, %v2376
    %v2378 = vand.u32 %v2377, 4294901760
    %2379 = vmatpush.msra.mxu0 %v2378
    %v2380 = vand.u32 %v2237, 4294901760
    %v2381 = vsub.f32 %v2237, %v2380
    %v2382 = vand.u32 %v2381, 4294901760
    %v2383 = vsub.f32 %v2381, %v2382
    %v2384 = vand.u32 %v2383, 4294901760
    %2385 = vmatpush.msra.mxu0 %v2384
    %v2386 = vand.u32 %v2236, 4294901760
    %v2387 = vsub.f32 %v2236, %v2386
    %v2388 = vand.u32 %v2387, 4294901760
    %v2389 = vsub.f32 %v2387, %v2388
    %v2390 = vand.u32 %v2389, 4294901760
    %2391 = vmatpush.msra.mxu0 %v2390
    %v2392 = vand.u32 %v2235, 4294901760
    %v2393 = vsub.f32 %v2235, %v2392
    %v2394 = vand.u32 %v2393, 4294901760
    %v2395 = vsub.f32 %v2393, %v2394
    %v2396 = vand.u32 %v2395, 4294901760
    %2397 = vmatpush.msra.mxu0 %v2396
    %v2398 = vand.u32 %v2234, 4294901760
    %v2399 = vsub.f32 %v2234, %v2398
    %v2400 = vand.u32 %v2399, 4294901760
    %v2401 = vsub.f32 %v2399, %v2400
    %v2402 = vand.u32 %v2401, 4294901760
    %2403 = vmatpush.msra.mxu0 %v2402
    %v2404 = vand.u32 %v2233, 4294901760
    %v2405 = vsub.f32 %v2233, %v2404
    %v2406 = vand.u32 %v2405, 4294901760
    %v2407 = vsub.f32 %v2405, %v2406
    %v2408 = vand.u32 %v2407, 4294901760
    %2409 = vmatpush.msra.mxu0 %v2408
    %v2410 = vand.u32 %v2231, 4294901760
    %2411 = vmatmul.f32.gmra.mxu0 %v2410
    %v2412 = vpop.f32.mrf.mxu0
    %v2413 = vadd.f32 %v2304, %v2412
    %v2414 = vand.u32 %v2232, 4294901760
    %2415 = vmatmul.f32.gmra.mxu0 %v2414
    %v2416 = vpop.f32.mrf.mxu0
    %v2417 = vadd.f32 %v2312, %v2416
    %2418 = vdwg.mxu0
    %v2419 = vand.u32 %v2248, 4294901760
    %v2420 = vsub.f32 %v2248, %v2419
    %2421 = vmatpush.msra.mxu0 %v2420
    %v2422 = vand.u32 %v2247, 4294901760
    %v2423 = vsub.f32 %v2247, %v2422
    %2424 = vmatpush.msra.mxu0 %v2423
    %v2425 = vand.u32 %v2246, 4294901760
    %v2426 = vsub.f32 %v2246, %v2425
    %2427 = vmatpush.msra.mxu0 %v2426
    %v2428 = vand.u32 %v2245, 4294901760
    %v2429 = vsub.f32 %v2245, %v2428
    %2430 = vmatpush.msra.mxu0 %v2429
    %v2431 = vand.u32 %v2244, 4294901760
    %v2432 = vsub.f32 %v2244, %v2431
    %2433 = vmatpush.msra.mxu0 %v2432
    %v2434 = vand.u32 %v2243, 4294901760
    %v2435 = vsub.f32 %v2243, %v2434
    %2436 = vmatpush.msra.mxu0 %v2435
    %v2437 = vand.u32 %v2242, 4294901760
    %v2438 = vsub.f32 %v2242, %v2437
    %2439 = vmatpush.msra.mxu0 %v2438
    %v2440 = vand.u32 %v2241, 4294901760
    %v2441 = vsub.f32 %v2241, %v2440
    %2442 = vmatpush.msra.mxu0 %v2441
    %v2443 = vand.u32 %v2240, 4294901760
    %v2444 = vsub.f32 %v2240, %v2443
    %2445 = vmatpush.msra.mxu0 %v2444
    %v2446 = vand.u32 %v2239, 4294901760
    %v2447 = vsub.f32 %v2239, %v2446
    %2448 = vmatpush.msra.mxu0 %v2447
    %v2449 = vand.u32 %v2238, 4294901760
    %v2450 = vsub.f32 %v2238, %v2449
    %2451 = vmatpush.msra.mxu0 %v2450
    %v2452 = vand.u32 %v2237, 4294901760
    %v2453 = vsub.f32 %v2237, %v2452
    %2454 = vmatpush.msra.mxu0 %v2453
    %v2455 = vand.u32 %v2236, 4294901760
    %v2456 = vsub.f32 %v2236, %v2455
    %2457 = vmatpush.msra.mxu0 %v2456
    %v2458 = vand.u32 %v2235, 4294901760
    %v2459 = vsub.f32 %v2235, %v2458
    %2460 = vmatpush.msra.mxu0 %v2459
    %v2461 = vand.u32 %v2234, 4294901760
    %v2462 = vsub.f32 %v2234, %v2461
    %2463 = vmatpush.msra.mxu0 %v2462
    %v2464 = vand.u32 %v2233, 4294901760
    %v2465 = vsub.f32 %v2233, %v2464
    %2466 = vmatpush.msra.mxu0 %v2465
    %v2467 = vand.u32 %v2231, 4294901760
    %v2468 = vsub.f32 %v2231, %v2467
    %2469 = vmatmul.f32.gmra.mxu0 %v2468
    %v2470 = vpop.f32.mrf.mxu0
    %v2471 = vadd.f32 %v2413, %v2470
    %v2472 = vand.u32 %v2232, 4294901760
    %v2473 = vsub.f32 %v2232, %v2472
    %2474 = vmatmul.f32.gmra.mxu0 %v2473
    %v2475 = vpop.f32.mrf.mxu0
    %v2476 = vadd.f32 %v2417, %v2475
    %2477 = vdwg.mxu0
    %v2478 = vand.u32 %v2248, 4294901760
    %2479 = vmatpush.msra.mxu0 %v2478
    %v2480 = vand.u32 %v2247, 4294901760
    %2481 = vmatpush.msra.mxu0 %v2480
    %v2482 = vand.u32 %v2246, 4294901760
    %2483 = vmatpush.msra.mxu0 %v2482
    %v2484 = vand.u32 %v2245, 4294901760
    %2485 = vmatpush.msra.mxu0 %v2484
    %v2486 = vand.u32 %v2244, 4294901760
    %2487 = vmatpush.msra.mxu0 %v2486
    %v2488 = vand.u32 %v2243, 4294901760
    %2489 = vmatpush.msra.mxu0 %v2488
    %v2490 = vand.u32 %v2242, 4294901760
    %2491 = vmatpush.msra.mxu0 %v2490
    %v2492 = vand.u32 %v2241, 4294901760
    %2493 = vmatpush.msra.mxu0 %v2492
    %v2494 = vand.u32 %v2240, 4294901760
    %2495 = vmatpush.msra.mxu0 %v2494
    %v2496 = vand.u32 %v2239, 4294901760
    %2497 = vmatpush.msra.mxu0 %v2496
    %v2498 = vand.u32 %v2238, 4294901760
    %2499 = vmatpush.msra.mxu0 %v2498
    %v2500 = vand.u32 %v2237, 4294901760
    %2501 = vmatpush.msra.mxu0 %v2500
    %v2502 = vand.u32 %v2236, 4294901760
    %2503 = vmatpush.msra.mxu0 %v2502
    %v2504 = vand.u32 %v2235, 4294901760
    %2505 = vmatpush.msra.mxu0 %v2504
    %v2506 = vand.u32 %v2234, 4294901760
    %2507 = vmatpush.msra.mxu0 %v2506
    %v2508 = vand.u32 %v2233, 4294901760
    %2509 = vmatpush.msra.mxu0 %v2508
    %v2510 = vand.u32 %v2231, 4294901760
    %v2511 = vsub.f32 %v2231, %v2510
    %v2512 = vand.u32 %v2511, 4294901760
    %2513 = vmatmul.f32.gmra.mxu0 %v2512
    %v2514 = vpop.f32.mrf.mxu0
    %v2515 = vadd.f32 %v2471, %v2514
    %v2516 = vand.u32 %v2232, 4294901760
    %v2517 = vsub.f32 %v2232, %v2516
    %v2518 = vand.u32 %v2517, 4294901760
    %2519 = vmatmul.f32.gmra.mxu0 %v2518
    %v2520 = vpop.f32.mrf.mxu0
    %v2521 = vadd.f32 %v2476, %v2520
    %2522 = vdwg.mxu0
    %v2523 = vand.u32 %v2248, 4294901760
    %v2524 = vsub.f32 %v2248, %v2523
    %v2525 = vand.u32 %v2524, 4294901760
    %2526 = vmatpush.msra.mxu0 %v2525
    %v2527 = vand.u32 %v2247, 4294901760
    %v2528 = vsub.f32 %v2247, %v2527
    %v2529 = vand.u32 %v2528, 4294901760
    %2530 = vmatpush.msra.mxu0 %v2529
    %v2531 = vand.u32 %v2246, 4294901760
    %v2532 = vsub.f32 %v2246, %v2531
    %v2533 = vand.u32 %v2532, 4294901760
    %2534 = vmatpush.msra.mxu0 %v2533
    %v2535 = vand.u32 %v2245, 4294901760
    %v2536 = vsub.f32 %v2245, %v2535
    %v2537 = vand.u32 %v2536, 4294901760
    %2538 = vmatpush.msra.mxu0 %v2537
    %v2539 = vand.u32 %v2244, 4294901760
    %v2540 = vsub.f32 %v2244, %v2539
    %v2541 = vand.u32 %v2540, 4294901760
    %2542 = vmatpush.msra.mxu0 %v2541
    %v2543 = vand.u32 %v2243, 4294901760
    %v2544 = vsub.f32 %v2243, %v2543
    %v2545 = vand.u32 %v2544, 4294901760
    %2546 = vmatpush.msra.mxu0 %v2545
    %v2547 = vand.u32 %v2242, 4294901760
    %v2548 = vsub.f32 %v2242, %v2547
    %v2549 = vand.u32 %v2548, 4294901760
    %2550 = vmatpush.msra.mxu0 %v2549
    %v2551 = vand.u32 %v2241, 4294901760
    %v2552 = vsub.f32 %v2241, %v2551
    %v2553 = vand.u32 %v2552, 4294901760
    %2554 = vmatpush.msra.mxu0 %v2553
    %v2555 = vand.u32 %v2240, 4294901760
    %v2556 = vsub.f32 %v2240, %v2555
    %v2557 = vand.u32 %v2556, 4294901760
    %2558 = vmatpush.msra.mxu0 %v2557
    %v2559 = vand.u32 %v2239, 4294901760
    %v2560 = vsub.f32 %v2239, %v2559
    %v2561 = vand.u32 %v2560, 4294901760
    %2562 = vmatpush.msra.mxu0 %v2561
    %v2563 = vand.u32 %v2238, 4294901760
    %v2564 = vsub.f32 %v2238, %v2563
    %v2565 = vand.u32 %v2564, 4294901760
    %2566 = vmatpush.msra.mxu0 %v2565
    %v2567 = vand.u32 %v2237, 4294901760
    %v2568 = vsub.f32 %v2237, %v2567
    %v2569 = vand.u32 %v2568, 4294901760
    %2570 = vmatpush.msra.mxu0 %v2569
    %v2571 = vand.u32 %v2236, 4294901760
    %v2572 = vsub.f32 %v2236, %v2571
    %v2573 = vand.u32 %v2572, 4294901760
    %2574 = vmatpush.msra.mxu0 %v2573
    %v2575 = vand.u32 %v2235, 4294901760
    %v2576 = vsub.f32 %v2235, %v2575
    %v2577 = vand.u32 %v2576, 4294901760
    %2578 = vmatpush.msra.mxu0 %v2577
    %v2579 = vand.u32 %v2234, 4294901760
    %v2580 = vsub.f32 %v2234, %v2579
    %v2581 = vand.u32 %v2580, 4294901760
    %2582 = vmatpush.msra.mxu0 %v2581
    %v2583 = vand.u32 %v2233, 4294901760
    %v2584 = vsub.f32 %v2233, %v2583
    %v2585 = vand.u32 %v2584, 4294901760
    %2586 = vmatpush.msra.mxu0 %v2585
    %v2587 = vand.u32 %v2231, 4294901760
    %2588 = vmatmul.f32.gmra.mxu0 %v2587
    %v2589 = vpop.f32.mrf.mxu0
    %v2590 = vadd.f32 %v2515, %v2589
    %v2591 = vand.u32 %v2232, 4294901760
    %2592 = vmatmul.f32.gmra.mxu0 %v2591
    %v2593 = vpop.f32.mrf.mxu0
    %v2594 = vadd.f32 %v2521, %v2593
    %2595 = vdwg.mxu0
    %v2596 = vand.u32 %v2248, 4294901760
    %2597 = vmatpush.msra.mxu0 %v2596
    %v2598 = vand.u32 %v2247, 4294901760
    %2599 = vmatpush.msra.mxu0 %v2598
    %v2600 = vand.u32 %v2246, 4294901760
    %2601 = vmatpush.msra.mxu0 %v2600
    %v2602 = vand.u32 %v2245, 4294901760
    %2603 = vmatpush.msra.mxu0 %v2602
    %v2604 = vand.u32 %v2244, 4294901760
    %2605 = vmatpush.msra.mxu0 %v2604
    %v2606 = vand.u32 %v2243, 4294901760
    %2607 = vmatpush.msra.mxu0 %v2606
    %v2608 = vand.u32 %v2242, 4294901760
    %2609 = vmatpush.msra.mxu0 %v2608
    %v2610 = vand.u32 %v2241, 4294901760
    %2611 = vmatpush.msra.mxu0 %v2610
    %v2612 = vand.u32 %v2240, 4294901760
    %2613 = vmatpush.msra.mxu0 %v2612
    %v2614 = vand.u32 %v2239, 4294901760
    %2615 = vmatpush.msra.mxu0 %v2614
    %v2616 = vand.u32 %v2238, 4294901760
    %2617 = vmatpush.msra.mxu0 %v2616
    %v2618 = vand.u32 %v2237, 4294901760
    %2619 = vmatpush.msra.mxu0 %v2618
    %v2620 = vand.u32 %v2236, 4294901760
    %2621 = vmatpush.msra.mxu0 %v2620
    %v2622 = vand.u32 %v2235, 4294901760
    %2623 = vmatpush.msra.mxu0 %v2622
    %v2624 = vand.u32 %v2234, 4294901760
    %2625 = vmatpush.msra.mxu0 %v2624
    %v2626 = vand.u32 %v2233, 4294901760
    %2627 = vmatpush.msra.mxu0 %v2626
    %v2628 = vand.u32 %v2231, 4294901760
    %2629 = vmatmul.f32.gmra.mxu0 %v2628
    %v2630 = vpop.f32.mrf.mxu0
    %v2631 = vadd.f32 %v2590, %v2630
    %v2632 = vand.u32 %v2232, 4294901760
    %2633 = vmatmul.f32.gmra.mxu0 %v2632
    %v2634 = vpop.f32.mrf.mxu0
    %v2635 = vadd.f32 %v2594, %v2634
    %2636 = vdwg.mxu0
    %2637 = vmatpush.msra.mxu0 0.0
    %2638 = vmatpush.msra.mxu0 0.0
    %2639 = vmatpush.msra.mxu0 0.0
    %2640 = vmatpush.msra.mxu0 0.0
    %2641 = vmatpush.msra.mxu0 0.0
    %2642 = vmatpush.msra.mxu0 0.0
    %2643 = vmatpush.msra.mxu0 0.0
    %2644 = vmatpush.msra.mxu0 0.0
    %v2645 = vand.u32 %v2256, 4294901760
    %2646 = vmatpush.msra.mxu0 %v2645
    %v2647 = vand.u32 %v2255, 4294901760
    %2648 = vmatpush.msra.mxu0 %v2647
    %v2649 = vand.u32 %v2254, 4294901760
    %2650 = vmatpush.msra.mxu0 %v2649
    %v2651 = vand.u32 %v2253, 4294901760
    %2652 = vmatpush.msra.mxu0 %v2651
    %v2653 = vand.u32 %v2252, 4294901760
    %2654 = vmatpush.msra.mxu0 %v2653
    %v2655 = vand.u32 %v2251, 4294901760
    %2656 = vmatpush.msra.mxu0 %v2655
    %v2657 = vand.u32 %v2250, 4294901760
    %2658 = vmatpush.msra.mxu0 %v2657
    %v2659 = vand.u32 %v2249, 4294901760
    %2660 = vmatpush.msra.mxu0 %v2659
    %v2661 = vand.u32 %v2260, 4294901760
    %v2662 = vsub.f32 %v2260, %v2661
    %v2663 = vand.u32 %v2662, 4294901760
    %v2664 = vsub.f32 %v2662, %v2663
    %v2665 = vand.u32 %v2664, 4294901760
    %2666 = vmatmul.f32.gmra.mxu0 %v2665
    %v2667 = vpop.f32.mrf.mxu0
    %v2668 = vadd.f32 %v2631, %v2667
    %v2669 = vand.u32 %v2263, 4294901760
    %v2670 = vsub.f32 %v2263, %v2669
    %v2671 = vand.u32 %v2670, 4294901760
    %v2672 = vsub.f32 %v2670, %v2671
    %v2673 = vand.u32 %v2672, 4294901760
    %2674 = vmatmul.f32.gmra.mxu0 %v2673
    %v2675 = vpop.f32.mrf.mxu0
    %v2676 = vadd.f32 %v2635, %v2675
    %2677 = vdwg.mxu0
    %2678 = vmatpush.msra.mxu0 0.0
    %2679 = vmatpush.msra.mxu0 0.0
    %2680 = vmatpush.msra.mxu0 0.0
    %2681 = vmatpush.msra.mxu0 0.0
    %2682 = vmatpush.msra.mxu0 0.0
    %2683 = vmatpush.msra.mxu0 0.0
    %2684 = vmatpush.msra.mxu0 0.0
    %2685 = vmatpush.msra.mxu0 0.0
    %v2686 = vand.u32 %v2256, 4294901760
    %v2687 = vsub.f32 %v2256, %v2686
    %v2688 = vand.u32 %v2687, 4294901760
    %v2689 = vsub.f32 %v2687, %v2688
    %v2690 = vand.u32 %v2689, 4294901760
    %2691 = vmatpush.msra.mxu0 %v2690
    %v2692 = vand.u32 %v2255, 4294901760
    %v2693 = vsub.f32 %v2255, %v2692
    %v2694 = vand.u32 %v2693, 4294901760
    %v2695 = vsub.f32 %v2693, %v2694
    %v2696 = vand.u32 %v2695, 4294901760
    %2697 = vmatpush.msra.mxu0 %v2696
    %v2698 = vand.u32 %v2254, 4294901760
    %v2699 = vsub.f32 %v2254, %v2698
    %v2700 = vand.u32 %v2699, 4294901760
    %v2701 = vsub.f32 %v2699, %v2700
    %v2702 = vand.u32 %v2701, 4294901760
    %2703 = vmatpush.msra.mxu0 %v2702
    %v2704 = vand.u32 %v2253, 4294901760
    %v2705 = vsub.f32 %v2253, %v2704
    %v2706 = vand.u32 %v2705, 4294901760
    %v2707 = vsub.f32 %v2705, %v2706
    %v2708 = vand.u32 %v2707, 4294901760
    %2709 = vmatpush.msra.mxu0 %v2708
    %v2710 = vand.u32 %v2252, 4294901760
    %v2711 = vsub.f32 %v2252, %v2710
    %v2712 = vand.u32 %v2711, 4294901760
    %v2713 = vsub.f32 %v2711, %v2712
    %v2714 = vand.u32 %v2713, 4294901760
    %2715 = vmatpush.msra.mxu0 %v2714
    %v2716 = vand.u32 %v2251, 4294901760
    %v2717 = vsub.f32 %v2251, %v2716
    %v2718 = vand.u32 %v2717, 4294901760
    %v2719 = vsub.f32 %v2717, %v2718
    %v2720 = vand.u32 %v2719, 4294901760
    %2721 = vmatpush.msra.mxu0 %v2720
    %v2722 = vand.u32 %v2250, 4294901760
    %v2723 = vsub.f32 %v2250, %v2722
    %v2724 = vand.u32 %v2723, 4294901760
    %v2725 = vsub.f32 %v2723, %v2724
    %v2726 = vand.u32 %v2725, 4294901760
    %2727 = vmatpush.msra.mxu0 %v2726
    %v2728 = vand.u32 %v2249, 4294901760
    %v2729 = vsub.f32 %v2249, %v2728
    %v2730 = vand.u32 %v2729, 4294901760
    %v2731 = vsub.f32 %v2729, %v2730
    %v2732 = vand.u32 %v2731, 4294901760
    %2733 = vmatpush.msra.mxu0 %v2732
    %v2734 = vand.u32 %v2260, 4294901760
    %2735 = vmatmul.f32.gmra.mxu0 %v2734
    %v2736 = vpop.f32.mrf.mxu0
    %v2737 = vadd.f32 %v2668, %v2736
    %v2738 = vand.u32 %v2263, 4294901760
    %2739 = vmatmul.f32.gmra.mxu0 %v2738
    %v2740 = vpop.f32.mrf.mxu0
    %v2741 = vadd.f32 %v2676, %v2740
    %2742 = vdwg.mxu0
    %2743 = vmatpush.msra.mxu0 0.0
    %2744 = vmatpush.msra.mxu0 0.0
    %2745 = vmatpush.msra.mxu0 0.0
    %2746 = vmatpush.msra.mxu0 0.0
    %2747 = vmatpush.msra.mxu0 0.0
    %2748 = vmatpush.msra.mxu0 0.0
    %2749 = vmatpush.msra.mxu0 0.0
    %2750 = vmatpush.msra.mxu0 0.0
    %v2751 = vand.u32 %v2256, 4294901760
    %v2752 = vsub.f32 %v2256, %v2751
    %2753 = vmatpush.msra.mxu0 %v2752
    %v2754 = vand.u32 %v2255, 4294901760
    %v2755 = vsub.f32 %v2255, %v2754
    %2756 = vmatpush.msra.mxu0 %v2755
    %v2757 = vand.u32 %v2254, 4294901760
    %v2758 = vsub.f32 %v2254, %v2757
    %2759 = vmatpush.msra.mxu0 %v2758
    %v2760 = vand.u32 %v2253, 4294901760
    %v2761 = vsub.f32 %v2253, %v2760
    %2762 = vmatpush.msra.mxu0 %v2761
    %v2763 = vand.u32 %v2252, 4294901760
    %v2764 = vsub.f32 %v2252, %v2763
    %2765 = vmatpush.msra.mxu0 %v2764
    %v2766 = vand.u32 %v2251, 4294901760
    %v2767 = vsub.f32 %v2251, %v2766
    %2768 = vmatpush.msra.mxu0 %v2767
    %v2769 = vand.u32 %v2250, 4294901760
    %v2770 = vsub.f32 %v2250, %v2769
    %2771 = vmatpush.msra.mxu0 %v2770
    %v2772 = vand.u32 %v2249, 4294901760
    %v2773 = vsub.f32 %v2249, %v2772
    %2774 = vmatpush.msra.mxu0 %v2773
    %v2775 = vand.u32 %v2260, 4294901760
    %v2776 = vsub.f32 %v2260, %v2775
    %2777 = vmatmul.f32.gmra.mxu0 %v2776
    %v2778 = vpop.f32.mrf.mxu0
    %v2779 = vadd.f32 %v2737, %v2778
    %v2780 = vand.u32 %v2263, 4294901760
    %v2781 = vsub.f32 %v2263, %v2780
    %2782 = vmatmul.f32.gmra.mxu0 %v2781
    %v2783 = vpop.f32.mrf.mxu0
    %v2784 = vadd.f32 %v2741, %v2783
    %2785 = vdwg.mxu0
    %2786 = vmatpush.msra.mxu0 0.0
    %2787 = vmatpush.msra.mxu0 0.0
    %2788 = vmatpush.msra.mxu0 0.0
    %2789 = vmatpush.msra.mxu0 0.0
    %2790 = vmatpush.msra.mxu0 0.0
    %2791 = vmatpush.msra.mxu0 0.0
    %2792 = vmatpush.msra.mxu0 0.0
    %2793 = vmatpush.msra.mxu0 0.0
    %v2794 = vand.u32 %v2256, 4294901760
    %2795 = vmatpush.msra.mxu0 %v2794
    %v2796 = vand.u32 %v2255, 4294901760
    %2797 = vmatpush.msra.mxu0 %v2796
    %v2798 = vand.u32 %v2254, 4294901760
    %2799 = vmatpush.msra.mxu0 %v2798
    %v2800 = vand.u32 %v2253, 4294901760
    %2801 = vmatpush.msra.mxu0 %v2800
    %v2802 = vand.u32 %v2252, 4294901760
    %2803 = vmatpush.msra.mxu0 %v2802
    %v2804 = vand.u32 %v2251, 4294901760
    %2805 = vmatpush.msra.mxu0 %v2804
    %v2806 = vand.u32 %v2250, 4294901760
    %2807 = vmatpush.msra.mxu0 %v2806
    %v2808 = vand.u32 %v2249, 4294901760
    %2809 = vmatpush.msra.mxu0 %v2808
    %v2810 = vand.u32 %v2260, 4294901760
    %v2811 = vsub.f32 %v2260, %v2810
    %v2812 = vand.u32 %v2811, 4294901760
    %2813 = vmatmul.f32.gmra.mxu0 %v2812
    %v2814 = vpop.f32.mrf.mxu0
    %v2815 = vadd.f32 %v2779, %v2814
    %v2816 = vand.u32 %v2263, 4294901760
    %v2817 = vsub.f32 %v2263, %v2816
    %v2818 = vand.u32 %v2817, 4294901760
    %2819 = vmatmul.f32.gmra.mxu0 %v2818
    %v2820 = vpop.f32.mrf.mxu0
    %v2821 = vadd.f32 %v2784, %v2820
    %2822 = vdwg.mxu0
    %2823 = vmatpush.msra.mxu0 0.0
    %2824 = vmatpush.msra.mxu0 0.0
    %2825 = vmatpush.msra.mxu0 0.0
    %2826 = vmatpush.msra.mxu0 0.0
    %2827 = vmatpush.msra.mxu0 0.0
    %2828 = vmatpush.msra.mxu0 0.0
    %2829 = vmatpush.msra.mxu0 0.0
    %2830 = vmatpush.msra.mxu0 0.0
    %v2831 = vand.u32 %v2256, 4294901760
    %v2832 = vsub.f32 %v2256, %v2831
    %v2833 = vand.u32 %v2832, 4294901760
    %2834 = vmatpush.msra.mxu0 %v2833
    %v2835 = vand.u32 %v2255, 4294901760
    %v2836 = vsub.f32 %v2255, %v2835
    %v2837 = vand.u32 %v2836, 4294901760
    %2838 = vmatpush.msra.mxu0 %v2837
    %v2839 = vand.u32 %v2254, 4294901760
    %v2840 = vsub.f32 %v2254, %v2839
    %v2841 = vand.u32 %v2840, 4294901760
    %2842 = vmatpush.msra.mxu0 %v2841
    %v2843 = vand.u32 %v2253, 4294901760
    %v2844 = vsub.f32 %v2253, %v2843
    %v2845 = vand.u32 %v2844, 4294901760
    %2846 = vmatpush.msra.mxu0 %v2845
    %v2847 = vand.u32 %v2252, 4294901760
    %v2848 = vsub.f32 %v2252, %v2847
    %v2849 = vand.u32 %v2848, 4294901760
    %2850 = vmatpush.msra.mxu0 %v2849
    %v2851 = vand.u32 %v2251, 4294901760
    %v2852 = vsub.f32 %v2251, %v2851
    %v2853 = vand.u32 %v2852, 4294901760
    %2854 = vmatpush.msra.mxu0 %v2853
    %v2855 = vand.u32 %v2250, 4294901760
    %v2856 = vsub.f32 %v2250, %v2855
    %v2857 = vand.u32 %v2856, 4294901760
    %2858 = vmatpush.msra.mxu0 %v2857
    %v2859 = vand.u32 %v2249, 4294901760
    %v2860 = vsub.f32 %v2249, %v2859
    %v2861 = vand.u32 %v2860, 4294901760
    %2862 = vmatpush.msra.mxu0 %v2861
    %v2863 = vand.u32 %v2260, 4294901760
    %2864 = vmatmul.f32.gmra.mxu0 %v2863
    %v2865 = vpop.f32.mrf.mxu0
    %v2866 = vadd.f32 %v2815, %v2865
    %v2867 = vand.u32 %v2263, 4294901760
    %2868 = vmatmul.f32.gmra.mxu0 %v2867
    %v2869 = vpop.f32.mrf.mxu0
    %v2870 = vadd.f32 %v2821, %v2869
    %2871 = vdwg.mxu0
    %2872 = vmatpush.msra.mxu0 0.0
    %2873 = vmatpush.msra.mxu0 0.0
    %2874 = vmatpush.msra.mxu0 0.0
    %2875 = vmatpush.msra.mxu0 0.0
    %2876 = vmatpush.msra.mxu0 0.0
    %2877 = vmatpush.msra.mxu0 0.0
    %2878 = vmatpush.msra.mxu0 0.0
    %2879 = vmatpush.msra.mxu0 0.0
    %v2880 = vand.u32 %v2256, 4294901760
    %2881 = vmatpush.msra.mxu0 %v2880
    %v2882 = vand.u32 %v2255, 4294901760
    %2883 = vmatpush.msra.mxu0 %v2882
    %v2884 = vand.u32 %v2254, 4294901760
    %2885 = vmatpush.msra.mxu0 %v2884
    %v2886 = vand.u32 %v2253, 4294901760
    %2887 = vmatpush.msra.mxu0 %v2886
    %v2888 = vand.u32 %v2252, 4294901760
    %2889 = vmatpush.msra.mxu0 %v2888
    %v2890 = vand.u32 %v2251, 4294901760
    %2891 = vmatpush.msra.mxu0 %v2890
    %v2892 = vand.u32 %v2250, 4294901760
    %2893 = vmatpush.msra.mxu0 %v2892
    %v2894 = vand.u32 %v2249, 4294901760
    %2895 = vmatpush.msra.mxu0 %v2894
    %v2896 = vand.u32 %v2260, 4294901760
    %2897 = vmatmul.f32.gmra.mxu0 %v2896
    %v2898 = vpop.f32.mrf.mxu0
    %v2899 = vadd.f32 %v2866, %v2898
    %v2900 = vand.u32 %v2263, 4294901760
    %2901 = vmatmul.f32.gmra.mxu0 %v2900
    %v2902 = vpop.f32.mrf.mxu0
    %v2903 = vadd.f32 %v2870, %v2902
    %2904 = vdwg.mxu0
    %v2905 = vmin.f32 %v2899, 20.0
    %v2906 = vmin.f32 %v2903, 20.0
    %v2907 = vmul.f32 %v2905, 1.442695
    %v2908 = vpow.pop %v2907
    %v2909 = vmul.f32 %v2906, 1.442695
    %v2910 = vpow.pop %v2909
    %v2911 = vadd.f32 %v2908, 2.0
    %v2912 = vadd.f32 %v2910, 2.0
    %v2913 = vmul.f32 %v2908, %v2911
    %v2914 = vmul.f32 %v2910, %v2912
    %vm2915 = vcmp.gt.f32.partialorder %v2899, 20.0
    %vm2916 = vcmp.gt.f32.partialorder %v2903, 20.0
    %v2917 = vadd.f32 %v2913, 2.0
    %v2918 = vadd.f32 %v2914, 2.0
    %v2919 = vrcp.pop %v2917
    %v2920 = vmul.f32 %v2917, %v2919
    %v2921 = vsub.f32 1.0, %v2920
    %v2922 = vmul.f32 %v2919, %v2921
    %v2923 = vadd.f32 %v2919, %v2922
    %vm2924 = vweird.f32 %v2917
    %vm2925 = vweird.f32 %v2919
    %vm2926 = vmor %vm2924, %vm2925
    %v2927 = vsel %vm2926, %v2919, %v2923
    %v2928 = vand.u32 2147483647, %v2917
    %vm2929 = vcmp.eq.f32.partialorder %v2928, 8.507059e+37
    %v2930 = vand.u32 %v2917, 2147483648
    %v2931 = vor.u32 1.1754944e-38, %v2930
    %v2932 = vsel %vm2929, %v2931, %v2927
    %v2933 = vmul.f32 %v2913, %v2932
    %v2934 = vrcp.pop %v2918
    %v2935 = vmul.f32 %v2918, %v2934
    %v2936 = vsub.f32 1.0, %v2935
    %v2937 = vmul.f32 %v2934, %v2936
    %v2938 = vadd.f32 %v2934, %v2937
    %vm2939 = vweird.f32 %v2918
    %vm2940 = vweird.f32 %v2934
    %vm2941 = vmor %vm2939, %vm2940
    %v2942 = vsel %vm2941, %v2934, %v2938
    %v2943 = vand.u32 2147483647, %v2918
    %vm2944 = vcmp.eq.f32.partialorder %v2943, 8.507059e+37
    %v2945 = vand.u32 %v2918, 2147483648
    %v2946 = vor.u32 1.1754944e-38, %v2945
    %v2947 = vsel %vm2944, %v2946, %v2942
    %v2948 = vmul.f32 %v2914, %v2947
    %v2949 = vmul.f32 %v2899, %v2933
    %v2950 = vmul.f32 %v2903, %v2948
    %v2951 = vsel %vm2915, %v2899, %v2949
    %v2952 = vsel %vm2916, %v2903, %v2950
    %2953 = vrot.lane.b32.xlu0 %v1928, 64
    %v2954 = vpop.permute.xlu0 %2953
    %2955 = vrot.lane.b32.xlu0 %v1929, 64
    %v2956 = vpop.permute.xlu0 %2955
    %2961 = vrot.lane.b32.xlu0 %v2951, 96
    %v2962 = vpop.permute.xlu0 %2961
    %2963 = vrot.lane.b32.xlu0 %v2952, 96
    %v2964 = vpop.permute.xlu0 %2963
    %v2967 = vsel %vm124, %v843, %v2954
    %v2968 = vsel %vm124, %v844, %v2956
    %vm2969 = vcmask 785408
    %v2970 = vsel %vm2969, %v2967, %v2962
    %v2971 = vsel %vm2969, %v2968, %v2964
    %v2972 = vld [vmem:[#allocation5 + $0x2a0] sm:$0xff]
    %v2973 = vld [vmem:[#allocation5 + $0x2a8] sm:$0xff]
    %v2974 = vld [vmem:[#allocation5 + $0x2b0] sm:$0xff]
    %v2975 = vld [vmem:[#allocation5 + $0x2b8] sm:$0xff]
    %v2976 = vld [vmem:[#allocation5 + $0x2c0] sm:$0xff]
    %v2977 = vld [vmem:[#allocation5 + $0x2c8] sm:$0xff]
    %v2978 = vld [vmem:[#allocation5 + $0x2d0] sm:$0xff]
    %v2979 = vld [vmem:[#allocation5 + $0x2d8] sm:$0xff]
    %v2980 = vld [vmem:[#allocation5 + $0x2e0] sm:$0xff]
    %v2981 = vld [vmem:[#allocation5 + $0x2e8] sm:$0xff]
    %v2982 = vld [vmem:[#allocation5 + $0x2f0] sm:$0xff]
    %v2983 = vld [vmem:[#allocation5 + $0x2f8] sm:$0xff]
    %v2984 = vld [vmem:[#allocation5 + $0x300] sm:$0xff]
    %v2985 = vld [vmem:[#allocation5 + $0x308] sm:$0xff]
    %v2986 = vld [vmem:[#allocation5 + $0x310] sm:$0xff]
    %v2987 = vld [vmem:[#allocation5 + $0x318] sm:$0xff]
    %v2988 = vld [vmem:[#allocation7 + $0x5] sm:$0x1]
    %v2989 = vperm.slane %v2988, 0
    %v2990 = vand.u32 %v2987, 4294901760
    %2991 = vmatpush.msra.mxu0 %v2990
    %v2992 = vand.u32 %v2986, 4294901760
    %2993 = vmatpush.msra.mxu0 %v2992
    %v2994 = vand.u32 %v2985, 4294901760
    %2995 = vmatpush.msra.mxu0 %v2994
    %v2996 = vand.u32 %v2984, 4294901760
    %2997 = vmatpush.msra.mxu0 %v2996
    %v2998 = vand.u32 %v2983, 4294901760
    %2999 = vmatpush.msra.mxu0 %v2998
    %v3000 = vand.u32 %v2982, 4294901760
    %3001 = vmatpush.msra.mxu0 %v3000
    %v3002 = vand.u32 %v2981, 4294901760
    %3003 = vmatpush.msra.mxu0 %v3002
    %v3004 = vand.u32 %v2980, 4294901760
    %3005 = vmatpush.msra.mxu0 %v3004
    %v3006 = vand.u32 %v2979, 4294901760
    %3007 = vmatpush.msra.mxu0 %v3006
    %v3008 = vand.u32 %v2978, 4294901760
    %3009 = vmatpush.msra.mxu0 %v3008
    %v3010 = vand.u32 %v2977, 4294901760
    %3011 = vmatpush.msra.mxu0 %v3010
    %v3012 = vand.u32 %v2976, 4294901760
    %3013 = vmatpush.msra.mxu0 %v3012
    %v3014 = vand.u32 %v2975, 4294901760
    %3015 = vmatpush.msra.mxu0 %v3014
    %v3016 = vand.u32 %v2974, 4294901760
    %3017 = vmatpush.msra.mxu0 %v3016
    %v3018 = vand.u32 %v2973, 4294901760
    %3019 = vmatpush.msra.mxu0 %v3018
    %v3020 = vand.u32 %v2972, 4294901760
    %3021 = vmatpush.msra.mxu0 %v3020
    %v3022 = vand.u32 %v2970, 4294901760
    %v3023 = vsub.f32 %v2970, %v3022
    %v3024 = vand.u32 %v3023, 4294901760
    %v3025 = vsub.f32 %v3023, %v3024
    %v3026 = vand.u32 %v3025, 4294901760
    %3027 = vmatmul.f32.gmra.mxu0 %v3026
    %v3028 = vpop.f32.mrf.mxu0
    %v3029 = vadd.f32 %v2989, %v3028
    %v3030 = vand.u32 %v2971, 4294901760
    %v3031 = vsub.f32 %v2971, %v3030
    %v3032 = vand.u32 %v3031, 4294901760
    %v3033 = vsub.f32 %v3031, %v3032
    %v3034 = vand.u32 %v3033, 4294901760
    %3035 = vmatmul.f32.gmra.mxu0 %v3034
    %v3036 = vpop.f32.mrf.mxu0
    %v3037 = vadd.f32 %v2989, %v3036
    %3038 = vdwg.mxu0
    %v3039 = vand.u32 %v2987, 4294901760
    %v3040 = vsub.f32 %v2987, %v3039
    %v3041 = vand.u32 %v3040, 4294901760
    %v3042 = vsub.f32 %v3040, %v3041
    %v3043 = vand.u32 %v3042, 4294901760
    %3044 = vmatpush.msra.mxu0 %v3043
    %v3045 = vand.u32 %v2986, 4294901760
    %v3046 = vsub.f32 %v2986, %v3045
    %v3047 = vand.u32 %v3046, 4294901760
    %v3048 = vsub.f32 %v3046, %v3047
    %v3049 = vand.u32 %v3048, 4294901760
    %3050 = vmatpush.msra.mxu0 %v3049
    %v3051 = vand.u32 %v2985, 4294901760
    %v3052 = vsub.f32 %v2985, %v3051
    %v3053 = vand.u32 %v3052, 4294901760
    %v3054 = vsub.f32 %v3052, %v3053
    %v3055 = vand.u32 %v3054, 4294901760
    %3056 = vmatpush.msra.mxu0 %v3055
    %v3057 = vand.u32 %v2984, 4294901760
    %v3058 = vsub.f32 %v2984, %v3057
    %v3059 = vand.u32 %v3058, 4294901760
    %v3060 = vsub.f32 %v3058, %v3059
    %v3061 = vand.u32 %v3060, 4294901760
    %3062 = vmatpush.msra.mxu0 %v3061
    %v3063 = vand.u32 %v2983, 4294901760
    %v3064 = vsub.f32 %v2983, %v3063
    %v3065 = vand.u32 %v3064, 4294901760
    %v3066 = vsub.f32 %v3064, %v3065
    %v3067 = vand.u32 %v3066, 4294901760
    %3068 = vmatpush.msra.mxu0 %v3067
    %v3069 = vand.u32 %v2982, 4294901760
    %v3070 = vsub.f32 %v2982, %v3069
    %v3071 = vand.u32 %v3070, 4294901760
    %v3072 = vsub.f32 %v3070, %v3071
    %v3073 = vand.u32 %v3072, 4294901760
    %3074 = vmatpush.msra.mxu0 %v3073
    %v3075 = vand.u32 %v2981, 4294901760
    %v3076 = vsub.f32 %v2981, %v3075
    %v3077 = vand.u32 %v3076, 4294901760
    %v3078 = vsub.f32 %v3076, %v3077
    %v3079 = vand.u32 %v3078, 4294901760
    %3080 = vmatpush.msra.mxu0 %v3079
    %v3081 = vand.u32 %v2980, 4294901760
    %v3082 = vsub.f32 %v2980, %v3081
    %v3083 = vand.u32 %v3082, 4294901760
    %v3084 = vsub.f32 %v3082, %v3083
    %v3085 = vand.u32 %v3084, 4294901760
    %3086 = vmatpush.msra.mxu0 %v3085
    %v3087 = vand.u32 %v2979, 4294901760
    %v3088 = vsub.f32 %v2979, %v3087
    %v3089 = vand.u32 %v3088, 4294901760
    %v3090 = vsub.f32 %v3088, %v3089
    %v3091 = vand.u32 %v3090, 4294901760
    %3092 = vmatpush.msra.mxu0 %v3091
    %v3093 = vand.u32 %v2978, 4294901760
    %v3094 = vsub.f32 %v2978, %v3093
    %v3095 = vand.u32 %v3094, 4294901760
    %v3096 = vsub.f32 %v3094, %v3095
    %v3097 = vand.u32 %v3096, 4294901760
    %3098 = vmatpush.msra.mxu0 %v3097
    %v3099 = vand.u32 %v2977, 4294901760
    %v3100 = vsub.f32 %v2977, %v3099
    %v3101 = vand.u32 %v3100, 4294901760
    %v3102 = vsub.f32 %v3100, %v3101
    %v3103 = vand.u32 %v3102, 4294901760
    %3104 = vmatpush.msra.mxu0 %v3103
    %v3105 = vand.u32 %v2976, 4294901760
    %v3106 = vsub.f32 %v2976, %v3105
    %v3107 = vand.u32 %v3106, 4294901760
    %v3108 = vsub.f32 %v3106, %v3107
    %v3109 = vand.u32 %v3108, 4294901760
    %3110 = vmatpush.msra.mxu0 %v3109
    %v3111 = vand.u32 %v2975, 4294901760
    %v3112 = vsub.f32 %v2975, %v3111
    %v3113 = vand.u32 %v3112, 4294901760
    %v3114 = vsub.f32 %v3112, %v3113
    %v3115 = vand.u32 %v3114, 4294901760
    %3116 = vmatpush.msra.mxu0 %v3115
    %v3117 = vand.u32 %v2974, 4294901760
    %v3118 = vsub.f32 %v2974, %v3117
    %v3119 = vand.u32 %v3118, 4294901760
    %v3120 = vsub.f32 %v3118, %v3119
    %v3121 = vand.u32 %v3120, 4294901760
    %3122 = vmatpush.msra.mxu0 %v3121
    %v3123 = vand.u32 %v2973, 4294901760
    %v3124 = vsub.f32 %v2973, %v3123
    %v3125 = vand.u32 %v3124, 4294901760
    %v3126 = vsub.f32 %v3124, %v3125
    %v3127 = vand.u32 %v3126, 4294901760
    %3128 = vmatpush.msra.mxu0 %v3127
    %v3129 = vand.u32 %v2972, 4294901760
    %v3130 = vsub.f32 %v2972, %v3129
    %v3131 = vand.u32 %v3130, 4294901760
    %v3132 = vsub.f32 %v3130, %v3131
    %v3133 = vand.u32 %v3132, 4294901760
    %3134 = vmatpush.msra.mxu0 %v3133
    %v3135 = vand.u32 %v2970, 4294901760
    %3136 = vmatmul.f32.gmra.mxu0 %v3135
    %v3137 = vpop.f32.mrf.mxu0
    %v3138 = vadd.f32 %v3029, %v3137
    %v3139 = vand.u32 %v2971, 4294901760
    %3140 = vmatmul.f32.gmra.mxu0 %v3139
    %v3141 = vpop.f32.mrf.mxu0
    %v3142 = vadd.f32 %v3037, %v3141
    %3143 = vdwg.mxu0
    %v3144 = vand.u32 %v2987, 4294901760
    %v3145 = vsub.f32 %v2987, %v3144
    %3146 = vmatpush.msra.mxu0 %v3145
    %v3147 = vand.u32 %v2986, 4294901760
    %v3148 = vsub.f32 %v2986, %v3147
    %3149 = vmatpush.msra.mxu0 %v3148
    %v3150 = vand.u32 %v2985, 4294901760
    %v3151 = vsub.f32 %v2985, %v3150
    %3152 = vmatpush.msra.mxu0 %v3151
    %v3153 = vand.u32 %v2984, 4294901760
    %v3154 = vsub.f32 %v2984, %v3153
    %3155 = vmatpush.msra.mxu0 %v3154
    %v3156 = vand.u32 %v2983, 4294901760
    %v3157 = vsub.f32 %v2983, %v3156
    %3158 = vmatpush.msra.mxu0 %v3157
    %v3159 = vand.u32 %v2982, 4294901760
    %v3160 = vsub.f32 %v2982, %v3159
    %3161 = vmatpush.msra.mxu0 %v3160
    %v3162 = vand.u32 %v2981, 4294901760
    %v3163 = vsub.f32 %v2981, %v3162
    %3164 = vmatpush.msra.mxu0 %v3163
    %v3165 = vand.u32 %v2980, 4294901760
    %v3166 = vsub.f32 %v2980, %v3165
    %3167 = vmatpush.msra.mxu0 %v3166
    %v3168 = vand.u32 %v2979, 4294901760
    %v3169 = vsub.f32 %v2979, %v3168
    %3170 = vmatpush.msra.mxu0 %v3169
    %v3171 = vand.u32 %v2978, 4294901760
    %v3172 = vsub.f32 %v2978, %v3171
    %3173 = vmatpush.msra.mxu0 %v3172
    %v3174 = vand.u32 %v2977, 4294901760
    %v3175 = vsub.f32 %v2977, %v3174
    %3176 = vmatpush.msra.mxu0 %v3175
    %v3177 = vand.u32 %v2976, 4294901760
    %v3178 = vsub.f32 %v2976, %v3177
    %3179 = vmatpush.msra.mxu0 %v3178
    %v3180 = vand.u32 %v2975, 4294901760
    %v3181 = vsub.f32 %v2975, %v3180
    %3182 = vmatpush.msra.mxu0 %v3181
    %v3183 = vand.u32 %v2974, 4294901760
    %v3184 = vsub.f32 %v2974, %v3183
    %3185 = vmatpush.msra.mxu0 %v3184
    %v3186 = vand.u32 %v2973, 4294901760
    %v3187 = vsub.f32 %v2973, %v3186
    %3188 = vmatpush.msra.mxu0 %v3187
    %v3189 = vand.u32 %v2972, 4294901760
    %v3190 = vsub.f32 %v2972, %v3189
    %3191 = vmatpush.msra.mxu0 %v3190
    %v3192 = vand.u32 %v2970, 4294901760
    %v3193 = vsub.f32 %v2970, %v3192
    %3194 = vmatmul.f32.gmra.mxu0 %v3193
    %v3195 = vpop.f32.mrf.mxu0
    %v3196 = vadd.f32 %v3138, %v3195
    %v3197 = vand.u32 %v2971, 4294901760
    %v3198 = vsub.f32 %v2971, %v3197
    %3199 = vmatmul.f32.gmra.mxu0 %v3198
    %v3200 = vpop.f32.mrf.mxu0
    %v3201 = vadd.f32 %v3142, %v3200
    %3202 = vdwg.mxu0
    %v3203 = vand.u32 %v2987, 4294901760
    %3204 = vmatpush.msra.mxu0 %v3203
    %v3205 = vand.u32 %v2986, 4294901760
    %3206 = vmatpush.msra.mxu0 %v3205
    %v3207 = vand.u32 %v2985, 4294901760
    %3208 = vmatpush.msra.mxu0 %v3207
    %v3209 = vand.u32 %v2984, 4294901760
    %3210 = vmatpush.msra.mxu0 %v3209
    %v3211 = vand.u32 %v2983, 4294901760
    %3212 = vmatpush.msra.mxu0 %v3211
    %v3213 = vand.u32 %v2982, 4294901760
    %3214 = vmatpush.msra.mxu0 %v3213
    %v3215 = vand.u32 %v2981, 4294901760
    %3216 = vmatpush.msra.mxu0 %v3215
    %v3217 = vand.u32 %v2980, 4294901760
    %3218 = vmatpush.msra.mxu0 %v3217
    %v3219 = vand.u32 %v2979, 4294901760
    %3220 = vmatpush.msra.mxu0 %v3219
    %v3221 = vand.u32 %v2978, 4294901760
    %3222 = vmatpush.msra.mxu0 %v3221
    %v3223 = vand.u32 %v2977, 4294901760
    %3224 = vmatpush.msra.mxu0 %v3223
    %v3225 = vand.u32 %v2976, 4294901760
    %3226 = vmatpush.msra.mxu0 %v3225
    %v3227 = vand.u32 %v2975, 4294901760
    %3228 = vmatpush.msra.mxu0 %v3227
    %v3229 = vand.u32 %v2974, 4294901760
    %3230 = vmatpush.msra.mxu0 %v3229
    %v3231 = vand.u32 %v2973, 4294901760
    %3232 = vmatpush.msra.mxu0 %v3231
    %v3233 = vand.u32 %v2972, 4294901760
    %3234 = vmatpush.msra.mxu0 %v3233
    %v3235 = vand.u32 %v2970, 4294901760
    %v3236 = vsub.f32 %v2970, %v3235
    %v3237 = vand.u32 %v3236, 4294901760
    %3238 = vmatmul.f32.gmra.mxu0 %v3237
    %v3239 = vpop.f32.mrf.mxu0
    %v3240 = vadd.f32 %v3196, %v3239
    %v3241 = vand.u32 %v2971, 4294901760
    %v3242 = vsub.f32 %v2971, %v3241
    %v3243 = vand.u32 %v3242, 4294901760
    %3244 = vmatmul.f32.gmra.mxu0 %v3243
    %v3245 = vpop.f32.mrf.mxu0
    %v3246 = vadd.f32 %v3201, %v3245
    %3247 = vdwg.mxu0
    %v3248 = vand.u32 %v2987, 4294901760
    %v3249 = vsub.f32 %v2987, %v3248
    %v3250 = vand.u32 %v3249, 4294901760
    %3251 = vmatpush.msra.mxu0 %v3250
    %v3252 = vand.u32 %v2986, 4294901760
    %v3253 = vsub.f32 %v2986, %v3252
    %v3254 = vand.u32 %v3253, 4294901760
    %3255 = vmatpush.msra.mxu0 %v3254
    %v3256 = vand.u32 %v2985, 4294901760
    %v3257 = vsub.f32 %v2985, %v3256
    %v3258 = vand.u32 %v3257, 4294901760
    %3259 = vmatpush.msra.mxu0 %v3258
    %v3260 = vand.u32 %v2984, 4294901760
    %v3261 = vsub.f32 %v2984, %v3260
    %v3262 = vand.u32 %v3261, 4294901760
    %3263 = vmatpush.msra.mxu0 %v3262
    %v3264 = vand.u32 %v2983, 4294901760
    %v3265 = vsub.f32 %v2983, %v3264
    %v3266 = vand.u32 %v3265, 4294901760
    %3267 = vmatpush.msra.mxu0 %v3266
    %v3268 = vand.u32 %v2982, 4294901760
    %v3269 = vsub.f32 %v2982, %v3268
    %v3270 = vand.u32 %v3269, 4294901760
    %3271 = vmatpush.msra.mxu0 %v3270
    %v3272 = vand.u32 %v2981, 4294901760
    %v3273 = vsub.f32 %v2981, %v3272
    %v3274 = vand.u32 %v3273, 4294901760
    %3275 = vmatpush.msra.mxu0 %v3274
    %v3276 = vand.u32 %v2980, 4294901760
    %v3277 = vsub.f32 %v2980, %v3276
    %v3278 = vand.u32 %v3277, 4294901760
    %3279 = vmatpush.msra.mxu0 %v3278
    %v3280 = vand.u32 %v2979, 4294901760
    %v3281 = vsub.f32 %v2979, %v3280
    %v3282 = vand.u32 %v3281, 4294901760
    %3283 = vmatpush.msra.mxu0 %v3282
    %v3284 = vand.u32 %v2978, 4294901760
    %v3285 = vsub.f32 %v2978, %v3284
    %v3286 = vand.u32 %v3285, 4294901760
    %3287 = vmatpush.msra.mxu0 %v3286
    %v3288 = vand.u32 %v2977, 4294901760
    %v3289 = vsub.f32 %v2977, %v3288
    %v3290 = vand.u32 %v3289, 4294901760
    %3291 = vmatpush.msra.mxu0 %v3290
    %v3292 = vand.u32 %v2976, 4294901760
    %v3293 = vsub.f32 %v2976, %v3292
    %v3294 = vand.u32 %v3293, 4294901760
    %3295 = vmatpush.msra.mxu0 %v3294
    %v3296 = vand.u32 %v2975, 4294901760
    %v3297 = vsub.f32 %v2975, %v3296
    %v3298 = vand.u32 %v3297, 4294901760
    %3299 = vmatpush.msra.mxu0 %v3298
    %v3300 = vand.u32 %v2974, 4294901760
    %v3301 = vsub.f32 %v2974, %v3300
    %v3302 = vand.u32 %v3301, 4294901760
    %3303 = vmatpush.msra.mxu0 %v3302
    %v3304 = vand.u32 %v2973, 4294901760
    %v3305 = vsub.f32 %v2973, %v3304
    %v3306 = vand.u32 %v3305, 4294901760
    %3307 = vmatpush.msra.mxu0 %v3306
    %v3308 = vand.u32 %v2972, 4294901760
    %v3309 = vsub.f32 %v2972, %v3308
    %v3310 = vand.u32 %v3309, 4294901760
    %3311 = vmatpush.msra.mxu0 %v3310
    %v3312 = vand.u32 %v2970, 4294901760
    %3313 = vmatmul.f32.gmra.mxu0 %v3312
    %v3314 = vpop.f32.mrf.mxu0
    %v3315 = vadd.f32 %v3240, %v3314
    %v3316 = vand.u32 %v2971, 4294901760
    %3317 = vmatmul.f32.gmra.mxu0 %v3316
    %v3318 = vpop.f32.mrf.mxu0
    %v3319 = vadd.f32 %v3246, %v3318
    %3320 = vdwg.mxu0
    %v3321 = vand.u32 %v2987, 4294901760
    %3322 = vmatpush.msra.mxu0 %v3321
    %v3323 = vand.u32 %v2986, 4294901760
    %3324 = vmatpush.msra.mxu0 %v3323
    %v3325 = vand.u32 %v2985, 4294901760
    %3326 = vmatpush.msra.mxu0 %v3325
    %v3327 = vand.u32 %v2984, 4294901760
    %3328 = vmatpush.msra.mxu0 %v3327
    %v3329 = vand.u32 %v2983, 4294901760
    %3330 = vmatpush.msra.mxu0 %v3329
    %v3331 = vand.u32 %v2982, 4294901760
    %3332 = vmatpush.msra.mxu0 %v3331
    %v3333 = vand.u32 %v2981, 4294901760
    %3334 = vmatpush.msra.mxu0 %v3333
    %v3335 = vand.u32 %v2980, 4294901760
    %3336 = vmatpush.msra.mxu0 %v3335
    %v3337 = vand.u32 %v2979, 4294901760
    %3338 = vmatpush.msra.mxu0 %v3337
    %v3339 = vand.u32 %v2978, 4294901760
    %3340 = vmatpush.msra.mxu0 %v3339
    %v3341 = vand.u32 %v2977, 4294901760
    %3342 = vmatpush.msra.mxu0 %v3341
    %v3343 = vand.u32 %v2976, 4294901760
    %3344 = vmatpush.msra.mxu0 %v3343
    %v3345 = vand.u32 %v2975, 4294901760
    %3346 = vmatpush.msra.mxu0 %v3345
    %v3347 = vand.u32 %v2974, 4294901760
    %3348 = vmatpush.msra.mxu0 %v3347
    %v3349 = vand.u32 %v2973, 4294901760
    %3350 = vmatpush.msra.mxu0 %v3349
    %v3351 = vand.u32 %v2972, 4294901760
    %3352 = vmatpush.msra.mxu0 %v3351
    %v3353 = vand.u32 %v2970, 4294901760
    %3354 = vmatmul.f32.gmra.mxu0 %v3353
    %v3355 = vpop.f32.mrf.mxu0
    %v3356 = vadd.f32 %v3315, %v3355
    %v3357 = vand.u32 %v2971, 4294901760
    %3358 = vmatmul.f32.gmra.mxu0 %v3357
    %v3359 = vpop.f32.mrf.mxu0
    %v3360 = vadd.f32 %v3319, %v3359
    %3361 = vdwg.mxu0
    %v3362 = vmin.f32 %v3356, 20.0
    %v3363 = vmin.f32 %v3360, 20.0
    %v3364 = vmul.f32 %v3362, 1.442695
    %v3365 = vpow.pop %v3364
    %v3366 = vmul.f32 %v3363, 1.442695
    %v3367 = vpow.pop %v3366
    %v3368 = vadd.f32 %v3365, 2.0
    %v3369 = vadd.f32 %v3367, 2.0
    %v3370 = vmul.f32 %v3365, %v3368
    %v3371 = vmul.f32 %v3367, %v3369
    %vm3372 = vcmp.gt.f32.partialorder %v3356, 20.0
    %vm3373 = vcmp.gt.f32.partialorder %v3360, 20.0
    %v3374 = vadd.f32 %v3370, 2.0
    %v3375 = vadd.f32 %v3371, 2.0
    %v3376 = vrcp.pop %v3374
    %v3377 = vmul.f32 %v3374, %v3376
    %v3378 = vsub.f32 1.0, %v3377
    %v3379 = vmul.f32 %v3376, %v3378
    %v3380 = vadd.f32 %v3376, %v3379
    %vm3381 = vweird.f32 %v3374
    %vm3382 = vweird.f32 %v3376
    %vm3383 = vmor %vm3381, %vm3382
    %v3384 = vsel %vm3383, %v3376, %v3380
    %v3385 = vand.u32 2147483647, %v3374
    %vm3386 = vcmp.eq.f32.partialorder %v3385, 8.507059e+37
    %v3387 = vand.u32 %v3374, 2147483648
    %v3388 = vor.u32 1.1754944e-38, %v3387
    %v3389 = vsel %vm3386, %v3388, %v3384
    %v3390 = vmul.f32 %v3370, %v3389
    %v3391 = vrcp.pop %v3375
    %v3392 = vmul.f32 %v3375, %v3391
    %v3393 = vsub.f32 1.0, %v3392
    %v3394 = vmul.f32 %v3391, %v3393
    %v3395 = vadd.f32 %v3391, %v3394
    %vm3396 = vweird.f32 %v3375
    %vm3397 = vweird.f32 %v3391
    %vm3398 = vmor %vm3396, %vm3397
    %v3399 = vsel %vm3398, %v3391, %v3395
    %v3400 = vand.u32 2147483647, %v3375
    %vm3401 = vcmp.eq.f32.partialorder %v3400, 8.507059e+37
    %v3402 = vand.u32 %v3375, 2147483648
    %v3403 = vor.u32 1.1754944e-38, %v3402
    %v3404 = vsel %vm3401, %v3403, %v3399
    %v3405 = vmul.f32 %v3371, %v3404
    %v3406 = vmul.f32 %v3356, %v3390
    %v3407 = vmul.f32 %v3360, %v3405
    %v3408 = vsel %vm3372, %v3356, %v3406
    %v3409 = vsel %vm3373, %v3360, %v3407
    %v3412 = vrot.slane %v3408, 7
    %v3413 = vrot.slane %v3409, 7
    %v3414 = vsel %vm74, %v3412, %v3413
    %v3417 = vsel %vm74, %v3408, %v3412
    %v3418 = vrot.slane %v3408, 1
    %v3419 = vrot.slane %v3409, 1
    %v3420 = vsel %vm1185, %v3418, %v3419
    %v3423 = vsel %vm1185, %v3419, %v3409
    %v3424 = vsel %vm112, 0.0, %v3417
    %v3425 = vsel %vm113, 0.0, %v3414
    %v3426 = vsel %vm1198, 0.0, %v3420
    %v3427 = vsel %vm1199, 0.0, %v3423
    %v3428 = vld [vmem:[#allocation5 + $0x320] sm:$0xff]
    %v3429 = vld [vmem:[#allocation5 + $0x328] sm:$0xff]
    %v3430 = vld [vmem:[#allocation5 + $0x330] sm:$0xff]
    %v3431 = vld [vmem:[#allocation5 + $0x338] sm:$0xff]
    %v3432 = vld [vmem:[#allocation5 + $0x340] sm:$0xff]
    %v3433 = vld [vmem:[#allocation5 + $0x348] sm:$0xff]
    %v3434 = vld [vmem:[#allocation5 + $0x350] sm:$0xff]
    %v3435 = vld [vmem:[#allocation5 + $0x358] sm:$0xff]
    %v3436 = vld [vmem:[#allocation5 + $0x360] sm:$0xff]
    %v3437 = vld [vmem:[#allocation5 + $0x368] sm:$0xff]
    %v3438 = vld [vmem:[#allocation5 + $0x370] sm:$0xff]
    %v3439 = vld [vmem:[#allocation5 + $0x378] sm:$0xff]
    %v3440 = vld [vmem:[#allocation5 + $0x380] sm:$0xff]
    %v3441 = vld [vmem:[#allocation5 + $0x388] sm:$0xff]
    %v3442 = vld [vmem:[#allocation5 + $0x390] sm:$0xff]
    %v3443 = vld [vmem:[#allocation5 + $0x398] sm:$0xff]
    %v3444 = vld [vmem:[#allocation5 + $0x3a0] sm:$0xff]
    %v3445 = vld [vmem:[#allocation5 + $0x3a8] sm:$0xff]
    %v3446 = vld [vmem:[#allocation5 + $0x3b0] sm:$0xff]
    %v3447 = vld [vmem:[#allocation5 + $0x3b8] sm:$0xff]
    %v3448 = vld [vmem:[#allocation5 + $0x3c0] sm:$0xff]
    %v3449 = vld [vmem:[#allocation5 + $0x3c8] sm:$0xff]
    %v3450 = vld [vmem:[#allocation5 + $0x3d0] sm:$0xff]
    %v3451 = vld [vmem:[#allocation5 + $0x3d8] sm:$0xff]
    %v3452 = vld [vmem:[#allocation5 + $0x3e0] sm:$0xff]
    %v3453 = vld [vmem:[#allocation5 + $0x3e8] sm:$0xff]
    %v3454 = vld [vmem:[#allocation5 + $0x3f0] sm:$0xff]
    %v3455 = vld [vmem:[#allocation5 + $0x3f8] sm:$0xff]
    %v3456 = vld [vmem:[#allocation5 + $0x400] sm:$0xff]
    %v3457 = vld [vmem:[#allocation5 + $0x408] sm:$0xff]
    %v3458 = vld [vmem:[#allocation5 + $0x410] sm:$0xff]
    %v3459 = vld [vmem:[#allocation5 + $0x418] sm:$0xff]
    %v3460 = vld [vmem:[#allocation5 + $0x420] sm:$0xff]
    %v3461 = vld [vmem:[#allocation5 + $0x428] sm:$0xff]
    %v3462 = vld [vmem:[#allocation5 + $0x430] sm:$0xff]
    %v3463 = vld [vmem:[#allocation5 + $0x438] sm:$0xff]
    %v3464 = vld [vmem:[#allocation5 + $0x440] sm:$0xff]
    %v3465 = vld [vmem:[#allocation5 + $0x448] sm:$0xff]
    %v3466 = vld [vmem:[#allocation5 + $0x450] sm:$0xff]
    %v3467 = vld [vmem:[#allocation5 + $0x458] sm:$0xff]
    %v3468 = vld [vmem:[#allocation5 + $0x460] sm:$0xff]
    %v3469 = vld [vmem:[#allocation5 + $0x468] sm:$0xff]
    %v3470 = vld [vmem:[#allocation5 + $0x470] sm:$0xff]
    %v3471 = vld [vmem:[#allocation5 + $0x478] sm:$0xff]
    %v3472 = vld [vmem:[#allocation5 + $0x480] sm:$0xff]
    %v3473 = vld [vmem:[#allocation5 + $0x488] sm:$0xff]
    %v3474 = vld [vmem:[#allocation5 + $0x490] sm:$0xff]
    %v3475 = vld [vmem:[#allocation5 + $0x498] sm:$0xff]
    %v3476 = vld [vmem:[#allocation7 + $0x6] sm:$0x1]
    %v3477 = vperm.slane %v3476, 0
    %v3478 = vand.u32 %v3443, 4294901760
    %3479 = vmatpush.msra.mxu0 %v3478
    %v3480 = vand.u32 %v3442, 4294901760
    %3481 = vmatpush.msra.mxu0 %v3480
    %v3482 = vand.u32 %v3441, 4294901760
    %3483 = vmatpush.msra.mxu0 %v3482
    %v3484 = vand.u32 %v3440, 4294901760
    %3485 = vmatpush.msra.mxu0 %v3484
    %v3486 = vand.u32 %v3439, 4294901760
    %3487 = vmatpush.msra.mxu0 %v3486
    %v3488 = vand.u32 %v3438, 4294901760
    %3489 = vmatpush.msra.mxu0 %v3488
    %v3490 = vand.u32 %v3437, 4294901760
    %3491 = vmatpush.msra.mxu0 %v3490
    %v3492 = vand.u32 %v3436, 4294901760
    %3493 = vmatpush.msra.mxu0 %v3492
    %v3494 = vand.u32 %v3435, 4294901760
    %3495 = vmatpush.msra.mxu0 %v3494
    %v3496 = vand.u32 %v3434, 4294901760
    %3497 = vmatpush.msra.mxu0 %v3496
    %v3498 = vand.u32 %v3433, 4294901760
    %3499 = vmatpush.msra.mxu0 %v3498
    %v3500 = vand.u32 %v3432, 4294901760
    %3501 = vmatpush.msra.mxu0 %v3500
    %v3502 = vand.u32 %v3431, 4294901760
    %3503 = vmatpush.msra.mxu0 %v3502
    %v3504 = vand.u32 %v3430, 4294901760
    %3505 = vmatpush.msra.mxu0 %v3504
    %v3506 = vand.u32 %v3429, 4294901760
    %3507 = vmatpush.msra.mxu0 %v3506
    %v3508 = vand.u32 %v3428, 4294901760
    %3509 = vmatpush.msra.mxu0 %v3508
    %v3510 = vand.u32 %v3424, 4294901760
    %v3511 = vsub.f32 %v3424, %v3510
    %v3512 = vand.u32 %v3511, 4294901760
    %v3513 = vsub.f32 %v3511, %v3512
    %v3514 = vand.u32 %v3513, 4294901760
    %3515 = vmatmul.f32.gmra.mxu0 %v3514
    %v3516 = vpop.f32.mrf.mxu0
    %v3517 = vadd.f32 %v3477, %v3516
    %v3518 = vand.u32 %v3425, 4294901760
    %v3519 = vsub.f32 %v3425, %v3518
    %v3520 = vand.u32 %v3519, 4294901760
    %v3521 = vsub.f32 %v3519, %v3520
    %v3522 = vand.u32 %v3521, 4294901760
    %3523 = vmatmul.f32.gmra.mxu0 %v3522
    %v3524 = vpop.f32.mrf.mxu0
    %v3525 = vadd.f32 %v3477, %v3524
    %3526 = vdwg.mxu0
    %v3527 = vand.u32 %v3443, 4294901760
    %v3528 = vsub.f32 %v3443, %v3527
    %v3529 = vand.u32 %v3528, 4294901760
    %v3530 = vsub.f32 %v3528, %v3529
    %v3531 = vand.u32 %v3530, 4294901760
    %3532 = vmatpush.msra.mxu0 %v3531
    %v3533 = vand.u32 %v3442, 4294901760
    %v3534 = vsub.f32 %v3442, %v3533
    %v3535 = vand.u32 %v3534, 4294901760
    %v3536 = vsub.f32 %v3534, %v3535
    %v3537 = vand.u32 %v3536, 4294901760
    %3538 = vmatpush.msra.mxu0 %v3537
    %v3539 = vand.u32 %v3441, 4294901760
    %v3540 = vsub.f32 %v3441, %v3539
    %v3541 = vand.u32 %v3540, 4294901760
    %v3542 = vsub.f32 %v3540, %v3541
    %v3543 = vand.u32 %v3542, 4294901760
    %3544 = vmatpush.msra.mxu0 %v3543
    %v3545 = vand.u32 %v3440, 4294901760
    %v3546 = vsub.f32 %v3440, %v3545
    %v3547 = vand.u32 %v3546, 4294901760
    %v3548 = vsub.f32 %v3546, %v3547
    %v3549 = vand.u32 %v3548, 4294901760
    %3550 = vmatpush.msra.mxu0 %v3549
    %v3551 = vand.u32 %v3439, 4294901760
    %v3552 = vsub.f32 %v3439, %v3551
    %v3553 = vand.u32 %v3552, 4294901760
    %v3554 = vsub.f32 %v3552, %v3553
    %v3555 = vand.u32 %v3554, 4294901760
    %3556 = vmatpush.msra.mxu0 %v3555
    %v3557 = vand.u32 %v3438, 4294901760
    %v3558 = vsub.f32 %v3438, %v3557
    %v3559 = vand.u32 %v3558, 4294901760
    %v3560 = vsub.f32 %v3558, %v3559
    %v3561 = vand.u32 %v3560, 4294901760
    %3562 = vmatpush.msra.mxu0 %v3561
    %v3563 = vand.u32 %v3437, 4294901760
    %v3564 = vsub.f32 %v3437, %v3563
    %v3565 = vand.u32 %v3564, 4294901760
    %v3566 = vsub.f32 %v3564, %v3565
    %v3567 = vand.u32 %v3566, 4294901760
    %3568 = vmatpush.msra.mxu0 %v3567
    %v3569 = vand.u32 %v3436, 4294901760
    %v3570 = vsub.f32 %v3436, %v3569
    %v3571 = vand.u32 %v3570, 4294901760
    %v3572 = vsub.f32 %v3570, %v3571
    %v3573 = vand.u32 %v3572, 4294901760
    %3574 = vmatpush.msra.mxu0 %v3573
    %v3575 = vand.u32 %v3435, 4294901760
    %v3576 = vsub.f32 %v3435, %v3575
    %v3577 = vand.u32 %v3576, 4294901760
    %v3578 = vsub.f32 %v3576, %v3577
    %v3579 = vand.u32 %v3578, 4294901760
    %3580 = vmatpush.msra.mxu0 %v3579
    %v3581 = vand.u32 %v3434, 4294901760
    %v3582 = vsub.f32 %v3434, %v3581
    %v3583 = vand.u32 %v3582, 4294901760
    %v3584 = vsub.f32 %v3582, %v3583
    %v3585 = vand.u32 %v3584, 4294901760
    %3586 = vmatpush.msra.mxu0 %v3585
    %v3587 = vand.u32 %v3433, 4294901760
    %v3588 = vsub.f32 %v3433, %v3587
    %v3589 = vand.u32 %v3588, 4294901760
    %v3590 = vsub.f32 %v3588, %v3589
    %v3591 = vand.u32 %v3590, 4294901760
    %3592 = vmatpush.msra.mxu0 %v3591
    %v3593 = vand.u32 %v3432, 4294901760
    %v3594 = vsub.f32 %v3432, %v3593
    %v3595 = vand.u32 %v3594, 4294901760
    %v3596 = vsub.f32 %v3594, %v3595
    %v3597 = vand.u32 %v3596, 4294901760
    %3598 = vmatpush.msra.mxu0 %v3597
    %v3599 = vand.u32 %v3431, 4294901760
    %v3600 = vsub.f32 %v3431, %v3599
    %v3601 = vand.u32 %v3600, 4294901760
    %v3602 = vsub.f32 %v3600, %v3601
    %v3603 = vand.u32 %v3602, 4294901760
    %3604 = vmatpush.msra.mxu0 %v3603
    %v3605 = vand.u32 %v3430, 4294901760
    %v3606 = vsub.f32 %v3430, %v3605
    %v3607 = vand.u32 %v3606, 4294901760
    %v3608 = vsub.f32 %v3606, %v3607
    %v3609 = vand.u32 %v3608, 4294901760
    %3610 = vmatpush.msra.mxu0 %v3609
    %v3611 = vand.u32 %v3429, 4294901760
    %v3612 = vsub.f32 %v3429, %v3611
    %v3613 = vand.u32 %v3612, 4294901760
    %v3614 = vsub.f32 %v3612, %v3613
    %v3615 = vand.u32 %v3614, 4294901760
    %3616 = vmatpush.msra.mxu0 %v3615
    %v3617 = vand.u32 %v3428, 4294901760
    %v3618 = vsub.f32 %v3428, %v3617
    %v3619 = vand.u32 %v3618, 4294901760
    %v3620 = vsub.f32 %v3618, %v3619
    %v3621 = vand.u32 %v3620, 4294901760
    %3622 = vmatpush.msra.mxu0 %v3621
    %v3623 = vand.u32 %v3424, 4294901760
    %3624 = vmatmul.f32.gmra.mxu0 %v3623
    %v3625 = vpop.f32.mrf.mxu0
    %v3626 = vadd.f32 %v3517, %v3625
    %v3627 = vand.u32 %v3425, 4294901760
    %3628 = vmatmul.f32.gmra.mxu0 %v3627
    %v3629 = vpop.f32.mrf.mxu0
    %v3630 = vadd.f32 %v3525, %v3629
    %3631 = vdwg.mxu0
    %v3632 = vand.u32 %v3443, 4294901760
    %v3633 = vsub.f32 %v3443, %v3632
    %3634 = vmatpush.msra.mxu0 %v3633
    %v3635 = vand.u32 %v3442, 4294901760
    %v3636 = vsub.f32 %v3442, %v3635
    %3637 = vmatpush.msra.mxu0 %v3636
    %v3638 = vand.u32 %v3441, 4294901760
    %v3639 = vsub.f32 %v3441, %v3638
    %3640 = vmatpush.msra.mxu0 %v3639
    %v3641 = vand.u32 %v3440, 4294901760
    %v3642 = vsub.f32 %v3440, %v3641
    %3643 = vmatpush.msra.mxu0 %v3642
    %v3644 = vand.u32 %v3439, 4294901760
    %v3645 = vsub.f32 %v3439, %v3644
    %3646 = vmatpush.msra.mxu0 %v3645
    %v3647 = vand.u32 %v3438, 4294901760
    %v3648 = vsub.f32 %v3438, %v3647
    %3649 = vmatpush.msra.mxu0 %v3648
    %v3650 = vand.u32 %v3437, 4294901760
    %v3651 = vsub.f32 %v3437, %v3650
    %3652 = vmatpush.msra.mxu0 %v3651
    %v3653 = vand.u32 %v3436, 4294901760
    %v3654 = vsub.f32 %v3436, %v3653
    %3655 = vmatpush.msra.mxu0 %v3654
    %v3656 = vand.u32 %v3435, 4294901760
    %v3657 = vsub.f32 %v3435, %v3656
    %3658 = vmatpush.msra.mxu0 %v3657
    %v3659 = vand.u32 %v3434, 4294901760
    %v3660 = vsub.f32 %v3434, %v3659
    %3661 = vmatpush.msra.mxu0 %v3660
    %v3662 = vand.u32 %v3433, 4294901760
    %v3663 = vsub.f32 %v3433, %v3662
    %3664 = vmatpush.msra.mxu0 %v3663
    %v3665 = vand.u32 %v3432, 4294901760
    %v3666 = vsub.f32 %v3432, %v3665
    %3667 = vmatpush.msra.mxu0 %v3666
    %v3668 = vand.u32 %v3431, 4294901760
    %v3669 = vsub.f32 %v3431, %v3668
    %3670 = vmatpush.msra.mxu0 %v3669
    %v3671 = vand.u32 %v3430, 4294901760
    %v3672 = vsub.f32 %v3430, %v3671
    %3673 = vmatpush.msra.mxu0 %v3672
    %v3674 = vand.u32 %v3429, 4294901760
    %v3675 = vsub.f32 %v3429, %v3674
    %3676 = vmatpush.msra.mxu0 %v3675
    %v3677 = vand.u32 %v3428, 4294901760
    %v3678 = vsub.f32 %v3428, %v3677
    %3679 = vmatpush.msra.mxu0 %v3678
    %v3680 = vand.u32 %v3424, 4294901760
    %v3681 = vsub.f32 %v3424, %v3680
    %3682 = vmatmul.f32.gmra.mxu0 %v3681
    %v3683 = vpop.f32.mrf.mxu0
    %v3684 = vadd.f32 %v3626, %v3683
    %v3685 = vand.u32 %v3425, 4294901760
    %v3686 = vsub.f32 %v3425, %v3685
    %3687 = vmatmul.f32.gmra.mxu0 %v3686
    %v3688 = vpop.f32.mrf.mxu0
    %v3689 = vadd.f32 %v3630, %v3688
    %3690 = vdwg.mxu0
    %v3691 = vand.u32 %v3443, 4294901760
    %3692 = vmatpush.msra.mxu0 %v3691
    %v3693 = vand.u32 %v3442, 4294901760
    %3694 = vmatpush.msra.mxu0 %v3693
    %v3695 = vand.u32 %v3441, 4294901760
    %3696 = vmatpush.msra.mxu0 %v3695
    %v3697 = vand.u32 %v3440, 4294901760
    %3698 = vmatpush.msra.mxu0 %v3697
    %v3699 = vand.u32 %v3439, 4294901760
    %3700 = vmatpush.msra.mxu0 %v3699
    %v3701 = vand.u32 %v3438, 4294901760
    %3702 = vmatpush.msra.mxu0 %v3701
    %v3703 = vand.u32 %v3437, 4294901760
    %3704 = vmatpush.msra.mxu0 %v3703
    %v3705 = vand.u32 %v3436, 4294901760
    %3706 = vmatpush.msra.mxu0 %v3705
    %v3707 = vand.u32 %v3435, 4294901760
    %3708 = vmatpush.msra.mxu0 %v3707
    %v3709 = vand.u32 %v3434, 4294901760
    %3710 = vmatpush.msra.mxu0 %v3709
    %v3711 = vand.u32 %v3433, 4294901760
    %3712 = vmatpush.msra.mxu0 %v3711
    %v3713 = vand.u32 %v3432, 4294901760
    %3714 = vmatpush.msra.mxu0 %v3713
    %v3715 = vand.u32 %v3431, 4294901760
    %3716 = vmatpush.msra.mxu0 %v3715
    %v3717 = vand.u32 %v3430, 4294901760
    %3718 = vmatpush.msra.mxu0 %v3717
    %v3719 = vand.u32 %v3429, 4294901760
    %3720 = vmatpush.msra.mxu0 %v3719
    %v3721 = vand.u32 %v3428, 4294901760
    %3722 = vmatpush.msra.mxu0 %v3721
    %v3723 = vand.u32 %v3424, 4294901760
    %v3724 = vsub.f32 %v3424, %v3723
    %v3725 = vand.u32 %v3724, 4294901760
    %3726 = vmatmul.f32.gmra.mxu0 %v3725
    %v3727 = vpop.f32.mrf.mxu0
    %v3728 = vadd.f32 %v3684, %v3727
    %v3729 = vand.u32 %v3425, 4294901760
    %v3730 = vsub.f32 %v3425, %v3729
    %v3731 = vand.u32 %v3730, 4294901760
    %3732 = vmatmul.f32.gmra.mxu0 %v3731
    %v3733 = vpop.f32.mrf.mxu0
    %v3734 = vadd.f32 %v3689, %v3733
    %3735 = vdwg.mxu0
    %v3736 = vand.u32 %v3443, 4294901760
    %v3737 = vsub.f32 %v3443, %v3736
    %v3738 = vand.u32 %v3737, 4294901760
    %3739 = vmatpush.msra.mxu0 %v3738
    %v3740 = vand.u32 %v3442, 4294901760
    %v3741 = vsub.f32 %v3442, %v3740
    %v3742 = vand.u32 %v3741, 4294901760
    %3743 = vmatpush.msra.mxu0 %v3742
    %v3744 = vand.u32 %v3441, 4294901760
    %v3745 = vsub.f32 %v3441, %v3744
    %v3746 = vand.u32 %v3745, 4294901760
    %3747 = vmatpush.msra.mxu0 %v3746
    %v3748 = vand.u32 %v3440, 4294901760
    %v3749 = vsub.f32 %v3440, %v3748
    %v3750 = vand.u32 %v3749, 4294901760
    %3751 = vmatpush.msra.mxu0 %v3750
    %v3752 = vand.u32 %v3439, 4294901760
    %v3753 = vsub.f32 %v3439, %v3752
    %v3754 = vand.u32 %v3753, 4294901760
    %3755 = vmatpush.msra.mxu0 %v3754
    %v3756 = vand.u32 %v3438, 4294901760
    %v3757 = vsub.f32 %v3438, %v3756
    %v3758 = vand.u32 %v3757, 4294901760
    %3759 = vmatpush.msra.mxu0 %v3758
    %v3760 = vand.u32 %v3437, 4294901760
    %v3761 = vsub.f32 %v3437, %v3760
    %v3762 = vand.u32 %v3761, 4294901760
    %3763 = vmatpush.msra.mxu0 %v3762
    %v3764 = vand.u32 %v3436, 4294901760
    %v3765 = vsub.f32 %v3436, %v3764
    %v3766 = vand.u32 %v3765, 4294901760
    %3767 = vmatpush.msra.mxu0 %v3766
    %v3768 = vand.u32 %v3435, 4294901760
    %v3769 = vsub.f32 %v3435, %v3768
    %v3770 = vand.u32 %v3769, 4294901760
    %3771 = vmatpush.msra.mxu0 %v3770
    %v3772 = vand.u32 %v3434, 4294901760
    %v3773 = vsub.f32 %v3434, %v3772
    %v3774 = vand.u32 %v3773, 4294901760
    %3775 = vmatpush.msra.mxu0 %v3774
    %v3776 = vand.u32 %v3433, 4294901760
    %v3777 = vsub.f32 %v3433, %v3776
    %v3778 = vand.u32 %v3777, 4294901760
    %3779 = vmatpush.msra.mxu0 %v3778
    %v3780 = vand.u32 %v3432, 4294901760
    %v3781 = vsub.f32 %v3432, %v3780
    %v3782 = vand.u32 %v3781, 4294901760
    %3783 = vmatpush.msra.mxu0 %v3782
    %v3784 = vand.u32 %v3431, 4294901760
    %v3785 = vsub.f32 %v3431, %v3784
    %v3786 = vand.u32 %v3785, 4294901760
    %3787 = vmatpush.msra.mxu0 %v3786
    %v3788 = vand.u32 %v3430, 4294901760
    %v3789 = vsub.f32 %v3430, %v3788
    %v3790 = vand.u32 %v3789, 4294901760
    %3791 = vmatpush.msra.mxu0 %v3790
    %v3792 = vand.u32 %v3429, 4294901760
    %v3793 = vsub.f32 %v3429, %v3792
    %v3794 = vand.u32 %v3793, 4294901760
    %3795 = vmatpush.msra.mxu0 %v3794
    %v3796 = vand.u32 %v3428, 4294901760
    %v3797 = vsub.f32 %v3428, %v3796
    %v3798 = vand.u32 %v3797, 4294901760
    %3799 = vmatpush.msra.mxu0 %v3798
    %v3800 = vand.u32 %v3424, 4294901760
    %3801 = vmatmul.f32.gmra.mxu0 %v3800
    %v3802 = vpop.f32.mrf.mxu0
    %v3803 = vadd.f32 %v3728, %v3802
    %v3804 = vand.u32 %v3425, 4294901760
    %3805 = vmatmul.f32.gmra.mxu0 %v3804
    %v3806 = vpop.f32.mrf.mxu0
    %v3807 = vadd.f32 %v3734, %v3806
    %3808 = vdwg.mxu0
    %v3809 = vand.u32 %v3443, 4294901760
    %3810 = vmatpush.msra.mxu0 %v3809
    %v3811 = vand.u32 %v3442, 4294901760
    %3812 = vmatpush.msra.mxu0 %v3811
    %v3813 = vand.u32 %v3441, 4294901760
    %3814 = vmatpush.msra.mxu0 %v3813
    %v3815 = vand.u32 %v3440, 4294901760
    %3816 = vmatpush.msra.mxu0 %v3815
    %v3817 = vand.u32 %v3439, 4294901760
    %3818 = vmatpush.msra.mxu0 %v3817
    %v3819 = vand.u32 %v3438, 4294901760
    %3820 = vmatpush.msra.mxu0 %v3819
    %v3821 = vand.u32 %v3437, 4294901760
    %3822 = vmatpush.msra.mxu0 %v3821
    %v3823 = vand.u32 %v3436, 4294901760
    %3824 = vmatpush.msra.mxu0 %v3823
    %v3825 = vand.u32 %v3435, 4294901760
    %3826 = vmatpush.msra.mxu0 %v3825
    %v3827 = vand.u32 %v3434, 4294901760
    %3828 = vmatpush.msra.mxu0 %v3827
    %v3829 = vand.u32 %v3433, 4294901760
    %3830 = vmatpush.msra.mxu0 %v3829
    %v3831 = vand.u32 %v3432, 4294901760
    %3832 = vmatpush.msra.mxu0 %v3831
    %v3833 = vand.u32 %v3431, 4294901760
    %3834 = vmatpush.msra.mxu0 %v3833
    %v3835 = vand.u32 %v3430, 4294901760
    %3836 = vmatpush.msra.mxu0 %v3835
    %v3837 = vand.u32 %v3429, 4294901760
    %3838 = vmatpush.msra.mxu0 %v3837
    %v3839 = vand.u32 %v3428, 4294901760
    %3840 = vmatpush.msra.mxu0 %v3839
    %v3841 = vand.u32 %v3424, 4294901760
    %3842 = vmatmul.f32.gmra.mxu0 %v3841
    %v3843 = vpop.f32.mrf.mxu0
    %v3844 = vadd.f32 %v3803, %v3843
    %v3845 = vand.u32 %v3425, 4294901760
    %3846 = vmatmul.f32.gmra.mxu0 %v3845
    %v3847 = vpop.f32.mrf.mxu0
    %v3848 = vadd.f32 %v3807, %v3847
    %3849 = vdwg.mxu0
    %v3850 = vand.u32 %v3459, 4294901760
    %3851 = vmatpush.msra.mxu0 %v3850
    %v3852 = vand.u32 %v3458, 4294901760
    %3853 = vmatpush.msra.mxu0 %v3852
    %v3854 = vand.u32 %v3457, 4294901760
    %3855 = vmatpush.msra.mxu0 %v3854
    %v3856 = vand.u32 %v3456, 4294901760
    %3857 = vmatpush.msra.mxu0 %v3856
    %v3858 = vand.u32 %v3455, 4294901760
    %3859 = vmatpush.msra.mxu0 %v3858
    %v3860 = vand.u32 %v3454, 4294901760
    %3861 = vmatpush.msra.mxu0 %v3860
    %v3862 = vand.u32 %v3453, 4294901760
    %3863 = vmatpush.msra.mxu0 %v3862
    %v3864 = vand.u32 %v3452, 4294901760
    %3865 = vmatpush.msra.mxu0 %v3864
    %v3866 = vand.u32 %v3451, 4294901760
    %3867 = vmatpush.msra.mxu0 %v3866
    %v3868 = vand.u32 %v3450, 4294901760
    %3869 = vmatpush.msra.mxu0 %v3868
    %v3870 = vand.u32 %v3449, 4294901760
    %3871 = vmatpush.msra.mxu0 %v3870
    %v3872 = vand.u32 %v3448, 4294901760
    %3873 = vmatpush.msra.mxu0 %v3872
    %v3874 = vand.u32 %v3447, 4294901760
    %3875 = vmatpush.msra.mxu0 %v3874
    %v3876 = vand.u32 %v3446, 4294901760
    %3877 = vmatpush.msra.mxu0 %v3876
    %v3878 = vand.u32 %v3445, 4294901760
    %3879 = vmatpush.msra.mxu0 %v3878
    %v3880 = vand.u32 %v3444, 4294901760
    %3881 = vmatpush.msra.mxu0 %v3880
    %v3882 = vand.u32 %v3408, 4294901760
    %v3883 = vsub.f32 %v3408, %v3882
    %v3884 = vand.u32 %v3883, 4294901760
    %v3885 = vsub.f32 %v3883, %v3884
    %v3886 = vand.u32 %v3885, 4294901760
    %3887 = vmatmul.f32.gmra.mxu0 %v3886
    %v3888 = vpop.f32.mrf.mxu0
    %v3889 = vadd.f32 %v3844, %v3888
    %v3890 = vand.u32 %v3409, 4294901760
    %v3891 = vsub.f32 %v3409, %v3890
    %v3892 = vand.u32 %v3891, 4294901760
    %v3893 = vsub.f32 %v3891, %v3892
    %v3894 = vand.u32 %v3893, 4294901760
    %3895 = vmatmul.f32.gmra.mxu0 %v3894
    %v3896 = vpop.f32.mrf.mxu0
    %v3897 = vadd.f32 %v3848, %v3896
    %3898 = vdwg.mxu0
    %v3899 = vand.u32 %v3459, 4294901760
    %v3900 = vsub.f32 %v3459, %v3899
    %v3901 = vand.u32 %v3900, 4294901760
    %v3902 = vsub.f32 %v3900, %v3901
    %v3903 = vand.u32 %v3902, 4294901760
    %3904 = vmatpush.msra.mxu0 %v3903
    %v3905 = vand.u32 %v3458, 4294901760
    %v3906 = vsub.f32 %v3458, %v3905
    %v3907 = vand.u32 %v3906, 4294901760
    %v3908 = vsub.f32 %v3906, %v3907
    %v3909 = vand.u32 %v3908, 4294901760
    %3910 = vmatpush.msra.mxu0 %v3909
    %v3911 = vand.u32 %v3457, 4294901760
    %v3912 = vsub.f32 %v3457, %v3911
    %v3913 = vand.u32 %v3912, 4294901760
    %v3914 = vsub.f32 %v3912, %v3913
    %v3915 = vand.u32 %v3914, 4294901760
    %3916 = vmatpush.msra.mxu0 %v3915
    %v3917 = vand.u32 %v3456, 4294901760
    %v3918 = vsub.f32 %v3456, %v3917
    %v3919 = vand.u32 %v3918, 4294901760
    %v3920 = vsub.f32 %v3918, %v3919
    %v3921 = vand.u32 %v3920, 4294901760
    %3922 = vmatpush.msra.mxu0 %v3921
    %v3923 = vand.u32 %v3455, 4294901760
    %v3924 = vsub.f32 %v3455, %v3923
    %v3925 = vand.u32 %v3924, 4294901760
    %v3926 = vsub.f32 %v3924, %v3925
    %v3927 = vand.u32 %v3926, 4294901760
    %3928 = vmatpush.msra.mxu0 %v3927
    %v3929 = vand.u32 %v3454, 4294901760
    %v3930 = vsub.f32 %v3454, %v3929
    %v3931 = vand.u32 %v3930, 4294901760
    %v3932 = vsub.f32 %v3930, %v3931
    %v3933 = vand.u32 %v3932, 4294901760
    %3934 = vmatpush.msra.mxu0 %v3933
    %v3935 = vand.u32 %v3453, 4294901760
    %v3936 = vsub.f32 %v3453, %v3935
    %v3937 = vand.u32 %v3936, 4294901760
    %v3938 = vsub.f32 %v3936, %v3937
    %v3939 = vand.u32 %v3938, 4294901760
    %3940 = vmatpush.msra.mxu0 %v3939
    %v3941 = vand.u32 %v3452, 4294901760
    %v3942 = vsub.f32 %v3452, %v3941
    %v3943 = vand.u32 %v3942, 4294901760
    %v3944 = vsub.f32 %v3942, %v3943
    %v3945 = vand.u32 %v3944, 4294901760
    %3946 = vmatpush.msra.mxu0 %v3945
    %v3947 = vand.u32 %v3451, 4294901760
    %v3948 = vsub.f32 %v3451, %v3947
    %v3949 = vand.u32 %v3948, 4294901760
    %v3950 = vsub.f32 %v3948, %v3949
    %v3951 = vand.u32 %v3950, 4294901760
    %3952 = vmatpush.msra.mxu0 %v3951
    %v3953 = vand.u32 %v3450, 4294901760
    %v3954 = vsub.f32 %v3450, %v3953
    %v3955 = vand.u32 %v3954, 4294901760
    %v3956 = vsub.f32 %v3954, %v3955
    %v3957 = vand.u32 %v3956, 4294901760
    %3958 = vmatpush.msra.mxu0 %v3957
    %v3959 = vand.u32 %v3449, 4294901760
    %v3960 = vsub.f32 %v3449, %v3959
    %v3961 = vand.u32 %v3960, 4294901760
    %v3962 = vsub.f32 %v3960, %v3961
    %v3963 = vand.u32 %v3962, 4294901760
    %3964 = vmatpush.msra.mxu0 %v3963
    %v3965 = vand.u32 %v3448, 4294901760
    %v3966 = vsub.f32 %v3448, %v3965
    %v3967 = vand.u32 %v3966, 4294901760
    %v3968 = vsub.f32 %v3966, %v3967
    %v3969 = vand.u32 %v3968, 4294901760
    %3970 = vmatpush.msra.mxu0 %v3969
    %v3971 = vand.u32 %v3447, 4294901760
    %v3972 = vsub.f32 %v3447, %v3971
    %v3973 = vand.u32 %v3972, 4294901760
    %v3974 = vsub.f32 %v3972, %v3973
    %v3975 = vand.u32 %v3974, 4294901760
    %3976 = vmatpush.msra.mxu0 %v3975
    %v3977 = vand.u32 %v3446, 4294901760
    %v3978 = vsub.f32 %v3446, %v3977
    %v3979 = vand.u32 %v3978, 4294901760
    %v3980 = vsub.f32 %v3978, %v3979
    %v3981 = vand.u32 %v3980, 4294901760
    %3982 = vmatpush.msra.mxu0 %v3981
    %v3983 = vand.u32 %v3445, 4294901760
    %v3984 = vsub.f32 %v3445, %v3983
    %v3985 = vand.u32 %v3984, 4294901760
    %v3986 = vsub.f32 %v3984, %v3985
    %v3987 = vand.u32 %v3986, 4294901760
    %3988 = vmatpush.msra.mxu0 %v3987
    %v3989 = vand.u32 %v3444, 4294901760
    %v3990 = vsub.f32 %v3444, %v3989
    %v3991 = vand.u32 %v3990, 4294901760
    %v3992 = vsub.f32 %v3990, %v3991
    %v3993 = vand.u32 %v3992, 4294901760
    %3994 = vmatpush.msra.mxu0 %v3993
    %v3995 = vand.u32 %v3408, 4294901760
    %3996 = vmatmul.f32.gmra.mxu0 %v3995
    %v3997 = vpop.f32.mrf.mxu0
    %v3998 = vadd.f32 %v3889, %v3997
    %v3999 = vand.u32 %v3409, 4294901760
    %4000 = vmatmul.f32.gmra.mxu0 %v3999
    %v4001 = vpop.f32.mrf.mxu0
    %v4002 = vadd.f32 %v3897, %v4001
    %4003 = vdwg.mxu0
    %v4004 = vand.u32 %v3459, 4294901760
    %v4005 = vsub.f32 %v3459, %v4004
    %4006 = vmatpush.msra.mxu0 %v4005
    %v4007 = vand.u32 %v3458, 4294901760
    %v4008 = vsub.f32 %v3458, %v4007
    %4009 = vmatpush.msra.mxu0 %v4008
    %v4010 = vand.u32 %v3457, 4294901760
    %v4011 = vsub.f32 %v3457, %v4010
    %4012 = vmatpush.msra.mxu0 %v4011
    %v4013 = vand.u32 %v3456, 4294901760
    %v4014 = vsub.f32 %v3456, %v4013
    %4015 = vmatpush.msra.mxu0 %v4014
    %v4016 = vand.u32 %v3455, 4294901760
    %v4017 = vsub.f32 %v3455, %v4016
    %4018 = vmatpush.msra.mxu0 %v4017
    %v4019 = vand.u32 %v3454, 4294901760
    %v4020 = vsub.f32 %v3454, %v4019
    %4021 = vmatpush.msra.mxu0 %v4020
    %v4022 = vand.u32 %v3453, 4294901760
    %v4023 = vsub.f32 %v3453, %v4022
    %4024 = vmatpush.msra.mxu0 %v4023
    %v4025 = vand.u32 %v3452, 4294901760
    %v4026 = vsub.f32 %v3452, %v4025
    %4027 = vmatpush.msra.mxu0 %v4026
    %v4028 = vand.u32 %v3451, 4294901760
    %v4029 = vsub.f32 %v3451, %v4028
    %4030 = vmatpush.msra.mxu0 %v4029
    %v4031 = vand.u32 %v3450, 4294901760
    %v4032 = vsub.f32 %v3450, %v4031
    %4033 = vmatpush.msra.mxu0 %v4032
    %v4034 = vand.u32 %v3449, 4294901760
    %v4035 = vsub.f32 %v3449, %v4034
    %4036 = vmatpush.msra.mxu0 %v4035
    %v4037 = vand.u32 %v3448, 4294901760
    %v4038 = vsub.f32 %v3448, %v4037
    %4039 = vmatpush.msra.mxu0 %v4038
    %v4040 = vand.u32 %v3447, 4294901760
    %v4041 = vsub.f32 %v3447, %v4040
    %4042 = vmatpush.msra.mxu0 %v4041
    %v4043 = vand.u32 %v3446, 4294901760
    %v4044 = vsub.f32 %v3446, %v4043
    %4045 = vmatpush.msra.mxu0 %v4044
    %v4046 = vand.u32 %v3445, 4294901760
    %v4047 = vsub.f32 %v3445, %v4046
    %4048 = vmatpush.msra.mxu0 %v4047
    %v4049 = vand.u32 %v3444, 4294901760
    %v4050 = vsub.f32 %v3444, %v4049
    %4051 = vmatpush.msra.mxu0 %v4050
    %v4052 = vand.u32 %v3408, 4294901760
    %v4053 = vsub.f32 %v3408, %v4052
    %4054 = vmatmul.f32.gmra.mxu0 %v4053
    %v4055 = vpop.f32.mrf.mxu0
    %v4056 = vadd.f32 %v3998, %v4055
    %v4057 = vand.u32 %v3409, 4294901760
    %v4058 = vsub.f32 %v3409, %v4057
    %4059 = vmatmul.f32.gmra.mxu0 %v4058
    %v4060 = vpop.f32.mrf.mxu0
    %v4061 = vadd.f32 %v4002, %v4060
    %4062 = vdwg.mxu0
    %v4063 = vand.u32 %v3459, 4294901760
    %4064 = vmatpush.msra.mxu0 %v4063
    %v4065 = vand.u32 %v3458, 4294901760
    %4066 = vmatpush.msra.mxu0 %v4065
    %v4067 = vand.u32 %v3457, 4294901760
    %4068 = vmatpush.msra.mxu0 %v4067
    %v4069 = vand.u32 %v3456, 4294901760
    %4070 = vmatpush.msra.mxu0 %v4069
    %v4071 = vand.u32 %v3455, 4294901760
    %4072 = vmatpush.msra.mxu0 %v4071
    %v4073 = vand.u32 %v3454, 4294901760
    %4074 = vmatpush.msra.mxu0 %v4073
    %v4075 = vand.u32 %v3453, 4294901760
    %4076 = vmatpush.msra.mxu0 %v4075
    %v4077 = vand.u32 %v3452, 4294901760
    %4078 = vmatpush.msra.mxu0 %v4077
    %v4079 = vand.u32 %v3451, 4294901760
    %4080 = vmatpush.msra.mxu0 %v4079
    %v4081 = vand.u32 %v3450, 4294901760
    %4082 = vmatpush.msra.mxu0 %v4081
    %v4083 = vand.u32 %v3449, 4294901760
    %4084 = vmatpush.msra.mxu0 %v4083
    %v4085 = vand.u32 %v3448, 4294901760
    %4086 = vmatpush.msra.mxu0 %v4085
    %v4087 = vand.u32 %v3447, 4294901760
    %4088 = vmatpush.msra.mxu0 %v4087
    %v4089 = vand.u32 %v3446, 4294901760
    %4090 = vmatpush.msra.mxu0 %v4089
    %v4091 = vand.u32 %v3445, 4294901760
    %4092 = vmatpush.msra.mxu0 %v4091
    %v4093 = vand.u32 %v3444, 4294901760
    %4094 = vmatpush.msra.mxu0 %v4093
    %v4095 = vand.u32 %v3408, 4294901760
    %v4096 = vsub.f32 %v3408, %v4095
    %v4097 = vand.u32 %v4096, 4294901760
    %4098 = vmatmul.f32.gmra.mxu0 %v4097
    %v4099 = vpop.f32.mrf.mxu0
    %v4100 = vadd.f32 %v4056, %v4099
    %v4101 = vand.u32 %v3409, 4294901760
    %v4102 = vsub.f32 %v3409, %v4101
    %v4103 = vand.u32 %v4102, 4294901760
    %4104 = vmatmul.f32.gmra.mxu0 %v4103
    %v4105 = vpop.f32.mrf.mxu0
    %v4106 = vadd.f32 %v4061, %v4105
    %4107 = vdwg.mxu0
    %v4108 = vand.u32 %v3459, 4294901760
    %v4109 = vsub.f32 %v3459, %v4108
    %v4110 = vand.u32 %v4109, 4294901760
    %4111 = vmatpush.msra.mxu0 %v4110
    %v4112 = vand.u32 %v3458, 4294901760
    %v4113 = vsub.f32 %v3458, %v4112
    %v4114 = vand.u32 %v4113, 4294901760
    %4115 = vmatpush.msra.mxu0 %v4114
    %v4116 = vand.u32 %v3457, 4294901760
    %v4117 = vsub.f32 %v3457, %v4116
    %v4118 = vand.u32 %v4117, 4294901760
    %4119 = vmatpush.msra.mxu0 %v4118
    %v4120 = vand.u32 %v3456, 4294901760
    %v4121 = vsub.f32 %v3456, %v4120
    %v4122 = vand.u32 %v4121, 4294901760
    %4123 = vmatpush.msra.mxu0 %v4122
    %v4124 = vand.u32 %v3455, 4294901760
    %v4125 = vsub.f32 %v3455, %v4124
    %v4126 = vand.u32 %v4125, 4294901760
    %4127 = vmatpush.msra.mxu0 %v4126
    %v4128 = vand.u32 %v3454, 4294901760
    %v4129 = vsub.f32 %v3454, %v4128
    %v4130 = vand.u32 %v4129, 4294901760
    %4131 = vmatpush.msra.mxu0 %v4130
    %v4132 = vand.u32 %v3453, 4294901760
    %v4133 = vsub.f32 %v3453, %v4132
    %v4134 = vand.u32 %v4133, 4294901760
    %4135 = vmatpush.msra.mxu0 %v4134
    %v4136 = vand.u32 %v3452, 4294901760
    %v4137 = vsub.f32 %v3452, %v4136
    %v4138 = vand.u32 %v4137, 4294901760
    %4139 = vmatpush.msra.mxu0 %v4138
    %v4140 = vand.u32 %v3451, 4294901760
    %v4141 = vsub.f32 %v3451, %v4140
    %v4142 = vand.u32 %v4141, 4294901760
    %4143 = vmatpush.msra.mxu0 %v4142
    %v4144 = vand.u32 %v3450, 4294901760
    %v4145 = vsub.f32 %v3450, %v4144
    %v4146 = vand.u32 %v4145, 4294901760
    %4147 = vmatpush.msra.mxu0 %v4146
    %v4148 = vand.u32 %v3449, 4294901760
    %v4149 = vsub.f32 %v3449, %v4148
    %v4150 = vand.u32 %v4149, 4294901760
    %4151 = vmatpush.msra.mxu0 %v4150
    %v4152 = vand.u32 %v3448, 4294901760
    %v4153 = vsub.f32 %v3448, %v4152
    %v4154 = vand.u32 %v4153, 4294901760
    %4155 = vmatpush.msra.mxu0 %v4154
    %v4156 = vand.u32 %v3447, 4294901760
    %v4157 = vsub.f32 %v3447, %v4156
    %v4158 = vand.u32 %v4157, 4294901760
    %4159 = vmatpush.msra.mxu0 %v4158
    %v4160 = vand.u32 %v3446, 4294901760
    %v4161 = vsub.f32 %v3446, %v4160
    %v4162 = vand.u32 %v4161, 4294901760
    %4163 = vmatpush.msra.mxu0 %v4162
    %v4164 = vand.u32 %v3445, 4294901760
    %v4165 = vsub.f32 %v3445, %v4164
    %v4166 = vand.u32 %v4165, 4294901760
    %4167 = vmatpush.msra.mxu0 %v4166
    %v4168 = vand.u32 %v3444, 4294901760
    %v4169 = vsub.f32 %v3444, %v4168
    %v4170 = vand.u32 %v4169, 4294901760
    %4171 = vmatpush.msra.mxu0 %v4170
    %v4172 = vand.u32 %v3408, 4294901760
    %4173 = vmatmul.f32.gmra.mxu0 %v4172
    %v4174 = vpop.f32.mrf.mxu0
    %v4175 = vadd.f32 %v4100, %v4174
    %v4176 = vand.u32 %v3409, 4294901760
    %4177 = vmatmul.f32.gmra.mxu0 %v4176
    %v4178 = vpop.f32.mrf.mxu0
    %v4179 = vadd.f32 %v4106, %v4178
    %4180 = vdwg.mxu0
    %v4181 = vand.u32 %v3459, 4294901760
    %4182 = vmatpush.msra.mxu0 %v4181
    %v4183 = vand.u32 %v3458, 4294901760
    %4184 = vmatpush.msra.mxu0 %v4183
    %v4185 = vand.u32 %v3457, 4294901760
    %4186 = vmatpush.msra.mxu0 %v4185
    %v4187 = vand.u32 %v3456, 4294901760
    %4188 = vmatpush.msra.mxu0 %v4187
    %v4189 = vand.u32 %v3455, 4294901760
    %4190 = vmatpush.msra.mxu0 %v4189
    %v4191 = vand.u32 %v3454, 4294901760
    %4192 = vmatpush.msra.mxu0 %v4191
    %v4193 = vand.u32 %v3453, 4294901760
    %4194 = vmatpush.msra.mxu0 %v4193
    %v4195 = vand.u32 %v3452, 4294901760
    %4196 = vmatpush.msra.mxu0 %v4195
    %v4197 = vand.u32 %v3451, 4294901760
    %4198 = vmatpush.msra.mxu0 %v4197
    %v4199 = vand.u32 %v3450, 4294901760
    %4200 = vmatpush.msra.mxu0 %v4199
    %v4201 = vand.u32 %v3449, 4294901760
    %4202 = vmatpush.msra.mxu0 %v4201
    %v4203 = vand.u32 %v3448, 4294901760
    %4204 = vmatpush.msra.mxu0 %v4203
    %v4205 = vand.u32 %v3447, 4294901760
    %4206 = vmatpush.msra.mxu0 %v4205
    %v4207 = vand.u32 %v3446, 4294901760
    %4208 = vmatpush.msra.mxu0 %v4207
    %v4209 = vand.u32 %v3445, 4294901760
    %4210 = vmatpush.msra.mxu0 %v4209
    %v4211 = vand.u32 %v3444, 4294901760
    %4212 = vmatpush.msra.mxu0 %v4211
    %v4213 = vand.u32 %v3408, 4294901760
    %4214 = vmatmul.f32.gmra.mxu0 %v4213
    %v4215 = vpop.f32.mrf.mxu0
    %v4216 = vadd.f32 %v4175, %v4215
    %v4217 = vand.u32 %v3409, 4294901760
    %4218 = vmatmul.f32.gmra.mxu0 %v4217
    %v4219 = vpop.f32.mrf.mxu0
    %v4220 = vadd.f32 %v4179, %v4219
    %4221 = vdwg.mxu0
    %v4222 = vand.u32 %v3475, 4294901760
    %4223 = vmatpush.msra.mxu0 %v4222
    %v4224 = vand.u32 %v3474, 4294901760
    %4225 = vmatpush.msra.mxu0 %v4224
    %v4226 = vand.u32 %v3473, 4294901760
    %4227 = vmatpush.msra.mxu0 %v4226
    %v4228 = vand.u32 %v3472, 4294901760
    %4229 = vmatpush.msra.mxu0 %v4228
    %v4230 = vand.u32 %v3471, 4294901760
    %4231 = vmatpush.msra.mxu0 %v4230
    %v4232 = vand.u32 %v3470, 4294901760
    %4233 = vmatpush.msra.mxu0 %v4232
    %v4234 = vand.u32 %v3469, 4294901760
    %4235 = vmatpush.msra.mxu0 %v4234
    %v4236 = vand.u32 %v3468, 4294901760
    %4237 = vmatpush.msra.mxu0 %v4236
    %v4238 = vand.u32 %v3467, 4294901760
    %4239 = vmatpush.msra.mxu0 %v4238
    %v4240 = vand.u32 %v3466, 4294901760
    %4241 = vmatpush.msra.mxu0 %v4240
    %v4242 = vand.u32 %v3465, 4294901760
    %4243 = vmatpush.msra.mxu0 %v4242
    %v4244 = vand.u32 %v3464, 4294901760
    %4245 = vmatpush.msra.mxu0 %v4244
    %v4246 = vand.u32 %v3463, 4294901760
    %4247 = vmatpush.msra.mxu0 %v4246
    %v4248 = vand.u32 %v3462, 4294901760
    %4249 = vmatpush.msra.mxu0 %v4248
    %v4250 = vand.u32 %v3461, 4294901760
    %4251 = vmatpush.msra.mxu0 %v4250
    %v4252 = vand.u32 %v3460, 4294901760
    %4253 = vmatpush.msra.mxu0 %v4252
    %v4254 = vand.u32 %v3426, 4294901760
    %v4255 = vsub.f32 %v3426, %v4254
    %v4256 = vand.u32 %v4255, 4294901760
    %v4257 = vsub.f32 %v4255, %v4256
    %v4258 = vand.u32 %v4257, 4294901760
    %4259 = vmatmul.f32.gmra.mxu0 %v4258
    %v4260 = vpop.f32.mrf.mxu0
    %v4261 = vadd.f32 %v4216, %v4260
    %v4262 = vand.u32 %v3427, 4294901760
    %v4263 = vsub.f32 %v3427, %v4262
    %v4264 = vand.u32 %v4263, 4294901760
    %v4265 = vsub.f32 %v4263, %v4264
    %v4266 = vand.u32 %v4265, 4294901760
    %4267 = vmatmul.f32.gmra.mxu0 %v4266
    %v4268 = vpop.f32.mrf.mxu0
    %v4269 = vadd.f32 %v4220, %v4268
    %4270 = vdwg.mxu0
    %v4271 = vand.u32 %v3475, 4294901760
    %v4272 = vsub.f32 %v3475, %v4271
    %v4273 = vand.u32 %v4272, 4294901760
    %v4274 = vsub.f32 %v4272, %v4273
    %v4275 = vand.u32 %v4274, 4294901760
    %4276 = vmatpush.msra.mxu0 %v4275
    %v4277 = vand.u32 %v3474, 4294901760
    %v4278 = vsub.f32 %v3474, %v4277
    %v4279 = vand.u32 %v4278, 4294901760
    %v4280 = vsub.f32 %v4278, %v4279
    %v4281 = vand.u32 %v4280, 4294901760
    %4282 = vmatpush.msra.mxu0 %v4281
    %v4283 = vand.u32 %v3473, 4294901760
    %v4284 = vsub.f32 %v3473, %v4283
    %v4285 = vand.u32 %v4284, 4294901760
    %v4286 = vsub.f32 %v4284, %v4285
    %v4287 = vand.u32 %v4286, 4294901760
    %4288 = vmatpush.msra.mxu0 %v4287
    %v4289 = vand.u32 %v3472, 4294901760
    %v4290 = vsub.f32 %v3472, %v4289
    %v4291 = vand.u32 %v4290, 4294901760
    %v4292 = vsub.f32 %v4290, %v4291
    %v4293 = vand.u32 %v4292, 4294901760
    %4294 = vmatpush.msra.mxu0 %v4293
    %v4295 = vand.u32 %v3471, 4294901760
    %v4296 = vsub.f32 %v3471, %v4295
    %v4297 = vand.u32 %v4296, 4294901760
    %v4298 = vsub.f32 %v4296, %v4297
    %v4299 = vand.u32 %v4298, 4294901760
    %4300 = vmatpush.msra.mxu0 %v4299
    %v4301 = vand.u32 %v3470, 4294901760
    %v4302 = vsub.f32 %v3470, %v4301
    %v4303 = vand.u32 %v4302, 4294901760
    %v4304 = vsub.f32 %v4302, %v4303
    %v4305 = vand.u32 %v4304, 4294901760
    %4306 = vmatpush.msra.mxu0 %v4305
    %v4307 = vand.u32 %v3469, 4294901760
    %v4308 = vsub.f32 %v3469, %v4307
    %v4309 = vand.u32 %v4308, 4294901760
    %v4310 = vsub.f32 %v4308, %v4309
    %v4311 = vand.u32 %v4310, 4294901760
    %4312 = vmatpush.msra.mxu0 %v4311
    %v4313 = vand.u32 %v3468, 4294901760
    %v4314 = vsub.f32 %v3468, %v4313
    %v4315 = vand.u32 %v4314, 4294901760
    %v4316 = vsub.f32 %v4314, %v4315
    %v4317 = vand.u32 %v4316, 4294901760
    %4318 = vmatpush.msra.mxu0 %v4317
    %v4319 = vand.u32 %v3467, 4294901760
    %v4320 = vsub.f32 %v3467, %v4319
    %v4321 = vand.u32 %v4320, 4294901760
    %v4322 = vsub.f32 %v4320, %v4321
    %v4323 = vand.u32 %v4322, 4294901760
    %4324 = vmatpush.msra.mxu0 %v4323
    %v4325 = vand.u32 %v3466, 4294901760
    %v4326 = vsub.f32 %v3466, %v4325
    %v4327 = vand.u32 %v4326, 4294901760
    %v4328 = vsub.f32 %v4326, %v4327
    %v4329 = vand.u32 %v4328, 4294901760
    %4330 = vmatpush.msra.mxu0 %v4329
    %v4331 = vand.u32 %v3465, 4294901760
    %v4332 = vsub.f32 %v3465, %v4331
    %v4333 = vand.u32 %v4332, 4294901760
    %v4334 = vsub.f32 %v4332, %v4333
    %v4335 = vand.u32 %v4334, 4294901760
    %4336 = vmatpush.msra.mxu0 %v4335
    %v4337 = vand.u32 %v3464, 4294901760
    %v4338 = vsub.f32 %v3464, %v4337
    %v4339 = vand.u32 %v4338, 4294901760
    %v4340 = vsub.f32 %v4338, %v4339
    %v4341 = vand.u32 %v4340, 4294901760
    %4342 = vmatpush.msra.mxu0 %v4341
    %v4343 = vand.u32 %v3463, 4294901760
    %v4344 = vsub.f32 %v3463, %v4343
    %v4345 = vand.u32 %v4344, 4294901760
    %v4346 = vsub.f32 %v4344, %v4345
    %v4347 = vand.u32 %v4346, 4294901760
    %4348 = vmatpush.msra.mxu0 %v4347
    %v4349 = vand.u32 %v3462, 4294901760
    %v4350 = vsub.f32 %v3462, %v4349
    %v4351 = vand.u32 %v4350, 4294901760
    %v4352 = vsub.f32 %v4350, %v4351
    %v4353 = vand.u32 %v4352, 4294901760
    %4354 = vmatpush.msra.mxu0 %v4353
    %v4355 = vand.u32 %v3461, 4294901760
    %v4356 = vsub.f32 %v3461, %v4355
    %v4357 = vand.u32 %v4356, 4294901760
    %v4358 = vsub.f32 %v4356, %v4357
    %v4359 = vand.u32 %v4358, 4294901760
    %4360 = vmatpush.msra.mxu0 %v4359
    %v4361 = vand.u32 %v3460, 4294901760
    %v4362 = vsub.f32 %v3460, %v4361
    %v4363 = vand.u32 %v4362, 4294901760
    %v4364 = vsub.f32 %v4362, %v4363
    %v4365 = vand.u32 %v4364, 4294901760
    %4366 = vmatpush.msra.mxu0 %v4365
    %v4367 = vand.u32 %v3426, 4294901760
    %4368 = vmatmul.f32.gmra.mxu0 %v4367
    %v4369 = vpop.f32.mrf.mxu0
    %v4370 = vadd.f32 %v4261, %v4369
    %v4371 = vand.u32 %v3427, 4294901760
    %4372 = vmatmul.f32.gmra.mxu0 %v4371
    %v4373 = vpop.f32.mrf.mxu0
    %v4374 = vadd.f32 %v4269, %v4373
    %4375 = vdwg.mxu0
    %v4376 = vand.u32 %v3475, 4294901760
    %v4377 = vsub.f32 %v3475, %v4376
    %4378 = vmatpush.msra.mxu0 %v4377
    %v4379 = vand.u32 %v3474, 4294901760
    %v4380 = vsub.f32 %v3474, %v4379
    %4381 = vmatpush.msra.mxu0 %v4380
    %v4382 = vand.u32 %v3473, 4294901760
    %v4383 = vsub.f32 %v3473, %v4382
    %4384 = vmatpush.msra.mxu0 %v4383
    %v4385 = vand.u32 %v3472, 4294901760
    %v4386 = vsub.f32 %v3472, %v4385
    %4387 = vmatpush.msra.mxu0 %v4386
    %v4388 = vand.u32 %v3471, 4294901760
    %v4389 = vsub.f32 %v3471, %v4388
    %4390 = vmatpush.msra.mxu0 %v4389
    %v4391 = vand.u32 %v3470, 4294901760
    %v4392 = vsub.f32 %v3470, %v4391
    %4393 = vmatpush.msra.mxu0 %v4392
    %v4394 = vand.u32 %v3469, 4294901760
    %v4395 = vsub.f32 %v3469, %v4394
    %4396 = vmatpush.msra.mxu0 %v4395
    %v4397 = vand.u32 %v3468, 4294901760
    %v4398 = vsub.f32 %v3468, %v4397
    %4399 = vmatpush.msra.mxu0 %v4398
    %v4400 = vand.u32 %v3467, 4294901760
    %v4401 = vsub.f32 %v3467, %v4400
    %4402 = vmatpush.msra.mxu0 %v4401
    %v4403 = vand.u32 %v3466, 4294901760
    %v4404 = vsub.f32 %v3466, %v4403
    %4405 = vmatpush.msra.mxu0 %v4404
    %v4406 = vand.u32 %v3465, 4294901760
    %v4407 = vsub.f32 %v3465, %v4406
    %4408 = vmatpush.msra.mxu0 %v4407
    %v4409 = vand.u32 %v3464, 4294901760
    %v4410 = vsub.f32 %v3464, %v4409
    %4411 = vmatpush.msra.mxu0 %v4410
    %v4412 = vand.u32 %v3463, 4294901760
    %v4413 = vsub.f32 %v3463, %v4412
    %4414 = vmatpush.msra.mxu0 %v4413
    %v4415 = vand.u32 %v3462, 4294901760
    %v4416 = vsub.f32 %v3462, %v4415
    %4417 = vmatpush.msra.mxu0 %v4416
    %v4418 = vand.u32 %v3461, 4294901760
    %v4419 = vsub.f32 %v3461, %v4418
    %4420 = vmatpush.msra.mxu0 %v4419
    %v4421 = vand.u32 %v3460, 4294901760
    %v4422 = vsub.f32 %v3460, %v4421
    %4423 = vmatpush.msra.mxu0 %v4422
    %v4424 = vand.u32 %v3426, 4294901760
    %v4425 = vsub.f32 %v3426, %v4424
    %4426 = vmatmul.f32.gmra.mxu0 %v4425
    %v4427 = vpop.f32.mrf.mxu0
    %v4428 = vadd.f32 %v4370, %v4427
    %v4429 = vand.u32 %v3427, 4294901760
    %v4430 = vsub.f32 %v3427, %v4429
    %4431 = vmatmul.f32.gmra.mxu0 %v4430
    %v4432 = vpop.f32.mrf.mxu0
    %v4433 = vadd.f32 %v4374, %v4432
    %4434 = vdwg.mxu0
    %v4435 = vand.u32 %v3475, 4294901760
    %4436 = vmatpush.msra.mxu0 %v4435
    %v4437 = vand.u32 %v3474, 4294901760
    %4438 = vmatpush.msra.mxu0 %v4437
    %v4439 = vand.u32 %v3473, 4294901760
    %4440 = vmatpush.msra.mxu0 %v4439
    %v4441 = vand.u32 %v3472, 4294901760
    %4442 = vmatpush.msra.mxu0 %v4441
    %v4443 = vand.u32 %v3471, 4294901760
    %4444 = vmatpush.msra.mxu0 %v4443
    %v4445 = vand.u32 %v3470, 4294901760
    %4446 = vmatpush.msra.mxu0 %v4445
    %v4447 = vand.u32 %v3469, 4294901760
    %4448 = vmatpush.msra.mxu0 %v4447
    %v4449 = vand.u32 %v3468, 4294901760
    %4450 = vmatpush.msra.mxu0 %v4449
    %v4451 = vand.u32 %v3467, 4294901760
    %4452 = vmatpush.msra.mxu0 %v4451
    %v4453 = vand.u32 %v3466, 4294901760
    %4454 = vmatpush.msra.mxu0 %v4453
    %v4455 = vand.u32 %v3465, 4294901760
    %4456 = vmatpush.msra.mxu0 %v4455
    %v4457 = vand.u32 %v3464, 4294901760
    %4458 = vmatpush.msra.mxu0 %v4457
    %v4459 = vand.u32 %v3463, 4294901760
    %4460 = vmatpush.msra.mxu0 %v4459
    %v4461 = vand.u32 %v3462, 4294901760
    %4462 = vmatpush.msra.mxu0 %v4461
    %v4463 = vand.u32 %v3461, 4294901760
    %4464 = vmatpush.msra.mxu0 %v4463
    %v4465 = vand.u32 %v3460, 4294901760
    %4466 = vmatpush.msra.mxu0 %v4465
    %v4467 = vand.u32 %v3426, 4294901760
    %v4468 = vsub.f32 %v3426, %v4467
    %v4469 = vand.u32 %v4468, 4294901760
    %4470 = vmatmul.f32.gmra.mxu0 %v4469
    %v4471 = vpop.f32.mrf.mxu0
    %v4472 = vadd.f32 %v4428, %v4471
    %v4473 = vand.u32 %v3427, 4294901760
    %v4474 = vsub.f32 %v3427, %v4473
    %v4475 = vand.u32 %v4474, 4294901760
    %4476 = vmatmul.f32.gmra.mxu0 %v4475
    %v4477 = vpop.f32.mrf.mxu0
    %v4478 = vadd.f32 %v4433, %v4477
    %4479 = vdwg.mxu0
    %v4480 = vand.u32 %v3475, 4294901760
    %v4481 = vsub.f32 %v3475, %v4480
    %v4482 = vand.u32 %v4481, 4294901760
    %4483 = vmatpush.msra.mxu0 %v4482
    %v4484 = vand.u32 %v3474, 4294901760
    %v4485 = vsub.f32 %v3474, %v4484
    %v4486 = vand.u32 %v4485, 4294901760
    %4487 = vmatpush.msra.mxu0 %v4486
    %v4488 = vand.u32 %v3473, 4294901760
    %v4489 = vsub.f32 %v3473, %v4488
    %v4490 = vand.u32 %v4489, 4294901760
    %4491 = vmatpush.msra.mxu0 %v4490
    %v4492 = vand.u32 %v3472, 4294901760
    %v4493 = vsub.f32 %v3472, %v4492
    %v4494 = vand.u32 %v4493, 4294901760
    %4495 = vmatpush.msra.mxu0 %v4494
    %v4496 = vand.u32 %v3471, 4294901760
    %v4497 = vsub.f32 %v3471, %v4496
    %v4498 = vand.u32 %v4497, 4294901760
    %4499 = vmatpush.msra.mxu0 %v4498
    %v4500 = vand.u32 %v3470, 4294901760
    %v4501 = vsub.f32 %v3470, %v4500
    %v4502 = vand.u32 %v4501, 4294901760
    %4503 = vmatpush.msra.mxu0 %v4502
    %v4504 = vand.u32 %v3469, 4294901760
    %v4505 = vsub.f32 %v3469, %v4504
    %v4506 = vand.u32 %v4505, 4294901760
    %4507 = vmatpush.msra.mxu0 %v4506
    %v4508 = vand.u32 %v3468, 4294901760
    %v4509 = vsub.f32 %v3468, %v4508
    %v4510 = vand.u32 %v4509, 4294901760
    %4511 = vmatpush.msra.mxu0 %v4510
    %v4512 = vand.u32 %v3467, 4294901760
    %v4513 = vsub.f32 %v3467, %v4512
    %v4514 = vand.u32 %v4513, 4294901760
    %4515 = vmatpush.msra.mxu0 %v4514
    %v4516 = vand.u32 %v3466, 4294901760
    %v4517 = vsub.f32 %v3466, %v4516
    %v4518 = vand.u32 %v4517, 4294901760
    %4519 = vmatpush.msra.mxu0 %v4518
    %v4520 = vand.u32 %v3465, 4294901760
    %v4521 = vsub.f32 %v3465, %v4520
    %v4522 = vand.u32 %v4521, 4294901760
    %4523 = vmatpush.msra.mxu0 %v4522
    %v4524 = vand.u32 %v3464, 4294901760
    %v4525 = vsub.f32 %v3464, %v4524
    %v4526 = vand.u32 %v4525, 4294901760
    %4527 = vmatpush.msra.mxu0 %v4526
    %v4528 = vand.u32 %v3463, 4294901760
    %v4529 = vsub.f32 %v3463, %v4528
    %v4530 = vand.u32 %v4529, 4294901760
    %4531 = vmatpush.msra.mxu0 %v4530
    %v4532 = vand.u32 %v3462, 4294901760
    %v4533 = vsub.f32 %v3462, %v4532
    %v4534 = vand.u32 %v4533, 4294901760
    %4535 = vmatpush.msra.mxu0 %v4534
    %v4536 = vand.u32 %v3461, 4294901760
    %v4537 = vsub.f32 %v3461, %v4536
    %v4538 = vand.u32 %v4537, 4294901760
    %4539 = vmatpush.msra.mxu0 %v4538
    %v4540 = vand.u32 %v3460, 4294901760
    %v4541 = vsub.f32 %v3460, %v4540
    %v4542 = vand.u32 %v4541, 4294901760
    %4543 = vmatpush.msra.mxu0 %v4542
    %v4544 = vand.u32 %v3426, 4294901760
    %4545 = vmatmul.f32.gmra.mxu0 %v4544
    %v4546 = vpop.f32.mrf.mxu0
    %v4547 = vadd.f32 %v4472, %v4546
    %v4548 = vand.u32 %v3427, 4294901760
    %4549 = vmatmul.f32.gmra.mxu0 %v4548
    %v4550 = vpop.f32.mrf.mxu0
    %v4551 = vadd.f32 %v4478, %v4550
    %4552 = vdwg.mxu0
    %v4553 = vand.u32 %v3475, 4294901760
    %4554 = vmatpush.msra.mxu0 %v4553
    %v4555 = vand.u32 %v3474, 4294901760
    %4556 = vmatpush.msra.mxu0 %v4555
    %v4557 = vand.u32 %v3473, 4294901760
    %4558 = vmatpush.msra.mxu0 %v4557
    %v4559 = vand.u32 %v3472, 4294901760
    %4560 = vmatpush.msra.mxu0 %v4559
    %v4561 = vand.u32 %v3471, 4294901760
    %4562 = vmatpush.msra.mxu0 %v4561
    %v4563 = vand.u32 %v3470, 4294901760
    %4564 = vmatpush.msra.mxu0 %v4563
    %v4565 = vand.u32 %v3469, 4294901760
    %4566 = vmatpush.msra.mxu0 %v4565
    %v4567 = vand.u32 %v3468, 4294901760
    %4568 = vmatpush.msra.mxu0 %v4567
    %v4569 = vand.u32 %v3467, 4294901760
    %4570 = vmatpush.msra.mxu0 %v4569
    %v4571 = vand.u32 %v3466, 4294901760
    %4572 = vmatpush.msra.mxu0 %v4571
    %v4573 = vand.u32 %v3465, 4294901760
    %4574 = vmatpush.msra.mxu0 %v4573
    %v4575 = vand.u32 %v3464, 4294901760
    %4576 = vmatpush.msra.mxu0 %v4575
    %v4577 = vand.u32 %v3463, 4294901760
    %4578 = vmatpush.msra.mxu0 %v4577
    %v4579 = vand.u32 %v3462, 4294901760
    %4580 = vmatpush.msra.mxu0 %v4579
    %v4581 = vand.u32 %v3461, 4294901760
    %4582 = vmatpush.msra.mxu0 %v4581
    %v4583 = vand.u32 %v3460, 4294901760
    %4584 = vmatpush.msra.mxu0 %v4583
    %v4585 = vand.u32 %v3426, 4294901760
    %4586 = vmatmul.f32.gmra.mxu0 %v4585
    %v4587 = vpop.f32.mrf.mxu0
    %v4588 = vadd.f32 %v4547, %v4587
    %v4589 = vand.u32 %v3427, 4294901760
    %4590 = vmatmul.f32.gmra.mxu0 %v4589
    %v4591 = vpop.f32.mrf.mxu0
    %v4592 = vadd.f32 %v4551, %v4591
    %4593 = vdwg.mxu0
    %v4594 = vmin.f32 %v4588, 20.0
    %v4595 = vmin.f32 %v4592, 20.0
    %v4596 = vmul.f32 %v4594, 1.442695
    %v4597 = vpow.pop %v4596
    %v4598 = vmul.f32 %v4595, 1.442695
    %v4599 = vpow.pop %v4598
    %v4600 = vadd.f32 %v4597, 2.0
    %v4601 = vadd.f32 %v4599, 2.0
    %v4602 = vmul.f32 %v4597, %v4600
    %v4603 = vmul.f32 %v4599, %v4601
    %vm4604 = vcmp.gt.f32.partialorder %v4588, 20.0
    %vm4605 = vcmp.gt.f32.partialorder %v4592, 20.0
    %v4606 = vadd.f32 %v4602, 2.0
    %v4607 = vadd.f32 %v4603, 2.0
    %v4608 = vrcp.pop %v4606
    %v4609 = vmul.f32 %v4606, %v4608
    %v4610 = vsub.f32 1.0, %v4609
    %v4611 = vmul.f32 %v4608, %v4610
    %v4612 = vadd.f32 %v4608, %v4611
    %vm4613 = vweird.f32 %v4606
    %vm4614 = vweird.f32 %v4608
    %vm4615 = vmor %vm4613, %vm4614
    %v4616 = vsel %vm4615, %v4608, %v4612
    %v4617 = vand.u32 2147483647, %v4606
    %vm4618 = vcmp.eq.f32.partialorder %v4617, 8.507059e+37
    %v4619 = vand.u32 %v4606, 2147483648
    %v4620 = vor.u32 1.1754944e-38, %v4619
    %v4621 = vsel %vm4618, %v4620, %v4616
    %v4622 = vmul.f32 %v4602, %v4621
    %v4623 = vrcp.pop %v4607
    %v4624 = vmul.f32 %v4607, %v4623
    %v4625 = vsub.f32 1.0, %v4624
    %v4626 = vmul.f32 %v4623, %v4625
    %v4627 = vadd.f32 %v4623, %v4626
    %vm4628 = vweird.f32 %v4607
    %vm4629 = vweird.f32 %v4623
    %vm4630 = vmor %vm4628, %vm4629
    %v4631 = vsel %vm4630, %v4623, %v4627
    %v4632 = vand.u32 2147483647, %v4607
    %vm4633 = vcmp.eq.f32.partialorder %v4632, 8.507059e+37
    %v4634 = vand.u32 %v4607, 2147483648
    %v4635 = vor.u32 1.1754944e-38, %v4634
    %v4636 = vsel %vm4633, %v4635, %v4631
    %v4637 = vmul.f32 %v4603, %v4636
    %v4638 = vmul.f32 %v4588, %v4622
    %v4639 = vmul.f32 %v4592, %v4637
    %v4640 = vsel %vm4604, %v4588, %v4638
    %v4641 = vsel %vm4605, %v4592, %v4639
    %v4642 = vld [vmem:[#allocation5 + $0x4a0] sm:$0xff]
    %v4643 = vld [vmem:[#allocation5 + $0x4a8] sm:$0xff]
    %v4644 = vld [vmem:[#allocation5 + $0x4b0] sm:$0xff]
    %v4645 = vld [vmem:[#allocation5 + $0x4b8] sm:$0xff]
    %v4646 = vld [vmem:[#allocation5 + $0x4c0] sm:$0xff]
    %v4647 = vld [vmem:[#allocation5 + $0x4c8] sm:$0xff]
    %v4648 = vld [vmem:[#allocation5 + $0x4d0] sm:$0xff]
    %v4649 = vld [vmem:[#allocation5 + $0x4d8] sm:$0xff]
    %v4650 = vld [vmem:[#allocation7 + $0x7] sm:$0x1]
    %v4651 = vperm.slane %v4650, 0
    %v4653 = vsel %vm124, %v4640, 0
    %v4656 = vsel %vm124, %v4641, 0
    %4658 = vmatpush.msra.mxu0 0.0
    %4659 = vmatpush.msra.mxu0 0.0
    %4660 = vmatpush.msra.mxu0 0.0
    %4661 = vmatpush.msra.mxu0 0.0
    %4662 = vmatpush.msra.mxu0 0.0
    %4663 = vmatpush.msra.mxu0 0.0
    %4664 = vmatpush.msra.mxu0 0.0
    %4665 = vmatpush.msra.mxu0 0.0
    %v4666 = vand.u32 %v4649, 4294901760
    %4667 = vmatpush.msra.mxu0 %v4666
    %v4668 = vand.u32 %v4648, 4294901760
    %4669 = vmatpush.msra.mxu0 %v4668
    %v4670 = vand.u32 %v4647, 4294901760
    %4671 = vmatpush.msra.mxu0 %v4670
    %v4672 = vand.u32 %v4646, 4294901760
    %4673 = vmatpush.msra.mxu0 %v4672
    %v4674 = vand.u32 %v4645, 4294901760
    %4675 = vmatpush.msra.mxu0 %v4674
    %v4676 = vand.u32 %v4644, 4294901760
    %4677 = vmatpush.msra.mxu0 %v4676
    %v4678 = vand.u32 %v4643, 4294901760
    %4679 = vmatpush.msra.mxu0 %v4678
    %v4680 = vand.u32 %v4642, 4294901760
    %4681 = vmatpush.msra.mxu0 %v4680
    %v4682 = vand.u32 %v4653, 4294901760
    %v4683 = vsub.f32 %v4653, %v4682
    %v4684 = vand.u32 %v4683, 4294901760
    %v4685 = vsub.f32 %v4683, %v4684
    %v4686 = vand.u32 %v4685, 4294901760
    %4687 = vmatmul.f32.gmra.mxu0 %v4686
    %v4688 = vpop.f32.mrf.mxu0
    %v4689 = vadd.f32 %v4651, %v4688
    %v4690 = vand.u32 %v4656, 4294901760
    %v4691 = vsub.f32 %v4656, %v4690
    %v4692 = vand.u32 %v4691, 4294901760
    %v4693 = vsub.f32 %v4691, %v4692
    %v4694 = vand.u32 %v4693, 4294901760
    %4695 = vmatmul.f32.gmra.mxu0 %v4694
    %v4696 = vpop.f32.mrf.mxu0
    %v4697 = vadd.f32 %v4651, %v4696
    %4698 = vdwg.mxu0
    %4699 = vmatpush.msra.mxu0 0.0
    %4700 = vmatpush.msra.mxu0 0.0
    %4701 = vmatpush.msra.mxu0 0.0
    %4702 = vmatpush.msra.mxu0 0.0
    %4703 = vmatpush.msra.mxu0 0.0
    %4704 = vmatpush.msra.mxu0 0.0
    %4705 = vmatpush.msra.mxu0 0.0
    %4706 = vmatpush.msra.mxu0 0.0
    %v4707 = vand.u32 %v4649, 4294901760
    %v4708 = vsub.f32 %v4649, %v4707
    %v4709 = vand.u32 %v4708, 4294901760
    %v4710 = vsub.f32 %v4708, %v4709
    %v4711 = vand.u32 %v4710, 4294901760
    %4712 = vmatpush.msra.mxu0 %v4711
    %v4713 = vand.u32 %v4648, 4294901760
    %v4714 = vsub.f32 %v4648, %v4713
    %v4715 = vand.u32 %v4714, 4294901760
    %v4716 = vsub.f32 %v4714, %v4715
    %v4717 = vand.u32 %v4716, 4294901760
    %4718 = vmatpush.msra.mxu0 %v4717
    %v4719 = vand.u32 %v4647, 4294901760
    %v4720 = vsub.f32 %v4647, %v4719
    %v4721 = vand.u32 %v4720, 4294901760
    %v4722 = vsub.f32 %v4720, %v4721
    %v4723 = vand.u32 %v4722, 4294901760
    %4724 = vmatpush.msra.mxu0 %v4723
    %v4725 = vand.u32 %v4646, 4294901760
    %v4726 = vsub.f32 %v4646, %v4725
    %v4727 = vand.u32 %v4726, 4294901760
    %v4728 = vsub.f32 %v4726, %v4727
    %v4729 = vand.u32 %v4728, 4294901760
    %4730 = vmatpush.msra.mxu0 %v4729
    %v4731 = vand.u32 %v4645, 4294901760
    %v4732 = vsub.f32 %v4645, %v4731
    %v4733 = vand.u32 %v4732, 4294901760
    %v4734 = vsub.f32 %v4732, %v4733
    %v4735 = vand.u32 %v4734, 4294901760
    %4736 = vmatpush.msra.mxu0 %v4735
    %v4737 = vand.u32 %v4644, 4294901760
    %v4738 = vsub.f32 %v4644, %v4737
    %v4739 = vand.u32 %v4738, 4294901760
    %v4740 = vsub.f32 %v4738, %v4739
    %v4741 = vand.u32 %v4740, 4294901760
    %4742 = vmatpush.msra.mxu0 %v4741
    %v4743 = vand.u32 %v4643, 4294901760
    %v4744 = vsub.f32 %v4643, %v4743
    %v4745 = vand.u32 %v4744, 4294901760
    %v4746 = vsub.f32 %v4744, %v4745
    %v4747 = vand.u32 %v4746, 4294901760
    %4748 = vmatpush.msra.mxu0 %v4747
    %v4749 = vand.u32 %v4642, 4294901760
    %v4750 = vsub.f32 %v4642, %v4749
    %v4751 = vand.u32 %v4750, 4294901760
    %v4752 = vsub.f32 %v4750, %v4751
    %v4753 = vand.u32 %v4752, 4294901760
    %4754 = vmatpush.msra.mxu0 %v4753
    %v4755 = vand.u32 %v4653, 4294901760
    %4756 = vmatmul.f32.gmra.mxu0 %v4755
    %v4757 = vpop.f32.mrf.mxu0
    %v4758 = vadd.f32 %v4689, %v4757
    %v4759 = vand.u32 %v4656, 4294901760
    %4760 = vmatmul.f32.gmra.mxu0 %v4759
    %v4761 = vpop.f32.mrf.mxu0
    %v4762 = vadd.f32 %v4697, %v4761
    %4763 = vdwg.mxu0
    %4764 = vmatpush.msra.mxu0 0.0
    %4765 = vmatpush.msra.mxu0 0.0
    %4766 = vmatpush.msra.mxu0 0.0
    %4767 = vmatpush.msra.mxu0 0.0
    %4768 = vmatpush.msra.mxu0 0.0
    %4769 = vmatpush.msra.mxu0 0.0
    %4770 = vmatpush.msra.mxu0 0.0
    %4771 = vmatpush.msra.mxu0 0.0
    %v4772 = vand.u32 %v4649, 4294901760
    %v4773 = vsub.f32 %v4649, %v4772
    %4774 = vmatpush.msra.mxu0 %v4773
    %v4775 = vand.u32 %v4648, 4294901760
    %v4776 = vsub.f32 %v4648, %v4775
    %4777 = vmatpush.msra.mxu0 %v4776
    %v4778 = vand.u32 %v4647, 4294901760
    %v4779 = vsub.f32 %v4647, %v4778
    %4780 = vmatpush.msra.mxu0 %v4779
    %v4781 = vand.u32 %v4646, 4294901760
    %v4782 = vsub.f32 %v4646, %v4781
    %4783 = vmatpush.msra.mxu0 %v4782
    %v4784 = vand.u32 %v4645, 4294901760
    %v4785 = vsub.f32 %v4645, %v4784
    %4786 = vmatpush.msra.mxu0 %v4785
    %v4787 = vand.u32 %v4644, 4294901760
    %v4788 = vsub.f32 %v4644, %v4787
    %4789 = vmatpush.msra.mxu0 %v4788
    %v4790 = vand.u32 %v4643, 4294901760
    %v4791 = vsub.f32 %v4643, %v4790
    %4792 = vmatpush.msra.mxu0 %v4791
    %v4793 = vand.u32 %v4642, 4294901760
    %v4794 = vsub.f32 %v4642, %v4793
    %4795 = vmatpush.msra.mxu0 %v4794
    %v4796 = vand.u32 %v4653, 4294901760
    %v4797 = vsub.f32 %v4653, %v4796
    %4798 = vmatmul.f32.gmra.mxu0 %v4797
    %v4799 = vpop.f32.mrf.mxu0
    %v4800 = vadd.f32 %v4758, %v4799
    %v4801 = vand.u32 %v4656, 4294901760
    %v4802 = vsub.f32 %v4656, %v4801
    %4803 = vmatmul.f32.gmra.mxu0 %v4802
    %v4804 = vpop.f32.mrf.mxu0
    %v4805 = vadd.f32 %v4762, %v4804
    %4806 = vdwg.mxu0
    %4807 = vmatpush.msra.mxu0 0.0
    %4808 = vmatpush.msra.mxu0 0.0
    %4809 = vmatpush.msra.mxu0 0.0
    %4810 = vmatpush.msra.mxu0 0.0
    %4811 = vmatpush.msra.mxu0 0.0
    %4812 = vmatpush.msra.mxu0 0.0
    %4813 = vmatpush.msra.mxu0 0.0
    %4814 = vmatpush.msra.mxu0 0.0
    %v4815 = vand.u32 %v4649, 4294901760
    %4816 = vmatpush.msra.mxu0 %v4815
    %v4817 = vand.u32 %v4648, 4294901760
    %4818 = vmatpush.msra.mxu0 %v4817
    %v4819 = vand.u32 %v4647, 4294901760
    %4820 = vmatpush.msra.mxu0 %v4819
    %v4821 = vand.u32 %v4646, 4294901760
    %4822 = vmatpush.msra.mxu0 %v4821
    %v4823 = vand.u32 %v4645, 4294901760
    %4824 = vmatpush.msra.mxu0 %v4823
    %v4825 = vand.u32 %v4644, 4294901760
    %4826 = vmatpush.msra.mxu0 %v4825
    %v4827 = vand.u32 %v4643, 4294901760
    %4828 = vmatpush.msra.mxu0 %v4827
    %v4829 = vand.u32 %v4642, 4294901760
    %4830 = vmatpush.msra.mxu0 %v4829
    %v4831 = vand.u32 %v4653, 4294901760
    %v4832 = vsub.f32 %v4653, %v4831
    %v4833 = vand.u32 %v4832, 4294901760
    %4834 = vmatmul.f32.gmra.mxu0 %v4833
    %v4835 = vpop.f32.mrf.mxu0
    %v4836 = vadd.f32 %v4800, %v4835
    %v4837 = vand.u32 %v4656, 4294901760
    %v4838 = vsub.f32 %v4656, %v4837
    %v4839 = vand.u32 %v4838, 4294901760
    %4840 = vmatmul.f32.gmra.mxu0 %v4839
    %v4841 = vpop.f32.mrf.mxu0
    %v4842 = vadd.f32 %v4805, %v4841
    %4843 = vdwg.mxu0
    %4844 = vmatpush.msra.mxu0 0.0
    %4845 = vmatpush.msra.mxu0 0.0
    %4846 = vmatpush.msra.mxu0 0.0
    %4847 = vmatpush.msra.mxu0 0.0
    %4848 = vmatpush.msra.mxu0 0.0
    %4849 = vmatpush.msra.mxu0 0.0
    %4850 = vmatpush.msra.mxu0 0.0
    %4851 = vmatpush.msra.mxu0 0.0
    %v4852 = vand.u32 %v4649, 4294901760
    %v4853 = vsub.f32 %v4649, %v4852
    %v4854 = vand.u32 %v4853, 4294901760
    %4855 = vmatpush.msra.mxu0 %v4854
    %v4856 = vand.u32 %v4648, 4294901760
    %v4857 = vsub.f32 %v4648, %v4856
    %v4858 = vand.u32 %v4857, 4294901760
    %4859 = vmatpush.msra.mxu0 %v4858
    %v4860 = vand.u32 %v4647, 4294901760
    %v4861 = vsub.f32 %v4647, %v4860
    %v4862 = vand.u32 %v4861, 4294901760
    %4863 = vmatpush.msra.mxu0 %v4862
    %v4864 = vand.u32 %v4646, 4294901760
    %v4865 = vsub.f32 %v4646, %v4864
    %v4866 = vand.u32 %v4865, 4294901760
    %4867 = vmatpush.msra.mxu0 %v4866
    %v4868 = vand.u32 %v4645, 4294901760
    %v4869 = vsub.f32 %v4645, %v4868
    %v4870 = vand.u32 %v4869, 4294901760
    %4871 = vmatpush.msra.mxu0 %v4870
    %v4872 = vand.u32 %v4644, 4294901760
    %v4873 = vsub.f32 %v4644, %v4872
    %v4874 = vand.u32 %v4873, 4294901760
    %4875 = vmatpush.msra.mxu0 %v4874
    %v4876 = vand.u32 %v4643, 4294901760
    %v4877 = vsub.f32 %v4643, %v4876
    %v4878 = vand.u32 %v4877, 4294901760
    %4879 = vmatpush.msra.mxu0 %v4878
    %v4880 = vand.u32 %v4642, 4294901760
    %v4881 = vsub.f32 %v4642, %v4880
    %v4882 = vand.u32 %v4881, 4294901760
    %4883 = vmatpush.msra.mxu0 %v4882
    %v4884 = vand.u32 %v4653, 4294901760
    %4885 = vmatmul.f32.gmra.mxu0 %v4884
    %v4886 = vpop.f32.mrf.mxu0
    %v4887 = vadd.f32 %v4836, %v4886
    %v4888 = vand.u32 %v4656, 4294901760
    %4889 = vmatmul.f32.gmra.mxu0 %v4888
    %v4890 = vpop.f32.mrf.mxu0
    %v4891 = vadd.f32 %v4842, %v4890
    %4892 = vdwg.mxu0
    %4893 = vmatpush.msra.mxu0 0.0
    %4894 = vmatpush.msra.mxu0 0.0
    %4895 = vmatpush.msra.mxu0 0.0
    %4896 = vmatpush.msra.mxu0 0.0
    %4897 = vmatpush.msra.mxu0 0.0
    %4898 = vmatpush.msra.mxu0 0.0
    %4899 = vmatpush.msra.mxu0 0.0
    %4900 = vmatpush.msra.mxu0 0.0
    %v4901 = vand.u32 %v4649, 4294901760
    %4902 = vmatpush.msra.mxu0 %v4901
    %v4903 = vand.u32 %v4648, 4294901760
    %4904 = vmatpush.msra.mxu0 %v4903
    %v4905 = vand.u32 %v4647, 4294901760
    %4906 = vmatpush.msra.mxu0 %v4905
    %v4907 = vand.u32 %v4646, 4294901760
    %4908 = vmatpush.msra.mxu0 %v4907
    %v4909 = vand.u32 %v4645, 4294901760
    %4910 = vmatpush.msra.mxu0 %v4909
    %v4911 = vand.u32 %v4644, 4294901760
    %4912 = vmatpush.msra.mxu0 %v4911
    %v4913 = vand.u32 %v4643, 4294901760
    %4914 = vmatpush.msra.mxu0 %v4913
    %v4915 = vand.u32 %v4642, 4294901760
    %4916 = vmatpush.msra.mxu0 %v4915
    %v4917 = vand.u32 %v4653, 4294901760
    %4918 = vmatmul.f32.gmra.mxu0 %v4917
    %v4919 = vpop.f32.mrf.mxu0
    %v4920 = vadd.f32 %v4887, %v4919
    %v4921 = vand.u32 %v4656, 4294901760
    %4922 = vmatmul.f32.gmra.mxu0 %v4921
    %v4923 = vpop.f32.mrf.mxu0
    %v4924 = vadd.f32 %v4891, %v4923
    %4925 = vdwg.mxu0
    %v4926 = vmin.f32 %v4920, 20.0
    %v4927 = vmin.f32 %v4924, 20.0
    %v4928 = vmul.f32 %v4926, 1.442695
    %v4929 = vpow.pop %v4928
    %v4930 = vmul.f32 %v4927, 1.442695
    %v4931 = vpow.pop %v4930
    %v4932 = vadd.f32 %v4929, 2.0
    %v4933 = vadd.f32 %v4931, 2.0
    %v4934 = vmul.f32 %v4929, %v4932
    %v4935 = vmul.f32 %v4931, %v4933
    %vm4936 = vcmp.gt.f32.partialorder %v4920, 20.0
    %vm4937 = vcmp.gt.f32.partialorder %v4924, 20.0
    %v4938 = vadd.f32 %v4934, 2.0
    %v4939 = vadd.f32 %v4935, 2.0
    %v4940 = vrcp.pop %v4938
    %v4941 = vmul.f32 %v4938, %v4940
    %v4942 = vsub.f32 1.0, %v4941
    %v4943 = vmul.f32 %v4940, %v4942
    %v4944 = vadd.f32 %v4940, %v4943
    %vm4945 = vweird.f32 %v4938
    %vm4946 = vweird.f32 %v4940
    %vm4947 = vmor %vm4945, %vm4946
    %v4948 = vsel %vm4947, %v4940, %v4944
    %v4949 = vand.u32 2147483647, %v4938
    %vm4950 = vcmp.eq.f32.partialorder %v4949, 8.507059e+37
    %v4951 = vand.u32 %v4938, 2147483648
    %v4952 = vor.u32 1.1754944e-38, %v4951
    %v4953 = vsel %vm4950, %v4952, %v4948
    %v4954 = vmul.f32 %v4934, %v4953
    %v4955 = vrcp.pop %v4939
    %v4956 = vmul.f32 %v4939, %v4955
    %v4957 = vsub.f32 1.0, %v4956
    %v4958 = vmul.f32 %v4955, %v4957
    %v4959 = vadd.f32 %v4955, %v4958
    %vm4960 = vweird.f32 %v4939
    %vm4961 = vweird.f32 %v4955
    %vm4962 = vmor %vm4960, %vm4961
    %v4963 = vsel %vm4962, %v4955, %v4959
    %v4964 = vand.u32 2147483647, %v4939
    %vm4965 = vcmp.eq.f32.partialorder %v4964, 8.507059e+37
    %v4966 = vand.u32 %v4939, 2147483648
    %v4967 = vor.u32 1.1754944e-38, %v4966
    %v4968 = vsel %vm4965, %v4967, %v4963
    %v4969 = vmul.f32 %v4935, %v4968
    %v4970 = vmul.f32 %v4920, %v4954
    %v4971 = vmul.f32 %v4924, %v4969
    %v4972 = vsel %vm4936, %v4920, %v4970
    %v4973 = vsel %vm4937, %v4924, %v4971
    %v4976 = vrot.slane %v4972, 7
    %v4977 = vrot.slane %v4973, 7
    %v4978 = vsel %vm74, %v4976, %v4977
    %v4981 = vsel %vm74, %v4972, %v4976
    %v4982 = vrot.slane %v4972, 1
    %v4983 = vrot.slane %v4973, 1
    %v4984 = vsel %vm1185, %v4982, %v4983
    %v4987 = vsel %vm1185, %v4983, %v4973
    %v4988 = vsel %vm112, 0.0, %v4981
    %v4989 = vsel %vm113, 0.0, %v4978
    %v4990 = vsel %vm1198, 0.0, %v4984
    %v4991 = vsel %vm1199, 0.0, %v4987
    %4992 = vrot.lane.b32.xlu0 %v4972, 64
    %v4993 = vpop.permute.xlu0 %4992
    %4994 = vrot.lane.b32.xlu0 %v4973, 64
    %v4995 = vpop.permute.xlu0 %4994
    %v4998 = vsel %vm124, %v4988, %v4993
    %v4999 = vsel %vm124, %v4989, %v4995
    %v5000 = vld [vmem:[#allocation5 + $0x4e0] sm:$0xff]
    %v5001 = vld [vmem:[#allocation5 + $0x4e8] sm:$0xff]
    %v5002 = vld [vmem:[#allocation5 + $0x4f0] sm:$0xff]
    %v5003 = vld [vmem:[#allocation5 + $0x4f8] sm:$0xff]
    %v5004 = vld [vmem:[#allocation5 + $0x500] sm:$0xff]
    %v5005 = vld [vmem:[#allocation5 + $0x508] sm:$0xff]
    %v5006 = vld [vmem:[#allocation5 + $0x510] sm:$0xff]
    %v5007 = vld [vmem:[#allocation5 + $0x518] sm:$0xff]
    %v5008 = vld [vmem:[#allocation5 + $0x520] sm:$0xff]
    %v5009 = vld [vmem:[#allocation5 + $0x528] sm:$0xff]
    %v5010 = vld [vmem:[#allocation5 + $0x530] sm:$0xff]
    %v5011 = vld [vmem:[#allocation5 + $0x538] sm:$0xff]
    %v5012 = vld [vmem:[#allocation5 + $0x540] sm:$0xff]
    %v5013 = vld [vmem:[#allocation5 + $0x548] sm:$0xff]
    %v5014 = vld [vmem:[#allocation5 + $0x550] sm:$0xff]
    %v5015 = vld [vmem:[#allocation5 + $0x558] sm:$0xff]
    %v5016 = vld [vmem:[#allocation5 + $0x560] sm:$0xff]
    %v5017 = vld [vmem:[#allocation5 + $0x568] sm:$0xff]
    %v5018 = vld [vmem:[#allocation5 + $0x570] sm:$0xff]
    %v5019 = vld [vmem:[#allocation5 + $0x578] sm:$0xff]
    %v5020 = vld [vmem:[#allocation5 + $0x580] sm:$0xff]
    %v5021 = vld [vmem:[#allocation5 + $0x588] sm:$0xff]
    %v5022 = vld [vmem:[#allocation5 + $0x590] sm:$0xff]
    %v5023 = vld [vmem:[#allocation5 + $0x598] sm:$0xff]
    %v5024 = vld [vmem:[#allocation7 + $0x8] sm:$0x1]
    %v5025 = vperm.slane %v5024, 0
    %v5027 = vsel %vm124, %v4990, 0
    %v5030 = vsel %vm124, %v4991, 0
    %v5032 = vand.u32 %v5015, 4294901760
    %5033 = vmatpush.msra.mxu0 %v5032
    %v5034 = vand.u32 %v5014, 4294901760
    %5035 = vmatpush.msra.mxu0 %v5034
    %v5036 = vand.u32 %v5013, 4294901760
    %5037 = vmatpush.msra.mxu0 %v5036
    %v5038 = vand.u32 %v5012, 4294901760
    %5039 = vmatpush.msra.mxu0 %v5038
    %v5040 = vand.u32 %v5011, 4294901760
    %5041 = vmatpush.msra.mxu0 %v5040
    %v5042 = vand.u32 %v5010, 4294901760
    %5043 = vmatpush.msra.mxu0 %v5042
    %v5044 = vand.u32 %v5009, 4294901760
    %5045 = vmatpush.msra.mxu0 %v5044
    %v5046 = vand.u32 %v5008, 4294901760
    %5047 = vmatpush.msra.mxu0 %v5046
    %v5048 = vand.u32 %v5007, 4294901760
    %5049 = vmatpush.msra.mxu0 %v5048
    %v5050 = vand.u32 %v5006, 4294901760
    %5051 = vmatpush.msra.mxu0 %v5050
    %v5052 = vand.u32 %v5005, 4294901760
    %5053 = vmatpush.msra.mxu0 %v5052
    %v5054 = vand.u32 %v5004, 4294901760
    %5055 = vmatpush.msra.mxu0 %v5054
    %v5056 = vand.u32 %v5003, 4294901760
    %5057 = vmatpush.msra.mxu0 %v5056
    %v5058 = vand.u32 %v5002, 4294901760
    %5059 = vmatpush.msra.mxu0 %v5058
    %v5060 = vand.u32 %v5001, 4294901760
    %5061 = vmatpush.msra.mxu0 %v5060
    %v5062 = vand.u32 %v5000, 4294901760
    %5063 = vmatpush.msra.mxu0 %v5062
    %v5064 = vand.u32 %v4998, 4294901760
    %v5065 = vsub.f32 %v4998, %v5064
    %v5066 = vand.u32 %v5065, 4294901760
    %v5067 = vsub.f32 %v5065, %v5066
    %v5068 = vand.u32 %v5067, 4294901760
    %5069 = vmatmul.f32.gmra.mxu0 %v5068
    %v5070 = vpop.f32.mrf.mxu0
    %v5071 = vadd.f32 %v5025, %v5070
    %v5072 = vand.u32 %v4999, 4294901760
    %v5073 = vsub.f32 %v4999, %v5072
    %v5074 = vand.u32 %v5073, 4294901760
    %v5075 = vsub.f32 %v5073, %v5074
    %v5076 = vand.u32 %v5075, 4294901760
    %5077 = vmatmul.f32.gmra.mxu0 %v5076
    %v5078 = vpop.f32.mrf.mxu0
    %v5079 = vadd.f32 %v5025, %v5078
    %5080 = vdwg.mxu0
    %v5081 = vand.u32 %v5015, 4294901760
    %v5082 = vsub.f32 %v5015, %v5081
    %v5083 = vand.u32 %v5082, 4294901760
    %v5084 = vsub.f32 %v5082, %v5083
    %v5085 = vand.u32 %v5084, 4294901760
    %5086 = vmatpush.msra.mxu0 %v5085
    %v5087 = vand.u32 %v5014, 4294901760
    %v5088 = vsub.f32 %v5014, %v5087
    %v5089 = vand.u32 %v5088, 4294901760
    %v5090 = vsub.f32 %v5088, %v5089
    %v5091 = vand.u32 %v5090, 4294901760
    %5092 = vmatpush.msra.mxu0 %v5091
    %v5093 = vand.u32 %v5013, 4294901760
    %v5094 = vsub.f32 %v5013, %v5093
    %v5095 = vand.u32 %v5094, 4294901760
    %v5096 = vsub.f32 %v5094, %v5095
    %v5097 = vand.u32 %v5096, 4294901760
    %5098 = vmatpush.msra.mxu0 %v5097
    %v5099 = vand.u32 %v5012, 4294901760
    %v5100 = vsub.f32 %v5012, %v5099
    %v5101 = vand.u32 %v5100, 4294901760
    %v5102 = vsub.f32 %v5100, %v5101
    %v5103 = vand.u32 %v5102, 4294901760
    %5104 = vmatpush.msra.mxu0 %v5103
    %v5105 = vand.u32 %v5011, 4294901760
    %v5106 = vsub.f32 %v5011, %v5105
    %v5107 = vand.u32 %v5106, 4294901760
    %v5108 = vsub.f32 %v5106, %v5107
    %v5109 = vand.u32 %v5108, 4294901760
    %5110 = vmatpush.msra.mxu0 %v5109
    %v5111 = vand.u32 %v5010, 4294901760
    %v5112 = vsub.f32 %v5010, %v5111
    %v5113 = vand.u32 %v5112, 4294901760
    %v5114 = vsub.f32 %v5112, %v5113
    %v5115 = vand.u32 %v5114, 4294901760
    %5116 = vmatpush.msra.mxu0 %v5115
    %v5117 = vand.u32 %v5009, 4294901760
    %v5118 = vsub.f32 %v5009, %v5117
    %v5119 = vand.u32 %v5118, 4294901760
    %v5120 = vsub.f32 %v5118, %v5119
    %v5121 = vand.u32 %v5120, 4294901760
    %5122 = vmatpush.msra.mxu0 %v5121
    %v5123 = vand.u32 %v5008, 4294901760
    %v5124 = vsub.f32 %v5008, %v5123
    %v5125 = vand.u32 %v5124, 4294901760
    %v5126 = vsub.f32 %v5124, %v5125
    %v5127 = vand.u32 %v5126, 4294901760
    %5128 = vmatpush.msra.mxu0 %v5127
    %v5129 = vand.u32 %v5007, 4294901760
    %v5130 = vsub.f32 %v5007, %v5129
    %v5131 = vand.u32 %v5130, 4294901760
    %v5132 = vsub.f32 %v5130, %v5131
    %v5133 = vand.u32 %v5132, 4294901760
    %5134 = vmatpush.msra.mxu0 %v5133
    %v5135 = vand.u32 %v5006, 4294901760
    %v5136 = vsub.f32 %v5006, %v5135
    %v5137 = vand.u32 %v5136, 4294901760
    %v5138 = vsub.f32 %v5136, %v5137
    %v5139 = vand.u32 %v5138, 4294901760
    %5140 = vmatpush.msra.mxu0 %v5139
    %v5141 = vand.u32 %v5005, 4294901760
    %v5142 = vsub.f32 %v5005, %v5141
    %v5143 = vand.u32 %v5142, 4294901760
    %v5144 = vsub.f32 %v5142, %v5143
    %v5145 = vand.u32 %v5144, 4294901760
    %5146 = vmatpush.msra.mxu0 %v5145
    %v5147 = vand.u32 %v5004, 4294901760
    %v5148 = vsub.f32 %v5004, %v5147
    %v5149 = vand.u32 %v5148, 4294901760
    %v5150 = vsub.f32 %v5148, %v5149
    %v5151 = vand.u32 %v5150, 4294901760
    %5152 = vmatpush.msra.mxu0 %v5151
    %v5153 = vand.u32 %v5003, 4294901760
    %v5154 = vsub.f32 %v5003, %v5153
    %v5155 = vand.u32 %v5154, 4294901760
    %v5156 = vsub.f32 %v5154, %v5155
    %v5157 = vand.u32 %v5156, 4294901760
    %5158 = vmatpush.msra.mxu0 %v5157
    %v5159 = vand.u32 %v5002, 4294901760
    %v5160 = vsub.f32 %v5002, %v5159
    %v5161 = vand.u32 %v5160, 4294901760
    %v5162 = vsub.f32 %v5160, %v5161
    %v5163 = vand.u32 %v5162, 4294901760
    %5164 = vmatpush.msra.mxu0 %v5163
    %v5165 = vand.u32 %v5001, 4294901760
    %v5166 = vsub.f32 %v5001, %v5165
    %v5167 = vand.u32 %v5166, 4294901760
    %v5168 = vsub.f32 %v5166, %v5167
    %v5169 = vand.u32 %v5168, 4294901760
    %5170 = vmatpush.msra.mxu0 %v5169
    %v5171 = vand.u32 %v5000, 4294901760
    %v5172 = vsub.f32 %v5000, %v5171
    %v5173 = vand.u32 %v5172, 4294901760
    %v5174 = vsub.f32 %v5172, %v5173
    %v5175 = vand.u32 %v5174, 4294901760
    %5176 = vmatpush.msra.mxu0 %v5175
    %v5177 = vand.u32 %v4998, 4294901760
    %5178 = vmatmul.f32.gmra.mxu0 %v5177
    %v5179 = vpop.f32.mrf.mxu0
    %v5180 = vadd.f32 %v5071, %v5179
    %v5181 = vand.u32 %v4999, 4294901760
    %5182 = vmatmul.f32.gmra.mxu0 %v5181
    %v5183 = vpop.f32.mrf.mxu0
    %v5184 = vadd.f32 %v5079, %v5183
    %5185 = vdwg.mxu0
    %v5186 = vand.u32 %v5015, 4294901760
    %v5187 = vsub.f32 %v5015, %v5186
    %5188 = vmatpush.msra.mxu0 %v5187
    %v5189 = vand.u32 %v5014, 4294901760
    %v5190 = vsub.f32 %v5014, %v5189
    %5191 = vmatpush.msra.mxu0 %v5190
    %v5192 = vand.u32 %v5013, 4294901760
    %v5193 = vsub.f32 %v5013, %v5192
    %5194 = vmatpush.msra.mxu0 %v5193
    %v5195 = vand.u32 %v5012, 4294901760
    %v5196 = vsub.f32 %v5012, %v5195
    %5197 = vmatpush.msra.mxu0 %v5196
    %v5198 = vand.u32 %v5011, 4294901760
    %v5199 = vsub.f32 %v5011, %v5198
    %5200 = vmatpush.msra.mxu0 %v5199
    %v5201 = vand.u32 %v5010, 4294901760
    %v5202 = vsub.f32 %v5010, %v5201
    %5203 = vmatpush.msra.mxu0 %v5202
    %v5204 = vand.u32 %v5009, 4294901760
    %v5205 = vsub.f32 %v5009, %v5204
    %5206 = vmatpush.msra.mxu0 %v5205
    %v5207 = vand.u32 %v5008, 4294901760
    %v5208 = vsub.f32 %v5008, %v5207
    %5209 = vmatpush.msra.mxu0 %v5208
    %v5210 = vand.u32 %v5007, 4294901760
    %v5211 = vsub.f32 %v5007, %v5210
    %5212 = vmatpush.msra.mxu0 %v5211
    %v5213 = vand.u32 %v5006, 4294901760
    %v5214 = vsub.f32 %v5006, %v5213
    %5215 = vmatpush.msra.mxu0 %v5214
    %v5216 = vand.u32 %v5005, 4294901760
    %v5217 = vsub.f32 %v5005, %v5216
    %5218 = vmatpush.msra.mxu0 %v5217
    %v5219 = vand.u32 %v5004, 4294901760
    %v5220 = vsub.f32 %v5004, %v5219
    %5221 = vmatpush.msra.mxu0 %v5220
    %v5222 = vand.u32 %v5003, 4294901760
    %v5223 = vsub.f32 %v5003, %v5222
    %5224 = vmatpush.msra.mxu0 %v5223
    %v5225 = vand.u32 %v5002, 4294901760
    %v5226 = vsub.f32 %v5002, %v5225
    %5227 = vmatpush.msra.mxu0 %v5226
    %v5228 = vand.u32 %v5001, 4294901760
    %v5229 = vsub.f32 %v5001, %v5228
    %5230 = vmatpush.msra.mxu0 %v5229
    %v5231 = vand.u32 %v5000, 4294901760
    %v5232 = vsub.f32 %v5000, %v5231
    %5233 = vmatpush.msra.mxu0 %v5232
    %v5234 = vand.u32 %v4998, 4294901760
    %v5235 = vsub.f32 %v4998, %v5234
    %5236 = vmatmul.f32.gmra.mxu0 %v5235
    %v5237 = vpop.f32.mrf.mxu0
    %v5238 = vadd.f32 %v5180, %v5237
    %v5239 = vand.u32 %v4999, 4294901760
    %v5240 = vsub.f32 %v4999, %v5239
    %5241 = vmatmul.f32.gmra.mxu0 %v5240
    %v5242 = vpop.f32.mrf.mxu0
    %v5243 = vadd.f32 %v5184, %v5242
    %5244 = vdwg.mxu0
    %v5245 = vand.u32 %v5015, 4294901760
    %5246 = vmatpush.msra.mxu0 %v5245
    %v5247 = vand.u32 %v5014, 4294901760
    %5248 = vmatpush.msra.mxu0 %v5247
    %v5249 = vand.u32 %v5013, 4294901760
    %5250 = vmatpush.msra.mxu0 %v5249
    %v5251 = vand.u32 %v5012, 4294901760
    %5252 = vmatpush.msra.mxu0 %v5251
    %v5253 = vand.u32 %v5011, 4294901760
    %5254 = vmatpush.msra.mxu0 %v5253
    %v5255 = vand.u32 %v5010, 4294901760
    %5256 = vmatpush.msra.mxu0 %v5255
    %v5257 = vand.u32 %v5009, 4294901760
    %5258 = vmatpush.msra.mxu0 %v5257
    %v5259 = vand.u32 %v5008, 4294901760
    %5260 = vmatpush.msra.mxu0 %v5259
    %v5261 = vand.u32 %v5007, 4294901760
    %5262 = vmatpush.msra.mxu0 %v5261
    %v5263 = vand.u32 %v5006, 4294901760
    %5264 = vmatpush.msra.mxu0 %v5263
    %v5265 = vand.u32 %v5005, 4294901760
    %5266 = vmatpush.msra.mxu0 %v5265
    %v5267 = vand.u32 %v5004, 4294901760
    %5268 = vmatpush.msra.mxu0 %v5267
    %v5269 = vand.u32 %v5003, 4294901760
    %5270 = vmatpush.msra.mxu0 %v5269
    %v5271 = vand.u32 %v5002, 4294901760
    %5272 = vmatpush.msra.mxu0 %v5271
    %v5273 = vand.u32 %v5001, 4294901760
    %5274 = vmatpush.msra.mxu0 %v5273
    %v5275 = vand.u32 %v5000, 4294901760
    %5276 = vmatpush.msra.mxu0 %v5275
    %v5277 = vand.u32 %v4998, 4294901760
    %v5278 = vsub.f32 %v4998, %v5277
    %v5279 = vand.u32 %v5278, 4294901760
    %5280 = vmatmul.f32.gmra.mxu0 %v5279
    %v5281 = vpop.f32.mrf.mxu0
    %v5282 = vadd.f32 %v5238, %v5281
    %v5283 = vand.u32 %v4999, 4294901760
    %v5284 = vsub.f32 %v4999, %v5283
    %v5285 = vand.u32 %v5284, 4294901760
    %5286 = vmatmul.f32.gmra.mxu0 %v5285
    %v5287 = vpop.f32.mrf.mxu0
    %v5288 = vadd.f32 %v5243, %v5287
    %5289 = vdwg.mxu0
    %v5290 = vand.u32 %v5015, 4294901760
    %v5291 = vsub.f32 %v5015, %v5290
    %v5292 = vand.u32 %v5291, 4294901760
    %5293 = vmatpush.msra.mxu0 %v5292
    %v5294 = vand.u32 %v5014, 4294901760
    %v5295 = vsub.f32 %v5014, %v5294
    %v5296 = vand.u32 %v5295, 4294901760
    %5297 = vmatpush.msra.mxu0 %v5296
    %v5298 = vand.u32 %v5013, 4294901760
    %v5299 = vsub.f32 %v5013, %v5298
    %v5300 = vand.u32 %v5299, 4294901760
    %5301 = vmatpush.msra.mxu0 %v5300
    %v5302 = vand.u32 %v5012, 4294901760
    %v5303 = vsub.f32 %v5012, %v5302
    %v5304 = vand.u32 %v5303, 4294901760
    %5305 = vmatpush.msra.mxu0 %v5304
    %v5306 = vand.u32 %v5011, 4294901760
    %v5307 = vsub.f32 %v5011, %v5306
    %v5308 = vand.u32 %v5307, 4294901760
    %5309 = vmatpush.msra.mxu0 %v5308
    %v5310 = vand.u32 %v5010, 4294901760
    %v5311 = vsub.f32 %v5010, %v5310
    %v5312 = vand.u32 %v5311, 4294901760
    %5313 = vmatpush.msra.mxu0 %v5312
    %v5314 = vand.u32 %v5009, 4294901760
    %v5315 = vsub.f32 %v5009, %v5314
    %v5316 = vand.u32 %v5315, 4294901760
    %5317 = vmatpush.msra.mxu0 %v5316
    %v5318 = vand.u32 %v5008, 4294901760
    %v5319 = vsub.f32 %v5008, %v5318
    %v5320 = vand.u32 %v5319, 4294901760
    %5321 = vmatpush.msra.mxu0 %v5320
    %v5322 = vand.u32 %v5007, 4294901760
    %v5323 = vsub.f32 %v5007, %v5322
    %v5324 = vand.u32 %v5323, 4294901760
    %5325 = vmatpush.msra.mxu0 %v5324
    %v5326 = vand.u32 %v5006, 4294901760
    %v5327 = vsub.f32 %v5006, %v5326
    %v5328 = vand.u32 %v5327, 4294901760
    %5329 = vmatpush.msra.mxu0 %v5328
    %v5330 = vand.u32 %v5005, 4294901760
    %v5331 = vsub.f32 %v5005, %v5330
    %v5332 = vand.u32 %v5331, 4294901760
    %5333 = vmatpush.msra.mxu0 %v5332
    %v5334 = vand.u32 %v5004, 4294901760
    %v5335 = vsub.f32 %v5004, %v5334
    %v5336 = vand.u32 %v5335, 4294901760
    %5337 = vmatpush.msra.mxu0 %v5336
    %v5338 = vand.u32 %v5003, 4294901760
    %v5339 = vsub.f32 %v5003, %v5338
    %v5340 = vand.u32 %v5339, 4294901760
    %5341 = vmatpush.msra.mxu0 %v5340
    %v5342 = vand.u32 %v5002, 4294901760
    %v5343 = vsub.f32 %v5002, %v5342
    %v5344 = vand.u32 %v5343, 4294901760
    %5345 = vmatpush.msra.mxu0 %v5344
    %v5346 = vand.u32 %v5001, 4294901760
    %v5347 = vsub.f32 %v5001, %v5346
    %v5348 = vand.u32 %v5347, 4294901760
    %5349 = vmatpush.msra.mxu0 %v5348
    %v5350 = vand.u32 %v5000, 4294901760
    %v5351 = vsub.f32 %v5000, %v5350
    %v5352 = vand.u32 %v5351, 4294901760
    %5353 = vmatpush.msra.mxu0 %v5352
    %v5354 = vand.u32 %v4998, 4294901760
    %5355 = vmatmul.f32.gmra.mxu0 %v5354
    %v5356 = vpop.f32.mrf.mxu0
    %v5357 = vadd.f32 %v5282, %v5356
    %v5358 = vand.u32 %v4999, 4294901760
    %5359 = vmatmul.f32.gmra.mxu0 %v5358
    %v5360 = vpop.f32.mrf.mxu0
    %v5361 = vadd.f32 %v5288, %v5360
    %5362 = vdwg.mxu0
    %v5363 = vand.u32 %v5015, 4294901760
    %5364 = vmatpush.msra.mxu0 %v5363
    %v5365 = vand.u32 %v5014, 4294901760
    %5366 = vmatpush.msra.mxu0 %v5365
    %v5367 = vand.u32 %v5013, 4294901760
    %5368 = vmatpush.msra.mxu0 %v5367
    %v5369 = vand.u32 %v5012, 4294901760
    %5370 = vmatpush.msra.mxu0 %v5369
    %v5371 = vand.u32 %v5011, 4294901760
    %5372 = vmatpush.msra.mxu0 %v5371
    %v5373 = vand.u32 %v5010, 4294901760
    %5374 = vmatpush.msra.mxu0 %v5373
    %v5375 = vand.u32 %v5009, 4294901760
    %5376 = vmatpush.msra.mxu0 %v5375
    %v5377 = vand.u32 %v5008, 4294901760
    %5378 = vmatpush.msra.mxu0 %v5377
    %v5379 = vand.u32 %v5007, 4294901760
    %5380 = vmatpush.msra.mxu0 %v5379
    %v5381 = vand.u32 %v5006, 4294901760
    %5382 = vmatpush.msra.mxu0 %v5381
    %v5383 = vand.u32 %v5005, 4294901760
    %5384 = vmatpush.msra.mxu0 %v5383
    %v5385 = vand.u32 %v5004, 4294901760
    %5386 = vmatpush.msra.mxu0 %v5385
    %v5387 = vand.u32 %v5003, 4294901760
    %5388 = vmatpush.msra.mxu0 %v5387
    %v5389 = vand.u32 %v5002, 4294901760
    %5390 = vmatpush.msra.mxu0 %v5389
    %v5391 = vand.u32 %v5001, 4294901760
    %5392 = vmatpush.msra.mxu0 %v5391
    %v5393 = vand.u32 %v5000, 4294901760
    %5394 = vmatpush.msra.mxu0 %v5393
    %v5395 = vand.u32 %v4998, 4294901760
    %5396 = vmatmul.f32.gmra.mxu0 %v5395
    %v5397 = vpop.f32.mrf.mxu0
    %v5398 = vadd.f32 %v5357, %v5397
    %v5399 = vand.u32 %v4999, 4294901760
    %5400 = vmatmul.f32.gmra.mxu0 %v5399
    %v5401 = vpop.f32.mrf.mxu0
    %v5402 = vadd.f32 %v5361, %v5401
    %5403 = vdwg.mxu0
    %5404 = vmatpush.msra.mxu0 0.0
    %5405 = vmatpush.msra.mxu0 0.0
    %5406 = vmatpush.msra.mxu0 0.0
    %5407 = vmatpush.msra.mxu0 0.0
    %5408 = vmatpush.msra.mxu0 0.0
    %5409 = vmatpush.msra.mxu0 0.0
    %5410 = vmatpush.msra.mxu0 0.0
    %5411 = vmatpush.msra.mxu0 0.0
    %v5412 = vand.u32 %v5023, 4294901760
    %5413 = vmatpush.msra.mxu0 %v5412
    %v5414 = vand.u32 %v5022, 4294901760
    %5415 = vmatpush.msra.mxu0 %v5414
    %v5416 = vand.u32 %v5021, 4294901760
    %5417 = vmatpush.msra.mxu0 %v5416
    %v5418 = vand.u32 %v5020, 4294901760
    %5419 = vmatpush.msra.mxu0 %v5418
    %v5420 = vand.u32 %v5019, 4294901760
    %5421 = vmatpush.msra.mxu0 %v5420
    %v5422 = vand.u32 %v5018, 4294901760
    %5423 = vmatpush.msra.mxu0 %v5422
    %v5424 = vand.u32 %v5017, 4294901760
    %5425 = vmatpush.msra.mxu0 %v5424
    %v5426 = vand.u32 %v5016, 4294901760
    %5427 = vmatpush.msra.mxu0 %v5426
    %v5428 = vand.u32 %v5027, 4294901760
    %v5429 = vsub.f32 %v5027, %v5428
    %v5430 = vand.u32 %v5429, 4294901760
    %v5431 = vsub.f32 %v5429, %v5430
    %v5432 = vand.u32 %v5431, 4294901760
    %5433 = vmatmul.f32.gmra.mxu0 %v5432
    %v5434 = vpop.f32.mrf.mxu0
    %v5435 = vadd.f32 %v5398, %v5434
    %v5436 = vand.u32 %v5030, 4294901760
    %v5437 = vsub.f32 %v5030, %v5436
    %v5438 = vand.u32 %v5437, 4294901760
    %v5439 = vsub.f32 %v5437, %v5438
    %v5440 = vand.u32 %v5439, 4294901760
    %5441 = vmatmul.f32.gmra.mxu0 %v5440
    %v5442 = vpop.f32.mrf.mxu0
    %v5443 = vadd.f32 %v5402, %v5442
    %5444 = vdwg.mxu0
    %5445 = vmatpush.msra.mxu0 0.0
    %5446 = vmatpush.msra.mxu0 0.0
    %5447 = vmatpush.msra.mxu0 0.0
    %5448 = vmatpush.msra.mxu0 0.0
    %5449 = vmatpush.msra.mxu0 0.0
    %5450 = vmatpush.msra.mxu0 0.0
    %5451 = vmatpush.msra.mxu0 0.0
    %5452 = vmatpush.msra.mxu0 0.0
    %v5453 = vand.u32 %v5023, 4294901760
    %v5454 = vsub.f32 %v5023, %v5453
    %v5455 = vand.u32 %v5454, 4294901760
    %v5456 = vsub.f32 %v5454, %v5455
    %v5457 = vand.u32 %v5456, 4294901760
    %5458 = vmatpush.msra.mxu0 %v5457
    %v5459 = vand.u32 %v5022, 4294901760
    %v5460 = vsub.f32 %v5022, %v5459
    %v5461 = vand.u32 %v5460, 4294901760
    %v5462 = vsub.f32 %v5460, %v5461
    %v5463 = vand.u32 %v5462, 4294901760
    %5464 = vmatpush.msra.mxu0 %v5463
    %v5465 = vand.u32 %v5021, 4294901760
    %v5466 = vsub.f32 %v5021, %v5465
    %v5467 = vand.u32 %v5466, 4294901760
    %v5468 = vsub.f32 %v5466, %v5467
    %v5469 = vand.u32 %v5468, 4294901760
    %5470 = vmatpush.msra.mxu0 %v5469
    %v5471 = vand.u32 %v5020, 4294901760
    %v5472 = vsub.f32 %v5020, %v5471
    %v5473 = vand.u32 %v5472, 4294901760
    %v5474 = vsub.f32 %v5472, %v5473
    %v5475 = vand.u32 %v5474, 4294901760
    %5476 = vmatpush.msra.mxu0 %v5475
    %v5477 = vand.u32 %v5019, 4294901760
    %v5478 = vsub.f32 %v5019, %v5477
    %v5479 = vand.u32 %v5478, 4294901760
    %v5480 = vsub.f32 %v5478, %v5479
    %v5481 = vand.u32 %v5480, 4294901760
    %5482 = vmatpush.msra.mxu0 %v5481
    %v5483 = vand.u32 %v5018, 4294901760
    %v5484 = vsub.f32 %v5018, %v5483
    %v5485 = vand.u32 %v5484, 4294901760
    %v5486 = vsub.f32 %v5484, %v5485
    %v5487 = vand.u32 %v5486, 4294901760
    %5488 = vmatpush.msra.mxu0 %v5487
    %v5489 = vand.u32 %v5017, 4294901760
    %v5490 = vsub.f32 %v5017, %v5489
    %v5491 = vand.u32 %v5490, 4294901760
    %v5492 = vsub.f32 %v5490, %v5491
    %v5493 = vand.u32 %v5492, 4294901760
    %5494 = vmatpush.msra.mxu0 %v5493
    %v5495 = vand.u32 %v5016, 4294901760
    %v5496 = vsub.f32 %v5016, %v5495
    %v5497 = vand.u32 %v5496, 4294901760
    %v5498 = vsub.f32 %v5496, %v5497
    %v5499 = vand.u32 %v5498, 4294901760
    %5500 = vmatpush.msra.mxu0 %v5499
    %v5501 = vand.u32 %v5027, 4294901760
    %5502 = vmatmul.f32.gmra.mxu0 %v5501
    %v5503 = vpop.f32.mrf.mxu0
    %v5504 = vadd.f32 %v5435, %v5503
    %v5505 = vand.u32 %v5030, 4294901760
    %5506 = vmatmul.f32.gmra.mxu0 %v5505
    %v5507 = vpop.f32.mrf.mxu0
    %v5508 = vadd.f32 %v5443, %v5507
    %5509 = vdwg.mxu0
    %5510 = vmatpush.msra.mxu0 0.0
    %5511 = vmatpush.msra.mxu0 0.0
    %5512 = vmatpush.msra.mxu0 0.0
    %5513 = vmatpush.msra.mxu0 0.0
    %5514 = vmatpush.msra.mxu0 0.0
    %5515 = vmatpush.msra.mxu0 0.0
    %5516 = vmatpush.msra.mxu0 0.0
    %5517 = vmatpush.msra.mxu0 0.0
    %v5518 = vand.u32 %v5023, 4294901760
    %v5519 = vsub.f32 %v5023, %v5518
    %5520 = vmatpush.msra.mxu0 %v5519
    %v5521 = vand.u32 %v5022, 4294901760
    %v5522 = vsub.f32 %v5022, %v5521
    %5523 = vmatpush.msra.mxu0 %v5522
    %v5524 = vand.u32 %v5021, 4294901760
    %v5525 = vsub.f32 %v5021, %v5524
    %5526 = vmatpush.msra.mxu0 %v5525
    %v5527 = vand.u32 %v5020, 4294901760
    %v5528 = vsub.f32 %v5020, %v5527
    %5529 = vmatpush.msra.mxu0 %v5528
    %v5530 = vand.u32 %v5019, 4294901760
    %v5531 = vsub.f32 %v5019, %v5530
    %5532 = vmatpush.msra.mxu0 %v5531
    %v5533 = vand.u32 %v5018, 4294901760
    %v5534 = vsub.f32 %v5018, %v5533
    %5535 = vmatpush.msra.mxu0 %v5534
    %v5536 = vand.u32 %v5017, 4294901760
    %v5537 = vsub.f32 %v5017, %v5536
    %5538 = vmatpush.msra.mxu0 %v5537
    %v5539 = vand.u32 %v5016, 4294901760
    %v5540 = vsub.f32 %v5016, %v5539
    %5541 = vmatpush.msra.mxu0 %v5540
    %v5542 = vand.u32 %v5027, 4294901760
    %v5543 = vsub.f32 %v5027, %v5542
    %5544 = vmatmul.f32.gmra.mxu0 %v5543
    %v5545 = vpop.f32.mrf.mxu0
    %v5546 = vadd.f32 %v5504, %v5545
    %v5547 = vand.u32 %v5030, 4294901760
    %v5548 = vsub.f32 %v5030, %v5547
    %5549 = vmatmul.f32.gmra.mxu0 %v5548
    %v5550 = vpop.f32.mrf.mxu0
    %v5551 = vadd.f32 %v5508, %v5550
    %5552 = vdwg.mxu0
    %5553 = vmatpush.msra.mxu0 0.0
    %5554 = vmatpush.msra.mxu0 0.0
    %5555 = vmatpush.msra.mxu0 0.0
    %5556 = vmatpush.msra.mxu0 0.0
    %5557 = vmatpush.msra.mxu0 0.0
    %5558 = vmatpush.msra.mxu0 0.0
    %5559 = vmatpush.msra.mxu0 0.0
    %5560 = vmatpush.msra.mxu0 0.0
    %v5561 = vand.u32 %v5023, 4294901760
    %5562 = vmatpush.msra.mxu0 %v5561
    %v5563 = vand.u32 %v5022, 4294901760
    %5564 = vmatpush.msra.mxu0 %v5563
    %v5565 = vand.u32 %v5021, 4294901760
    %5566 = vmatpush.msra.mxu0 %v5565
    %v5567 = vand.u32 %v5020, 4294901760
    %5568 = vmatpush.msra.mxu0 %v5567
    %v5569 = vand.u32 %v5019, 4294901760
    %5570 = vmatpush.msra.mxu0 %v5569
    %v5571 = vand.u32 %v5018, 4294901760
    %5572 = vmatpush.msra.mxu0 %v5571
    %v5573 = vand.u32 %v5017, 4294901760
    %5574 = vmatpush.msra.mxu0 %v5573
    %v5575 = vand.u32 %v5016, 4294901760
    %5576 = vmatpush.msra.mxu0 %v5575
    %v5577 = vand.u32 %v5027, 4294901760
    %v5578 = vsub.f32 %v5027, %v5577
    %v5579 = vand.u32 %v5578, 4294901760
    %5580 = vmatmul.f32.gmra.mxu0 %v5579
    %v5581 = vpop.f32.mrf.mxu0
    %v5582 = vadd.f32 %v5546, %v5581
    %v5583 = vand.u32 %v5030, 4294901760
    %v5584 = vsub.f32 %v5030, %v5583
    %v5585 = vand.u32 %v5584, 4294901760
    %5586 = vmatmul.f32.gmra.mxu0 %v5585
    %v5587 = vpop.f32.mrf.mxu0
    %v5588 = vadd.f32 %v5551, %v5587
    %5589 = vdwg.mxu0
    %5590 = vmatpush.msra.mxu0 0.0
    %5591 = vmatpush.msra.mxu0 0.0
    %5592 = vmatpush.msra.mxu0 0.0
    %5593 = vmatpush.msra.mxu0 0.0
    %5594 = vmatpush.msra.mxu0 0.0
    %5595 = vmatpush.msra.mxu0 0.0
    %5596 = vmatpush.msra.mxu0 0.0
    %5597 = vmatpush.msra.mxu0 0.0
    %v5598 = vand.u32 %v5023, 4294901760
    %v5599 = vsub.f32 %v5023, %v5598
    %v5600 = vand.u32 %v5599, 4294901760
    %5601 = vmatpush.msra.mxu0 %v5600
    %v5602 = vand.u32 %v5022, 4294901760
    %v5603 = vsub.f32 %v5022, %v5602
    %v5604 = vand.u32 %v5603, 4294901760
    %5605 = vmatpush.msra.mxu0 %v5604
    %v5606 = vand.u32 %v5021, 4294901760
    %v5607 = vsub.f32 %v5021, %v5606
    %v5608 = vand.u32 %v5607, 4294901760
    %5609 = vmatpush.msra.mxu0 %v5608
    %v5610 = vand.u32 %v5020, 4294901760
    %v5611 = vsub.f32 %v5020, %v5610
    %v5612 = vand.u32 %v5611, 4294901760
    %5613 = vmatpush.msra.mxu0 %v5612
    %v5614 = vand.u32 %v5019, 4294901760
    %v5615 = vsub.f32 %v5019, %v5614
    %v5616 = vand.u32 %v5615, 4294901760
    %5617 = vmatpush.msra.mxu0 %v5616
    %v5618 = vand.u32 %v5018, 4294901760
    %v5619 = vsub.f32 %v5018, %v5618
    %v5620 = vand.u32 %v5619, 4294901760
    %5621 = vmatpush.msra.mxu0 %v5620
    %v5622 = vand.u32 %v5017, 4294901760
    %v5623 = vsub.f32 %v5017, %v5622
    %v5624 = vand.u32 %v5623, 4294901760
    %5625 = vmatpush.msra.mxu0 %v5624
    %v5626 = vand.u32 %v5016, 4294901760
    %v5627 = vsub.f32 %v5016, %v5626
    %v5628 = vand.u32 %v5627, 4294901760
    %5629 = vmatpush.msra.mxu0 %v5628
    %v5630 = vand.u32 %v5027, 4294901760
    %5631 = vmatmul.f32.gmra.mxu0 %v5630
    %v5632 = vpop.f32.mrf.mxu0
    %v5633 = vadd.f32 %v5582, %v5632
    %v5634 = vand.u32 %v5030, 4294901760
    %5635 = vmatmul.f32.gmra.mxu0 %v5634
    %v5636 = vpop.f32.mrf.mxu0
    %v5637 = vadd.f32 %v5588, %v5636
    %5638 = vdwg.mxu0
    %5639 = vmatpush.msra.mxu0 0.0
    %5640 = vmatpush.msra.mxu0 0.0
    %5641 = vmatpush.msra.mxu0 0.0
    %5642 = vmatpush.msra.mxu0 0.0
    %5643 = vmatpush.msra.mxu0 0.0
    %5644 = vmatpush.msra.mxu0 0.0
    %5645 = vmatpush.msra.mxu0 0.0
    %5646 = vmatpush.msra.mxu0 0.0
    %v5647 = vand.u32 %v5023, 4294901760
    %5648 = vmatpush.msra.mxu0 %v5647
    %v5649 = vand.u32 %v5022, 4294901760
    %5650 = vmatpush.msra.mxu0 %v5649
    %v5651 = vand.u32 %v5021, 4294901760
    %5652 = vmatpush.msra.mxu0 %v5651
    %v5653 = vand.u32 %v5020, 4294901760
    %5654 = vmatpush.msra.mxu0 %v5653
    %v5655 = vand.u32 %v5019, 4294901760
    %5656 = vmatpush.msra.mxu0 %v5655
    %v5657 = vand.u32 %v5018, 4294901760
    %5658 = vmatpush.msra.mxu0 %v5657
    %v5659 = vand.u32 %v5017, 4294901760
    %5660 = vmatpush.msra.mxu0 %v5659
    %v5661 = vand.u32 %v5016, 4294901760
    %5662 = vmatpush.msra.mxu0 %v5661
    %v5663 = vand.u32 %v5027, 4294901760
    %5664 = vmatmul.f32.gmra.mxu0 %v5663
    %v5665 = vpop.f32.mrf.mxu0
    %v5666 = vadd.f32 %v5633, %v5665
    %v5667 = vand.u32 %v5030, 4294901760
    %5668 = vmatmul.f32.gmra.mxu0 %v5667
    %v5669 = vpop.f32.mrf.mxu0
    %v5670 = vadd.f32 %v5637, %v5669
    %5671 = vdwg.mxu0
    %v5672 = vmin.f32 %v5666, 20.0
    %v5673 = vmin.f32 %v5670, 20.0
    %v5674 = vmul.f32 %v5672, 1.442695
    %v5675 = vpow.pop %v5674
    %v5676 = vmul.f32 %v5673, 1.442695
    %v5677 = vpow.pop %v5676
    %v5678 = vadd.f32 %v5675, 2.0
    %v5679 = vadd.f32 %v5677, 2.0
    %v5680 = vmul.f32 %v5675, %v5678
    %v5681 = vmul.f32 %v5677, %v5679
    %vm5682 = vcmp.gt.f32.partialorder %v5666, 20.0
    %vm5683 = vcmp.gt.f32.partialorder %v5670, 20.0
    %v5684 = vadd.f32 %v5680, 2.0
    %v5685 = vadd.f32 %v5681, 2.0
    %v5686 = vrcp.pop %v5684
    %v5687 = vmul.f32 %v5684, %v5686
    %v5688 = vsub.f32 1.0, %v5687
    %v5689 = vmul.f32 %v5686, %v5688
    %v5690 = vadd.f32 %v5686, %v5689
    %vm5691 = vweird.f32 %v5684
    %vm5692 = vweird.f32 %v5686
    %vm5693 = vmor %vm5691, %vm5692
    %v5694 = vsel %vm5693, %v5686, %v5690
    %v5695 = vand.u32 2147483647, %v5684
    %vm5696 = vcmp.eq.f32.partialorder %v5695, 8.507059e+37
    %v5697 = vand.u32 %v5684, 2147483648
    %v5698 = vor.u32 1.1754944e-38, %v5697
    %v5699 = vsel %vm5696, %v5698, %v5694
    %v5700 = vmul.f32 %v5680, %v5699
    %v5701 = vrcp.pop %v5685
    %v5702 = vmul.f32 %v5685, %v5701
    %v5703 = vsub.f32 1.0, %v5702
    %v5704 = vmul.f32 %v5701, %v5703
    %v5705 = vadd.f32 %v5701, %v5704
    %vm5706 = vweird.f32 %v5685
    %vm5707 = vweird.f32 %v5701
    %vm5708 = vmor %vm5706, %vm5707
    %v5709 = vsel %vm5708, %v5701, %v5705
    %v5710 = vand.u32 2147483647, %v5685
    %vm5711 = vcmp.eq.f32.partialorder %v5710, 8.507059e+37
    %v5712 = vand.u32 %v5685, 2147483648
    %v5713 = vor.u32 1.1754944e-38, %v5712
    %v5714 = vsel %vm5711, %v5713, %v5709
    %v5715 = vmul.f32 %v5681, %v5714
    %v5716 = vmul.f32 %v5666, %v5700
    %v5717 = vmul.f32 %v5670, %v5715
    %v5718 = vsel %vm5682, %v5666, %v5716
    %v5719 = vsel %vm5683, %v5670, %v5717
    %v5720 = vld [vmem:[#allocation5 + $0x5a0] sm:$0xff]
    %v5721 = vld [vmem:[#allocation5 + $0x5a8] sm:$0xff]
    %v5722 = vld [vmem:[#allocation5 + $0x5b0] sm:$0xff]
    %v5723 = vld [vmem:[#allocation5 + $0x5b8] sm:$0xff]
    %v5724 = vld [vmem:[#allocation7 + $0x9] sm:$0x1]
    %v5725 = vperm.slane %v5724, 0
    %v5727 = vsel %vm1936, %v5718, 0
    %v5730 = vsel %vm1936, %v5719, 0
    %5732 = vmatpush.msra.mxu0 0.0
    %5733 = vmatpush.msra.mxu0 0.0
    %5734 = vmatpush.msra.mxu0 0.0
    %5735 = vmatpush.msra.mxu0 0.0
    %5736 = vmatpush.msra.mxu0 0.0
    %5737 = vmatpush.msra.mxu0 0.0
    %5738 = vmatpush.msra.mxu0 0.0
    %5739 = vmatpush.msra.mxu0 0.0
    %5740 = vmatpush.msra.mxu0 0.0
    %5741 = vmatpush.msra.mxu0 0.0
    %5742 = vmatpush.msra.mxu0 0.0
    %5743 = vmatpush.msra.mxu0 0.0
    %v5744 = vand.u32 %v5723, 4294901760
    %5745 = vmatpush.msra.mxu0 %v5744
    %v5746 = vand.u32 %v5722, 4294901760
    %5747 = vmatpush.msra.mxu0 %v5746
    %v5748 = vand.u32 %v5721, 4294901760
    %5749 = vmatpush.msra.mxu0 %v5748
    %v5750 = vand.u32 %v5720, 4294901760
    %5751 = vmatpush.msra.mxu0 %v5750
    %v5752 = vand.u32 %v5727, 4294901760
    %v5753 = vsub.f32 %v5727, %v5752
    %v5754 = vand.u32 %v5753, 4294901760
    %v5755 = vsub.f32 %v5753, %v5754
    %v5756 = vand.u32 %v5755, 4294901760
    %5757 = vmatmul.f32.gmra.mxu0 %v5756
    %v5758 = vpop.f32.mrf.mxu0
    %v5759 = vadd.f32 %v5725, %v5758
    %v5760 = vand.u32 %v5730, 4294901760
    %v5761 = vsub.f32 %v5730, %v5760
    %v5762 = vand.u32 %v5761, 4294901760
    %v5763 = vsub.f32 %v5761, %v5762
    %v5764 = vand.u32 %v5763, 4294901760
    %5765 = vmatmul.f32.gmra.mxu0 %v5764
    %v5766 = vpop.f32.mrf.mxu0
    %v5767 = vadd.f32 %v5725, %v5766
    %5768 = vdwg.mxu0
    %5769 = vmatpush.msra.mxu0 0.0
    %5770 = vmatpush.msra.mxu0 0.0
    %5771 = vmatpush.msra.mxu0 0.0
    %5772 = vmatpush.msra.mxu0 0.0
    %5773 = vmatpush.msra.mxu0 0.0
    %5774 = vmatpush.msra.mxu0 0.0
    %5775 = vmatpush.msra.mxu0 0.0
    %5776 = vmatpush.msra.mxu0 0.0
    %5777 = vmatpush.msra.mxu0 0.0
    %5778 = vmatpush.msra.mxu0 0.0
    %5779 = vmatpush.msra.mxu0 0.0
    %5780 = vmatpush.msra.mxu0 0.0
    %v5781 = vand.u32 %v5723, 4294901760
    %v5782 = vsub.f32 %v5723, %v5781
    %v5783 = vand.u32 %v5782, 4294901760
    %v5784 = vsub.f32 %v5782, %v5783
    %v5785 = vand.u32 %v5784, 4294901760
    %5786 = vmatpush.msra.mxu0 %v5785
    %v5787 = vand.u32 %v5722, 4294901760
    %v5788 = vsub.f32 %v5722, %v5787
    %v5789 = vand.u32 %v5788, 4294901760
    %v5790 = vsub.f32 %v5788, %v5789
    %v5791 = vand.u32 %v5790, 4294901760
    %5792 = vmatpush.msra.mxu0 %v5791
    %v5793 = vand.u32 %v5721, 4294901760
    %v5794 = vsub.f32 %v5721, %v5793
    %v5795 = vand.u32 %v5794, 4294901760
    %v5796 = vsub.f32 %v5794, %v5795
    %v5797 = vand.u32 %v5796, 4294901760
    %5798 = vmatpush.msra.mxu0 %v5797
    %v5799 = vand.u32 %v5720, 4294901760
    %v5800 = vsub.f32 %v5720, %v5799
    %v5801 = vand.u32 %v5800, 4294901760
    %v5802 = vsub.f32 %v5800, %v5801
    %v5803 = vand.u32 %v5802, 4294901760
    %5804 = vmatpush.msra.mxu0 %v5803
    %v5805 = vand.u32 %v5727, 4294901760
    %5806 = vmatmul.f32.gmra.mxu0 %v5805
    %v5807 = vpop.f32.mrf.mxu0
    %v5808 = vadd.f32 %v5759, %v5807
    %v5809 = vand.u32 %v5730, 4294901760
    %5810 = vmatmul.f32.gmra.mxu0 %v5809
    %v5811 = vpop.f32.mrf.mxu0
    %v5812 = vadd.f32 %v5767, %v5811
    %5813 = vdwg.mxu0
    %5814 = vmatpush.msra.mxu0 0.0
    %5815 = vmatpush.msra.mxu0 0.0
    %5816 = vmatpush.msra.mxu0 0.0
    %5817 = vmatpush.msra.mxu0 0.0
    %5818 = vmatpush.msra.mxu0 0.0
    %5819 = vmatpush.msra.mxu0 0.0
    %5820 = vmatpush.msra.mxu0 0.0
    %5821 = vmatpush.msra.mxu0 0.0
    %5822 = vmatpush.msra.mxu0 0.0
    %5823 = vmatpush.msra.mxu0 0.0
    %5824 = vmatpush.msra.mxu0 0.0
    %5825 = vmatpush.msra.mxu0 0.0
    %v5826 = vand.u32 %v5723, 4294901760
    %v5827 = vsub.f32 %v5723, %v5826
    %5828 = vmatpush.msra.mxu0 %v5827
    %v5829 = vand.u32 %v5722, 4294901760
    %v5830 = vsub.f32 %v5722, %v5829
    %5831 = vmatpush.msra.mxu0 %v5830
    %v5832 = vand.u32 %v5721, 4294901760
    %v5833 = vsub.f32 %v5721, %v5832
    %5834 = vmatpush.msra.mxu0 %v5833
    %v5835 = vand.u32 %v5720, 4294901760
    %v5836 = vsub.f32 %v5720, %v5835
    %5837 = vmatpush.msra.mxu0 %v5836
    %v5838 = vand.u32 %v5727, 4294901760
    %v5839 = vsub.f32 %v5727, %v5838
    %5840 = vmatmul.f32.gmra.mxu0 %v5839
    %v5841 = vpop.f32.mrf.mxu0
    %v5842 = vadd.f32 %v5808, %v5841
    %v5843 = vand.u32 %v5730, 4294901760
    %v5844 = vsub.f32 %v5730, %v5843
    %5845 = vmatmul.f32.gmra.mxu0 %v5844
    %v5846 = vpop.f32.mrf.mxu0
    %v5847 = vadd.f32 %v5812, %v5846
    %5848 = vdwg.mxu0
    %5849 = vmatpush.msra.mxu0 0.0
    %5850 = vmatpush.msra.mxu0 0.0
    %5851 = vmatpush.msra.mxu0 0.0
    %5852 = vmatpush.msra.mxu0 0.0
    %5853 = vmatpush.msra.mxu0 0.0
    %5854 = vmatpush.msra.mxu0 0.0
    %5855 = vmatpush.msra.mxu0 0.0
    %5856 = vmatpush.msra.mxu0 0.0
    %5857 = vmatpush.msra.mxu0 0.0
    %5858 = vmatpush.msra.mxu0 0.0
    %5859 = vmatpush.msra.mxu0 0.0
    %5860 = vmatpush.msra.mxu0 0.0
    %v5861 = vand.u32 %v5723, 4294901760
    %5862 = vmatpush.msra.mxu0 %v5861
    %v5863 = vand.u32 %v5722, 4294901760
    %5864 = vmatpush.msra.mxu0 %v5863
    %v5865 = vand.u32 %v5721, 4294901760
    %5866 = vmatpush.msra.mxu0 %v5865
    %v5867 = vand.u32 %v5720, 4294901760
    %5868 = vmatpush.msra.mxu0 %v5867
    %v5869 = vand.u32 %v5727, 4294901760
    %v5870 = vsub.f32 %v5727, %v5869
    %v5871 = vand.u32 %v5870, 4294901760
    %5872 = vmatmul.f32.gmra.mxu0 %v5871
    %v5873 = vpop.f32.mrf.mxu0
    %v5874 = vadd.f32 %v5842, %v5873
    %v5875 = vand.u32 %v5730, 4294901760
    %v5876 = vsub.f32 %v5730, %v5875
    %v5877 = vand.u32 %v5876, 4294901760
    %5878 = vmatmul.f32.gmra.mxu0 %v5877
    %v5879 = vpop.f32.mrf.mxu0
    %v5880 = vadd.f32 %v5847, %v5879
    %5881 = vdwg.mxu0
    %5882 = vmatpush.msra.mxu0 0.0
    %5883 = vmatpush.msra.mxu0 0.0
    %5884 = vmatpush.msra.mxu0 0.0
    %5885 = vmatpush.msra.mxu0 0.0
    %5886 = vmatpush.msra.mxu0 0.0
    %5887 = vmatpush.msra.mxu0 0.0
    %5888 = vmatpush.msra.mxu0 0.0
    %5889 = vmatpush.msra.mxu0 0.0
    %5890 = vmatpush.msra.mxu0 0.0
    %5891 = vmatpush.msra.mxu0 0.0
    %5892 = vmatpush.msra.mxu0 0.0
    %5893 = vmatpush.msra.mxu0 0.0
    %v5894 = vand.u32 %v5723, 4294901760
    %v5895 = vsub.f32 %v5723, %v5894
    %v5896 = vand.u32 %v5895, 4294901760
    %5897 = vmatpush.msra.mxu0 %v5896
    %v5898 = vand.u32 %v5722, 4294901760
    %v5899 = vsub.f32 %v5722, %v5898
    %v5900 = vand.u32 %v5899, 4294901760
    %5901 = vmatpush.msra.mxu0 %v5900
    %v5902 = vand.u32 %v5721, 4294901760
    %v5903 = vsub.f32 %v5721, %v5902
    %v5904 = vand.u32 %v5903, 4294901760
    %5905 = vmatpush.msra.mxu0 %v5904
    %v5906 = vand.u32 %v5720, 4294901760
    %v5907 = vsub.f32 %v5720, %v5906
    %v5908 = vand.u32 %v5907, 4294901760
    %5909 = vmatpush.msra.mxu0 %v5908
    %v5910 = vand.u32 %v5727, 4294901760
    %5911 = vmatmul.f32.gmra.mxu0 %v5910
    %v5912 = vpop.f32.mrf.mxu0
    %v5913 = vadd.f32 %v5874, %v5912
    %v5914 = vand.u32 %v5730, 4294901760
    %5915 = vmatmul.f32.gmra.mxu0 %v5914
    %v5916 = vpop.f32.mrf.mxu0
    %v5917 = vadd.f32 %v5880, %v5916
    %5918 = vdwg.mxu0
    %5919 = vmatpush.msra.mxu0 0.0
    %5920 = vmatpush.msra.mxu0 0.0
    %5921 = vmatpush.msra.mxu0 0.0
    %5922 = vmatpush.msra.mxu0 0.0
    %5923 = vmatpush.msra.mxu0 0.0
    %5924 = vmatpush.msra.mxu0 0.0
    %5925 = vmatpush.msra.mxu0 0.0
    %5926 = vmatpush.msra.mxu0 0.0
    %5927 = vmatpush.msra.mxu0 0.0
    %5928 = vmatpush.msra.mxu0 0.0
    %5929 = vmatpush.msra.mxu0 0.0
    %5930 = vmatpush.msra.mxu0 0.0
    %v5931 = vand.u32 %v5723, 4294901760
    %5932 = vmatpush.msra.mxu0 %v5931
    %v5933 = vand.u32 %v5722, 4294901760
    %5934 = vmatpush.msra.mxu0 %v5933
    %v5935 = vand.u32 %v5721, 4294901760
    %5936 = vmatpush.msra.mxu0 %v5935
    %v5937 = vand.u32 %v5720, 4294901760
    %5938 = vmatpush.msra.mxu0 %v5937
    %v5939 = vand.u32 %v5727, 4294901760
    %5940 = vmatmul.f32.gmra.mxu0 %v5939
    %v5941 = vpop.f32.mrf.mxu0
    %v5942 = vadd.f32 %v5913, %v5941
    %v5943 = vand.u32 %v5730, 4294901760
    %5944 = vmatmul.f32.gmra.mxu0 %v5943
    %v5945 = vpop.f32.mrf.mxu0
    %v5946 = vadd.f32 %v5917, %v5945
    %5947 = vdwg.mxu0
    %v5948 = vmin.f32 %v5942, 20.0
    %v5949 = vmin.f32 %v5946, 20.0
    %v5950 = vmul.f32 %v5948, 1.442695
    %v5951 = vpow.pop %v5950
    %v5952 = vmul.f32 %v5949, 1.442695
    %v5953 = vpow.pop %v5952
    %v5954 = vadd.f32 %v5951, 2.0
    %v5955 = vadd.f32 %v5953, 2.0
    %v5956 = vmul.f32 %v5951, %v5954
    %v5957 = vmul.f32 %v5953, %v5955
    %vm5958 = vcmp.gt.f32.partialorder %v5942, 20.0
    %vm5959 = vcmp.gt.f32.partialorder %v5946, 20.0
    %v5960 = vadd.f32 %v5956, 2.0
    %v5961 = vadd.f32 %v5957, 2.0
    %v5962 = vrcp.pop %v5960
    %v5963 = vmul.f32 %v5960, %v5962
    %v5964 = vsub.f32 1.0, %v5963
    %v5965 = vmul.f32 %v5962, %v5964
    %v5966 = vadd.f32 %v5962, %v5965
    %vm5967 = vweird.f32 %v5960
    %vm5968 = vweird.f32 %v5962
    %vm5969 = vmor %vm5967, %vm5968
    %v5970 = vsel %vm5969, %v5962, %v5966
    %v5971 = vand.u32 2147483647, %v5960
    %vm5972 = vcmp.eq.f32.partialorder %v5971, 8.507059e+37
    %v5973 = vand.u32 %v5960, 2147483648
    %v5974 = vor.u32 1.1754944e-38, %v5973
    %v5975 = vsel %vm5972, %v5974, %v5970
    %v5976 = vmul.f32 %v5956, %v5975
    %v5977 = vrcp.pop %v5961
    %v5978 = vmul.f32 %v5961, %v5977
    %v5979 = vsub.f32 1.0, %v5978
    %v5980 = vmul.f32 %v5977, %v5979
    %v5981 = vadd.f32 %v5977, %v5980
    %vm5982 = vweird.f32 %v5961
    %vm5983 = vweird.f32 %v5977
    %vm5984 = vmor %vm5982, %vm5983
    %v5985 = vsel %vm5984, %v5977, %v5981
    %v5986 = vand.u32 2147483647, %v5961
    %vm5987 = vcmp.eq.f32.partialorder %v5986, 8.507059e+37
    %v5988 = vand.u32 %v5961, 2147483648
    %v5989 = vor.u32 1.1754944e-38, %v5988
    %v5990 = vsel %vm5987, %v5989, %v5985
    %v5991 = vmul.f32 %v5957, %v5990
    %v5992 = vmul.f32 %v5942, %v5976
    %v5993 = vmul.f32 %v5946, %v5991
    %v5994 = vsel %vm5958, %v5942, %v5992
    %v5995 = vsel %vm5959, %v5946, %v5993
    %v5998 = vrot.slane %v5994, 7
    %v5999 = vrot.slane %v5995, 7
    %v6000 = vsel %vm74, %v5998, %v5999
    %v6003 = vsel %vm74, %v5994, %v5998
    %v6004 = vrot.slane %v5994, 1
    %v6005 = vrot.slane %v5995, 1
    %v6006 = vsel %vm1185, %v6004, %v6005
    %v6009 = vsel %vm1185, %v6005, %v5995
    %v6010 = vsel %vm112, 0.0, %v6003
    %v6011 = vsel %vm113, 0.0, %v6000
    %v6012 = vsel %vm1198, 0.0, %v6006
    %v6013 = vsel %vm1199, 0.0, %v6009
    %6014 = vrot.lane.b32.xlu0 %v5994, 64
    %v6015 = vpop.permute.xlu0 %6014
    %6016 = vrot.lane.b32.xlu0 %v5995, 64
    %v6017 = vpop.permute.xlu0 %6016
    %v6020 = vsel %vm124, %v6010, %v6015
    %v6021 = vsel %vm124, %v6011, %v6017
    %v6022 = vld [vmem:[#allocation5 + $0x5c0] sm:$0xff]
    %v6023 = vld [vmem:[#allocation5 + $0x5c8] sm:$0xff]
    %v6024 = vld [vmem:[#allocation5 + $0x5d0] sm:$0xff]
    %v6025 = vld [vmem:[#allocation5 + $0x5d8] sm:$0xff]
    %v6026 = vld [vmem:[#allocation5 + $0x5e0] sm:$0xff]
    %v6027 = vld [vmem:[#allocation5 + $0x5e8] sm:$0xff]
    %v6028 = vld [vmem:[#allocation5 + $0x5f0] sm:$0xff]
    %v6029 = vld [vmem:[#allocation5 + $0x5f8] sm:$0xff]
    %v6030 = vld [vmem:[#allocation5 + $0x600] sm:$0xff]
    %v6031 = vld [vmem:[#allocation5 + $0x608] sm:$0xff]
    %v6032 = vld [vmem:[#allocation5 + $0x610] sm:$0xff]
    %v6033 = vld [vmem:[#allocation5 + $0x618] sm:$0xff]
    %v6034 = vld [vmem:[#allocation5 + $0x620] sm:$0xff]
    %v6035 = vld [vmem:[#allocation5 + $0x628] sm:$0xff]
    %v6036 = vld [vmem:[#allocation5 + $0x630] sm:$0xff]
    %v6037 = vld [vmem:[#allocation5 + $0x638] sm:$0xff]
    %v6038 = vld [vmem:[#allocation5 + $0x640] sm:$0xff]
    %v6039 = vld [vmem:[#allocation5 + $0x648] sm:$0xff]
    %v6040 = vld [vmem:[#allocation5 + $0x650] sm:$0xff]
    %v6041 = vld [vmem:[#allocation5 + $0x658] sm:$0xff]
    %v6042 = vld [vmem:[#allocation5 + $0x660] sm:$0xff]
    %v6043 = vld [vmem:[#allocation5 + $0x668] sm:$0xff]
    %v6044 = vld [vmem:[#allocation5 + $0x670] sm:$0xff]
    %v6045 = vld [vmem:[#allocation5 + $0x678] sm:$0xff]
    %v6046 = vld [vmem:[#allocation7 + $0xa] sm:$0x1]
    %v6047 = vperm.slane %v6046, 0
    %v6049 = vsel %vm124, %v6012, 0
    %v6052 = vsel %vm124, %v6013, 0
    %v6054 = vand.u32 %v6037, 4294901760
    %6055 = vmatpush.msra.mxu0 %v6054
    %v6056 = vand.u32 %v6036, 4294901760
    %6057 = vmatpush.msra.mxu0 %v6056
    %v6058 = vand.u32 %v6035, 4294901760
    %6059 = vmatpush.msra.mxu0 %v6058
    %v6060 = vand.u32 %v6034, 4294901760
    %6061 = vmatpush.msra.mxu0 %v6060
    %v6062 = vand.u32 %v6033, 4294901760
    %6063 = vmatpush.msra.mxu0 %v6062
    %v6064 = vand.u32 %v6032, 4294901760
    %6065 = vmatpush.msra.mxu0 %v6064
    %v6066 = vand.u32 %v6031, 4294901760
    %6067 = vmatpush.msra.mxu0 %v6066
    %v6068 = vand.u32 %v6030, 4294901760
    %6069 = vmatpush.msra.mxu0 %v6068
    %v6070 = vand.u32 %v6029, 4294901760
    %6071 = vmatpush.msra.mxu0 %v6070
    %v6072 = vand.u32 %v6028, 4294901760
    %6073 = vmatpush.msra.mxu0 %v6072
    %v6074 = vand.u32 %v6027, 4294901760
    %6075 = vmatpush.msra.mxu0 %v6074
    %v6076 = vand.u32 %v6026, 4294901760
    %6077 = vmatpush.msra.mxu0 %v6076
    %v6078 = vand.u32 %v6025, 4294901760
    %6079 = vmatpush.msra.mxu0 %v6078
    %v6080 = vand.u32 %v6024, 4294901760
    %6081 = vmatpush.msra.mxu0 %v6080
    %v6082 = vand.u32 %v6023, 4294901760
    %6083 = vmatpush.msra.mxu0 %v6082
    %v6084 = vand.u32 %v6022, 4294901760
    %6085 = vmatpush.msra.mxu0 %v6084
    %v6086 = vand.u32 %v6020, 4294901760
    %v6087 = vsub.f32 %v6020, %v6086
    %v6088 = vand.u32 %v6087, 4294901760
    %v6089 = vsub.f32 %v6087, %v6088
    %v6090 = vand.u32 %v6089, 4294901760
    %6091 = vmatmul.f32.gmra.mxu0 %v6090
    %v6092 = vpop.f32.mrf.mxu0
    %v6093 = vadd.f32 %v6047, %v6092
    %v6094 = vand.u32 %v6021, 4294901760
    %v6095 = vsub.f32 %v6021, %v6094
    %v6096 = vand.u32 %v6095, 4294901760
    %v6097 = vsub.f32 %v6095, %v6096
    %v6098 = vand.u32 %v6097, 4294901760
    %6099 = vmatmul.f32.gmra.mxu0 %v6098
    %v6100 = vpop.f32.mrf.mxu0
    %v6101 = vadd.f32 %v6047, %v6100
    %6102 = vdwg.mxu0
    %v6103 = vand.u32 %v6037, 4294901760
    %v6104 = vsub.f32 %v6037, %v6103
    %v6105 = vand.u32 %v6104, 4294901760
    %v6106 = vsub.f32 %v6104, %v6105
    %v6107 = vand.u32 %v6106, 4294901760
    %6108 = vmatpush.msra.mxu0 %v6107
    %v6109 = vand.u32 %v6036, 4294901760
    %v6110 = vsub.f32 %v6036, %v6109
    %v6111 = vand.u32 %v6110, 4294901760
    %v6112 = vsub.f32 %v6110, %v6111
    %v6113 = vand.u32 %v6112, 4294901760
    %6114 = vmatpush.msra.mxu0 %v6113
    %v6115 = vand.u32 %v6035, 4294901760
    %v6116 = vsub.f32 %v6035, %v6115
    %v6117 = vand.u32 %v6116, 4294901760
    %v6118 = vsub.f32 %v6116, %v6117
    %v6119 = vand.u32 %v6118, 4294901760
    %6120 = vmatpush.msra.mxu0 %v6119
    %v6121 = vand.u32 %v6034, 4294901760
    %v6122 = vsub.f32 %v6034, %v6121
    %v6123 = vand.u32 %v6122, 4294901760
    %v6124 = vsub.f32 %v6122, %v6123
    %v6125 = vand.u32 %v6124, 4294901760
    %6126 = vmatpush.msra.mxu0 %v6125
    %v6127 = vand.u32 %v6033, 4294901760
    %v6128 = vsub.f32 %v6033, %v6127
    %v6129 = vand.u32 %v6128, 4294901760
    %v6130 = vsub.f32 %v6128, %v6129
    %v6131 = vand.u32 %v6130, 4294901760
    %6132 = vmatpush.msra.mxu0 %v6131
    %v6133 = vand.u32 %v6032, 4294901760
    %v6134 = vsub.f32 %v6032, %v6133
    %v6135 = vand.u32 %v6134, 4294901760
    %v6136 = vsub.f32 %v6134, %v6135
    %v6137 = vand.u32 %v6136, 4294901760
    %6138 = vmatpush.msra.mxu0 %v6137
    %v6139 = vand.u32 %v6031, 4294901760
    %v6140 = vsub.f32 %v6031, %v6139
    %v6141 = vand.u32 %v6140, 4294901760
    %v6142 = vsub.f32 %v6140, %v6141
    %v6143 = vand.u32 %v6142, 4294901760
    %6144 = vmatpush.msra.mxu0 %v6143
    %v6145 = vand.u32 %v6030, 4294901760
    %v6146 = vsub.f32 %v6030, %v6145
    %v6147 = vand.u32 %v6146, 4294901760
    %v6148 = vsub.f32 %v6146, %v6147
    %v6149 = vand.u32 %v6148, 4294901760
    %6150 = vmatpush.msra.mxu0 %v6149
    %v6151 = vand.u32 %v6029, 4294901760
    %v6152 = vsub.f32 %v6029, %v6151
    %v6153 = vand.u32 %v6152, 4294901760
    %v6154 = vsub.f32 %v6152, %v6153
    %v6155 = vand.u32 %v6154, 4294901760
    %6156 = vmatpush.msra.mxu0 %v6155
    %v6157 = vand.u32 %v6028, 4294901760
    %v6158 = vsub.f32 %v6028, %v6157
    %v6159 = vand.u32 %v6158, 4294901760
    %v6160 = vsub.f32 %v6158, %v6159
    %v6161 = vand.u32 %v6160, 4294901760
    %6162 = vmatpush.msra.mxu0 %v6161
    %v6163 = vand.u32 %v6027, 4294901760
    %v6164 = vsub.f32 %v6027, %v6163
    %v6165 = vand.u32 %v6164, 4294901760
    %v6166 = vsub.f32 %v6164, %v6165
    %v6167 = vand.u32 %v6166, 4294901760
    %6168 = vmatpush.msra.mxu0 %v6167
    %v6169 = vand.u32 %v6026, 4294901760
    %v6170 = vsub.f32 %v6026, %v6169
    %v6171 = vand.u32 %v6170, 4294901760
    %v6172 = vsub.f32 %v6170, %v6171
    %v6173 = vand.u32 %v6172, 4294901760
    %6174 = vmatpush.msra.mxu0 %v6173
    %v6175 = vand.u32 %v6025, 4294901760
    %v6176 = vsub.f32 %v6025, %v6175
    %v6177 = vand.u32 %v6176, 4294901760
    %v6178 = vsub.f32 %v6176, %v6177
    %v6179 = vand.u32 %v6178, 4294901760
    %6180 = vmatpush.msra.mxu0 %v6179
    %v6181 = vand.u32 %v6024, 4294901760
    %v6182 = vsub.f32 %v6024, %v6181
    %v6183 = vand.u32 %v6182, 4294901760
    %v6184 = vsub.f32 %v6182, %v6183
    %v6185 = vand.u32 %v6184, 4294901760
    %6186 = vmatpush.msra.mxu0 %v6185
    %v6187 = vand.u32 %v6023, 4294901760
    %v6188 = vsub.f32 %v6023, %v6187
    %v6189 = vand.u32 %v6188, 4294901760
    %v6190 = vsub.f32 %v6188, %v6189
    %v6191 = vand.u32 %v6190, 4294901760
    %6192 = vmatpush.msra.mxu0 %v6191
    %v6193 = vand.u32 %v6022, 4294901760
    %v6194 = vsub.f32 %v6022, %v6193
    %v6195 = vand.u32 %v6194, 4294901760
    %v6196 = vsub.f32 %v6194, %v6195
    %v6197 = vand.u32 %v6196, 4294901760
    %6198 = vmatpush.msra.mxu0 %v6197
    %v6199 = vand.u32 %v6020, 4294901760
    %6200 = vmatmul.f32.gmra.mxu0 %v6199
    %v6201 = vpop.f32.mrf.mxu0
    %v6202 = vadd.f32 %v6093, %v6201
    %v6203 = vand.u32 %v6021, 4294901760
    %6204 = vmatmul.f32.gmra.mxu0 %v6203
    %v6205 = vpop.f32.mrf.mxu0
    %v6206 = vadd.f32 %v6101, %v6205
    %6207 = vdwg.mxu0
    %v6208 = vand.u32 %v6037, 4294901760
    %v6209 = vsub.f32 %v6037, %v6208
    %6210 = vmatpush.msra.mxu0 %v6209
    %v6211 = vand.u32 %v6036, 4294901760
    %v6212 = vsub.f32 %v6036, %v6211
    %6213 = vmatpush.msra.mxu0 %v6212
    %v6214 = vand.u32 %v6035, 4294901760
    %v6215 = vsub.f32 %v6035, %v6214
    %6216 = vmatpush.msra.mxu0 %v6215
    %v6217 = vand.u32 %v6034, 4294901760
    %v6218 = vsub.f32 %v6034, %v6217
    %6219 = vmatpush.msra.mxu0 %v6218
    %v6220 = vand.u32 %v6033, 4294901760
    %v6221 = vsub.f32 %v6033, %v6220
    %6222 = vmatpush.msra.mxu0 %v6221
    %v6223 = vand.u32 %v6032, 4294901760
    %v6224 = vsub.f32 %v6032, %v6223
    %6225 = vmatpush.msra.mxu0 %v6224
    %v6226 = vand.u32 %v6031, 4294901760
    %v6227 = vsub.f32 %v6031, %v6226
    %6228 = vmatpush.msra.mxu0 %v6227
    %v6229 = vand.u32 %v6030, 4294901760
    %v6230 = vsub.f32 %v6030, %v6229
    %6231 = vmatpush.msra.mxu0 %v6230
    %v6232 = vand.u32 %v6029, 4294901760
    %v6233 = vsub.f32 %v6029, %v6232
    %6234 = vmatpush.msra.mxu0 %v6233
    %v6235 = vand.u32 %v6028, 4294901760
    %v6236 = vsub.f32 %v6028, %v6235
    %6237 = vmatpush.msra.mxu0 %v6236
    %v6238 = vand.u32 %v6027, 4294901760
    %v6239 = vsub.f32 %v6027, %v6238
    %6240 = vmatpush.msra.mxu0 %v6239
    %v6241 = vand.u32 %v6026, 4294901760
    %v6242 = vsub.f32 %v6026, %v6241
    %6243 = vmatpush.msra.mxu0 %v6242
    %v6244 = vand.u32 %v6025, 4294901760
    %v6245 = vsub.f32 %v6025, %v6244
    %6246 = vmatpush.msra.mxu0 %v6245
    %v6247 = vand.u32 %v6024, 4294901760
    %v6248 = vsub.f32 %v6024, %v6247
    %6249 = vmatpush.msra.mxu0 %v6248
    %v6250 = vand.u32 %v6023, 4294901760
    %v6251 = vsub.f32 %v6023, %v6250
    %6252 = vmatpush.msra.mxu0 %v6251
    %v6253 = vand.u32 %v6022, 4294901760
    %v6254 = vsub.f32 %v6022, %v6253
    %6255 = vmatpush.msra.mxu0 %v6254
    %v6256 = vand.u32 %v6020, 4294901760
    %v6257 = vsub.f32 %v6020, %v6256
    %6258 = vmatmul.f32.gmra.mxu0 %v6257
    %v6259 = vpop.f32.mrf.mxu0
    %v6260 = vadd.f32 %v6202, %v6259
    %v6261 = vand.u32 %v6021, 4294901760
    %v6262 = vsub.f32 %v6021, %v6261
    %6263 = vmatmul.f32.gmra.mxu0 %v6262
    %v6264 = vpop.f32.mrf.mxu0
    %v6265 = vadd.f32 %v6206, %v6264
    %6266 = vdwg.mxu0
    %v6267 = vand.u32 %v6037, 4294901760
    %6268 = vmatpush.msra.mxu0 %v6267
    %v6269 = vand.u32 %v6036, 4294901760
    %6270 = vmatpush.msra.mxu0 %v6269
    %v6271 = vand.u32 %v6035, 4294901760
    %6272 = vmatpush.msra.mxu0 %v6271
    %v6273 = vand.u32 %v6034, 4294901760
    %6274 = vmatpush.msra.mxu0 %v6273
    %v6275 = vand.u32 %v6033, 4294901760
    %6276 = vmatpush.msra.mxu0 %v6275
    %v6277 = vand.u32 %v6032, 4294901760
    %6278 = vmatpush.msra.mxu0 %v6277
    %v6279 = vand.u32 %v6031, 4294901760
    %6280 = vmatpush.msra.mxu0 %v6279
    %v6281 = vand.u32 %v6030, 4294901760
    %6282 = vmatpush.msra.mxu0 %v6281
    %v6283 = vand.u32 %v6029, 4294901760
    %6284 = vmatpush.msra.mxu0 %v6283
    %v6285 = vand.u32 %v6028, 4294901760
    %6286 = vmatpush.msra.mxu0 %v6285
    %v6287 = vand.u32 %v6027, 4294901760
    %6288 = vmatpush.msra.mxu0 %v6287
    %v6289 = vand.u32 %v6026, 4294901760
    %6290 = vmatpush.msra.mxu0 %v6289
    %v6291 = vand.u32 %v6025, 4294901760
    %6292 = vmatpush.msra.mxu0 %v6291
    %v6293 = vand.u32 %v6024, 4294901760
    %6294 = vmatpush.msra.mxu0 %v6293
    %v6295 = vand.u32 %v6023, 4294901760
    %6296 = vmatpush.msra.mxu0 %v6295
    %v6297 = vand.u32 %v6022, 4294901760
    %6298 = vmatpush.msra.mxu0 %v6297
    %v6299 = vand.u32 %v6020, 4294901760
    %v6300 = vsub.f32 %v6020, %v6299
    %v6301 = vand.u32 %v6300, 4294901760
    %6302 = vmatmul.f32.gmra.mxu0 %v6301
    %v6303 = vpop.f32.mrf.mxu0
    %v6304 = vadd.f32 %v6260, %v6303
    %v6305 = vand.u32 %v6021, 4294901760
    %v6306 = vsub.f32 %v6021, %v6305
    %v6307 = vand.u32 %v6306, 4294901760
    %6308 = vmatmul.f32.gmra.mxu0 %v6307
    %v6309 = vpop.f32.mrf.mxu0
    %v6310 = vadd.f32 %v6265, %v6309
    %6311 = vdwg.mxu0
    %v6312 = vand.u32 %v6037, 4294901760
    %v6313 = vsub.f32 %v6037, %v6312
    %v6314 = vand.u32 %v6313, 4294901760
    %6315 = vmatpush.msra.mxu0 %v6314
    %v6316 = vand.u32 %v6036, 4294901760
    %v6317 = vsub.f32 %v6036, %v6316
    %v6318 = vand.u32 %v6317, 4294901760
    %6319 = vmatpush.msra.mxu0 %v6318
    %v6320 = vand.u32 %v6035, 4294901760
    %v6321 = vsub.f32 %v6035, %v6320
    %v6322 = vand.u32 %v6321, 4294901760
    %6323 = vmatpush.msra.mxu0 %v6322
    %v6324 = vand.u32 %v6034, 4294901760
    %v6325 = vsub.f32 %v6034, %v6324
    %v6326 = vand.u32 %v6325, 4294901760
    %6327 = vmatpush.msra.mxu0 %v6326
    %v6328 = vand.u32 %v6033, 4294901760
    %v6329 = vsub.f32 %v6033, %v6328
    %v6330 = vand.u32 %v6329, 4294901760
    %6331 = vmatpush.msra.mxu0 %v6330
    %v6332 = vand.u32 %v6032, 4294901760
    %v6333 = vsub.f32 %v6032, %v6332
    %v6334 = vand.u32 %v6333, 4294901760
    %6335 = vmatpush.msra.mxu0 %v6334
    %v6336 = vand.u32 %v6031, 4294901760
    %v6337 = vsub.f32 %v6031, %v6336
    %v6338 = vand.u32 %v6337, 4294901760
    %6339 = vmatpush.msra.mxu0 %v6338
    %v6340 = vand.u32 %v6030, 4294901760
    %v6341 = vsub.f32 %v6030, %v6340
    %v6342 = vand.u32 %v6341, 4294901760
    %6343 = vmatpush.msra.mxu0 %v6342
    %v6344 = vand.u32 %v6029, 4294901760
    %v6345 = vsub.f32 %v6029, %v6344
    %v6346 = vand.u32 %v6345, 4294901760
    %6347 = vmatpush.msra.mxu0 %v6346
    %v6348 = vand.u32 %v6028, 4294901760
    %v6349 = vsub.f32 %v6028, %v6348
    %v6350 = vand.u32 %v6349, 4294901760
    %6351 = vmatpush.msra.mxu0 %v6350
    %v6352 = vand.u32 %v6027, 4294901760
    %v6353 = vsub.f32 %v6027, %v6352
    %v6354 = vand.u32 %v6353, 4294901760
    %6355 = vmatpush.msra.mxu0 %v6354
    %v6356 = vand.u32 %v6026, 4294901760
    %v6357 = vsub.f32 %v6026, %v6356
    %v6358 = vand.u32 %v6357, 4294901760
    %6359 = vmatpush.msra.mxu0 %v6358
    %v6360 = vand.u32 %v6025, 4294901760
    %v6361 = vsub.f32 %v6025, %v6360
    %v6362 = vand.u32 %v6361, 4294901760
    %6363 = vmatpush.msra.mxu0 %v6362
    %v6364 = vand.u32 %v6024, 4294901760
    %v6365 = vsub.f32 %v6024, %v6364
    %v6366 = vand.u32 %v6365, 4294901760
    %6367 = vmatpush.msra.mxu0 %v6366
    %v6368 = vand.u32 %v6023, 4294901760
    %v6369 = vsub.f32 %v6023, %v6368
    %v6370 = vand.u32 %v6369, 4294901760
    %6371 = vmatpush.msra.mxu0 %v6370
    %v6372 = vand.u32 %v6022, 4294901760
    %v6373 = vsub.f32 %v6022, %v6372
    %v6374 = vand.u32 %v6373, 4294901760
    %6375 = vmatpush.msra.mxu0 %v6374
    %v6376 = vand.u32 %v6020, 4294901760
    %6377 = vmatmul.f32.gmra.mxu0 %v6376
    %v6378 = vpop.f32.mrf.mxu0
    %v6379 = vadd.f32 %v6304, %v6378
    %v6380 = vand.u32 %v6021, 4294901760
    %6381 = vmatmul.f32.gmra.mxu0 %v6380
    %v6382 = vpop.f32.mrf.mxu0
    %v6383 = vadd.f32 %v6310, %v6382
    %6384 = vdwg.mxu0
    %v6385 = vand.u32 %v6037, 4294901760
    %6386 = vmatpush.msra.mxu0 %v6385
    %v6387 = vand.u32 %v6036, 4294901760
    %6388 = vmatpush.msra.mxu0 %v6387
    %v6389 = vand.u32 %v6035, 4294901760
    %6390 = vmatpush.msra.mxu0 %v6389
    %v6391 = vand.u32 %v6034, 4294901760
    %6392 = vmatpush.msra.mxu0 %v6391
    %v6393 = vand.u32 %v6033, 4294901760
    %6394 = vmatpush.msra.mxu0 %v6393
    %v6395 = vand.u32 %v6032, 4294901760
    %6396 = vmatpush.msra.mxu0 %v6395
    %v6397 = vand.u32 %v6031, 4294901760
    %6398 = vmatpush.msra.mxu0 %v6397
    %v6399 = vand.u32 %v6030, 4294901760
    %6400 = vmatpush.msra.mxu0 %v6399
    %v6401 = vand.u32 %v6029, 4294901760
    %6402 = vmatpush.msra.mxu0 %v6401
    %v6403 = vand.u32 %v6028, 4294901760
    %6404 = vmatpush.msra.mxu0 %v6403
    %v6405 = vand.u32 %v6027, 4294901760
    %6406 = vmatpush.msra.mxu0 %v6405
    %v6407 = vand.u32 %v6026, 4294901760
    %6408 = vmatpush.msra.mxu0 %v6407
    %v6409 = vand.u32 %v6025, 4294901760
    %6410 = vmatpush.msra.mxu0 %v6409
    %v6411 = vand.u32 %v6024, 4294901760
    %6412 = vmatpush.msra.mxu0 %v6411
    %v6413 = vand.u32 %v6023, 4294901760
    %6414 = vmatpush.msra.mxu0 %v6413
    %v6415 = vand.u32 %v6022, 4294901760
    %6416 = vmatpush.msra.mxu0 %v6415
    %v6417 = vand.u32 %v6020, 4294901760
    %6418 = vmatmul.f32.gmra.mxu0 %v6417
    %v6419 = vpop.f32.mrf.mxu0
    %v6420 = vadd.f32 %v6379, %v6419
    %v6421 = vand.u32 %v6021, 4294901760
    %6422 = vmatmul.f32.gmra.mxu0 %v6421
    %v6423 = vpop.f32.mrf.mxu0
    %v6424 = vadd.f32 %v6383, %v6423
    %6425 = vdwg.mxu0
    %6426 = vmatpush.msra.mxu0 0.0
    %6427 = vmatpush.msra.mxu0 0.0
    %6428 = vmatpush.msra.mxu0 0.0
    %6429 = vmatpush.msra.mxu0 0.0
    %6430 = vmatpush.msra.mxu0 0.0
    %6431 = vmatpush.msra.mxu0 0.0
    %6432 = vmatpush.msra.mxu0 0.0
    %6433 = vmatpush.msra.mxu0 0.0
    %v6434 = vand.u32 %v6045, 4294901760
    %6435 = vmatpush.msra.mxu0 %v6434
    %v6436 = vand.u32 %v6044, 4294901760
    %6437 = vmatpush.msra.mxu0 %v6436
    %v6438 = vand.u32 %v6043, 4294901760
    %6439 = vmatpush.msra.mxu0 %v6438
    %v6440 = vand.u32 %v6042, 4294901760
    %6441 = vmatpush.msra.mxu0 %v6440
    %v6442 = vand.u32 %v6041, 4294901760
    %6443 = vmatpush.msra.mxu0 %v6442
    %v6444 = vand.u32 %v6040, 4294901760
    %6445 = vmatpush.msra.mxu0 %v6444
    %v6446 = vand.u32 %v6039, 4294901760
    %6447 = vmatpush.msra.mxu0 %v6446
    %v6448 = vand.u32 %v6038, 4294901760
    %6449 = vmatpush.msra.mxu0 %v6448
    %v6450 = vand.u32 %v6049, 4294901760
    %v6451 = vsub.f32 %v6049, %v6450
    %v6452 = vand.u32 %v6451, 4294901760
    %v6453 = vsub.f32 %v6451, %v6452
    %v6454 = vand.u32 %v6453, 4294901760
    %6455 = vmatmul.f32.gmra.mxu0 %v6454
    %v6456 = vpop.f32.mrf.mxu0
    %v6457 = vadd.f32 %v6420, %v6456
    %v6458 = vand.u32 %v6052, 4294901760
    %v6459 = vsub.f32 %v6052, %v6458
    %v6460 = vand.u32 %v6459, 4294901760
    %v6461 = vsub.f32 %v6459, %v6460
    %v6462 = vand.u32 %v6461, 4294901760
    %6463 = vmatmul.f32.gmra.mxu0 %v6462
    %v6464 = vpop.f32.mrf.mxu0
    %v6465 = vadd.f32 %v6424, %v6464
    %6466 = vdwg.mxu0
    %6467 = vmatpush.msra.mxu0 0.0
    %6468 = vmatpush.msra.mxu0 0.0
    %6469 = vmatpush.msra.mxu0 0.0
    %6470 = vmatpush.msra.mxu0 0.0
    %6471 = vmatpush.msra.mxu0 0.0
    %6472 = vmatpush.msra.mxu0 0.0
    %6473 = vmatpush.msra.mxu0 0.0
    %6474 = vmatpush.msra.mxu0 0.0
    %v6475 = vand.u32 %v6045, 4294901760
    %v6476 = vsub.f32 %v6045, %v6475
    %v6477 = vand.u32 %v6476, 4294901760
    %v6478 = vsub.f32 %v6476, %v6477
    %v6479 = vand.u32 %v6478, 4294901760
    %6480 = vmatpush.msra.mxu0 %v6479
    %v6481 = vand.u32 %v6044, 4294901760
    %v6482 = vsub.f32 %v6044, %v6481
    %v6483 = vand.u32 %v6482, 4294901760
    %v6484 = vsub.f32 %v6482, %v6483
    %v6485 = vand.u32 %v6484, 4294901760
    %6486 = vmatpush.msra.mxu0 %v6485
    %v6487 = vand.u32 %v6043, 4294901760
    %v6488 = vsub.f32 %v6043, %v6487
    %v6489 = vand.u32 %v6488, 4294901760
    %v6490 = vsub.f32 %v6488, %v6489
    %v6491 = vand.u32 %v6490, 4294901760
    %6492 = vmatpush.msra.mxu0 %v6491
    %v6493 = vand.u32 %v6042, 4294901760
    %v6494 = vsub.f32 %v6042, %v6493
    %v6495 = vand.u32 %v6494, 4294901760
    %v6496 = vsub.f32 %v6494, %v6495
    %v6497 = vand.u32 %v6496, 4294901760
    %6498 = vmatpush.msra.mxu0 %v6497
    %v6499 = vand.u32 %v6041, 4294901760
    %v6500 = vsub.f32 %v6041, %v6499
    %v6501 = vand.u32 %v6500, 4294901760
    %v6502 = vsub.f32 %v6500, %v6501
    %v6503 = vand.u32 %v6502, 4294901760
    %6504 = vmatpush.msra.mxu0 %v6503
    %v6505 = vand.u32 %v6040, 4294901760
    %v6506 = vsub.f32 %v6040, %v6505
    %v6507 = vand.u32 %v6506, 4294901760
    %v6508 = vsub.f32 %v6506, %v6507
    %v6509 = vand.u32 %v6508, 4294901760
    %6510 = vmatpush.msra.mxu0 %v6509
    %v6511 = vand.u32 %v6039, 4294901760
    %v6512 = vsub.f32 %v6039, %v6511
    %v6513 = vand.u32 %v6512, 4294901760
    %v6514 = vsub.f32 %v6512, %v6513
    %v6515 = vand.u32 %v6514, 4294901760
    %6516 = vmatpush.msra.mxu0 %v6515
    %v6517 = vand.u32 %v6038, 4294901760
    %v6518 = vsub.f32 %v6038, %v6517
    %v6519 = vand.u32 %v6518, 4294901760
    %v6520 = vsub.f32 %v6518, %v6519
    %v6521 = vand.u32 %v6520, 4294901760
    %6522 = vmatpush.msra.mxu0 %v6521
    %v6523 = vand.u32 %v6049, 4294901760
    %6524 = vmatmul.f32.gmra.mxu0 %v6523
    %v6525 = vpop.f32.mrf.mxu0
    %v6526 = vadd.f32 %v6457, %v6525
    %v6527 = vand.u32 %v6052, 4294901760
    %6528 = vmatmul.f32.gmra.mxu0 %v6527
    %v6529 = vpop.f32.mrf.mxu0
    %v6530 = vadd.f32 %v6465, %v6529
    %6531 = vdwg.mxu0
    %6532 = vmatpush.msra.mxu0 0.0
    %6533 = vmatpush.msra.mxu0 0.0
    %6534 = vmatpush.msra.mxu0 0.0
    %6535 = vmatpush.msra.mxu0 0.0
    %6536 = vmatpush.msra.mxu0 0.0
    %6537 = vmatpush.msra.mxu0 0.0
    %6538 = vmatpush.msra.mxu0 0.0
    %6539 = vmatpush.msra.mxu0 0.0
    %v6540 = vand.u32 %v6045, 4294901760
    %v6541 = vsub.f32 %v6045, %v6540
    %6542 = vmatpush.msra.mxu0 %v6541
    %v6543 = vand.u32 %v6044, 4294901760
    %v6544 = vsub.f32 %v6044, %v6543
    %6545 = vmatpush.msra.mxu0 %v6544
    %v6546 = vand.u32 %v6043, 4294901760
    %v6547 = vsub.f32 %v6043, %v6546
    %6548 = vmatpush.msra.mxu0 %v6547
    %v6549 = vand.u32 %v6042, 4294901760
    %v6550 = vsub.f32 %v6042, %v6549
    %6551 = vmatpush.msra.mxu0 %v6550
    %v6552 = vand.u32 %v6041, 4294901760
    %v6553 = vsub.f32 %v6041, %v6552
    %6554 = vmatpush.msra.mxu0 %v6553
    %v6555 = vand.u32 %v6040, 4294901760
    %v6556 = vsub.f32 %v6040, %v6555
    %6557 = vmatpush.msra.mxu0 %v6556
    %v6558 = vand.u32 %v6039, 4294901760
    %v6559 = vsub.f32 %v6039, %v6558
    %6560 = vmatpush.msra.mxu0 %v6559
    %v6561 = vand.u32 %v6038, 4294901760
    %v6562 = vsub.f32 %v6038, %v6561
    %6563 = vmatpush.msra.mxu0 %v6562
    %v6564 = vand.u32 %v6049, 4294901760
    %v6565 = vsub.f32 %v6049, %v6564
    %6566 = vmatmul.f32.gmra.mxu0 %v6565
    %v6567 = vpop.f32.mrf.mxu0
    %v6568 = vadd.f32 %v6526, %v6567
    %v6569 = vand.u32 %v6052, 4294901760
    %v6570 = vsub.f32 %v6052, %v6569
    %6571 = vmatmul.f32.gmra.mxu0 %v6570
    %v6572 = vpop.f32.mrf.mxu0
    %v6573 = vadd.f32 %v6530, %v6572
    %6574 = vdwg.mxu0
    %6575 = vmatpush.msra.mxu0 0.0
    %6576 = vmatpush.msra.mxu0 0.0
    %6577 = vmatpush.msra.mxu0 0.0
    %6578 = vmatpush.msra.mxu0 0.0
    %6579 = vmatpush.msra.mxu0 0.0
    %6580 = vmatpush.msra.mxu0 0.0
    %6581 = vmatpush.msra.mxu0 0.0
    %6582 = vmatpush.msra.mxu0 0.0
    %v6583 = vand.u32 %v6045, 4294901760
    %6584 = vmatpush.msra.mxu0 %v6583
    %v6585 = vand.u32 %v6044, 4294901760
    %6586 = vmatpush.msra.mxu0 %v6585
    %v6587 = vand.u32 %v6043, 4294901760
    %6588 = vmatpush.msra.mxu0 %v6587
    %v6589 = vand.u32 %v6042, 4294901760
    %6590 = vmatpush.msra.mxu0 %v6589
    %v6591 = vand.u32 %v6041, 4294901760
    %6592 = vmatpush.msra.mxu0 %v6591
    %v6593 = vand.u32 %v6040, 4294901760
    %6594 = vmatpush.msra.mxu0 %v6593
    %v6595 = vand.u32 %v6039, 4294901760
    %6596 = vmatpush.msra.mxu0 %v6595
    %v6597 = vand.u32 %v6038, 4294901760
    %6598 = vmatpush.msra.mxu0 %v6597
    %v6599 = vand.u32 %v6049, 4294901760
    %v6600 = vsub.f32 %v6049, %v6599
    %v6601 = vand.u32 %v6600, 4294901760
    %6602 = vmatmul.f32.gmra.mxu0 %v6601
    %v6603 = vpop.f32.mrf.mxu0
    %v6604 = vadd.f32 %v6568, %v6603
    %v6605 = vand.u32 %v6052, 4294901760
    %v6606 = vsub.f32 %v6052, %v6605
    %v6607 = vand.u32 %v6606, 4294901760
    %6608 = vmatmul.f32.gmra.mxu0 %v6607
    %v6609 = vpop.f32.mrf.mxu0
    %v6610 = vadd.f32 %v6573, %v6609
    %6611 = vdwg.mxu0
    %6612 = vmatpush.msra.mxu0 0.0
    %6613 = vmatpush.msra.mxu0 0.0
    %6614 = vmatpush.msra.mxu0 0.0
    %6615 = vmatpush.msra.mxu0 0.0
    %6616 = vmatpush.msra.mxu0 0.0
    %6617 = vmatpush.msra.mxu0 0.0
    %6618 = vmatpush.msra.mxu0 0.0
    %6619 = vmatpush.msra.mxu0 0.0
    %v6620 = vand.u32 %v6045, 4294901760
    %v6621 = vsub.f32 %v6045, %v6620
    %v6622 = vand.u32 %v6621, 4294901760
    %6623 = vmatpush.msra.mxu0 %v6622
    %v6624 = vand.u32 %v6044, 4294901760
    %v6625 = vsub.f32 %v6044, %v6624
    %v6626 = vand.u32 %v6625, 4294901760
    %6627 = vmatpush.msra.mxu0 %v6626
    %v6628 = vand.u32 %v6043, 4294901760
    %v6629 = vsub.f32 %v6043, %v6628
    %v6630 = vand.u32 %v6629, 4294901760
    %6631 = vmatpush.msra.mxu0 %v6630
    %v6632 = vand.u32 %v6042, 4294901760
    %v6633 = vsub.f32 %v6042, %v6632
    %v6634 = vand.u32 %v6633, 4294901760
    %6635 = vmatpush.msra.mxu0 %v6634
    %v6636 = vand.u32 %v6041, 4294901760
    %v6637 = vsub.f32 %v6041, %v6636
    %v6638 = vand.u32 %v6637, 4294901760
    %6639 = vmatpush.msra.mxu0 %v6638
    %v6640 = vand.u32 %v6040, 4294901760
    %v6641 = vsub.f32 %v6040, %v6640
    %v6642 = vand.u32 %v6641, 4294901760
    %6643 = vmatpush.msra.mxu0 %v6642
    %v6644 = vand.u32 %v6039, 4294901760
    %v6645 = vsub.f32 %v6039, %v6644
    %v6646 = vand.u32 %v6645, 4294901760
    %6647 = vmatpush.msra.mxu0 %v6646
    %v6648 = vand.u32 %v6038, 4294901760
    %v6649 = vsub.f32 %v6038, %v6648
    %v6650 = vand.u32 %v6649, 4294901760
    %6651 = vmatpush.msra.mxu0 %v6650
    %v6652 = vand.u32 %v6049, 4294901760
    %6653 = vmatmul.f32.gmra.mxu0 %v6652
    %v6654 = vpop.f32.mrf.mxu0
    %v6655 = vadd.f32 %v6604, %v6654
    %v6656 = vand.u32 %v6052, 4294901760
    %6657 = vmatmul.f32.gmra.mxu0 %v6656
    %v6658 = vpop.f32.mrf.mxu0
    %v6659 = vadd.f32 %v6610, %v6658
    %6660 = vdwg.mxu0
    %6661 = vmatpush.msra.mxu0 0.0
    %6662 = vmatpush.msra.mxu0 0.0
    %6663 = vmatpush.msra.mxu0 0.0
    %6664 = vmatpush.msra.mxu0 0.0
    %6665 = vmatpush.msra.mxu0 0.0
    %6666 = vmatpush.msra.mxu0 0.0
    %6667 = vmatpush.msra.mxu0 0.0
    %6668 = vmatpush.msra.mxu0 0.0
    %v6669 = vand.u32 %v6045, 4294901760
    %6670 = vmatpush.msra.mxu0 %v6669
    %v6671 = vand.u32 %v6044, 4294901760
    %6672 = vmatpush.msra.mxu0 %v6671
    %v6673 = vand.u32 %v6043, 4294901760
    %6674 = vmatpush.msra.mxu0 %v6673
    %v6675 = vand.u32 %v6042, 4294901760
    %6676 = vmatpush.msra.mxu0 %v6675
    %v6677 = vand.u32 %v6041, 4294901760
    %6678 = vmatpush.msra.mxu0 %v6677
    %v6679 = vand.u32 %v6040, 4294901760
    %6680 = vmatpush.msra.mxu0 %v6679
    %v6681 = vand.u32 %v6039, 4294901760
    %6682 = vmatpush.msra.mxu0 %v6681
    %v6683 = vand.u32 %v6038, 4294901760
    %6684 = vmatpush.msra.mxu0 %v6683
    %v6685 = vand.u32 %v6049, 4294901760
    %6686 = vmatmul.f32.gmra.mxu0 %v6685
    %v6687 = vpop.f32.mrf.mxu0
    %v6688 = vadd.f32 %v6655, %v6687
    %v6689 = vand.u32 %v6052, 4294901760
    %6690 = vmatmul.f32.gmra.mxu0 %v6689
    %v6691 = vpop.f32.mrf.mxu0
    %v6692 = vadd.f32 %v6659, %v6691
    %6693 = vdwg.mxu0
    %v6694 = vmin.f32 %v6688, 20.0
    %v6695 = vmin.f32 %v6692, 20.0
    %v6696 = vmul.f32 %v6694, 1.442695
    %v6697 = vpow.pop %v6696
    %v6698 = vmul.f32 %v6695, 1.442695
    %v6699 = vpow.pop %v6698
    %v6700 = vadd.f32 %v6697, 2.0
    %v6701 = vadd.f32 %v6699, 2.0
    %v6702 = vmul.f32 %v6697, %v6700
    %v6703 = vmul.f32 %v6699, %v6701
    %vm6704 = vcmp.gt.f32.partialorder %v6688, 20.0
    %vm6705 = vcmp.gt.f32.partialorder %v6692, 20.0
    %v6706 = vadd.f32 %v6702, 2.0
    %v6707 = vadd.f32 %v6703, 2.0
    %v6708 = vrcp.pop %v6706
    %v6709 = vmul.f32 %v6706, %v6708
    %v6710 = vsub.f32 1.0, %v6709
    %v6711 = vmul.f32 %v6708, %v6710
    %v6712 = vadd.f32 %v6708, %v6711
    %vm6713 = vweird.f32 %v6706
    %vm6714 = vweird.f32 %v6708
    %vm6715 = vmor %vm6713, %vm6714
    %v6716 = vsel %vm6715, %v6708, %v6712
    %v6717 = vand.u32 2147483647, %v6706
    %vm6718 = vcmp.eq.f32.partialorder %v6717, 8.507059e+37
    %v6719 = vand.u32 %v6706, 2147483648
    %v6720 = vor.u32 1.1754944e-38, %v6719
    %v6721 = vsel %vm6718, %v6720, %v6716
    %v6722 = vmul.f32 %v6702, %v6721
    %v6723 = vrcp.pop %v6707
    %v6724 = vmul.f32 %v6707, %v6723
    %v6725 = vsub.f32 1.0, %v6724
    %v6726 = vmul.f32 %v6723, %v6725
    %v6727 = vadd.f32 %v6723, %v6726
    %vm6728 = vweird.f32 %v6707
    %vm6729 = vweird.f32 %v6723
    %vm6730 = vmor %vm6728, %vm6729
    %v6731 = vsel %vm6730, %v6723, %v6727
    %v6732 = vand.u32 2147483647, %v6707
    %vm6733 = vcmp.eq.f32.partialorder %v6732, 8.507059e+37
    %v6734 = vand.u32 %v6707, 2147483648
    %v6735 = vor.u32 1.1754944e-38, %v6734
    %v6736 = vsel %vm6733, %v6735, %v6731
    %v6737 = vmul.f32 %v6703, %v6736
    %v6738 = vmul.f32 %v6688, %v6722
    %v6739 = vmul.f32 %v6692, %v6737
    %v6740 = vsel %vm6704, %v6688, %v6738
    %v6741 = vsel %vm6705, %v6692, %v6739
    %6742 = vrot.lane.b32.xlu0 %v5718, 64
    %v6743 = vpop.permute.xlu0 %6742
    %6744 = vrot.lane.b32.xlu0 %v5719, 64
    %v6745 = vpop.permute.xlu0 %6744
    %6750 = vrot.lane.b32.xlu0 %v6740, 96
    %v6751 = vpop.permute.xlu0 %6750
    %6752 = vrot.lane.b32.xlu0 %v6741, 96
    %v6753 = vpop.permute.xlu0 %6752
    %v6756 = vsel %vm124, %v4640, %v6743
    %v6757 = vsel %vm124, %v4641, %v6745
    %v6758 = vsel %vm2969, %v6756, %v6751
    %v6759 = vsel %vm2969, %v6757, %v6753
    %v6760 = vld [vmem:[#allocation5 + $0x680] sm:$0xff]
    %v6761 = vld [vmem:[#allocation5 + $0x688] sm:$0xff]
    %v6762 = vld [vmem:[#allocation5 + $0x690] sm:$0xff]
    %v6763 = vld [vmem:[#allocation5 + $0x698] sm:$0xff]
    %v6764 = vld [vmem:[#allocation5 + $0x6a0] sm:$0xff]
    %v6765 = vld [vmem:[#allocation5 + $0x6a8] sm:$0xff]
    %v6766 = vld [vmem:[#allocation5 + $0x6b0] sm:$0xff]
    %v6767 = vld [vmem:[#allocation5 + $0x6b8] sm:$0xff]
    %v6768 = vld [vmem:[#allocation5 + $0x6c0] sm:$0xff]
    %v6769 = vld [vmem:[#allocation5 + $0x6c8] sm:$0xff]
    %v6770 = vld [vmem:[#allocation5 + $0x6d0] sm:$0xff]
    %v6771 = vld [vmem:[#allocation5 + $0x6d8] sm:$0xff]
    %v6772 = vld [vmem:[#allocation5 + $0x6e0] sm:$0xff]
    %v6773 = vld [vmem:[#allocation5 + $0x6e8] sm:$0xff]
    %v6774 = vld [vmem:[#allocation5 + $0x6f0] sm:$0xff]
    %v6775 = vld [vmem:[#allocation5 + $0x6f8] sm:$0xff]
    %v6776 = vld [vmem:[#allocation5 + $0x700] sm:$0xff]
    %v6777 = vld [vmem:[#allocation5 + $0x708] sm:$0xff]
    %v6778 = vld [vmem:[#allocation5 + $0x710] sm:$0xff]
    %v6779 = vld [vmem:[#allocation5 + $0x718] sm:$0xff]
    %v6780 = vld [vmem:[#allocation5 + $0x720] sm:$0xff]
    %v6781 = vld [vmem:[#allocation5 + $0x728] sm:$0xff]
    %v6782 = vld [vmem:[#allocation5 + $0x730] sm:$0xff]
    %v6783 = vld [vmem:[#allocation5 + $0x738] sm:$0xff]
    %v6784 = vld [vmem:[#allocation5 + $0x740] sm:$0xff]
    %v6785 = vld [vmem:[#allocation5 + $0x748] sm:$0xff]
    %v6786 = vld [vmem:[#allocation5 + $0x750] sm:$0xff]
    %v6787 = vld [vmem:[#allocation5 + $0x758] sm:$0xff]
    %v6788 = vld [vmem:[#allocation5 + $0x760] sm:$0xff]
    %v6789 = vld [vmem:[#allocation5 + $0x768] sm:$0xff]
    %v6790 = vld [vmem:[#allocation5 + $0x770] sm:$0xff]
    %v6791 = vld [vmem:[#allocation5 + $0x778] sm:$0xff]
    %v6792 = vld [vmem:[#allocation7 + $0xb] sm:$0x1]
    %v6793 = vperm.slane %v6792, 0
    %v6794 = vand.u32 %v6775, 4294901760
    %6795 = vmatpush.msra.mxu0 %v6794
    %v6796 = vand.u32 %v6774, 4294901760
    %6797 = vmatpush.msra.mxu0 %v6796
    %v6798 = vand.u32 %v6773, 4294901760
    %6799 = vmatpush.msra.mxu0 %v6798
    %v6800 = vand.u32 %v6772, 4294901760
    %6801 = vmatpush.msra.mxu0 %v6800
    %v6802 = vand.u32 %v6771, 4294901760
    %6803 = vmatpush.msra.mxu0 %v6802
    %v6804 = vand.u32 %v6770, 4294901760
    %6805 = vmatpush.msra.mxu0 %v6804
    %v6806 = vand.u32 %v6769, 4294901760
    %6807 = vmatpush.msra.mxu0 %v6806
    %v6808 = vand.u32 %v6768, 4294901760
    %6809 = vmatpush.msra.mxu0 %v6808
    %v6810 = vand.u32 %v6767, 4294901760
    %6811 = vmatpush.msra.mxu0 %v6810
    %v6812 = vand.u32 %v6766, 4294901760
    %6813 = vmatpush.msra.mxu0 %v6812
    %v6814 = vand.u32 %v6765, 4294901760
    %6815 = vmatpush.msra.mxu0 %v6814
    %v6816 = vand.u32 %v6764, 4294901760
    %6817 = vmatpush.msra.mxu0 %v6816
    %v6818 = vand.u32 %v6763, 4294901760
    %6819 = vmatpush.msra.mxu0 %v6818
    %v6820 = vand.u32 %v6762, 4294901760
    %6821 = vmatpush.msra.mxu0 %v6820
    %v6822 = vand.u32 %v6761, 4294901760
    %6823 = vmatpush.msra.mxu0 %v6822
    %v6824 = vand.u32 %v6760, 4294901760
    %6825 = vmatpush.msra.mxu0 %v6824
    %v6826 = vand.u32 %v6758, 4294901760
    %v6827 = vsub.f32 %v6758, %v6826
    %v6828 = vand.u32 %v6827, 4294901760
    %v6829 = vsub.f32 %v6827, %v6828
    %v6830 = vand.u32 %v6829, 4294901760
    %6831 = vmatmul.f32.gmra.mxu0 %v6830
    %v6832 = vpop.f32.mrf.mxu0
    %v6833 = vadd.f32 %v6793, %v6832
    %v6834 = vand.u32 %v6759, 4294901760
    %v6835 = vsub.f32 %v6759, %v6834
    %v6836 = vand.u32 %v6835, 4294901760
    %v6837 = vsub.f32 %v6835, %v6836
    %v6838 = vand.u32 %v6837, 4294901760
    %6839 = vmatmul.f32.gmra.mxu0 %v6838
    %v6840 = vpop.f32.mrf.mxu0
    %v6841 = vadd.f32 %v6793, %v6840
    %6842 = vdwg.mxu0
    %v6843 = vand.u32 %v6775, 4294901760
    %v6844 = vsub.f32 %v6775, %v6843
    %v6845 = vand.u32 %v6844, 4294901760
    %v6846 = vsub.f32 %v6844, %v6845
    %v6847 = vand.u32 %v6846, 4294901760
    %6848 = vmatpush.msra.mxu0 %v6847
    %v6849 = vand.u32 %v6774, 4294901760
    %v6850 = vsub.f32 %v6774, %v6849
    %v6851 = vand.u32 %v6850, 4294901760
    %v6852 = vsub.f32 %v6850, %v6851
    %v6853 = vand.u32 %v6852, 4294901760
    %6854 = vmatpush.msra.mxu0 %v6853
    %v6855 = vand.u32 %v6773, 4294901760
    %v6856 = vsub.f32 %v6773, %v6855
    %v6857 = vand.u32 %v6856, 4294901760
    %v6858 = vsub.f32 %v6856, %v6857
    %v6859 = vand.u32 %v6858, 4294901760
    %6860 = vmatpush.msra.mxu0 %v6859
    %v6861 = vand.u32 %v6772, 4294901760
    %v6862 = vsub.f32 %v6772, %v6861
    %v6863 = vand.u32 %v6862, 4294901760
    %v6864 = vsub.f32 %v6862, %v6863
    %v6865 = vand.u32 %v6864, 4294901760
    %6866 = vmatpush.msra.mxu0 %v6865
    %v6867 = vand.u32 %v6771, 4294901760
    %v6868 = vsub.f32 %v6771, %v6867
    %v6869 = vand.u32 %v6868, 4294901760
    %v6870 = vsub.f32 %v6868, %v6869
    %v6871 = vand.u32 %v6870, 4294901760
    %6872 = vmatpush.msra.mxu0 %v6871
    %v6873 = vand.u32 %v6770, 4294901760
    %v6874 = vsub.f32 %v6770, %v6873
    %v6875 = vand.u32 %v6874, 4294901760
    %v6876 = vsub.f32 %v6874, %v6875
    %v6877 = vand.u32 %v6876, 4294901760
    %6878 = vmatpush.msra.mxu0 %v6877
    %v6879 = vand.u32 %v6769, 4294901760
    %v6880 = vsub.f32 %v6769, %v6879
    %v6881 = vand.u32 %v6880, 4294901760
    %v6882 = vsub.f32 %v6880, %v6881
    %v6883 = vand.u32 %v6882, 4294901760
    %6884 = vmatpush.msra.mxu0 %v6883
    %v6885 = vand.u32 %v6768, 4294901760
    %v6886 = vsub.f32 %v6768, %v6885
    %v6887 = vand.u32 %v6886, 4294901760
    %v6888 = vsub.f32 %v6886, %v6887
    %v6889 = vand.u32 %v6888, 4294901760
    %6890 = vmatpush.msra.mxu0 %v6889
    %v6891 = vand.u32 %v6767, 4294901760
    %v6892 = vsub.f32 %v6767, %v6891
    %v6893 = vand.u32 %v6892, 4294901760
    %v6894 = vsub.f32 %v6892, %v6893
    %v6895 = vand.u32 %v6894, 4294901760
    %6896 = vmatpush.msra.mxu0 %v6895
    %v6897 = vand.u32 %v6766, 4294901760
    %v6898 = vsub.f32 %v6766, %v6897
    %v6899 = vand.u32 %v6898, 4294901760
    %v6900 = vsub.f32 %v6898, %v6899
    %v6901 = vand.u32 %v6900, 4294901760
    %6902 = vmatpush.msra.mxu0 %v6901
    %v6903 = vand.u32 %v6765, 4294901760
    %v6904 = vsub.f32 %v6765, %v6903
    %v6905 = vand.u32 %v6904, 4294901760
    %v6906 = vsub.f32 %v6904, %v6905
    %v6907 = vand.u32 %v6906, 4294901760
    %6908 = vmatpush.msra.mxu0 %v6907
    %v6909 = vand.u32 %v6764, 4294901760
    %v6910 = vsub.f32 %v6764, %v6909
    %v6911 = vand.u32 %v6910, 4294901760
    %v6912 = vsub.f32 %v6910, %v6911
    %v6913 = vand.u32 %v6912, 4294901760
    %6914 = vmatpush.msra.mxu0 %v6913
    %v6915 = vand.u32 %v6763, 4294901760
    %v6916 = vsub.f32 %v6763, %v6915
    %v6917 = vand.u32 %v6916, 4294901760
    %v6918 = vsub.f32 %v6916, %v6917
    %v6919 = vand.u32 %v6918, 4294901760
    %6920 = vmatpush.msra.mxu0 %v6919
    %v6921 = vand.u32 %v6762, 4294901760
    %v6922 = vsub.f32 %v6762, %v6921
    %v6923 = vand.u32 %v6922, 4294901760
    %v6924 = vsub.f32 %v6922, %v6923
    %v6925 = vand.u32 %v6924, 4294901760
    %6926 = vmatpush.msra.mxu0 %v6925
    %v6927 = vand.u32 %v6761, 4294901760
    %v6928 = vsub.f32 %v6761, %v6927
    %v6929 = vand.u32 %v6928, 4294901760
    %v6930 = vsub.f32 %v6928, %v6929
    %v6931 = vand.u32 %v6930, 4294901760
    %6932 = vmatpush.msra.mxu0 %v6931
    %v6933 = vand.u32 %v6760, 4294901760
    %v6934 = vsub.f32 %v6760, %v6933
    %v6935 = vand.u32 %v6934, 4294901760
    %v6936 = vsub.f32 %v6934, %v6935
    %v6937 = vand.u32 %v6936, 4294901760
    %6938 = vmatpush.msra.mxu0 %v6937
    %v6939 = vand.u32 %v6758, 4294901760
    %6940 = vmatmul.f32.gmra.mxu0 %v6939
    %v6941 = vpop.f32.mrf.mxu0
    %v6942 = vadd.f32 %v6833, %v6941
    %v6943 = vand.u32 %v6759, 4294901760
    %6944 = vmatmul.f32.gmra.mxu0 %v6943
    %v6945 = vpop.f32.mrf.mxu0
    %v6946 = vadd.f32 %v6841, %v6945
    %6947 = vdwg.mxu0
    %v6948 = vand.u32 %v6775, 4294901760
    %v6949 = vsub.f32 %v6775, %v6948
    %6950 = vmatpush.msra.mxu0 %v6949
    %v6951 = vand.u32 %v6774, 4294901760
    %v6952 = vsub.f32 %v6774, %v6951
    %6953 = vmatpush.msra.mxu0 %v6952
    %v6954 = vand.u32 %v6773, 4294901760
    %v6955 = vsub.f32 %v6773, %v6954
    %6956 = vmatpush.msra.mxu0 %v6955
    %v6957 = vand.u32 %v6772, 4294901760
    %v6958 = vsub.f32 %v6772, %v6957
    %6959 = vmatpush.msra.mxu0 %v6958
    %v6960 = vand.u32 %v6771, 4294901760
    %v6961 = vsub.f32 %v6771, %v6960
    %6962 = vmatpush.msra.mxu0 %v6961
    %v6963 = vand.u32 %v6770, 4294901760
    %v6964 = vsub.f32 %v6770, %v6963
    %6965 = vmatpush.msra.mxu0 %v6964
    %v6966 = vand.u32 %v6769, 4294901760
    %v6967 = vsub.f32 %v6769, %v6966
    %6968 = vmatpush.msra.mxu0 %v6967
    %v6969 = vand.u32 %v6768, 4294901760
    %v6970 = vsub.f32 %v6768, %v6969
    %6971 = vmatpush.msra.mxu0 %v6970
    %v6972 = vand.u32 %v6767, 4294901760
    %v6973 = vsub.f32 %v6767, %v6972
    %6974 = vmatpush.msra.mxu0 %v6973
    %v6975 = vand.u32 %v6766, 4294901760
    %v6976 = vsub.f32 %v6766, %v6975
    %6977 = vmatpush.msra.mxu0 %v6976
    %v6978 = vand.u32 %v6765, 4294901760
    %v6979 = vsub.f32 %v6765, %v6978
    %6980 = vmatpush.msra.mxu0 %v6979
    %v6981 = vand.u32 %v6764, 4294901760
    %v6982 = vsub.f32 %v6764, %v6981
    %6983 = vmatpush.msra.mxu0 %v6982
    %v6984 = vand.u32 %v6763, 4294901760
    %v6985 = vsub.f32 %v6763, %v6984
    %6986 = vmatpush.msra.mxu0 %v6985
    %v6987 = vand.u32 %v6762, 4294901760
    %v6988 = vsub.f32 %v6762, %v6987
    %6989 = vmatpush.msra.mxu0 %v6988
    %v6990 = vand.u32 %v6761, 4294901760
    %v6991 = vsub.f32 %v6761, %v6990
    %6992 = vmatpush.msra.mxu0 %v6991
    %v6993 = vand.u32 %v6760, 4294901760
    %v6994 = vsub.f32 %v6760, %v6993
    %6995 = vmatpush.msra.mxu0 %v6994
    %v6996 = vand.u32 %v6758, 4294901760
    %v6997 = vsub.f32 %v6758, %v6996
    %6998 = vmatmul.f32.gmra.mxu0 %v6997
    %v6999 = vpop.f32.mrf.mxu0
    %v7000 = vadd.f32 %v6942, %v6999
    %v7001 = vand.u32 %v6759, 4294901760
    %v7002 = vsub.f32 %v6759, %v7001
    %7003 = vmatmul.f32.gmra.mxu0 %v7002
    %v7004 = vpop.f32.mrf.mxu0
    %v7005 = vadd.f32 %v6946, %v7004
    %7006 = vdwg.mxu0
    %v7007 = vand.u32 %v6775, 4294901760
    %7008 = vmatpush.msra.mxu0 %v7007
    %v7009 = vand.u32 %v6774, 4294901760
    %7010 = vmatpush.msra.mxu0 %v7009
    %v7011 = vand.u32 %v6773, 4294901760
    %7012 = vmatpush.msra.mxu0 %v7011
    %v7013 = vand.u32 %v6772, 4294901760
    %7014 = vmatpush.msra.mxu0 %v7013
    %v7015 = vand.u32 %v6771, 4294901760
    %7016 = vmatpush.msra.mxu0 %v7015
    %v7017 = vand.u32 %v6770, 4294901760
    %7018 = vmatpush.msra.mxu0 %v7017
    %v7019 = vand.u32 %v6769, 4294901760
    %7020 = vmatpush.msra.mxu0 %v7019
    %v7021 = vand.u32 %v6768, 4294901760
    %7022 = vmatpush.msra.mxu0 %v7021
    %v7023 = vand.u32 %v6767, 4294901760
    %7024 = vmatpush.msra.mxu0 %v7023
    %v7025 = vand.u32 %v6766, 4294901760
    %7026 = vmatpush.msra.mxu0 %v7025
    %v7027 = vand.u32 %v6765, 4294901760
    %7028 = vmatpush.msra.mxu0 %v7027
    %v7029 = vand.u32 %v6764, 4294901760
    %7030 = vmatpush.msra.mxu0 %v7029
    %v7031 = vand.u32 %v6763, 4294901760
    %7032 = vmatpush.msra.mxu0 %v7031
    %v7033 = vand.u32 %v6762, 4294901760
    %7034 = vmatpush.msra.mxu0 %v7033
    %v7035 = vand.u32 %v6761, 4294901760
    %7036 = vmatpush.msra.mxu0 %v7035
    %v7037 = vand.u32 %v6760, 4294901760
    %7038 = vmatpush.msra.mxu0 %v7037
    %v7039 = vand.u32 %v6758, 4294901760
    %v7040 = vsub.f32 %v6758, %v7039
    %v7041 = vand.u32 %v7040, 4294901760
    %7042 = vmatmul.f32.gmra.mxu0 %v7041
    %v7043 = vpop.f32.mrf.mxu0
    %v7044 = vadd.f32 %v7000, %v7043
    %v7045 = vand.u32 %v6759, 4294901760
    %v7046 = vsub.f32 %v6759, %v7045
    %v7047 = vand.u32 %v7046, 4294901760
    %7048 = vmatmul.f32.gmra.mxu0 %v7047
    %v7049 = vpop.f32.mrf.mxu0
    %v7050 = vadd.f32 %v7005, %v7049
    %7051 = vdwg.mxu0
    %v7052 = vand.u32 %v6775, 4294901760
    %v7053 = vsub.f32 %v6775, %v7052
    %v7054 = vand.u32 %v7053, 4294901760
    %7055 = vmatpush.msra.mxu0 %v7054
    %v7056 = vand.u32 %v6774, 4294901760
    %v7057 = vsub.f32 %v6774, %v7056
    %v7058 = vand.u32 %v7057, 4294901760
    %7059 = vmatpush.msra.mxu0 %v7058
    %v7060 = vand.u32 %v6773, 4294901760
    %v7061 = vsub.f32 %v6773, %v7060
    %v7062 = vand.u32 %v7061, 4294901760
    %7063 = vmatpush.msra.mxu0 %v7062
    %v7064 = vand.u32 %v6772, 4294901760
    %v7065 = vsub.f32 %v6772, %v7064
    %v7066 = vand.u32 %v7065, 4294901760
    %7067 = vmatpush.msra.mxu0 %v7066
    %v7068 = vand.u32 %v6771, 4294901760
    %v7069 = vsub.f32 %v6771, %v7068
    %v7070 = vand.u32 %v7069, 4294901760
    %7071 = vmatpush.msra.mxu0 %v7070
    %v7072 = vand.u32 %v6770, 4294901760
    %v7073 = vsub.f32 %v6770, %v7072
    %v7074 = vand.u32 %v7073, 4294901760
    %7075 = vmatpush.msra.mxu0 %v7074
    %v7076 = vand.u32 %v6769, 4294901760
    %v7077 = vsub.f32 %v6769, %v7076
    %v7078 = vand.u32 %v7077, 4294901760
    %7079 = vmatpush.msra.mxu0 %v7078
    %v7080 = vand.u32 %v6768, 4294901760
    %v7081 = vsub.f32 %v6768, %v7080
    %v7082 = vand.u32 %v7081, 4294901760
    %7083 = vmatpush.msra.mxu0 %v7082
    %v7084 = vand.u32 %v6767, 4294901760
    %v7085 = vsub.f32 %v6767, %v7084
    %v7086 = vand.u32 %v7085, 4294901760
    %7087 = vmatpush.msra.mxu0 %v7086
    %v7088 = vand.u32 %v6766, 4294901760
    %v7089 = vsub.f32 %v6766, %v7088
    %v7090 = vand.u32 %v7089, 4294901760
    %7091 = vmatpush.msra.mxu0 %v7090
    %v7092 = vand.u32 %v6765, 4294901760
    %v7093 = vsub.f32 %v6765, %v7092
    %v7094 = vand.u32 %v7093, 4294901760
    %7095 = vmatpush.msra.mxu0 %v7094
    %v7096 = vand.u32 %v6764, 4294901760
    %v7097 = vsub.f32 %v6764, %v7096
    %v7098 = vand.u32 %v7097, 4294901760
    %7099 = vmatpush.msra.mxu0 %v7098
    %v7100 = vand.u32 %v6763, 4294901760
    %v7101 = vsub.f32 %v6763, %v7100
    %v7102 = vand.u32 %v7101, 4294901760
    %7103 = vmatpush.msra.mxu0 %v7102
    %v7104 = vand.u32 %v6762, 4294901760
    %v7105 = vsub.f32 %v6762, %v7104
    %v7106 = vand.u32 %v7105, 4294901760
    %7107 = vmatpush.msra.mxu0 %v7106
    %v7108 = vand.u32 %v6761, 4294901760
    %v7109 = vsub.f32 %v6761, %v7108
    %v7110 = vand.u32 %v7109, 4294901760
    %7111 = vmatpush.msra.mxu0 %v7110
    %v7112 = vand.u32 %v6760, 4294901760
    %v7113 = vsub.f32 %v6760, %v7112
    %v7114 = vand.u32 %v7113, 4294901760
    %7115 = vmatpush.msra.mxu0 %v7114
    %v7116 = vand.u32 %v6758, 4294901760
    %7117 = vmatmul.f32.gmra.mxu0 %v7116
    %v7118 = vpop.f32.mrf.mxu0
    %v7119 = vadd.f32 %v7044, %v7118
    %v7120 = vand.u32 %v6759, 4294901760
    %7121 = vmatmul.f32.gmra.mxu0 %v7120
    %v7122 = vpop.f32.mrf.mxu0
    %v7123 = vadd.f32 %v7050, %v7122
    %7124 = vdwg.mxu0
    %v7125 = vand.u32 %v6775, 4294901760
    %7126 = vmatpush.msra.mxu0 %v7125
    %v7127 = vand.u32 %v6774, 4294901760
    %7128 = vmatpush.msra.mxu0 %v7127
    %v7129 = vand.u32 %v6773, 4294901760
    %7130 = vmatpush.msra.mxu0 %v7129
    %v7131 = vand.u32 %v6772, 4294901760
    %7132 = vmatpush.msra.mxu0 %v7131
    %v7133 = vand.u32 %v6771, 4294901760
    %7134 = vmatpush.msra.mxu0 %v7133
    %v7135 = vand.u32 %v6770, 4294901760
    %7136 = vmatpush.msra.mxu0 %v7135
    %v7137 = vand.u32 %v6769, 4294901760
    %7138 = vmatpush.msra.mxu0 %v7137
    %v7139 = vand.u32 %v6768, 4294901760
    %7140 = vmatpush.msra.mxu0 %v7139
    %v7141 = vand.u32 %v6767, 4294901760
    %7142 = vmatpush.msra.mxu0 %v7141
    %v7143 = vand.u32 %v6766, 4294901760
    %7144 = vmatpush.msra.mxu0 %v7143
    %v7145 = vand.u32 %v6765, 4294901760
    %7146 = vmatpush.msra.mxu0 %v7145
    %v7147 = vand.u32 %v6764, 4294901760
    %7148 = vmatpush.msra.mxu0 %v7147
    %v7149 = vand.u32 %v6763, 4294901760
    %7150 = vmatpush.msra.mxu0 %v7149
    %v7151 = vand.u32 %v6762, 4294901760
    %7152 = vmatpush.msra.mxu0 %v7151
    %v7153 = vand.u32 %v6761, 4294901760
    %7154 = vmatpush.msra.mxu0 %v7153
    %v7155 = vand.u32 %v6760, 4294901760
    %7156 = vmatpush.msra.mxu0 %v7155
    %v7157 = vand.u32 %v6758, 4294901760
    %7158 = vmatmul.f32.gmra.mxu0 %v7157
    %v7159 = vpop.f32.mrf.mxu0
    %v7160 = vadd.f32 %v7119, %v7159
    %v7161 = vand.u32 %v6759, 4294901760
    %7162 = vmatmul.f32.gmra.mxu0 %v7161
    %v7163 = vpop.f32.mrf.mxu0
    %v7164 = vadd.f32 %v7123, %v7163
    %7165 = vdwg.mxu0
    %v7166 = vand.u32 %v6791, 4294901760
    %7167 = vmatpush.msra.mxu0 %v7166
    %v7168 = vand.u32 %v6790, 4294901760
    %7169 = vmatpush.msra.mxu0 %v7168
    %v7170 = vand.u32 %v6789, 4294901760
    %7171 = vmatpush.msra.mxu0 %v7170
    %v7172 = vand.u32 %v6788, 4294901760
    %7173 = vmatpush.msra.mxu0 %v7172
    %v7174 = vand.u32 %v6787, 4294901760
    %7175 = vmatpush.msra.mxu0 %v7174
    %v7176 = vand.u32 %v6786, 4294901760
    %7177 = vmatpush.msra.mxu0 %v7176
    %v7178 = vand.u32 %v6785, 4294901760
    %7179 = vmatpush.msra.mxu0 %v7178
    %v7180 = vand.u32 %v6784, 4294901760
    %7181 = vmatpush.msra.mxu0 %v7180
    %v7182 = vand.u32 %v6783, 4294901760
    %7183 = vmatpush.msra.mxu0 %v7182
    %v7184 = vand.u32 %v6782, 4294901760
    %7185 = vmatpush.msra.mxu0 %v7184
    %v7186 = vand.u32 %v6781, 4294901760
    %7187 = vmatpush.msra.mxu0 %v7186
    %v7188 = vand.u32 %v6780, 4294901760
    %7189 = vmatpush.msra.mxu0 %v7188
    %v7190 = vand.u32 %v6779, 4294901760
    %7191 = vmatpush.msra.mxu0 %v7190
    %v7192 = vand.u32 %v6778, 4294901760
    %7193 = vmatpush.msra.mxu0 %v7192
    %v7194 = vand.u32 %v6777, 4294901760
    %7195 = vmatpush.msra.mxu0 %v7194
    %v7196 = vand.u32 %v6776, 4294901760
    %7197 = vmatpush.msra.mxu0 %v7196
    %v7198 = vand.u32 %v3408, 4294901760
    %v7199 = vsub.f32 %v3408, %v7198
    %v7200 = vand.u32 %v7199, 4294901760
    %v7201 = vsub.f32 %v7199, %v7200
    %v7202 = vand.u32 %v7201, 4294901760
    %7203 = vmatmul.f32.gmra.mxu0 %v7202
    %v7204 = vpop.f32.mrf.mxu0
    %v7205 = vadd.f32 %v7160, %v7204
    %v7206 = vand.u32 %v3409, 4294901760
    %v7207 = vsub.f32 %v3409, %v7206
    %v7208 = vand.u32 %v7207, 4294901760
    %v7209 = vsub.f32 %v7207, %v7208
    %v7210 = vand.u32 %v7209, 4294901760
    %7211 = vmatmul.f32.gmra.mxu0 %v7210
    %v7212 = vpop.f32.mrf.mxu0
    %v7213 = vadd.f32 %v7164, %v7212
    %7214 = vdwg.mxu0
    %v7215 = vand.u32 %v6791, 4294901760
    %v7216 = vsub.f32 %v6791, %v7215
    %v7217 = vand.u32 %v7216, 4294901760
    %v7218 = vsub.f32 %v7216, %v7217
    %v7219 = vand.u32 %v7218, 4294901760
    %7220 = vmatpush.msra.mxu0 %v7219
    %v7221 = vand.u32 %v6790, 4294901760
    %v7222 = vsub.f32 %v6790, %v7221
    %v7223 = vand.u32 %v7222, 4294901760
    %v7224 = vsub.f32 %v7222, %v7223
    %v7225 = vand.u32 %v7224, 4294901760
    %7226 = vmatpush.msra.mxu0 %v7225
    %v7227 = vand.u32 %v6789, 4294901760
    %v7228 = vsub.f32 %v6789, %v7227
    %v7229 = vand.u32 %v7228, 4294901760
    %v7230 = vsub.f32 %v7228, %v7229
    %v7231 = vand.u32 %v7230, 4294901760
    %7232 = vmatpush.msra.mxu0 %v7231
    %v7233 = vand.u32 %v6788, 4294901760
    %v7234 = vsub.f32 %v6788, %v7233
    %v7235 = vand.u32 %v7234, 4294901760
    %v7236 = vsub.f32 %v7234, %v7235
    %v7237 = vand.u32 %v7236, 4294901760
    %7238 = vmatpush.msra.mxu0 %v7237
    %v7239 = vand.u32 %v6787, 4294901760
    %v7240 = vsub.f32 %v6787, %v7239
    %v7241 = vand.u32 %v7240, 4294901760
    %v7242 = vsub.f32 %v7240, %v7241
    %v7243 = vand.u32 %v7242, 4294901760
    %7244 = vmatpush.msra.mxu0 %v7243
    %v7245 = vand.u32 %v6786, 4294901760
    %v7246 = vsub.f32 %v6786, %v7245
    %v7247 = vand.u32 %v7246, 4294901760
    %v7248 = vsub.f32 %v7246, %v7247
    %v7249 = vand.u32 %v7248, 4294901760
    %7250 = vmatpush.msra.mxu0 %v7249
    %v7251 = vand.u32 %v6785, 4294901760
    %v7252 = vsub.f32 %v6785, %v7251
    %v7253 = vand.u32 %v7252, 4294901760
    %v7254 = vsub.f32 %v7252, %v7253
    %v7255 = vand.u32 %v7254, 4294901760
    %7256 = vmatpush.msra.mxu0 %v7255
    %v7257 = vand.u32 %v6784, 4294901760
    %v7258 = vsub.f32 %v6784, %v7257
    %v7259 = vand.u32 %v7258, 4294901760
    %v7260 = vsub.f32 %v7258, %v7259
    %v7261 = vand.u32 %v7260, 4294901760
    %7262 = vmatpush.msra.mxu0 %v7261
    %v7263 = vand.u32 %v6783, 4294901760
    %v7264 = vsub.f32 %v6783, %v7263
    %v7265 = vand.u32 %v7264, 4294901760
    %v7266 = vsub.f32 %v7264, %v7265
    %v7267 = vand.u32 %v7266, 4294901760
    %7268 = vmatpush.msra.mxu0 %v7267
    %v7269 = vand.u32 %v6782, 4294901760
    %v7270 = vsub.f32 %v6782, %v7269
    %v7271 = vand.u32 %v7270, 4294901760
    %v7272 = vsub.f32 %v7270, %v7271
    %v7273 = vand.u32 %v7272, 4294901760
    %7274 = vmatpush.msra.mxu0 %v7273
    %v7275 = vand.u32 %v6781, 4294901760
    %v7276 = vsub.f32 %v6781, %v7275
    %v7277 = vand.u32 %v7276, 4294901760
    %v7278 = vsub.f32 %v7276, %v7277
    %v7279 = vand.u32 %v7278, 4294901760
    %7280 = vmatpush.msra.mxu0 %v7279
    %v7281 = vand.u32 %v6780, 4294901760
    %v7282 = vsub.f32 %v6780, %v7281
    %v7283 = vand.u32 %v7282, 4294901760
    %v7284 = vsub.f32 %v7282, %v7283
    %v7285 = vand.u32 %v7284, 4294901760
    %7286 = vmatpush.msra.mxu0 %v7285
    %v7287 = vand.u32 %v6779, 4294901760
    %v7288 = vsub.f32 %v6779, %v7287
    %v7289 = vand.u32 %v7288, 4294901760
    %v7290 = vsub.f32 %v7288, %v7289
    %v7291 = vand.u32 %v7290, 4294901760
    %7292 = vmatpush.msra.mxu0 %v7291
    %v7293 = vand.u32 %v6778, 4294901760
    %v7294 = vsub.f32 %v6778, %v7293
    %v7295 = vand.u32 %v7294, 4294901760
    %v7296 = vsub.f32 %v7294, %v7295
    %v7297 = vand.u32 %v7296, 4294901760
    %7298 = vmatpush.msra.mxu0 %v7297
    %v7299 = vand.u32 %v6777, 4294901760
    %v7300 = vsub.f32 %v6777, %v7299
    %v7301 = vand.u32 %v7300, 4294901760
    %v7302 = vsub.f32 %v7300, %v7301
    %v7303 = vand.u32 %v7302, 4294901760
    %7304 = vmatpush.msra.mxu0 %v7303
    %v7305 = vand.u32 %v6776, 4294901760
    %v7306 = vsub.f32 %v6776, %v7305
    %v7307 = vand.u32 %v7306, 4294901760
    %v7308 = vsub.f32 %v7306, %v7307
    %v7309 = vand.u32 %v7308, 4294901760
    %7310 = vmatpush.msra.mxu0 %v7309
    %v7311 = vand.u32 %v3408, 4294901760
    %7312 = vmatmul.f32.gmra.mxu0 %v7311
    %v7313 = vpop.f32.mrf.mxu0
    %v7314 = vadd.f32 %v7205, %v7313
    %v7315 = vand.u32 %v3409, 4294901760
    %7316 = vmatmul.f32.gmra.mxu0 %v7315
    %v7317 = vpop.f32.mrf.mxu0
    %v7318 = vadd.f32 %v7213, %v7317
    %7319 = vdwg.mxu0
    %v7320 = vand.u32 %v6791, 4294901760
    %v7321 = vsub.f32 %v6791, %v7320
    %7322 = vmatpush.msra.mxu0 %v7321
    %v7323 = vand.u32 %v6790, 4294901760
    %v7324 = vsub.f32 %v6790, %v7323
    %7325 = vmatpush.msra.mxu0 %v7324
    %v7326 = vand.u32 %v6789, 4294901760
    %v7327 = vsub.f32 %v6789, %v7326
    %7328 = vmatpush.msra.mxu0 %v7327
    %v7329 = vand.u32 %v6788, 4294901760
    %v7330 = vsub.f32 %v6788, %v7329
    %7331 = vmatpush.msra.mxu0 %v7330
    %v7332 = vand.u32 %v6787, 4294901760
    %v7333 = vsub.f32 %v6787, %v7332
    %7334 = vmatpush.msra.mxu0 %v7333
    %v7335 = vand.u32 %v6786, 4294901760
    %v7336 = vsub.f32 %v6786, %v7335
    %7337 = vmatpush.msra.mxu0 %v7336
    %v7338 = vand.u32 %v6785, 4294901760
    %v7339 = vsub.f32 %v6785, %v7338
    %7340 = vmatpush.msra.mxu0 %v7339
    %v7341 = vand.u32 %v6784, 4294901760
    %v7342 = vsub.f32 %v6784, %v7341
    %7343 = vmatpush.msra.mxu0 %v7342
    %v7344 = vand.u32 %v6783, 4294901760
    %v7345 = vsub.f32 %v6783, %v7344
    %7346 = vmatpush.msra.mxu0 %v7345
    %v7347 = vand.u32 %v6782, 4294901760
    %v7348 = vsub.f32 %v6782, %v7347
    %7349 = vmatpush.msra.mxu0 %v7348
    %v7350 = vand.u32 %v6781, 4294901760
    %v7351 = vsub.f32 %v6781, %v7350
    %7352 = vmatpush.msra.mxu0 %v7351
    %v7353 = vand.u32 %v6780, 4294901760
    %v7354 = vsub.f32 %v6780, %v7353
    %7355 = vmatpush.msra.mxu0 %v7354
    %v7356 = vand.u32 %v6779, 4294901760
    %v7357 = vsub.f32 %v6779, %v7356
    %7358 = vmatpush.msra.mxu0 %v7357
    %v7359 = vand.u32 %v6778, 4294901760
    %v7360 = vsub.f32 %v6778, %v7359
    %7361 = vmatpush.msra.mxu0 %v7360
    %v7362 = vand.u32 %v6777, 4294901760
    %v7363 = vsub.f32 %v6777, %v7362
    %7364 = vmatpush.msra.mxu0 %v7363
    %v7365 = vand.u32 %v6776, 4294901760
    %v7366 = vsub.f32 %v6776, %v7365
    %7367 = vmatpush.msra.mxu0 %v7366
    %v7368 = vand.u32 %v3408, 4294901760
    %v7369 = vsub.f32 %v3408, %v7368
    %7370 = vmatmul.f32.gmra.mxu0 %v7369
    %v7371 = vpop.f32.mrf.mxu0
    %v7372 = vadd.f32 %v7314, %v7371
    %v7373 = vand.u32 %v3409, 4294901760
    %v7374 = vsub.f32 %v3409, %v7373
    %7375 = vmatmul.f32.gmra.mxu0 %v7374
    %v7376 = vpop.f32.mrf.mxu0
    %v7377 = vadd.f32 %v7318, %v7376
    %7378 = vdwg.mxu0
    %v7379 = vand.u32 %v6791, 4294901760
    %7380 = vmatpush.msra.mxu0 %v7379
    %v7381 = vand.u32 %v6790, 4294901760
    %7382 = vmatpush.msra.mxu0 %v7381
    %v7383 = vand.u32 %v6789, 4294901760
    %7384 = vmatpush.msra.mxu0 %v7383
    %v7385 = vand.u32 %v6788, 4294901760
    %7386 = vmatpush.msra.mxu0 %v7385
    %v7387 = vand.u32 %v6787, 4294901760
    %7388 = vmatpush.msra.mxu0 %v7387
    %v7389 = vand.u32 %v6786, 4294901760
    %7390 = vmatpush.msra.mxu0 %v7389
    %v7391 = vand.u32 %v6785, 4294901760
    %7392 = vmatpush.msra.mxu0 %v7391
    %v7393 = vand.u32 %v6784, 4294901760
    %7394 = vmatpush.msra.mxu0 %v7393
    %v7395 = vand.u32 %v6783, 4294901760
    %7396 = vmatpush.msra.mxu0 %v7395
    %v7397 = vand.u32 %v6782, 4294901760
    %7398 = vmatpush.msra.mxu0 %v7397
    %v7399 = vand.u32 %v6781, 4294901760
    %7400 = vmatpush.msra.mxu0 %v7399
    %v7401 = vand.u32 %v6780, 4294901760
    %7402 = vmatpush.msra.mxu0 %v7401
    %v7403 = vand.u32 %v6779, 4294901760
    %7404 = vmatpush.msra.mxu0 %v7403
    %v7405 = vand.u32 %v6778, 4294901760
    %7406 = vmatpush.msra.mxu0 %v7405
    %v7407 = vand.u32 %v6777, 4294901760
    %7408 = vmatpush.msra.mxu0 %v7407
    %v7409 = vand.u32 %v6776, 4294901760
    %7410 = vmatpush.msra.mxu0 %v7409
    %v7411 = vand.u32 %v3408, 4294901760
    %v7412 = vsub.f32 %v3408, %v7411
    %v7413 = vand.u32 %v7412, 4294901760
    %7414 = vmatmul.f32.gmra.mxu0 %v7413
    %v7415 = vpop.f32.mrf.mxu0
    %v7416 = vadd.f32 %v7372, %v7415
    %v7417 = vand.u32 %v3409, 4294901760
    %v7418 = vsub.f32 %v3409, %v7417
    %v7419 = vand.u32 %v7418, 4294901760
    %7420 = vmatmul.f32.gmra.mxu0 %v7419
    %v7421 = vpop.f32.mrf.mxu0
    %v7422 = vadd.f32 %v7377, %v7421
    %7423 = vdwg.mxu0
    %v7424 = vand.u32 %v6791, 4294901760
    %v7425 = vsub.f32 %v6791, %v7424
    %v7426 = vand.u32 %v7425, 4294901760
    %7427 = vmatpush.msra.mxu0 %v7426
    %v7428 = vand.u32 %v6790, 4294901760
    %v7429 = vsub.f32 %v6790, %v7428
    %v7430 = vand.u32 %v7429, 4294901760
    %7431 = vmatpush.msra.mxu0 %v7430
    %v7432 = vand.u32 %v6789, 4294901760
    %v7433 = vsub.f32 %v6789, %v7432
    %v7434 = vand.u32 %v7433, 4294901760
    %7435 = vmatpush.msra.mxu0 %v7434
    %v7436 = vand.u32 %v6788, 4294901760
    %v7437 = vsub.f32 %v6788, %v7436
    %v7438 = vand.u32 %v7437, 4294901760
    %7439 = vmatpush.msra.mxu0 %v7438
    %v7440 = vand.u32 %v6787, 4294901760
    %v7441 = vsub.f32 %v6787, %v7440
    %v7442 = vand.u32 %v7441, 4294901760
    %7443 = vmatpush.msra.mxu0 %v7442
    %v7444 = vand.u32 %v6786, 4294901760
    %v7445 = vsub.f32 %v6786, %v7444
    %v7446 = vand.u32 %v7445, 4294901760
    %7447 = vmatpush.msra.mxu0 %v7446
    %v7448 = vand.u32 %v6785, 4294901760
    %v7449 = vsub.f32 %v6785, %v7448
    %v7450 = vand.u32 %v7449, 4294901760
    %7451 = vmatpush.msra.mxu0 %v7450
    %v7452 = vand.u32 %v6784, 4294901760
    %v7453 = vsub.f32 %v6784, %v7452
    %v7454 = vand.u32 %v7453, 4294901760
    %7455 = vmatpush.msra.mxu0 %v7454
    %v7456 = vand.u32 %v6783, 4294901760
    %v7457 = vsub.f32 %v6783, %v7456
    %v7458 = vand.u32 %v7457, 4294901760
    %7459 = vmatpush.msra.mxu0 %v7458
    %v7460 = vand.u32 %v6782, 4294901760
    %v7461 = vsub.f32 %v6782, %v7460
    %v7462 = vand.u32 %v7461, 4294901760
    %7463 = vmatpush.msra.mxu0 %v7462
    %v7464 = vand.u32 %v6781, 4294901760
    %v7465 = vsub.f32 %v6781, %v7464
    %v7466 = vand.u32 %v7465, 4294901760
    %7467 = vmatpush.msra.mxu0 %v7466
    %v7468 = vand.u32 %v6780, 4294901760
    %v7469 = vsub.f32 %v6780, %v7468
    %v7470 = vand.u32 %v7469, 4294901760
    %7471 = vmatpush.msra.mxu0 %v7470
    %v7472 = vand.u32 %v6779, 4294901760
    %v7473 = vsub.f32 %v6779, %v7472
    %v7474 = vand.u32 %v7473, 4294901760
    %7475 = vmatpush.msra.mxu0 %v7474
    %v7476 = vand.u32 %v6778, 4294901760
    %v7477 = vsub.f32 %v6778, %v7476
    %v7478 = vand.u32 %v7477, 4294901760
    %7479 = vmatpush.msra.mxu0 %v7478
    %v7480 = vand.u32 %v6777, 4294901760
    %v7481 = vsub.f32 %v6777, %v7480
    %v7482 = vand.u32 %v7481, 4294901760
    %7483 = vmatpush.msra.mxu0 %v7482
    %v7484 = vand.u32 %v6776, 4294901760
    %v7485 = vsub.f32 %v6776, %v7484
    %v7486 = vand.u32 %v7485, 4294901760
    %7487 = vmatpush.msra.mxu0 %v7486
    %v7488 = vand.u32 %v3408, 4294901760
    %7489 = vmatmul.f32.gmra.mxu0 %v7488
    %v7490 = vpop.f32.mrf.mxu0
    %v7491 = vadd.f32 %v7416, %v7490
    %v7492 = vand.u32 %v3409, 4294901760
    %7493 = vmatmul.f32.gmra.mxu0 %v7492
    %v7494 = vpop.f32.mrf.mxu0
    %v7495 = vadd.f32 %v7422, %v7494
    %7496 = vdwg.mxu0
    %v7497 = vand.u32 %v6791, 4294901760
    %7498 = vmatpush.msra.mxu0 %v7497
    %v7499 = vand.u32 %v6790, 4294901760
    %7500 = vmatpush.msra.mxu0 %v7499
    %v7501 = vand.u32 %v6789, 4294901760
    %7502 = vmatpush.msra.mxu0 %v7501
    %v7503 = vand.u32 %v6788, 4294901760
    %7504 = vmatpush.msra.mxu0 %v7503
    %v7505 = vand.u32 %v6787, 4294901760
    %7506 = vmatpush.msra.mxu0 %v7505
    %v7507 = vand.u32 %v6786, 4294901760
    %7508 = vmatpush.msra.mxu0 %v7507
    %v7509 = vand.u32 %v6785, 4294901760
    %7510 = vmatpush.msra.mxu0 %v7509
    %v7511 = vand.u32 %v6784, 4294901760
    %7512 = vmatpush.msra.mxu0 %v7511
    %v7513 = vand.u32 %v6783, 4294901760
    %7514 = vmatpush.msra.mxu0 %v7513
    %v7515 = vand.u32 %v6782, 4294901760
    %7516 = vmatpush.msra.mxu0 %v7515
    %v7517 = vand.u32 %v6781, 4294901760
    %7518 = vmatpush.msra.mxu0 %v7517
    %v7519 = vand.u32 %v6780, 4294901760
    %7520 = vmatpush.msra.mxu0 %v7519
    %v7521 = vand.u32 %v6779, 4294901760
    %7522 = vmatpush.msra.mxu0 %v7521
    %v7523 = vand.u32 %v6778, 4294901760
    %7524 = vmatpush.msra.mxu0 %v7523
    %v7525 = vand.u32 %v6777, 4294901760
    %7526 = vmatpush.msra.mxu0 %v7525
    %v7527 = vand.u32 %v6776, 4294901760
    %7528 = vmatpush.msra.mxu0 %v7527
    %v7529 = vand.u32 %v3408, 4294901760
    %7530 = vmatmul.f32.gmra.mxu0 %v7529
    %v7531 = vpop.f32.mrf.mxu0
    %v7532 = vadd.f32 %v7491, %v7531
    %v7533 = vand.u32 %v3409, 4294901760
    %7534 = vmatmul.f32.gmra.mxu0 %v7533
    %v7535 = vpop.f32.mrf.mxu0
    %v7536 = vadd.f32 %v7495, %v7535
    %7537 = vdwg.mxu0
    %v7538 = vmin.f32 %v7532, 20.0
    %v7539 = vmin.f32 %v7536, 20.0
    %v7540 = vmul.f32 %v7538, 1.442695
    %v7541 = vpow.pop %v7540
    %v7542 = vmul.f32 %v7539, 1.442695
    %v7543 = vpow.pop %v7542
    %v7544 = vadd.f32 %v7541, 2.0
    %v7545 = vadd.f32 %v7543, 2.0
    %v7546 = vmul.f32 %v7541, %v7544
    %v7547 = vmul.f32 %v7543, %v7545
    %vm7548 = vcmp.gt.f32.partialorder %v7532, 20.0
    %vm7549 = vcmp.gt.f32.partialorder %v7536, 20.0
    %v7550 = vadd.f32 %v7546, 2.0
    %v7551 = vadd.f32 %v7547, 2.0
    %v7552 = vrcp.pop %v7550
    %v7553 = vmul.f32 %v7550, %v7552
    %v7554 = vsub.f32 1.0, %v7553
    %v7555 = vmul.f32 %v7552, %v7554
    %v7556 = vadd.f32 %v7552, %v7555
    %vm7557 = vweird.f32 %v7550
    %vm7558 = vweird.f32 %v7552
    %vm7559 = vmor %vm7557, %vm7558
    %v7560 = vsel %vm7559, %v7552, %v7556
    %v7561 = vand.u32 2147483647, %v7550
    %vm7562 = vcmp.eq.f32.partialorder %v7561, 8.507059e+37
    %v7563 = vand.u32 %v7550, 2147483648
    %v7564 = vor.u32 1.1754944e-38, %v7563
    %v7565 = vsel %vm7562, %v7564, %v7560
    %v7566 = vmul.f32 %v7546, %v7565
    %v7567 = vrcp.pop %v7551
    %v7568 = vmul.f32 %v7551, %v7567
    %v7569 = vsub.f32 1.0, %v7568
    %v7570 = vmul.f32 %v7567, %v7569
    %v7571 = vadd.f32 %v7567, %v7570
    %vm7572 = vweird.f32 %v7551
    %vm7573 = vweird.f32 %v7567
    %vm7574 = vmor %vm7572, %vm7573
    %v7575 = vsel %vm7574, %v7567, %v7571
    %v7576 = vand.u32 2147483647, %v7551
    %vm7577 = vcmp.eq.f32.partialorder %v7576, 8.507059e+37
    %v7578 = vand.u32 %v7551, 2147483648
    %v7579 = vor.u32 1.1754944e-38, %v7578
    %v7580 = vsel %vm7577, %v7579, %v7575
    %v7581 = vmul.f32 %v7547, %v7580
    %v7582 = vmul.f32 %v7532, %v7566
    %v7583 = vmul.f32 %v7536, %v7581
    %v7584 = vsel %vm7548, %v7532, %v7582
    %v7585 = vsel %vm7549, %v7536, %v7583
    %7586 = vst [vmem:[#allocation8] sm:$0xff] %v7584
    %7587 = vst [vmem:[#allocation8 + $0x8] sm:$0xff] %v7585
    %7588 = vst [vmem:[#allocation9] sm:$0xff] %v3408
    %7589 = vst [vmem:[#allocation9 + $0x8] sm:$0xff] %v3409
    // Predicated region
    $region26: #{tpu_custom_call.1} parent=1 // pred_check
      _
    $region27: #{tpu_custom_call.1} parent=1 // pred_check_branch
      %7591 = sbr.rel (0) target = $region29
    $region28: #{tpu_custom_call.1} parent=1 // pred_region
      %7593 = vsyncadd [#allocation4], 0
      %s7594 = sshll.u32 [#allocation8], 4
      %s7595 = int_to_ptr.vmem [resolvable:$true] %s7594
      %s7596 = sshll.u32 %s3, 4
      %s7597 = int_to_ptr.hbm [resolvable:$true] %s7596
      %7602 = dma.vmem_to_hbm [thread:$0]  %s7595, 256, %s7597, [#allocation4], 128, 128, 8
    $region29: #{tpu_custom_call.1} parent=1 // pred_fallthru
      _
    // Predicated region
    $region30: #{tpu_custom_call.1} parent=1 // pred_check
      _
    $region31: #{tpu_custom_call.1} parent=1 // pred_check_branch
      %7604 = sbr.rel (0) target = $region33
    $region32: #{tpu_custom_call.1} parent=1 // pred_region
      %7606 = vsyncadd [#allocation10], 0
      %s7607 = sshll.u32 [#allocation9], 4
      %s7608 = int_to_ptr.vmem [resolvable:$true] %s7607
      %s7609 = sshll.u32 %s4, 4
      %s7610 = int_to_ptr.hbm [resolvable:$true] %s7609
      %7615 = dma.vmem_to_hbm [thread:$0]  %s7608, 256, %s7610, [#allocation10], 128, 128, 8
    $region33: #{tpu_custom_call.1} parent=1 // pred_fallthru
      _
    // Predicated region
    $region34: #{tpu_custom_call.1} parent=1 // pred_check
      _
    $region35: #{tpu_custom_call.1} parent=1 // pred_check_branch
      %7617 = sbr.rel (0) target = $region37
    $region36: #{tpu_custom_call.1} parent=1 // pred_region
      %7619 = dma.done [#allocation4], 256
    $region37: #{tpu_custom_call.1} parent=1 // pred_fallthru
      _
    // Predicated region
    $region38: #{tpu_custom_call.1} parent=1 // pred_check
      _
    $region39: #{tpu_custom_call.1} parent=1 // pred_check_branch
      %7621 = sbr.rel (0) target = $region41
    $region40: #{tpu_custom_call.1} parent=1 // pred_region
      %7623 = dma.done [#allocation10], 256
    $region41: #{tpu_custom_call.1} parent=1 // pred_fallthru
      _
    %7624 = vsyncpa [#allocation3], 1
    %7625 = vsyncpa [#allocation6], 1
    %7626 = vsyncpa [#allocation4], 1
    %7627 = vsyncpa [#allocation10], 1

</llo_original>
